<compile_context>
chip_gen: v5e
topology: v5e:2x2
jax: 0.10.0
libtpu: 0.0.40
codegen_flags: <defaults>
</compile_context>

<pallas_src>
import functools

import jax
import jax.numpy as jnp
from jax.experimental import pallas as pl
from jax.experimental.pallas import tpu as pltpu

EPS = 1e-5
NEG_SLOPE = 0.2

C1 = 64      # conv1 output channels
C2 = 128     # conv2 output channels
S2 = 49      # conv2 output positions (7*7)
KP = 24      # padded conv1-patch width: 16 taps + 1 bias/validity gate + 7 zero pad
H1 = 1024    # fc1 width
NK = 7       # fc1 K-tiles (7 spatial positions x 128 channels each)


def _lrelu(x):
    return jnp.maximum(x, NEG_SLOPE * x)


# ------------------------------ fused kernel ------------------------------

def disc_kernel(p1_ref, w1_ref, w2_ref, b2_ref, g2_ref, be2_ref,
                fw1_ref, fb1_ref, fg_ref, fbe_ref, fw2_ref, fb2_ref,
                o_ref, y2_ref, acc_ref, *, batch):
    k = pl.program_id(0)
    nk = pl.num_programs(0)
    rows = S2 * batch

    # Step 0: full conv stack; conv2 output (post BN + LeakyReLU) stays resident in
    # VMEM scratch for the remaining grid steps.
    @pl.when(k == 0)
    def _():
        acc_ref[...] = jnp.zeros_like(acc_ref)
        y2 = jnp.zeros((rows, C2), jnp.float32)
        for t in range(16):                     # conv2 taps (kh, kw), statically unrolled
            # conv1 evaluated at every (conv2-position, tap) slot; the gate column adds
            # the conv1 bias for valid slots and zeroes conv2's zero-padding slots.
            y1t = _lrelu(jnp.dot(p1_ref[t], w1_ref[...],
                                 preferred_element_type=jnp.float32))     # [rows, 64]
            y2 = y2 + jnp.dot(y1t, w2_ref[t],
                              preferred_element_type=jnp.float32)         # [rows, 128]
        y2 = y2 + b2_ref[...]
        # BatchNorm2d: batch statistics over (B, H, W) per channel (= axis 0 here).
        mu = jnp.mean(y2, axis=0, keepdims=True)
        var = jnp.mean(jnp.square(y2 - mu), axis=0, keepdims=True)
        y2 = (y2 - mu) * jax.lax.rsqrt(var + EPS) * g2_ref[...] + be2_ref[...]
        y2_ref[...] = _lrelu(y2)

    # fc1 partial contraction for this K-tile (7 spatial positions x 128 channels),
    # bf16 x bf16 on the MXU with f32 accumulation.
    part = jnp.zeros((batch, H1), jnp.float32)
    for s in range(7):
        row = pl.multiple_of((k * 7 + s) * batch, batch)
        x_sb = y2_ref[pl.ds(row, batch), :].astype(jnp.bfloat16)          # [B, 128]
        part = part + jnp.dot(x_sb, fw1_ref[s],
                              preferred_element_type=jnp.float32)         # [B, 1024]
    acc_ref[...] += part

    # Last step: fc1 bias + BatchNorm1d + LeakyReLU + fc2 + mean over the batch.
    @pl.when(k == nk - 1)
    def _():
        h = acc_ref[...] + fb1_ref[...]
        mu = jnp.mean(h, axis=0, keepdims=True)
        var = jnp.mean(jnp.square(h - mu), axis=0, keepdims=True)
        h = (h - mu) * jax.lax.rsqrt(var + EPS) * fg_ref[...] + fbe_ref[...]
        h = _lrelu(h)
        out = jnp.sum(h * fw2_ref[...], axis=1, keepdims=True) + fb2_ref[...]   # [B, 1]
        o_ref[...] = jnp.mean(out, axis=0, keepdims=True)


def discriminator_fused(p1dup, params, *, batch):
    rows = S2 * batch
    kernel = functools.partial(disc_kernel, batch=batch)
    out = pl.pallas_call(
        kernel,
        out_shape=jax.ShapeDtypeStruct((1, 1), jnp.float32),
        grid_spec=pltpu.PrefetchScalarGridSpec(
            num_scalar_prefetch=0,
            grid=(NK,),
            in_specs=[
                pl.BlockSpec((16, rows, KP), lambda k: (0, 0, 0)),   # conv1 patches (dup)
                pl.BlockSpec((KP, C1), lambda k: (0, 0)),            # conv1 W | bias
                pl.BlockSpec((16, C1, C2), lambda k: (0, 0, 0)),     # conv2 W
                pl.BlockSpec((1, C2), lambda k: (0, 0)),             # conv2 bias
                pl.BlockSpec((1, C2), lambda k: (0, 0)),             # bn2 gamma
                pl.BlockSpec((1, C2), lambda k: (0, 0)),             # bn2 beta
                pl.BlockSpec((7, C2, H1), lambda k: (k, 0, 0)),      # fc1 W (bf16, K-tiled)
                pl.BlockSpec((1, H1), lambda k: (0, 0)),             # fc1 bias
                pl.BlockSpec((1, H1), lambda k: (0, 0)),             # bn1 gamma
                pl.BlockSpec((1, H1), lambda k: (0, 0)),             # bn1 beta
                pl.BlockSpec((1, H1), lambda k: (0, 0)),             # fc2 W
                pl.BlockSpec((1, 1), lambda k: (0, 0)),              # fc2 bias
            ],
            out_specs=pl.BlockSpec((1, 1), lambda k: (0, 0)),
            scratch_shapes=[pltpu.VMEM((rows, C2), jnp.float32),     # conv2 output (resident)
                            pltpu.VMEM((batch, H1), jnp.float32)],   # fc1 accumulator
        ),
        compiler_params=pltpu.CompilerParams(
            dimension_semantics=("arbitrary",)),
    )(p1dup, params["w1e"], params["w2c"], params["b2c"], params["g2"],
      params["be2"], params["fw1"], params["fb1"], params["fg"],
      params["fbe"], params["fw2"], params["fb2"])
    return out.reshape(1)


# ------------------------- host-side glue (tiny, on raw input only) -------------------------

def build_patches(x):
    """x: [B,1,28,28] NCHW -> duplicated conv1 patches [16, 49*B, 24].

    Leading axis t = kh*4+kw is the conv2 tap; rows are (s, b) with s = oy*7+ox over conv2
    output positions.  Columns 0..15 hold the conv1 im2col patch at conv1-output position
    (2*oy+kh-1, 2*ox+kw-1); column 16 is a 1/0 validity gate (feeds the conv1 bias and zeroes
    conv2's zero-padding taps); columns 17..23 are zero padding.
    """
    b = x.shape[0]
    xp = jnp.pad(x[:, 0], ((0, 0), (1, 1), (1, 1)))                  # [B, 30, 30]
    taps = [xp[:, i:i + 28:2, j:j + 28:2] for i in range(4) for j in range(4)]
    p1 = jnp.stack(taps, axis=-1)                                     # [B, 14, 14, 16]
    idx = 2 * jnp.arange(7)[:, None] + jnp.arange(4)[None, :] - 1     # [7(o), 4(k)]
    valid = ((idx >= 0) & (idx < 14)).astype(x.dtype)
    idxc = jnp.clip(idx, 0, 13)
    g = p1[:, idxc, :, :]                                             # [B,7,4,14,16]
    g = g[:, :, :, idxc, :]                                           # [B,7,4,7,4,16]
    vt = valid.T                                                      # [4(k), 7(o)]
    gate = vt[:, None, :, None] * vt[None, :, None, :]                # [4,4,7,7] (kh,kw,oy,ox)
    g = jnp.transpose(g, (2, 4, 1, 3, 0, 5)) * gate[..., None, None]  # [4,4,7,7,B,16]
    gate = jnp.broadcast_to(gate[..., None, None], g.shape[:-1] + (1,))
    zpad = jnp.zeros(g.shape[:-1] + (KP - 17,), x.dtype)
    return jnp.concatenate([g, gate, zpad], axis=-1).reshape(16, S2 * b, KP)


def init_raw_params(key):
    """Raw parameters in the PyTorch layouts, initialized as in weight_init()."""
    ks = jax.random.split(key, 4)
    std = 0.02
    return dict(
        w1=std * jax.random.normal(ks[0], (C1, 1, 4, 4), jnp.float32),
        b1=jnp.zeros((C1,), jnp.float32),
        w2=std * jax.random.normal(ks[1], (C2, C1, 4, 4), jnp.float32),
        b2=jnp.zeros((C2,), jnp.float32),
        g2=jnp.ones((C2,), jnp.float32),
        be2=jnp.zeros((C2,), jnp.float32),
        fw1=std * jax.random.normal(ks[2], (H1, C2 * S2), jnp.float32),
        fb1=jnp.zeros((H1,), jnp.float32),
        fg=jnp.ones((H1,), jnp.float32),
        fbe=jnp.zeros((H1,), jnp.float32),
        fw2=std * jax.random.normal(ks[3], (1, H1), jnp.float32),
        fb2=jnp.zeros((1,), jnp.float32),
    )


def pack_params(raw):
    """One-time repack into kernel-friendly layouts (outside the hot path)."""
    # conv1: [16 taps, 64] with the bias folded in as row 16, zero-padded to 24 rows.
    w1m = jnp.transpose(raw["w1"].reshape(C1, 16))                    # [16, 64] (kh,kw)
    w1e = jnp.zeros((KP, C1), jnp.float32).at[:16].set(w1m).at[16].set(raw["b1"])
    # conv2: [tap=(kh,kw), cin, cout]
    w2c = jnp.transpose(raw["w2"], (2, 3, 1, 0)).reshape(16, C1, C2)
    # fc1: torch [1024, c*49+s] -> [s, c, 1024], bf16 (halves the dominant HBM stream).
    fw1 = jnp.transpose(raw["fw1"].reshape(H1, C2, S2), (2, 1, 0)).astype(jnp.bfloat16)
    return dict(
        w1e=w1e, w2c=w2c,
        b2c=raw["b2"].reshape(1, C2), g2=raw["g2"].reshape(1, C2),
        be2=raw["be2"].reshape(1, C2),
        fw1=fw1, fb1=raw["fb1"].reshape(1, H1), fg=raw["fg"].reshape(1, H1),
        fbe=raw["fbe"].reshape(1, H1),
        fw2=raw["fw2"].reshape(1, H1), fb2=raw["fb2"].reshape(1, 1),
    )


@jax.jit
def discriminator_forward(x, params):
    return discriminator_fused(build_patches(x), params, batch=x.shape[0])


@jax.jit
def reference_forward(x, raw):
    """Pure-JAX reference matching the PyTorch module (training-mode BN)."""
    dn = ("NCHW", "OIHW", "NCHW")
    y = jax.lax.conv_general_dilated(x, raw["w1"], (2, 2), [(1, 1), (1, 1)],
                                     dimension_numbers=dn)
    y = y + raw["b1"].reshape(1, -1, 1, 1)
    y = jnp.where(y > 0, y, NEG_SLOPE * y)
    y = jax.lax.conv_general_dilated(y, raw["w2"], (2, 2), [(1, 1), (1, 1)],
                                     dimension_numbers=dn)
    y = y + raw["b2"].reshape(1, -1, 1, 1)
    mu = jnp.mean(y, axis=(0, 2, 3), keepdims=True)
    var = jnp.mean((y - mu) ** 2, axis=(0, 2, 3), keepdims=True)
    y = (y - mu) * jax.lax.rsqrt(var + EPS)
    y = y * raw["g2"].reshape(1, -1, 1, 1) + raw["be2"].reshape(1, -1, 1, 1)
    y = jnp.where(y > 0, y, NEG_SLOPE * y)
    f = y.reshape(x.shape[0], C2 * S2)
    h = f @ raw["fw1"].T + raw["fb1"]
    mu = jnp.mean(h, axis=0, keepdims=True)
    var = jnp.mean((h - mu) ** 2, axis=0, keepdims=True)
    h = (h - mu) * jax.lax.rsqrt(var + EPS) * raw["fg"] + raw["fbe"]
    h = jnp.where(h > 0, h, NEG_SLOPE * h)
    out = h @ raw["fw2"].T + raw["fb2"]
    return jnp.mean(out, axis=0).reshape(1)


if __name__ == "__main__":
    key = jax.random.PRNGKey(0)
    pkey, xkey = jax.random.split(key)
    raw = init_raw_params(pkey)
    params = pack_params(raw)
    # Spatial must be 28x28 (fc1 expects 128*7*7); small batch of 4 (BN needs >1 sample).
    x = jax.random.normal(xkey, (4, 1, 28, 28), jnp.float32)

    out = discriminator_forward(x, params)
    jax.block_until_ready(out)
    assert out.shape == (1,)

    ref = reference_forward(x, raw)
    err = jnp.max(jnp.abs(out - ref))
    # fc1 weights/activations are bf16 inside the kernel -> allow a small numeric gap.
    assert err <= 2e-2 + 5e-2 * jnp.max(jnp.abs(ref)), (out, ref, err)
    print("KERNEL_OK")
</pallas_src>

<mosaic_0001>
module attributes {stable_mosaic.version = 11 : i64} {
  func.func @disc_kernel(%arg0: i32, %arg1: memref<16x196x24xf32, #tpu.memory_space<vmem>>, %arg2: memref<24x64xf32, #tpu.memory_space<vmem>>, %arg3: memref<16x64x128xf32, #tpu.memory_space<vmem>>, %arg4: memref<1x128xf32, #tpu.memory_space<vmem>>, %arg5: memref<1x128xf32, #tpu.memory_space<vmem>>, %arg6: memref<1x128xf32, #tpu.memory_space<vmem>>, %arg7: memref<7x128x1024xbf16, #tpu.memory_space<vmem>>, %arg8: memref<1x1024xf32, #tpu.memory_space<vmem>>, %arg9: memref<1x1024xf32, #tpu.memory_space<vmem>>, %arg10: memref<1x1024xf32, #tpu.memory_space<vmem>>, %arg11: memref<1x1024xf32, #tpu.memory_space<vmem>>, %arg12: memref<1x1xf32, #tpu.memory_space<vmem>>, %arg13: memref<1x1xf32, #tpu.memory_space<vmem>>, %arg14: memref<196x128xf32, #tpu.memory_space<vmem>>, %arg15: memref<4x1024xf32, #tpu.memory_space<vmem>>) attributes {dimension_semantics = [#tpu.dimension_semantics<arbitrary>], iteration_bounds = array<i64: 7>, scalar_prefetch = 0 : i64, scratch_operands = 2 : i64, tpu.core_type = #tpu.core_type<tc>, window_params = [{pipeline_mode = #tpu.pipeline_mode<synchronous>, transform_indices = @transform_0, window_bounds = array<i64: 16, 196, 24>}, {pipeline_mode = #tpu.pipeline_mode<synchronous>, transform_indices = @transform_1, window_bounds = array<i64: 24, 64>}, {pipeline_mode = #tpu.pipeline_mode<synchronous>, transform_indices = @transform_2, window_bounds = array<i64: 16, 64, 128>}, {pipeline_mode = #tpu.pipeline_mode<synchronous>, transform_indices = @transform_3, window_bounds = array<i64: 1, 128>}, {pipeline_mode = #tpu.pipeline_mode<synchronous>, transform_indices = @transform_4, window_bounds = array<i64: 1, 128>}, {pipeline_mode = #tpu.pipeline_mode<synchronous>, transform_indices = @transform_5, window_bounds = array<i64: 1, 128>}, {transform_indices = @transform_6, window_bounds = array<i64: 7, 128, 1024>}, {pipeline_mode = #tpu.pipeline_mode<synchronous>, transform_indices = @transform_7, window_bounds = array<i64: 1, 1024>}, {pipeline_mode = #tpu.pipeline_mode<synchronous>, transform_indices = @transform_8, window_bounds = array<i64: 1, 1024>}, {pipeline_mode = #tpu.pipeline_mode<synchronous>, transform_indices = @transform_9, window_bounds = array<i64: 1, 1024>}, {pipeline_mode = #tpu.pipeline_mode<synchronous>, transform_indices = @transform_10, window_bounds = array<i64: 1, 1024>}, {pipeline_mode = #tpu.pipeline_mode<synchronous>, transform_indices = @transform_11, window_bounds = array<i64: 1, 1>}, {pipeline_mode = #tpu.pipeline_mode<synchronous>, transform_indices = @transform_12, window_bounds = array<i64: 1, 1>}]} {
    %c0_i32 = arith.constant 0 : i32
    %0 = arith.cmpi eq, %arg0, %c0_i32 : i32
    %1 = arith.extui %0 : i1 to i32
    %c0_i32_0 = arith.constant 0 : i32
    %2 = arith.cmpi ne, %1, %c0_i32_0 : i32
    scf.if %2 {
      %cst_49 = arith.constant 0.000000e+00 : f32
      %87 = vector.broadcast %cst_49 : f32 to vector<4x1024xf32>
      %c0_50 = arith.constant 0 : index
      %c0_51 = arith.constant 0 : index
      %88 = vector.load %arg15[%c0_50, %c0_51] : memref<4x1024xf32, #tpu.memory_space<vmem>>, vector<4x1024xf32>
      tpu.vector_store %arg15[%c0_50, %c0_51], %87 {strides = array<i32>} : memref<4x1024xf32, #tpu.memory_space<vmem>>, vector<4x1024xf32>,
      %cst_52 = arith.constant 0.000000e+00 : f32
      %89 = vector.broadcast %cst_52 : f32 to vector<196x128xf32>
      %c0_53 = arith.constant 0 : index
      %c0_54 = arith.constant 0 : index
      %c0_55 = arith.constant 0 : index
      %90 = vector.load %arg1[%c0_53, %c0_54, %c0_55] : memref<16x196x24xf32, #tpu.memory_space<vmem>>, vector<1x196x24xf32>
      %91 = vector.shape_cast %90 : vector<1x196x24xf32> to vector<196x24xf32>
      %c0_56 = arith.constant 0 : index
      %c0_57 = arith.constant 0 : index
      %92 = vector.load %arg2[%c0_56, %c0_57] : memref<24x64xf32, #tpu.memory_space<vmem>>, vector<24x64xf32>
      %cst_58 = arith.constant dense<0.000000e+00> : vector<196x64xf32>
      %93 = tpu.matmul %91, %92, %cst_58 {dimension_numbers = #tpu.dot_dimension_numbers<[1], [0], [0], [1], [0, 0, 1, 1], [], []>} : vector<196x24xf32>, vector<24x64xf32>, vector<196x64xf32> -> vector<196x64xf32>
      %cst_59 = arith.constant 2.000000e-01 : f32
      %94 = vector.broadcast %cst_59 : f32 to vector<196x64xf32>
      %95 = arith.mulf %94, %93 : vector<196x64xf32>
      %96 = arith.maximumf %93, %95 : vector<196x64xf32>
      %c0_60 = arith.constant 0 : index
      %c0_61 = arith.constant 0 : index
      %c0_62 = arith.constant 0 : index
      %97 = vector.load %arg3[%c0_60, %c0_61, %c0_62] : memref<16x64x128xf32, #tpu.memory_space<vmem>>, vector<1x64x128xf32>
      %98 = vector.shape_cast %97 : vector<1x64x128xf32> to vector<64x128xf32>
      %cst_63 = arith.constant dense<0.000000e+00> : vector<196x128xf32>
      %99 = tpu.matmul %96, %98, %cst_63 {dimension_numbers = #tpu.dot_dimension_numbers<[1], [0], [0], [1], [0, 0, 1, 1], [], []>} : vector<196x64xf32>, vector<64x128xf32>, vector<196x128xf32> -> vector<196x128xf32>
      %100 = arith.addf %89, %99 : vector<196x128xf32>
      %c1_64 = arith.constant 1 : index
      %c0_65 = arith.constant 0 : index
      %c0_66 = arith.constant 0 : index
      %101 = vector.load %arg1[%c1_64, %c0_65, %c0_66] : memref<16x196x24xf32, #tpu.memory_space<vmem>>, vector<1x196x24xf32>
      %102 = vector.shape_cast %101 : vector<1x196x24xf32> to vector<196x24xf32>
      %c0_67 = arith.constant 0 : index
      %c0_68 = arith.constant 0 : index
      %103 = vector.load %arg2[%c0_67, %c0_68] : memref<24x64xf32, #tpu.memory_space<vmem>>, vector<24x64xf32>
      %cst_69 = arith.constant dense<0.000000e+00> : vector<196x64xf32>
      %104 = tpu.matmul %102, %103, %cst_69 {dimension_numbers = #tpu.dot_dimension_numbers<[1], [0], [0], [1], [0, 0, 1, 1], [], []>} : vector<196x24xf32>, vector<24x64xf32>, vector<196x64xf32> -> vector<196x64xf32>
      %cst_70 = arith.constant 2.000000e-01 : f32
      %105 = vector.broadcast %cst_70 : f32 to vector<196x64xf32>
      %106 = arith.mulf %105, %104 : vector<196x64xf32>
      %107 = arith.maximumf %104, %106 : vector<196x64xf32>
      %c1_71 = arith.constant 1 : index
      %c0_72 = arith.constant 0 : index
      %c0_73 = arith.constant 0 : index
      %108 = vector.load %arg3[%c1_71, %c0_72, %c0_73] : memref<16x64x128xf32, #tpu.memory_space<vmem>>, vector<1x64x128xf32>
      %109 = vector.shape_cast %108 : vector<1x64x128xf32> to vector<64x128xf32>
      %cst_74 = arith.constant dense<0.000000e+00> : vector<196x128xf32>
      %110 = tpu.matmul %107, %109, %cst_74 {dimension_numbers = #tpu.dot_dimension_numbers<[1], [0], [0], [1], [0, 0, 1, 1], [], []>} : vector<196x64xf32>, vector<64x128xf32>, vector<196x128xf32> -> vector<196x128xf32>
      %111 = arith.addf %100, %110 : vector<196x128xf32>
      %c2_75 = arith.constant 2 : index
      %c0_76 = arith.constant 0 : index
      %c0_77 = arith.constant 0 : index
      %112 = vector.load %arg1[%c2_75, %c0_76, %c0_77] : memref<16x196x24xf32, #tpu.memory_space<vmem>>, vector<1x196x24xf32>
      %113 = vector.shape_cast %112 : vector<1x196x24xf32> to vector<196x24xf32>
      %c0_78 = arith.constant 0 : index
      %c0_79 = arith.constant 0 : index
      %114 = vector.load %arg2[%c0_78, %c0_79] : memref<24x64xf32, #tpu.memory_space<vmem>>, vector<24x64xf32>
      %cst_80 = arith.constant dense<0.000000e+00> : vector<196x64xf32>
      %115 = tpu.matmul %113, %114, %cst_80 {dimension_numbers = #tpu.dot_dimension_numbers<[1], [0], [0], [1], [0, 0, 1, 1], [], []>} : vector<196x24xf32>, vector<24x64xf32>, vector<196x64xf32> -> vector<196x64xf32>
      %cst_81 = arith.constant 2.000000e-01 : f32
      %116 = vector.broadcast %cst_81 : f32 to vector<196x64xf32>
      %117 = arith.mulf %116, %115 : vector<196x64xf32>
      %118 = arith.maximumf %115, %117 : vector<196x64xf32>
      %c2_82 = arith.constant 2 : index
      %c0_83 = arith.constant 0 : index
      %c0_84 = arith.constant 0 : index
      %119 = vector.load %arg3[%c2_82, %c0_83, %c0_84] : memref<16x64x128xf32, #tpu.memory_space<vmem>>, vector<1x64x128xf32>
      %120 = vector.shape_cast %119 : vector<1x64x128xf32> to vector<64x128xf32>
      %cst_85 = arith.constant dense<0.000000e+00> : vector<196x128xf32>
      %121 = tpu.matmul %118, %120, %cst_85 {dimension_numbers = #tpu.dot_dimension_numbers<[1], [0], [0], [1], [0, 0, 1, 1], [], []>} : vector<196x64xf32>, vector<64x128xf32>, vector<196x128xf32> -> vector<196x128xf32>
      %122 = arith.addf %111, %121 : vector<196x128xf32>
      %c3_86 = arith.constant 3 : index
      %c0_87 = arith.constant 0 : index
      %c0_88 = arith.constant 0 : index
      %123 = vector.load %arg1[%c3_86, %c0_87, %c0_88] : memref<16x196x24xf32, #tpu.memory_space<vmem>>, vector<1x196x24xf32>
      %124 = vector.shape_cast %123 : vector<1x196x24xf32> to vector<196x24xf32>
      %c0_89 = arith.constant 0 : index
      %c0_90 = arith.constant 0 : index
      %125 = vector.load %arg2[%c0_89, %c0_90] : memref<24x64xf32, #tpu.memory_space<vmem>>, vector<24x64xf32>
      %cst_91 = arith.constant dense<0.000000e+00> : vector<196x64xf32>
      %126 = tpu.matmul %124, %125, %cst_91 {dimension_numbers = #tpu.dot_dimension_numbers<[1], [0], [0], [1], [0, 0, 1, 1], [], []>} : vector<196x24xf32>, vector<24x64xf32>, vector<196x64xf32> -> vector<196x64xf32>
      %cst_92 = arith.constant 2.000000e-01 : f32
      %127 = vector.broadcast %cst_92 : f32 to vector<196x64xf32>
      %128 = arith.mulf %127, %126 : vector<196x64xf32>
      %129 = arith.maximumf %126, %128 : vector<196x64xf32>
      %c3_93 = arith.constant 3 : index
      %c0_94 = arith.constant 0 : index
      %c0_95 = arith.constant 0 : index
      %130 = vector.load %arg3[%c3_93, %c0_94, %c0_95] : memref<16x64x128xf32, #tpu.memory_space<vmem>>, vector<1x64x128xf32>
      %131 = vector.shape_cast %130 : vector<1x64x128xf32> to vector<64x128xf32>
      %cst_96 = arith.constant dense<0.000000e+00> : vector<196x128xf32>
      %132 = tpu.matmul %129, %131, %cst_96 {dimension_numbers = #tpu.dot_dimension_numbers<[1], [0], [0], [1], [0, 0, 1, 1], [], []>} : vector<196x64xf32>, vector<64x128xf32>, vector<196x128xf32> -> vector<196x128xf32>
      %133 = arith.addf %122, %132 : vector<196x128xf32>
      %c4_97 = arith.constant 4 : index
      %c0_98 = arith.constant 0 : index
      %c0_99 = arith.constant 0 : index
      %134 = vector.load %arg1[%c4_97, %c0_98, %c0_99] : memref<16x196x24xf32, #tpu.memory_space<vmem>>, vector<1x196x24xf32>
      %135 = vector.shape_cast %134 : vector<1x196x24xf32> to vector<196x24xf32>
      %c0_100 = arith.constant 0 : index
      %c0_101 = arith.constant 0 : index
      %136 = vector.load %arg2[%c0_100, %c0_101] : memref<24x64xf32, #tpu.memory_space<vmem>>, vector<24x64xf32>
      %cst_102 = arith.constant dense<0.000000e+00> : vector<196x64xf32>
      %137 = tpu.matmul %135, %136, %cst_102 {dimension_numbers = #tpu.dot_dimension_numbers<[1], [0], [0], [1], [0, 0, 1, 1], [], []>} : vector<196x24xf32>, vector<24x64xf32>, vector<196x64xf32> -> vector<196x64xf32>
      %cst_103 = arith.constant 2.000000e-01 : f32
      %138 = vector.broadcast %cst_103 : f32 to vector<196x64xf32>
      %139 = arith.mulf %138, %137 : vector<196x64xf32>
      %140 = arith.maximumf %137, %139 : vector<196x64xf32>
      %c4_104 = arith.constant 4 : index
      %c0_105 = arith.constant 0 : index
      %c0_106 = arith.constant 0 : index
      %141 = vector.load %arg3[%c4_104, %c0_105, %c0_106] : memref<16x64x128xf32, #tpu.memory_space<vmem>>, vector<1x64x128xf32>
      %142 = vector.shape_cast %141 : vector<1x64x128xf32> to vector<64x128xf32>
      %cst_107 = arith.constant dense<0.000000e+00> : vector<196x128xf32>
      %143 = tpu.matmul %140, %142, %cst_107 {dimension_numbers = #tpu.dot_dimension_numbers<[1], [0], [0], [1], [0, 0, 1, 1], [], []>} : vector<196x64xf32>, vector<64x128xf32>, vector<196x128xf32> -> vector<196x128xf32>
      %144 = arith.addf %133, %143 : vector<196x128xf32>
      %c5_108 = arith.constant 5 : index
      %c0_109 = arith.constant 0 : index
      %c0_110 = arith.constant 0 : index
      %145 = vector.load %arg1[%c5_108, %c0_109, %c0_110] : memref<16x196x24xf32, #tpu.memory_space<vmem>>, vector<1x196x24xf32>
      %146 = vector.shape_cast %145 : vector<1x196x24xf32> to vector<196x24xf32>
      %c0_111 = arith.constant 0 : index
      %c0_112 = arith.constant 0 : index
      %147 = vector.load %arg2[%c0_111, %c0_112] : memref<24x64xf32, #tpu.memory_space<vmem>>, vector<24x64xf32>
      %cst_113 = arith.constant dense<0.000000e+00> : vector<196x64xf32>
      %148 = tpu.matmul %146, %147, %cst_113 {dimension_numbers = #tpu.dot_dimension_numbers<[1], [0], [0], [1], [0, 0, 1, 1], [], []>} : vector<196x24xf32>, vector<24x64xf32>, vector<196x64xf32> -> vector<196x64xf32>
      %cst_114 = arith.constant 2.000000e-01 : f32
      %149 = vector.broadcast %cst_114 : f32 to vector<196x64xf32>
      %150 = arith.mulf %149, %148 : vector<196x64xf32>
      %151 = arith.maximumf %148, %150 : vector<196x64xf32>
      %c5_115 = arith.constant 5 : index
      %c0_116 = arith.constant 0 : index
      %c0_117 = arith.constant 0 : index
      %152 = vector.load %arg3[%c5_115, %c0_116, %c0_117] : memref<16x64x128xf32, #tpu.memory_space<vmem>>, vector<1x64x128xf32>
      %153 = vector.shape_cast %152 : vector<1x64x128xf32> to vector<64x128xf32>
      %cst_118 = arith.constant dense<0.000000e+00> : vector<196x128xf32>
      %154 = tpu.matmul %151, %153, %cst_118 {dimension_numbers = #tpu.dot_dimension_numbers<[1], [0], [0], [1], [0, 0, 1, 1], [], []>} : vector<196x64xf32>, vector<64x128xf32>, vector<196x128xf32> -> vector<196x128xf32>
      %155 = arith.addf %144, %154 : vector<196x128xf32>
      %c6_119 = arith.constant 6 : index
      %c0_120 = arith.constant 0 : index
      %c0_121 = arith.constant 0 : index
      %156 = vector.load %arg1[%c6_119, %c0_120, %c0_121] : memref<16x196x24xf32, #tpu.memory_space<vmem>>, vector<1x196x24xf32>
      %157 = vector.shape_cast %156 : vector<1x196x24xf32> to vector<196x24xf32>
      %c0_122 = arith.constant 0 : index
      %c0_123 = arith.constant 0 : index
      %158 = vector.load %arg2[%c0_122, %c0_123] : memref<24x64xf32, #tpu.memory_space<vmem>>, vector<24x64xf32>
      %cst_124 = arith.constant dense<0.000000e+00> : vector<196x64xf32>
      %159 = tpu.matmul %157, %158, %cst_124 {dimension_numbers = #tpu.dot_dimension_numbers<[1], [0], [0], [1], [0, 0, 1, 1], [], []>} : vector<196x24xf32>, vector<24x64xf32>, vector<196x64xf32> -> vector<196x64xf32>
      %cst_125 = arith.constant 2.000000e-01 : f32
      %160 = vector.broadcast %cst_125 : f32 to vector<196x64xf32>
      %161 = arith.mulf %160, %159 : vector<196x64xf32>
      %162 = arith.maximumf %159, %161 : vector<196x64xf32>
      %c6_126 = arith.constant 6 : index
      %c0_127 = arith.constant 0 : index
      %c0_128 = arith.constant 0 : index
      %163 = vector.load %arg3[%c6_126, %c0_127, %c0_128] : memref<16x64x128xf32, #tpu.memory_space<vmem>>, vector<1x64x128xf32>
      %164 = vector.shape_cast %163 : vector<1x64x128xf32> to vector<64x128xf32>
      %cst_129 = arith.constant dense<0.000000e+00> : vector<196x128xf32>
      %165 = tpu.matmul %162, %164, %cst_129 {dimension_numbers = #tpu.dot_dimension_numbers<[1], [0], [0], [1], [0, 0, 1, 1], [], []>} : vector<196x64xf32>, vector<64x128xf32>, vector<196x128xf32> -> vector<196x128xf32>
      %166 = arith.addf %155, %165 : vector<196x128xf32>
      %c7 = arith.constant 7 : index
      %c0_130 = arith.constant 0 : index
      %c0_131 = arith.constant 0 : index
      %167 = vector.load %arg1[%c7, %c0_130, %c0_131] : memref<16x196x24xf32, #tpu.memory_space<vmem>>, vector<1x196x24xf32>
      %168 = vector.shape_cast %167 : vector<1x196x24xf32> to vector<196x24xf32>
      %c0_132 = arith.constant 0 : index
      %c0_133 = arith.constant 0 : index
      %169 = vector.load %arg2[%c0_132, %c0_133] : memref<24x64xf32, #tpu.memory_space<vmem>>, vector<24x64xf32>
      %cst_134 = arith.constant dense<0.000000e+00> : vector<196x64xf32>
      %170 = tpu.matmul %168, %169, %cst_134 {dimension_numbers = #tpu.dot_dimension_numbers<[1], [0], [0], [1], [0, 0, 1, 1], [], []>} : vector<196x24xf32>, vector<24x64xf32>, vector<196x64xf32> -> vector<196x64xf32>
      %cst_135 = arith.constant 2.000000e-01 : f32
      %171 = vector.broadcast %cst_135 : f32 to vector<196x64xf32>
      %172 = arith.mulf %171, %170 : vector<196x64xf32>
      %173 = arith.maximumf %170, %172 : vector<196x64xf32>
      %c7_136 = arith.constant 7 : index
      %c0_137 = arith.constant 0 : index
      %c0_138 = arith.constant 0 : index
      %174 = vector.load %arg3[%c7_136, %c0_137, %c0_138] : memref<16x64x128xf32, #tpu.memory_space<vmem>>, vector<1x64x128xf32>
      %175 = vector.shape_cast %174 : vector<1x64x128xf32> to vector<64x128xf32>
      %cst_139 = arith.constant dense<0.000000e+00> : vector<196x128xf32>
      %176 = tpu.matmul %173, %175, %cst_139 {dimension_numbers = #tpu.dot_dimension_numbers<[1], [0], [0], [1], [0, 0, 1, 1], [], []>} : vector<196x64xf32>, vector<64x128xf32>, vector<196x128xf32> -> vector<196x128xf32>
      %177 = arith.addf %166, %176 : vector<196x128xf32>
      %c8 = arith.constant 8 : index
      %c0_140 = arith.constant 0 : index
      %c0_141 = arith.constant 0 : index
      %178 = vector.load %arg1[%c8, %c0_140, %c0_141] : memref<16x196x24xf32, #tpu.memory_space<vmem>>, vector<1x196x24xf32>
      %179 = vector.shape_cast %178 : vector<1x196x24xf32> to vector<196x24xf32>
      %c0_142 = arith.constant 0 : index
      %c0_143 = arith.constant 0 : index
      %180 = vector.load %arg2[%c0_142, %c0_143] : memref<24x64xf32, #tpu.memory_space<vmem>>, vector<24x64xf32>
      %cst_144 = arith.constant dense<0.000000e+00> : vector<196x64xf32>
      %181 = tpu.matmul %179, %180, %cst_144 {dimension_numbers = #tpu.dot_dimension_numbers<[1], [0], [0], [1], [0, 0, 1, 1], [], []>} : vector<196x24xf32>, vector<24x64xf32>, vector<196x64xf32> -> vector<196x64xf32>
      %cst_145 = arith.constant 2.000000e-01 : f32
      %182 = vector.broadcast %cst_145 : f32 to vector<196x64xf32>
      %183 = arith.mulf %182, %181 : vector<196x64xf32>
      %184 = arith.maximumf %181, %183 : vector<196x64xf32>
      %c8_146 = arith.constant 8 : index
      %c0_147 = arith.constant 0 : index
      %c0_148 = arith.constant 0 : index
      %185 = vector.load %arg3[%c8_146, %c0_147, %c0_148] : memref<16x64x128xf32, #tpu.memory_space<vmem>>, vector<1x64x128xf32>
      %186 = vector.shape_cast %185 : vector<1x64x128xf32> to vector<64x128xf32>
      %cst_149 = arith.constant dense<0.000000e+00> : vector<196x128xf32>
      %187 = tpu.matmul %184, %186, %cst_149 {dimension_numbers = #tpu.dot_dimension_numbers<[1], [0], [0], [1], [0, 0, 1, 1], [], []>} : vector<196x64xf32>, vector<64x128xf32>, vector<196x128xf32> -> vector<196x128xf32>
      %188 = arith.addf %177, %187 : vector<196x128xf32>
      %c9 = arith.constant 9 : index
      %c0_150 = arith.constant 0 : index
      %c0_151 = arith.constant 0 : index
      %189 = vector.load %arg1[%c9, %c0_150, %c0_151] : memref<16x196x24xf32, #tpu.memory_space<vmem>>, vector<1x196x24xf32>
      %190 = vector.shape_cast %189 : vector<1x196x24xf32> to vector<196x24xf32>
      %c0_152 = arith.constant 0 : index
      %c0_153 = arith.constant 0 : index
      %191 = vector.load %arg2[%c0_152, %c0_153] : memref<24x64xf32, #tpu.memory_space<vmem>>, vector<24x64xf32>
      %cst_154 = arith.constant dense<0.000000e+00> : vector<196x64xf32>
      %192 = tpu.matmul %190, %191, %cst_154 {dimension_numbers = #tpu.dot_dimension_numbers<[1], [0], [0], [1], [0, 0, 1, 1], [], []>} : vector<196x24xf32>, vector<24x64xf32>, vector<196x64xf32> -> vector<196x64xf32>
      %cst_155 = arith.constant 2.000000e-01 : f32
      %193 = vector.broadcast %cst_155 : f32 to vector<196x64xf32>
      %194 = arith.mulf %193, %192 : vector<196x64xf32>
      %195 = arith.maximumf %192, %194 : vector<196x64xf32>
      %c9_156 = arith.constant 9 : index
      %c0_157 = arith.constant 0 : index
      %c0_158 = arith.constant 0 : index
      %196 = vector.load %arg3[%c9_156, %c0_157, %c0_158] : memref<16x64x128xf32, #tpu.memory_space<vmem>>, vector<1x64x128xf32>
      %197 = vector.shape_cast %196 : vector<1x64x128xf32> to vector<64x128xf32>
      %cst_159 = arith.constant dense<0.000000e+00> : vector<196x128xf32>
      %198 = tpu.matmul %195, %197, %cst_159 {dimension_numbers = #tpu.dot_dimension_numbers<[1], [0], [0], [1], [0, 0, 1, 1], [], []>} : vector<196x64xf32>, vector<64x128xf32>, vector<196x128xf32> -> vector<196x128xf32>
      %199 = arith.addf %188, %198 : vector<196x128xf32>
      %c10 = arith.constant 10 : index
      %c0_160 = arith.constant 0 : index
      %c0_161 = arith.constant 0 : index
      %200 = vector.load %arg1[%c10, %c0_160, %c0_161] : memref<16x196x24xf32, #tpu.memory_space<vmem>>, vector<1x196x24xf32>
      %201 = vector.shape_cast %200 : vector<1x196x24xf32> to vector<196x24xf32>
      %c0_162 = arith.constant 0 : index
      %c0_163 = arith.constant 0 : index
      %202 = vector.load %arg2[%c0_162, %c0_163] : memref<24x64xf32, #tpu.memory_space<vmem>>, vector<24x64xf32>
      %cst_164 = arith.constant dense<0.000000e+00> : vector<196x64xf32>
      %203 = tpu.matmul %201, %202, %cst_164 {dimension_numbers = #tpu.dot_dimension_numbers<[1], [0], [0], [1], [0, 0, 1, 1], [], []>} : vector<196x24xf32>, vector<24x64xf32>, vector<196x64xf32> -> vector<196x64xf32>
      %cst_165 = arith.constant 2.000000e-01 : f32
      %204 = vector.broadcast %cst_165 : f32 to vector<196x64xf32>
      %205 = arith.mulf %204, %203 : vector<196x64xf32>
      %206 = arith.maximumf %203, %205 : vector<196x64xf32>
      %c10_166 = arith.constant 10 : index
      %c0_167 = arith.constant 0 : index
      %c0_168 = arith.constant 0 : index
      %207 = vector.load %arg3[%c10_166, %c0_167, %c0_168] : memref<16x64x128xf32, #tpu.memory_space<vmem>>, vector<1x64x128xf32>
      %208 = vector.shape_cast %207 : vector<1x64x128xf32> to vector<64x128xf32>
      %cst_169 = arith.constant dense<0.000000e+00> : vector<196x128xf32>
      %209 = tpu.matmul %206, %208, %cst_169 {dimension_numbers = #tpu.dot_dimension_numbers<[1], [0], [0], [1], [0, 0, 1, 1], [], []>} : vector<196x64xf32>, vector<64x128xf32>, vector<196x128xf32> -> vector<196x128xf32>
      %210 = arith.addf %199, %209 : vector<196x128xf32>
      %c11 = arith.constant 11 : index
      %c0_170 = arith.constant 0 : index
      %c0_171 = arith.constant 0 : index
      %211 = vector.load %arg1[%c11, %c0_170, %c0_171] : memref<16x196x24xf32, #tpu.memory_space<vmem>>, vector<1x196x24xf32>
      %212 = vector.shape_cast %211 : vector<1x196x24xf32> to vector<196x24xf32>
      %c0_172 = arith.constant 0 : index
      %c0_173 = arith.constant 0 : index
      %213 = vector.load %arg2[%c0_172, %c0_173] : memref<24x64xf32, #tpu.memory_space<vmem>>, vector<24x64xf32>
      %cst_174 = arith.constant dense<0.000000e+00> : vector<196x64xf32>
      %214 = tpu.matmul %212, %213, %cst_174 {dimension_numbers = #tpu.dot_dimension_numbers<[1], [0], [0], [1], [0, 0, 1, 1], [], []>} : vector<196x24xf32>, vector<24x64xf32>, vector<196x64xf32> -> vector<196x64xf32>
      %cst_175 = arith.constant 2.000000e-01 : f32
      %215 = vector.broadcast %cst_175 : f32 to vector<196x64xf32>
      %216 = arith.mulf %215, %214 : vector<196x64xf32>
      %217 = arith.maximumf %214, %216 : vector<196x64xf32>
      %c11_176 = arith.constant 11 : index
      %c0_177 = arith.constant 0 : index
      %c0_178 = arith.constant 0 : index
      %218 = vector.load %arg3[%c11_176, %c0_177, %c0_178] : memref<16x64x128xf32, #tpu.memory_space<vmem>>, vector<1x64x128xf32>
      %219 = vector.shape_cast %218 : vector<1x64x128xf32> to vector<64x128xf32>
      %cst_179 = arith.constant dense<0.000000e+00> : vector<196x128xf32>
      %220 = tpu.matmul %217, %219, %cst_179 {dimension_numbers = #tpu.dot_dimension_numbers<[1], [0], [0], [1], [0, 0, 1, 1], [], []>} : vector<196x64xf32>, vector<64x128xf32>, vector<196x128xf32> -> vector<196x128xf32>
      %221 = arith.addf %210, %220 : vector<196x128xf32>
      %c12 = arith.constant 12 : index
      %c0_180 = arith.constant 0 : index
      %c0_181 = arith.constant 0 : index
      %222 = vector.load %arg1[%c12, %c0_180, %c0_181] : memref<16x196x24xf32, #tpu.memory_space<vmem>>, vector<1x196x24xf32>
      %223 = vector.shape_cast %222 : vector<1x196x24xf32> to vector<196x24xf32>
      %c0_182 = arith.constant 0 : index
      %c0_183 = arith.constant 0 : index
      %224 = vector.load %arg2[%c0_182, %c0_183] : memref<24x64xf32, #tpu.memory_space<vmem>>, vector<24x64xf32>
      %cst_184 = arith.constant dense<0.000000e+00> : vector<196x64xf32>
      %225 = tpu.matmul %223, %224, %cst_184 {dimension_numbers = #tpu.dot_dimension_numbers<[1], [0], [0], [1], [0, 0, 1, 1], [], []>} : vector<196x24xf32>, vector<24x64xf32>, vector<196x64xf32> -> vector<196x64xf32>
      %cst_185 = arith.constant 2.000000e-01 : f32
      %226 = vector.broadcast %cst_185 : f32 to vector<196x64xf32>
      %227 = arith.mulf %226, %225 : vector<196x64xf32>
      %228 = arith.maximumf %225, %227 : vector<196x64xf32>
      %c12_186 = arith.constant 12 : index
      %c0_187 = arith.constant 0 : index
      %c0_188 = arith.constant 0 : index
      %229 = vector.load %arg3[%c12_186, %c0_187, %c0_188] : memref<16x64x128xf32, #tpu.memory_space<vmem>>, vector<1x64x128xf32>
      %230 = vector.shape_cast %229 : vector<1x64x128xf32> to vector<64x128xf32>
      %cst_189 = arith.constant dense<0.000000e+00> : vector<196x128xf32>
      %231 = tpu.matmul %228, %230, %cst_189 {dimension_numbers = #tpu.dot_dimension_numbers<[1], [0], [0], [1], [0, 0, 1, 1], [], []>} : vector<196x64xf32>, vector<64x128xf32>, vector<196x128xf32> -> vector<196x128xf32>
      %232 = arith.addf %221, %231 : vector<196x128xf32>
      %c13 = arith.constant 13 : index
      %c0_190 = arith.constant 0 : index
      %c0_191 = arith.constant 0 : index
      %233 = vector.load %arg1[%c13, %c0_190, %c0_191] : memref<16x196x24xf32, #tpu.memory_space<vmem>>, vector<1x196x24xf32>
      %234 = vector.shape_cast %233 : vector<1x196x24xf32> to vector<196x24xf32>
      %c0_192 = arith.constant 0 : index
      %c0_193 = arith.constant 0 : index
      %235 = vector.load %arg2[%c0_192, %c0_193] : memref<24x64xf32, #tpu.memory_space<vmem>>, vector<24x64xf32>
      %cst_194 = arith.constant dense<0.000000e+00> : vector<196x64xf32>
      %236 = tpu.matmul %234, %235, %cst_194 {dimension_numbers = #tpu.dot_dimension_numbers<[1], [0], [0], [1], [0, 0, 1, 1], [], []>} : vector<196x24xf32>, vector<24x64xf32>, vector<196x64xf32> -> vector<196x64xf32>
      %cst_195 = arith.constant 2.000000e-01 : f32
      %237 = vector.broadcast %cst_195 : f32 to vector<196x64xf32>
      %238 = arith.mulf %237, %236 : vector<196x64xf32>
      %239 = arith.maximumf %236, %238 : vector<196x64xf32>
      %c13_196 = arith.constant 13 : index
      %c0_197 = arith.constant 0 : index
      %c0_198 = arith.constant 0 : index
      %240 = vector.load %arg3[%c13_196, %c0_197, %c0_198] : memref<16x64x128xf32, #tpu.memory_space<vmem>>, vector<1x64x128xf32>
      %241 = vector.shape_cast %240 : vector<1x64x128xf32> to vector<64x128xf32>
      %cst_199 = arith.constant dense<0.000000e+00> : vector<196x128xf32>
      %242 = tpu.matmul %239, %241, %cst_199 {dimension_numbers = #tpu.dot_dimension_numbers<[1], [0], [0], [1], [0, 0, 1, 1], [], []>} : vector<196x64xf32>, vector<64x128xf32>, vector<196x128xf32> -> vector<196x128xf32>
      %243 = arith.addf %232, %242 : vector<196x128xf32>
      %c14 = arith.constant 14 : index
      %c0_200 = arith.constant 0 : index
      %c0_201 = arith.constant 0 : index
      %244 = vector.load %arg1[%c14, %c0_200, %c0_201] : memref<16x196x24xf32, #tpu.memory_space<vmem>>, vector<1x196x24xf32>
      %245 = vector.shape_cast %244 : vector<1x196x24xf32> to vector<196x24xf32>
      %c0_202 = arith.constant 0 : index
      %c0_203 = arith.constant 0 : index
      %246 = vector.load %arg2[%c0_202, %c0_203] : memref<24x64xf32, #tpu.memory_space<vmem>>, vector<24x64xf32>
      %cst_204 = arith.constant dense<0.000000e+00> : vector<196x64xf32>
      %247 = tpu.matmul %245, %246, %cst_204 {dimension_numbers = #tpu.dot_dimension_numbers<[1], [0], [0], [1], [0, 0, 1, 1], [], []>} : vector<196x24xf32>, vector<24x64xf32>, vector<196x64xf32> -> vector<196x64xf32>
      %cst_205 = arith.constant 2.000000e-01 : f32
      %248 = vector.broadcast %cst_205 : f32 to vector<196x64xf32>
      %249 = arith.mulf %248, %247 : vector<196x64xf32>
      %250 = arith.maximumf %247, %249 : vector<196x64xf32>
      %c14_206 = arith.constant 14 : index
      %c0_207 = arith.constant 0 : index
      %c0_208 = arith.constant 0 : index
      %251 = vector.load %arg3[%c14_206, %c0_207, %c0_208] : memref<16x64x128xf32, #tpu.memory_space<vmem>>, vector<1x64x128xf32>
      %252 = vector.shape_cast %251 : vector<1x64x128xf32> to vector<64x128xf32>
      %cst_209 = arith.constant dense<0.000000e+00> : vector<196x128xf32>
      %253 = tpu.matmul %250, %252, %cst_209 {dimension_numbers = #tpu.dot_dimension_numbers<[1], [0], [0], [1], [0, 0, 1, 1], [], []>} : vector<196x64xf32>, vector<64x128xf32>, vector<196x128xf32> -> vector<196x128xf32>
      %254 = arith.addf %243, %253 : vector<196x128xf32>
      %c15 = arith.constant 15 : index
      %c0_210 = arith.constant 0 : index
      %c0_211 = arith.constant 0 : index
      %255 = vector.load %arg1[%c15, %c0_210, %c0_211] : memref<16x196x24xf32, #tpu.memory_space<vmem>>, vector<1x196x24xf32>
      %256 = vector.shape_cast %255 : vector<1x196x24xf32> to vector<196x24xf32>
      %c0_212 = arith.constant 0 : index
      %c0_213 = arith.constant 0 : index
      %257 = vector.load %arg2[%c0_212, %c0_213] : memref<24x64xf32, #tpu.memory_space<vmem>>, vector<24x64xf32>
      %cst_214 = arith.constant dense<0.000000e+00> : vector<196x64xf32>
      %258 = tpu.matmul %256, %257, %cst_214 {dimension_numbers = #tpu.dot_dimension_numbers<[1], [0], [0], [1], [0, 0, 1, 1], [], []>} : vector<196x24xf32>, vector<24x64xf32>, vector<196x64xf32> -> vector<196x64xf32>
      %cst_215 = arith.constant 2.000000e-01 : f32
      %259 = vector.broadcast %cst_215 : f32 to vector<196x64xf32>
      %260 = arith.mulf %259, %258 : vector<196x64xf32>
      %261 = arith.maximumf %258, %260 : vector<196x64xf32>
      %c15_216 = arith.constant 15 : index
      %c0_217 = arith.constant 0 : index
      %c0_218 = arith.constant 0 : index
      %262 = vector.load %arg3[%c15_216, %c0_217, %c0_218] : memref<16x64x128xf32, #tpu.memory_space<vmem>>, vector<1x64x128xf32>
      %263 = vector.shape_cast %262 : vector<1x64x128xf32> to vector<64x128xf32>
      %cst_219 = arith.constant dense<0.000000e+00> : vector<196x128xf32>
      %264 = tpu.matmul %261, %263, %cst_219 {dimension_numbers = #tpu.dot_dimension_numbers<[1], [0], [0], [1], [0, 0, 1, 1], [], []>} : vector<196x64xf32>, vector<64x128xf32>, vector<196x128xf32> -> vector<196x128xf32>
      %265 = arith.addf %254, %264 : vector<196x128xf32>
      %c0_220 = arith.constant 0 : index
      %c0_221 = arith.constant 0 : index
      %266 = vector.load %arg4[%c0_220, %c0_221] : memref<1x128xf32, #tpu.memory_space<vmem>>, vector<1x128xf32>
      %267 = vector.broadcast %266 : vector<1x128xf32> to vector<196x128xf32>
      %268 = arith.addf %265, %267 : vector<196x128xf32>
      %cst_222 = arith.constant dense<0.000000e+00> : vector<128xf32>
      %269 = vector.multi_reduction <add>, %268, %cst_222 [0] : vector<196x128xf32> to vector<128xf32>
      %270 = vector.shape_cast %269 : vector<128xf32> to vector<1x128xf32>
      %cst_223 = arith.constant 1.960000e+02 : f32
      %271 = vector.broadcast %cst_223 : f32 to vector<1x128xf32>
      %272 = arith.divf %270, %271 : vector<1x128xf32>
      %273 = vector.broadcast %272 : vector<1x128xf32> to vector<196x128xf32>
      %274 = arith.subf %268, %273 : vector<196x128xf32>
      %275 = arith.mulf %274, %274 : vector<196x128xf32>
      %cst_224 = arith.constant dense<0.000000e+00> : vector<128xf32>
      %276 = vector.multi_reduction <add>, %275, %cst_224 [0] : vector<196x128xf32> to vector<128xf32>
      %277 = vector.shape_cast %276 : vector<128xf32> to vector<1x128xf32>
      %cst_225 = arith.constant 1.960000e+02 : f32
      %278 = vector.broadcast %cst_225 : f32 to vector<1x128xf32>
      %279 = arith.divf %277, %278 : vector<1x128xf32>
      %280 = vector.broadcast %272 : vector<1x128xf32> to vector<196x128xf32>
      %281 = arith.subf %268, %280 : vector<196x128xf32>
      %cst_226 = arith.constant 9.99999974E-6 : f32
      %282 = vector.broadcast %cst_226 : f32 to vector<1x128xf32>
      %283 = arith.addf %279, %282 : vector<1x128xf32>
      %284 = math.rsqrt %283 : vector<1x128xf32>
      %285 = vector.broadcast %284 : vector<1x128xf32> to vector<196x128xf32>
      %286 = arith.mulf %281, %285 : vector<196x128xf32>
      %c0_227 = arith.constant 0 : index
      %c0_228 = arith.constant 0 : index
      %287 = vector.load %arg5[%c0_227, %c0_228] : memref<1x128xf32, #tpu.memory_space<vmem>>, vector<1x128xf32>
      %288 = vector.broadcast %287 : vector<1x128xf32> to vector<196x128xf32>
      %289 = arith.mulf %286, %288 : vector<196x128xf32>
      %c0_229 = arith.constant 0 : index
      %c0_230 = arith.constant 0 : index
      %290 = vector.load %arg6[%c0_229, %c0_230] : memref<1x128xf32, #tpu.memory_space<vmem>>, vector<1x128xf32>
      %291 = vector.broadcast %290 : vector<1x128xf32> to vector<196x128xf32>
      %292 = arith.addf %289, %291 : vector<196x128xf32>
      %cst_231 = arith.constant 2.000000e-01 : f32
      %293 = vector.broadcast %cst_231 : f32 to vector<196x128xf32>
      %294 = arith.mulf %293, %292 : vector<196x128xf32>
      %295 = arith.maximumf %292, %294 : vector<196x128xf32>
      %c0_232 = arith.constant 0 : index
      %c0_233 = arith.constant 0 : index
      %296 = vector.load %arg14[%c0_232, %c0_233] : memref<196x128xf32, #tpu.memory_space<vmem>>, vector<196x128xf32>
      tpu.vector_store %arg14[%c0_232, %c0_233], %295 {strides = array<i32>} : memref<196x128xf32, #tpu.memory_space<vmem>>, vector<196x128xf32>,
    } else {
    }
    %cst = arith.constant 0.000000e+00 : f32
    %3 = vector.broadcast %cst : f32 to vector<4x1024xf32>
    %c7_i32 = arith.constant 7 : i32
    %4 = arith.muli %arg0, %c7_i32 : i32
    %c0_i32_1 = arith.constant 0 : i32
    %5 = arith.addi %4, %c0_i32_1 : i32
    %c4_i32 = arith.constant 4 : i32
    %6 = arith.muli %5, %c4_i32 : i32
    %7 = tpu.assume_multiple %6, 4 : i32
    %8 = arith.index_cast %7 : i32 to index
    %c0 = arith.constant 0 : index
    %9 = vector.load %arg14[%8, %c0] : memref<196x128xf32, #tpu.memory_space<vmem>>, vector<4x128xf32>
    %10 = arith.truncf %9 : vector<4x128xf32> to vector<4x128xbf16>
    %c0_2 = arith.constant 0 : index
    %c0_3 = arith.constant 0 : index
    %c0_4 = arith.constant 0 : index
    %11 = vector.load %arg7[%c0_2, %c0_3, %c0_4] : memref<7x128x1024xbf16, #tpu.memory_space<vmem>>, vector<1x128x1024xbf16>
    %12 = vector.shape_cast %11 : vector<1x128x1024xbf16> to vector<128x1024xbf16>
    %cst_5 = arith.constant dense<0.000000e+00> : vector<4x1024xf32>
    %13 = tpu.matmul %10, %12, %cst_5 {dimension_numbers = #tpu.dot_dimension_numbers<[1], [0], [0], [1], [0, 0, 1, 1], [], []>} : vector<4x128xbf16>, vector<128x1024xbf16>, vector<4x1024xf32> -> vector<4x1024xf32>
    %14 = arith.addf %3, %13 : vector<4x1024xf32>
    %c7_i32_6 = arith.constant 7 : i32
    %15 = arith.muli %arg0, %c7_i32_6 : i32
    %c1_i32 = arith.constant 1 : i32
    %16 = arith.addi %15, %c1_i32 : i32
    %c4_i32_7 = arith.constant 4 : i32
    %17 = arith.muli %16, %c4_i32_7 : i32
    %18 = tpu.assume_multiple %17, 4 : i32
    %19 = arith.index_cast %18 : i32 to index
    %c0_8 = arith.constant 0 : index
    %20 = vector.load %arg14[%19, %c0_8] : memref<196x128xf32, #tpu.memory_space<vmem>>, vector<4x128xf32>
    %21 = arith.truncf %20 : vector<4x128xf32> to vector<4x128xbf16>
    %c1 = arith.constant 1 : index
    %c0_9 = arith.constant 0 : index
    %c0_10 = arith.constant 0 : index
    %22 = vector.load %arg7[%c1, %c0_9, %c0_10] : memref<7x128x1024xbf16, #tpu.memory_space<vmem>>, vector<1x128x1024xbf16>
    %23 = vector.shape_cast %22 : vector<1x128x1024xbf16> to vector<128x1024xbf16>
    %cst_11 = arith.constant dense<0.000000e+00> : vector<4x1024xf32>
    %24 = tpu.matmul %21, %23, %cst_11 {dimension_numbers = #tpu.dot_dimension_numbers<[1], [0], [0], [1], [0, 0, 1, 1], [], []>} : vector<4x128xbf16>, vector<128x1024xbf16>, vector<4x1024xf32> -> vector<4x1024xf32>
    %25 = arith.addf %14, %24 : vector<4x1024xf32>
    %c7_i32_12 = arith.constant 7 : i32
    %26 = arith.muli %arg0, %c7_i32_12 : i32
    %c2_i32 = arith.constant 2 : i32
    %27 = arith.addi %26, %c2_i32 : i32
    %c4_i32_13 = arith.constant 4 : i32
    %28 = arith.muli %27, %c4_i32_13 : i32
    %29 = tpu.assume_multiple %28, 4 : i32
    %30 = arith.index_cast %29 : i32 to index
    %c0_14 = arith.constant 0 : index
    %31 = vector.load %arg14[%30, %c0_14] : memref<196x128xf32, #tpu.memory_space<vmem>>, vector<4x128xf32>
    %32 = arith.truncf %31 : vector<4x128xf32> to vector<4x128xbf16>
    %c2 = arith.constant 2 : index
    %c0_15 = arith.constant 0 : index
    %c0_16 = arith.constant 0 : index
    %33 = vector.load %arg7[%c2, %c0_15, %c0_16] : memref<7x128x1024xbf16, #tpu.memory_space<vmem>>, vector<1x128x1024xbf16>
    %34 = vector.shape_cast %33 : vector<1x128x1024xbf16> to vector<128x1024xbf16>
    %cst_17 = arith.constant dense<0.000000e+00> : vector<4x1024xf32>
    %35 = tpu.matmul %32, %34, %cst_17 {dimension_numbers = #tpu.dot_dimension_numbers<[1], [0], [0], [1], [0, 0, 1, 1], [], []>} : vector<4x128xbf16>, vector<128x1024xbf16>, vector<4x1024xf32> -> vector<4x1024xf32>
    %36 = arith.addf %25, %35 : vector<4x1024xf32>
    %c7_i32_18 = arith.constant 7 : i32
    %37 = arith.muli %arg0, %c7_i32_18 : i32
    %c3_i32 = arith.constant 3 : i32
    %38 = arith.addi %37, %c3_i32 : i32
    %c4_i32_19 = arith.constant 4 : i32
    %39 = arith.muli %38, %c4_i32_19 : i32
    %40 = tpu.assume_multiple %39, 4 : i32
    %41 = arith.index_cast %40 : i32 to index
    %c0_20 = arith.constant 0 : index
    %42 = vector.load %arg14[%41, %c0_20] : memref<196x128xf32, #tpu.memory_space<vmem>>, vector<4x128xf32>
    %43 = arith.truncf %42 : vector<4x128xf32> to vector<4x128xbf16>
    %c3 = arith.constant 3 : index
    %c0_21 = arith.constant 0 : index
    %c0_22 = arith.constant 0 : index
    %44 = vector.load %arg7[%c3, %c0_21, %c0_22] : memref<7x128x1024xbf16, #tpu.memory_space<vmem>>, vector<1x128x1024xbf16>
    %45 = vector.shape_cast %44 : vector<1x128x1024xbf16> to vector<128x1024xbf16>
    %cst_23 = arith.constant dense<0.000000e+00> : vector<4x1024xf32>
    %46 = tpu.matmul %43, %45, %cst_23 {dimension_numbers = #tpu.dot_dimension_numbers<[1], [0], [0], [1], [0, 0, 1, 1], [], []>} : vector<4x128xbf16>, vector<128x1024xbf16>, vector<4x1024xf32> -> vector<4x1024xf32>
    %47 = arith.addf %36, %46 : vector<4x1024xf32>
    %c7_i32_24 = arith.constant 7 : i32
    %48 = arith.muli %arg0, %c7_i32_24 : i32
    %c4_i32_25 = arith.constant 4 : i32
    %49 = arith.addi %48, %c4_i32_25 : i32
    %c4_i32_26 = arith.constant 4 : i32
    %50 = arith.muli %49, %c4_i32_26 : i32
    %51 = tpu.assume_multiple %50, 4 : i32
    %52 = arith.index_cast %51 : i32 to index
    %c0_27 = arith.constant 0 : index
    %53 = vector.load %arg14[%52, %c0_27] : memref<196x128xf32, #tpu.memory_space<vmem>>, vector<4x128xf32>
    %54 = arith.truncf %53 : vector<4x128xf32> to vector<4x128xbf16>
    %c4 = arith.constant 4 : index
    %c0_28 = arith.constant 0 : index
    %c0_29 = arith.constant 0 : index
    %55 = vector.load %arg7[%c4, %c0_28, %c0_29] : memref<7x128x1024xbf16, #tpu.memory_space<vmem>>, vector<1x128x1024xbf16>
    %56 = vector.shape_cast %55 : vector<1x128x1024xbf16> to vector<128x1024xbf16>
    %cst_30 = arith.constant dense<0.000000e+00> : vector<4x1024xf32>
    %57 = tpu.matmul %54, %56, %cst_30 {dimension_numbers = #tpu.dot_dimension_numbers<[1], [0], [0], [1], [0, 0, 1, 1], [], []>} : vector<4x128xbf16>, vector<128x1024xbf16>, vector<4x1024xf32> -> vector<4x1024xf32>
    %58 = arith.addf %47, %57 : vector<4x1024xf32>
    %c7_i32_31 = arith.constant 7 : i32
    %59 = arith.muli %arg0, %c7_i32_31 : i32
    %c5_i32 = arith.constant 5 : i32
    %60 = arith.addi %59, %c5_i32 : i32
    %c4_i32_32 = arith.constant 4 : i32
    %61 = arith.muli %60, %c4_i32_32 : i32
    %62 = tpu.assume_multiple %61, 4 : i32
    %63 = arith.index_cast %62 : i32 to index
    %c0_33 = arith.constant 0 : index
    %64 = vector.load %arg14[%63, %c0_33] : memref<196x128xf32, #tpu.memory_space<vmem>>, vector<4x128xf32>
    %65 = arith.truncf %64 : vector<4x128xf32> to vector<4x128xbf16>
    %c5 = arith.constant 5 : index
    %c0_34 = arith.constant 0 : index
    %c0_35 = arith.constant 0 : index
    %66 = vector.load %arg7[%c5, %c0_34, %c0_35] : memref<7x128x1024xbf16, #tpu.memory_space<vmem>>, vector<1x128x1024xbf16>
    %67 = vector.shape_cast %66 : vector<1x128x1024xbf16> to vector<128x1024xbf16>
    %cst_36 = arith.constant dense<0.000000e+00> : vector<4x1024xf32>
    %68 = tpu.matmul %65, %67, %cst_36 {dimension_numbers = #tpu.dot_dimension_numbers<[1], [0], [0], [1], [0, 0, 1, 1], [], []>} : vector<4x128xbf16>, vector<128x1024xbf16>, vector<4x1024xf32> -> vector<4x1024xf32>
    %69 = arith.addf %58, %68 : vector<4x1024xf32>
    %c7_i32_37 = arith.constant 7 : i32
    %70 = arith.muli %arg0, %c7_i32_37 : i32
    %c6_i32 = arith.constant 6 : i32
    %71 = arith.addi %70, %c6_i32 : i32
    %c4_i32_38 = arith.constant 4 : i32
    %72 = arith.muli %71, %c4_i32_38 : i32
    %73 = tpu.assume_multiple %72, 4 : i32
    %74 = arith.index_cast %73 : i32 to index
    %c0_39 = arith.constant 0 : index
    %75 = vector.load %arg14[%74, %c0_39] : memref<196x128xf32, #tpu.memory_space<vmem>>, vector<4x128xf32>
    %76 = arith.truncf %75 : vector<4x128xf32> to vector<4x128xbf16>
    %c6 = arith.constant 6 : index
    %c0_40 = arith.constant 0 : index
    %c0_41 = arith.constant 0 : index
    %77 = vector.load %arg7[%c6, %c0_40, %c0_41] : memref<7x128x1024xbf16, #tpu.memory_space<vmem>>, vector<1x128x1024xbf16>
    %78 = vector.shape_cast %77 : vector<1x128x1024xbf16> to vector<128x1024xbf16>
    %cst_42 = arith.constant dense<0.000000e+00> : vector<4x1024xf32>
    %79 = tpu.matmul %76, %78, %cst_42 {dimension_numbers = #tpu.dot_dimension_numbers<[1], [0], [0], [1], [0, 0, 1, 1], [], []>} : vector<4x128xbf16>, vector<128x1024xbf16>, vector<4x1024xf32> -> vector<4x1024xf32>
    %80 = arith.addf %69, %79 : vector<4x1024xf32>
    %c0_43 = arith.constant 0 : index
    %c0_44 = arith.constant 0 : index
    %81 = vector.load %arg15[%c0_43, %c0_44] : memref<4x1024xf32, #tpu.memory_space<vmem>>, vector<4x1024xf32>
    %82 = arith.addf %81, %80 : vector<4x1024xf32>
    %c0_45 = arith.constant 0 : index
    %c0_46 = arith.constant 0 : index
    %83 = vector.load %arg15[%c0_45, %c0_46] : memref<4x1024xf32, #tpu.memory_space<vmem>>, vector<4x1024xf32>
    tpu.vector_store %arg15[%c0_45, %c0_46], %82 {strides = array<i32>} : memref<4x1024xf32, #tpu.memory_space<vmem>>, vector<4x1024xf32>,
    %c6_i32_47 = arith.constant 6 : i32
    %84 = arith.cmpi eq, %arg0, %c6_i32_47 : i32
    %85 = arith.extui %84 : i1 to i32
    %c0_i32_48 = arith.constant 0 : i32
    %86 = arith.cmpi ne, %85, %c0_i32_48 : i32
    scf.if %86 {
      %c0_49 = arith.constant 0 : index
      %c0_50 = arith.constant 0 : index
      %87 = vector.load %arg15[%c0_49, %c0_50] : memref<4x1024xf32, #tpu.memory_space<vmem>>, vector<4x1024xf32>
      %c0_51 = arith.constant 0 : index
      %c0_52 = arith.constant 0 : index
      %88 = vector.load %arg8[%c0_51, %c0_52] : memref<1x1024xf32, #tpu.memory_space<vmem>>, vector<1x1024xf32>
      %89 = vector.broadcast %88 : vector<1x1024xf32> to vector<4x1024xf32>
      %90 = arith.addf %87, %89 : vector<4x1024xf32>
      %cst_53 = arith.constant dense<0.000000e+00> : vector<1024xf32>
      %91 = vector.multi_reduction <add>, %90, %cst_53 [0] : vector<4x1024xf32> to vector<1024xf32>
      %92 = vector.shape_cast %91 : vector<1024xf32> to vector<1x1024xf32>
      %cst_54 = arith.constant 4.000000e+00 : f32
      %93 = vector.broadcast %cst_54 : f32 to vector<1x1024xf32>
      %94 = arith.divf %92, %93 : vector<1x1024xf32>
      %95 = vector.broadcast %94 : vector<1x1024xf32> to vector<4x1024xf32>
      %96 = arith.subf %90, %95 : vector<4x1024xf32>
      %97 = arith.mulf %96, %96 : vector<4x1024xf32>
      %cst_55 = arith.constant dense<0.000000e+00> : vector<1024xf32>
      %98 = vector.multi_reduction <add>, %97, %cst_55 [0] : vector<4x1024xf32> to vector<1024xf32>
      %99 = vector.shape_cast %98 : vector<1024xf32> to vector<1x1024xf32>
      %cst_56 = arith.constant 4.000000e+00 : f32
      %100 = vector.broadcast %cst_56 : f32 to vector<1x1024xf32>
      %101 = arith.divf %99, %100 : vector<1x1024xf32>
      %102 = vector.broadcast %94 : vector<1x1024xf32> to vector<4x1024xf32>
      %103 = arith.subf %90, %102 : vector<4x1024xf32>
      %cst_57 = arith.constant 9.99999974E-6 : f32
      %104 = vector.broadcast %cst_57 : f32 to vector<1x1024xf32>
      %105 = arith.addf %101, %104 : vector<1x1024xf32>
      %106 = math.rsqrt %105 : vector<1x1024xf32>
      %107 = vector.broadcast %106 : vector<1x1024xf32> to vector<4x1024xf32>
      %108 = arith.mulf %103, %107 : vector<4x1024xf32>
      %c0_58 = arith.constant 0 : index
      %c0_59 = arith.constant 0 : index
      %109 = vector.load %arg9[%c0_58, %c0_59] : memref<1x1024xf32, #tpu.memory_space<vmem>>, vector<1x1024xf32>
      %110 = vector.broadcast %109 : vector<1x1024xf32> to vector<4x1024xf32>
      %111 = arith.mulf %108, %110 : vector<4x1024xf32>
      %c0_60 = arith.constant 0 : index
      %c0_61 = arith.constant 0 : index
      %112 = vector.load %arg10[%c0_60, %c0_61] : memref<1x1024xf32, #tpu.memory_space<vmem>>, vector<1x1024xf32>
      %113 = vector.broadcast %112 : vector<1x1024xf32> to vector<4x1024xf32>
      %114 = arith.addf %111, %113 : vector<4x1024xf32>
      %cst_62 = arith.constant 2.000000e-01 : f32
      %115 = vector.broadcast %cst_62 : f32 to vector<4x1024xf32>
      %116 = arith.mulf %115, %114 : vector<4x1024xf32>
      %117 = arith.maximumf %114, %116 : vector<4x1024xf32>
      %c0_63 = arith.constant 0 : index
      %c0_64 = arith.constant 0 : index
      %118 = vector.load %arg11[%c0_63, %c0_64] : memref<1x1024xf32, #tpu.memory_space<vmem>>, vector<1x1024xf32>
      %119 = vector.broadcast %118 : vector<1x1024xf32> to vector<4x1024xf32>
      %120 = arith.mulf %117, %119 : vector<4x1024xf32>
      %cst_65 = arith.constant dense<0.000000e+00> : vector<4xf32>
      %121 = vector.multi_reduction <add>, %120, %cst_65 [1] : vector<4x1024xf32> to vector<4xf32>
      %122 = vector.shape_cast %121 : vector<4xf32> to vector<4x1xf32>
      %c0_66 = arith.constant 0 : index
      %c0_67 = arith.constant 0 : index
      %123 = vector.load %arg12[%c0_66, %c0_67] : memref<1x1xf32, #tpu.memory_space<vmem>>, vector<1x1xf32>
      %124 = vector.broadcast %123 : vector<1x1xf32> to vector<4x1xf32>
      %125 = arith.addf %122, %124 : vector<4x1xf32>
      %cst_68 = arith.constant dense<0.000000e+00> : vector<1xf32>
      %126 = vector.multi_reduction <add>, %125, %cst_68 [0] : vector<4x1xf32> to vector<1xf32>
      %127 = vector.shape_cast %126 : vector<1xf32> to vector<1x1xf32>
      %cst_69 = arith.constant 4.000000e+00 : f32
      %128 = vector.broadcast %cst_69 : f32 to vector<1x1xf32>
      %129 = arith.divf %127, %128 : vector<1x1xf32>
      %c0_70 = arith.constant 0 : index
      %c0_71 = arith.constant 0 : index
      %130 = vector.load %arg13[%c0_70, %c0_71] : memref<1x1xf32, #tpu.memory_space<vmem>>, vector<1x1xf32>
      tpu.vector_store %arg13[%c0_70, %c0_71], %129 {strides = array<i32>} : memref<1x1xf32, #tpu.memory_space<vmem>>, vector<1x1xf32>,
    } else {
    }
    return
  }
  func.func @transform_0(%arg0: i32) -> (i32, i32, i32) {
    %c0_i32 = arith.constant 0 : i32
    %c0_i32_0 = arith.constant 0 : i32
    %c0_i32_1 = arith.constant 0 : i32
    %c0_i32_2 = arith.constant 0 : i32
    return %c0_i32, %c0_i32_0, %c0_i32_1 : i32, i32, i32
  }
  func.func @transform_1(%arg0: i32) -> (i32, i32) {
    %c0_i32 = arith.constant 0 : i32
    %c0_i32_0 = arith.constant 0 : i32
    %c0_i32_1 = arith.constant 0 : i32
    return %c0_i32, %c0_i32_0 : i32, i32
  }
  func.func @transform_2(%arg0: i32) -> (i32, i32, i32) {
    %c0_i32 = arith.constant 0 : i32
    %c0_i32_0 = arith.constant 0 : i32
    %c0_i32_1 = arith.constant 0 : i32
    %c0_i32_2 = arith.constant 0 : i32
    return %c0_i32, %c0_i32_0, %c0_i32_1 : i32, i32, i32
  }
  func.func @transform_3(%arg0: i32) -> (i32, i32) {
    %c0_i32 = arith.constant 0 : i32
    %c0_i32_0 = arith.constant 0 : i32
    %c0_i32_1 = arith.constant 0 : i32
    return %c0_i32, %c0_i32_0 : i32, i32
  }
  func.func @transform_4(%arg0: i32) -> (i32, i32) {
    %c0_i32 = arith.constant 0 : i32
    %c0_i32_0 = arith.constant 0 : i32
    %c0_i32_1 = arith.constant 0 : i32
    return %c0_i32, %c0_i32_0 : i32, i32
  }
  func.func @transform_5(%arg0: i32) -> (i32, i32) {
    %c0_i32 = arith.constant 0 : i32
    %c0_i32_0 = arith.constant 0 : i32
    %c0_i32_1 = arith.constant 0 : i32
    return %c0_i32, %c0_i32_0 : i32, i32
  }
  func.func @transform_6(%arg0: i32) -> (i32, i32, i32) {
    %c0_i32 = arith.constant 0 : i32
    %c0_i32_0 = arith.constant 0 : i32
    %c0_i32_1 = arith.constant 0 : i32
    return %arg0, %c0_i32, %c0_i32_0 : i32, i32, i32
  }
  func.func @transform_7(%arg0: i32) -> (i32, i32) {
    %c0_i32 = arith.constant 0 : i32
    %c0_i32_0 = arith.constant 0 : i32
    %c0_i32_1 = arith.constant 0 : i32
    return %c0_i32, %c0_i32_0 : i32, i32
  }
  func.func @transform_8(%arg0: i32) -> (i32, i32) {
    %c0_i32 = arith.constant 0 : i32
    %c0_i32_0 = arith.constant 0 : i32
    %c0_i32_1 = arith.constant 0 : i32
    return %c0_i32, %c0_i32_0 : i32, i32
  }
  func.func @transform_9(%arg0: i32) -> (i32, i32) {
    %c0_i32 = arith.constant 0 : i32
    %c0_i32_0 = arith.constant 0 : i32
    %c0_i32_1 = arith.constant 0 : i32
    return %c0_i32, %c0_i32_0 : i32, i32
  }
  func.func @transform_10(%arg0: i32) -> (i32, i32) {
    %c0_i32 = arith.constant 0 : i32
    %c0_i32_0 = arith.constant 0 : i32
    %c0_i32_1 = arith.constant 0 : i32
    return %c0_i32, %c0_i32_0 : i32, i32
  }
  func.func @transform_11(%arg0: i32) -> (i32, i32) {
    %c0_i32 = arith.constant 0 : i32
    %c0_i32_0 = arith.constant 0 : i32
    %c0_i32_1 = arith.constant 0 : i32
    return %c0_i32, %c0_i32_0 : i32, i32
  }
  func.func @transform_12(%arg0: i32) -> (i32, i32) {
    %c0_i32 = arith.constant 0 : i32
    %c0_i32_0 = arith.constant 0 : i32
    %c0_i32_1 = arith.constant 0 : i32
    return %c0_i32, %c0_i32_0 : i32, i32
  }
}

</mosaic_0001>

<llo_original>
// kernel: discriminator_forward.1
$region0: #{discriminator_forward.1}
  #allocation0 [shape = 'u32[]', space=smem, size = 0x4, offset = 0x4, fixed_abs, tag = 'smem constant byte address 0x4 - core index']
  #allocation1 [shape = 'u32[72,128]{1,0:T(1,128)}', space=vmem, size = 0x9000, scoped, tag = 'internal scratch']
  #allocation2 [shape = 'f32[196,128]{1,0:T(8,128)}', space=vmem, size = 0x19000, scoped, tag = 'scratch operand']
  #allocation3 [shape = 'f32[4,1024]{1,0:T(4,128)}', space=vmem, size = 0x4000, scoped, tag = 'scratch operand']
  #allocation4 [shape = 'f32[1,1]{1,0:T(1,128)S(1)}', space=vmem, size = 0x200, scoped, tag = 'scoped memory for discriminator_forward.1']
  %s0 = inlined_call_operand.vmem [shape: f32[16,196,24], index: 0, kind: input, shape index: {}]
  %s1 = inlined_call_operand.vmem [shape: f32[24,64], index: 1, kind: input, shape index: {}]
  %s2 = inlined_call_operand.vmem [shape: f32[16,64,128], index: 2, kind: input, shape index: {}]
  %s3 = inlined_call_operand.vmem [shape: f32[1,128], index: 3, kind: input, shape index: {}]
  %s4 = inlined_call_operand.vmem [shape: f32[1,128], index: 4, kind: input, shape index: {}]
  %s5 = inlined_call_operand.vmem [shape: f32[1,128], index: 5, kind: input, shape index: {}]
  %s6 = inlined_call_operand.vmem [shape: bf16[49,128,1024], index: 6, kind: input, shape index: {}]
  %s7 = inlined_call_operand.vmem [shape: f32[1,1024], index: 7, kind: input, shape index: {}]
  %s8 = inlined_call_operand.vmem [shape: f32[1,1024], index: 8, kind: input, shape index: {}]
  %s9 = inlined_call_operand.vmem [shape: f32[1,1024], index: 9, kind: input, shape index: {}]
  %s10 = inlined_call_operand.vmem [shape: f32[1,1024], index: 10, kind: input, shape index: {}]
  %s11 = inlined_call_operand.<no memory space> [shape: f32[1,1], index: 11, kind: input, shape index: {}]
  %s12 = inlined_call_operand.hbm [shape: f32[1,1], index: 12, kind: output, shape index: {}]
  %s13 = sld [smem:[#allocation0]]
  $region89: #{discriminator_forward.1} parent=0
    _
  %s15 = ssub.s32 1, %s13
  %s16 = scalar_select 0, %s15, %s13
  %v17 = vstv %s11
  %18 = vst [vmem:[#allocation4] sm:$0x1] %v17
  $region1: #{discriminator_forward.1} parent=0
    #allocation5 [shape = 'u8[512]{0}', space=vmem, size = 0x400, scoped, tag = 'output window, operand 0, single buffered']
    #allocation6 [shape = 's32[2]{0}', space=sflag, size = 0x8, scoped, tag = 'scoped memory for discriminator_forward.1']
    %19 = vsyncpa [#allocation6], 0
    loop: start=0, step=1, limit=9
    $region2: #{discriminator_forward.1} parent=1 // loop_pre_header
      _
    $region3: #{discriminator_forward.1} parent=1 // loop_header
      %s21 = sphi 0, %s25
      %p22 = scmp.ge.s32.totalorder %s21, 9
      %s29 = sphi 0, %s29
      %s31 = sphi 0, %s29
      %s32 = sphi 0, %s31
      %s46 = sphi 0, %s32
      %s50 = sphi 0, %s50
      %s52 = sphi 0, %s50
      %s53 = sphi 0, %s52
      %s67 = sphi 0, %s53
      %s71 = sphi 0, %s71
      %s73 = sphi 0, %s71
      %s74 = sphi 0, %s73
      %s88 = sphi 0, %s74
      %s92 = sphi 0, %s92
      %s94 = sphi 0, %s92
      %s95 = sphi 0, %s94
      %s109 = sphi 0, %s95
      %s113 = sphi 0, %s113
      %s115 = sphi 0, %s113
      %s116 = sphi 0, %s115
      %s130 = sphi 0, %s116
      %s134 = sphi 0, %s134
      %s136 = sphi 0, %s134
      %s137 = sphi 0, %s136
      %s151 = sphi 0, %s137
      %s157 = sphi 0, %s159
      %s160 = sphi 0, %s157
      %s161 = sphi 0, %s160
      %s177 = sphi 0, %s161
      %s181 = sphi 0, %s181
      %s183 = sphi 0, %s181
      %s184 = sphi 0, %s183
      %s198 = sphi 0, %s184
      %s202 = sphi 0, %s202
      %s204 = sphi 0, %s202
      %s205 = sphi 0, %s204
      %s219 = sphi 0, %s205
      %s223 = sphi 0, %s223
      %s225 = sphi 0, %s223
      %s226 = sphi 0, %s225
      %s240 = sphi 0, %s226
      %s244 = sphi 0, %s244
      %s246 = sphi 0, %s244
      %s247 = sphi 0, %s246
      %s261 = sphi 0, %s247
      %s265 = sphi 0, %s265
      %s267 = sphi 0, %s265
      %s268 = sphi 0, %s267
      %s282 = sphi 0, %s268
      %s286 = sphi 0, %s286
      %s288 = sphi 0, %s286
      %s289 = sphi 0, %s288
      %s303 = sphi 0, %s289
    $region4: #{discriminator_forward.1} parent=1 // loop_header_branch
      %24 = sbr.rel (%p22) target = $region8
    $region5: #{discriminator_forward.1} parent=1 // loop_body
      %s26 = ssub.s32 %s21, 1
      %s27 = ssub.s32 %s21, 2
      %s28 = sadd.s32 %s21, 1
      %s30 = sadd.s32 %s29, 1
      %p33 = scmp.eq.s32.totalorder %s21, 6
      %p34 = scmp.ne.s32.totalorder %s29, %s31
      %p35 = scmp.eq.s32.totalorder %s21, 0
      %p36 = por %p34, %p35
      %p37 = scmp.ne.s32.totalorder %s29, %s31
      %p38 = scmp.eq.s32.totalorder %s26, 6
      %p39 = por %p37, %p38
      %p40 = scmp.ne.s32.totalorder %s31, %s32
      %p41 = scmp.eq.s32.totalorder %s26, 0
      %p42 = por %p40, %p41
      %p43 = scmp.ne.s32.totalorder %s31, %s32
      %p44 = scmp.eq.s32.totalorder %s27, 6
      %p45 = por %p43, %p44
      %p47 = scmp.ne.s32.totalorder %s32, %s46
      %p48 = scmp.eq.s32.totalorder %s27, 0
      %p49 = por %p47, %p48
      %s51 = sadd.s32 %s50, 1
      %p54 = scmp.eq.s32.totalorder %s21, 6
      %p55 = scmp.ne.s32.totalorder %s50, %s52
      %p56 = scmp.eq.s32.totalorder %s21, 0
      %p57 = por %p55, %p56
      %p58 = scmp.ne.s32.totalorder %s50, %s52
      %p59 = scmp.eq.s32.totalorder %s26, 6
      %p60 = por %p58, %p59
      %p61 = scmp.ne.s32.totalorder %s52, %s53
      %p62 = scmp.eq.s32.totalorder %s26, 0
      %p63 = por %p61, %p62
      %p64 = scmp.ne.s32.totalorder %s52, %s53
      %p65 = scmp.eq.s32.totalorder %s27, 6
      %p66 = por %p64, %p65
      %p68 = scmp.ne.s32.totalorder %s53, %s67
      %p69 = scmp.eq.s32.totalorder %s27, 0
      %p70 = por %p68, %p69
      %s72 = sadd.s32 %s71, 1
      %p75 = scmp.eq.s32.totalorder %s21, 6
      %p76 = scmp.ne.s32.totalorder %s71, %s73
      %p77 = scmp.eq.s32.totalorder %s21, 0
      %p78 = por %p76, %p77
      %p79 = scmp.ne.s32.totalorder %s71, %s73
      %p80 = scmp.eq.s32.totalorder %s26, 6
      %p81 = por %p79, %p80
      %p82 = scmp.ne.s32.totalorder %s73, %s74
      %p83 = scmp.eq.s32.totalorder %s26, 0
      %p84 = por %p82, %p83
      %p85 = scmp.ne.s32.totalorder %s73, %s74
      %p86 = scmp.eq.s32.totalorder %s27, 6
      %p87 = por %p85, %p86
      %p89 = scmp.ne.s32.totalorder %s74, %s88
      %p90 = scmp.eq.s32.totalorder %s27, 0
      %p91 = por %p89, %p90
      %s93 = sadd.s32 %s92, 1
      %p96 = scmp.eq.s32.totalorder %s21, 6
      %p97 = scmp.ne.s32.totalorder %s92, %s94
      %p98 = scmp.eq.s32.totalorder %s21, 0
      %p99 = por %p97, %p98
      %p100 = scmp.ne.s32.totalorder %s92, %s94
      %p101 = scmp.eq.s32.totalorder %s26, 6
      %p102 = por %p100, %p101
      %p103 = scmp.ne.s32.totalorder %s94, %s95
      %p104 = scmp.eq.s32.totalorder %s26, 0
      %p105 = por %p103, %p104
      %p106 = scmp.ne.s32.totalorder %s94, %s95
      %p107 = scmp.eq.s32.totalorder %s27, 6
      %p108 = por %p106, %p107
      %p110 = scmp.ne.s32.totalorder %s95, %s109
      %p111 = scmp.eq.s32.totalorder %s27, 0
      %p112 = por %p110, %p111
      %s114 = sadd.s32 %s113, 1
      %p117 = scmp.eq.s32.totalorder %s21, 6
      %p118 = scmp.ne.s32.totalorder %s113, %s115
      %p119 = scmp.eq.s32.totalorder %s21, 0
      %p120 = por %p118, %p119
      %p121 = scmp.ne.s32.totalorder %s113, %s115
      %p122 = scmp.eq.s32.totalorder %s26, 6
      %p123 = por %p121, %p122
      %p124 = scmp.ne.s32.totalorder %s115, %s116
      %p125 = scmp.eq.s32.totalorder %s26, 0
      %p126 = por %p124, %p125
      %p127 = scmp.ne.s32.totalorder %s115, %s116
      %p128 = scmp.eq.s32.totalorder %s27, 6
      %p129 = por %p127, %p128
      %p131 = scmp.ne.s32.totalorder %s116, %s130
      %p132 = scmp.eq.s32.totalorder %s27, 0
      %p133 = por %p131, %p132
      %s135 = sadd.s32 %s134, 1
      %p138 = scmp.eq.s32.totalorder %s21, 6
      %p139 = scmp.ne.s32.totalorder %s134, %s136
      %p140 = scmp.eq.s32.totalorder %s21, 0
      %p141 = por %p139, %p140
      %p142 = scmp.ne.s32.totalorder %s134, %s136
      %p143 = scmp.eq.s32.totalorder %s26, 6
      %p144 = por %p142, %p143
      %p145 = scmp.ne.s32.totalorder %s136, %s137
      %p146 = scmp.eq.s32.totalorder %s26, 0
      %p147 = por %p145, %p146
      %p148 = scmp.ne.s32.totalorder %s136, %s137
      %p149 = scmp.eq.s32.totalorder %s27, 6
      %p150 = por %p148, %p149
      %p152 = scmp.ne.s32.totalorder %s137, %s151
      %p153 = scmp.eq.s32.totalorder %s27, 0
      %p154 = por %p152, %p153
      %s155 = ssub.s32 %s21, %s28
      %p156 = scmp.eq.s32.totalorder %s155, 0
      %s158 = sadd.s32 %s157, 1
      %s159 = scalar_select %p156, %s157, %s158
      %p162 = pneg %p156
      %p163 = scmp.eq.s32.totalorder %s21, 6
      %p164 = por %p162, %p163
      %p165 = scmp.ne.s32.totalorder %s157, %s160
      %p166 = scmp.eq.s32.totalorder %s21, 0
      %p167 = por %p165, %p166
      %p168 = scmp.ne.s32.totalorder %s157, %s160
      %p169 = scmp.eq.s32.totalorder %s26, 6
      %p170 = por %p168, %p169
      %p171 = scmp.ne.s32.totalorder %s160, %s161
      %p172 = scmp.eq.s32.totalorder %s26, 0
      %p173 = por %p171, %p172
      %p174 = scmp.ne.s32.totalorder %s160, %s161
      %p175 = scmp.eq.s32.totalorder %s27, 6
      %p176 = por %p174, %p175
      %p178 = scmp.ne.s32.totalorder %s161, %s177
      %p179 = scmp.eq.s32.totalorder %s27, 0
      %p180 = por %p178, %p179
      %s182 = sadd.s32 %s181, 1
      %p185 = scmp.eq.s32.totalorder %s21, 6
      %p186 = scmp.ne.s32.totalorder %s181, %s183
      %p187 = scmp.eq.s32.totalorder %s21, 0
      %p188 = por %p186, %p187
      %p189 = scmp.ne.s32.totalorder %s181, %s183
      %p190 = scmp.eq.s32.totalorder %s26, 6
      %p191 = por %p189, %p190
      %p192 = scmp.ne.s32.totalorder %s183, %s184
      %p193 = scmp.eq.s32.totalorder %s26, 0
      %p194 = por %p192, %p193
      %p195 = scmp.ne.s32.totalorder %s183, %s184
      %p196 = scmp.eq.s32.totalorder %s27, 6
      %p197 = por %p195, %p196
      %p199 = scmp.ne.s32.totalorder %s184, %s198
      %p200 = scmp.eq.s32.totalorder %s27, 0
      %p201 = por %p199, %p200
      %s203 = sadd.s32 %s202, 1
      %p206 = scmp.eq.s32.totalorder %s21, 6
      %p207 = scmp.ne.s32.totalorder %s202, %s204
      %p208 = scmp.eq.s32.totalorder %s21, 0
      %p209 = por %p207, %p208
      %p210 = scmp.ne.s32.totalorder %s202, %s204
      %p211 = scmp.eq.s32.totalorder %s26, 6
      %p212 = por %p210, %p211
      %p213 = scmp.ne.s32.totalorder %s204, %s205
      %p214 = scmp.eq.s32.totalorder %s26, 0
      %p215 = por %p213, %p214
      %p216 = scmp.ne.s32.totalorder %s204, %s205
      %p217 = scmp.eq.s32.totalorder %s27, 6
      %p218 = por %p216, %p217
      %p220 = scmp.ne.s32.totalorder %s205, %s219
      %p221 = scmp.eq.s32.totalorder %s27, 0
      %p222 = por %p220, %p221
      %s224 = sadd.s32 %s223, 1
      %p227 = scmp.eq.s32.totalorder %s21, 6
      %p228 = scmp.ne.s32.totalorder %s223, %s225
      %p229 = scmp.eq.s32.totalorder %s21, 0
      %p230 = por %p228, %p229
      %p231 = scmp.ne.s32.totalorder %s223, %s225
      %p232 = scmp.eq.s32.totalorder %s26, 6
      %p233 = por %p231, %p232
      %p234 = scmp.ne.s32.totalorder %s225, %s226
      %p235 = scmp.eq.s32.totalorder %s26, 0
      %p236 = por %p234, %p235
      %p237 = scmp.ne.s32.totalorder %s225, %s226
      %p238 = scmp.eq.s32.totalorder %s27, 6
      %p239 = por %p237, %p238
      %p241 = scmp.ne.s32.totalorder %s226, %s240
      %p242 = scmp.eq.s32.totalorder %s27, 0
      %p243 = por %p241, %p242
      %s245 = sadd.s32 %s244, 1
      %p248 = scmp.eq.s32.totalorder %s21, 6
      %p249 = scmp.ne.s32.totalorder %s244, %s246
      %p250 = scmp.eq.s32.totalorder %s21, 0
      %p251 = por %p249, %p250
      %p252 = scmp.ne.s32.totalorder %s244, %s246
      %p253 = scmp.eq.s32.totalorder %s26, 6
      %p254 = por %p252, %p253
      %p255 = scmp.ne.s32.totalorder %s246, %s247
      %p256 = scmp.eq.s32.totalorder %s26, 0
      %p257 = por %p255, %p256
      %p258 = scmp.ne.s32.totalorder %s246, %s247
      %p259 = scmp.eq.s32.totalorder %s27, 6
      %p260 = por %p258, %p259
      %p262 = scmp.ne.s32.totalorder %s247, %s261
      %p263 = scmp.eq.s32.totalorder %s27, 0
      %p264 = por %p262, %p263
      %s266 = sadd.s32 %s265, 1
      %p269 = scmp.eq.s32.totalorder %s21, 6
      %p270 = scmp.ne.s32.totalorder %s265, %s267
      %p271 = scmp.eq.s32.totalorder %s21, 0
      %p272 = por %p270, %p271
      %p273 = scmp.ne.s32.totalorder %s265, %s267
      %p274 = scmp.eq.s32.totalorder %s26, 6
      %p275 = por %p273, %p274
      %p276 = scmp.ne.s32.totalorder %s267, %s268
      %p277 = scmp.eq.s32.totalorder %s26, 0
      %p278 = por %p276, %p277
      %p279 = scmp.ne.s32.totalorder %s267, %s268
      %p280 = scmp.eq.s32.totalorder %s27, 6
      %p281 = por %p279, %p280
      %p283 = scmp.ne.s32.totalorder %s268, %s282
      %p284 = scmp.eq.s32.totalorder %s27, 0
      %p285 = por %p283, %p284
      %s287 = sadd.s32 %s286, 1
      %p290 = scmp.eq.s32.totalorder %s21, 6
      %p291 = scmp.ne.s32.totalorder %s286, %s288
      %p292 = scmp.eq.s32.totalorder %s21, 0
      %p293 = por %p291, %p292
      %p294 = scmp.ne.s32.totalorder %s286, %s288
      %p295 = scmp.eq.s32.totalorder %s26, 6
      %p296 = por %p294, %p295
      %p297 = scmp.ne.s32.totalorder %s288, %s289
      %p298 = scmp.eq.s32.totalorder %s26, 0
      %p299 = por %p297, %p298
      %p300 = scmp.ne.s32.totalorder %s288, %s289
      %p301 = scmp.eq.s32.totalorder %s27, 6
      %p302 = por %p300, %p301
      %p304 = scmp.ne.s32.totalorder %s289, %s303
      %p305 = scmp.eq.s32.totalorder %s27, 0
      %p306 = por %p304, %p305
      %p307 = scmp.le.s32.totalorder 1, %s21
      %p308 = scmp.lt.s32.totalorder %s21, 8
      %p309 = pnand %p307, %p308
      %p310 = pneg %p309
      // Predicated region
      $region9: #{discriminator_forward.1} parent=5 // pred_check
        _
      $region10: #{discriminator_forward.1} parent=5 // pred_check_branch
        %312 = sbr.rel (%p309) target = $region12
      $region11: #{discriminator_forward.1} parent=5 // pred_region
        %s313 = ssub.s32 %s21, 1
        // Predicated region
        $region13: #{discriminator_forward.1} parent=11 // pred_check
          %p314 = pneg %p42
        $region14: #{discriminator_forward.1} parent=11 // pred_check_branch
          %316 = sbr.rel (%p314) target = $region16
        $region15: #{discriminator_forward.1} parent=11 // pred_region
          _
        $region16: #{discriminator_forward.1} parent=11 // pred_fallthru
          _
        // Predicated region
        $region17: #{discriminator_forward.1} parent=11 // pred_check
          %p317 = pneg %p63
        $region18: #{discriminator_forward.1} parent=11 // pred_check_branch
          %319 = sbr.rel (%p317) target = $region20
        $region19: #{discriminator_forward.1} parent=11 // pred_region
          _
        $region20: #{discriminator_forward.1} parent=11 // pred_fallthru
          _
        // Predicated region
        $region21: #{discriminator_forward.1} parent=11 // pred_check
          %p320 = pneg %p84
        $region22: #{discriminator_forward.1} parent=11 // pred_check_branch
          %322 = sbr.rel (%p320) target = $region24
        $region23: #{discriminator_forward.1} parent=11 // pred_region
          _
        $region24: #{discriminator_forward.1} parent=11 // pred_fallthru
          _
        // Predicated region
        $region25: #{discriminator_forward.1} parent=11 // pred_check
          %p323 = pneg %p105
        $region26: #{discriminator_forward.1} parent=11 // pred_check_branch
          %325 = sbr.rel (%p323) target = $region28
        $region27: #{discriminator_forward.1} parent=11 // pred_region
          _
        $region28: #{discriminator_forward.1} parent=11 // pred_fallthru
          _
        // Predicated region
        $region29: #{discriminator_forward.1} parent=11 // pred_check
          %p326 = pneg %p126
        $region30: #{discriminator_forward.1} parent=11 // pred_check_branch
          %328 = sbr.rel (%p326) target = $region32
        $region31: #{discriminator_forward.1} parent=11 // pred_region
          _
        $region32: #{discriminator_forward.1} parent=11 // pred_fallthru
          _
        // Predicated region
        $region33: #{discriminator_forward.1} parent=11 // pred_check
          %p329 = pneg %p147
        $region34: #{discriminator_forward.1} parent=11 // pred_check_branch
          %331 = sbr.rel (%p329) target = $region36
        $region35: #{discriminator_forward.1} parent=11 // pred_region
          _
        $region36: #{discriminator_forward.1} parent=11 // pred_fallthru
          _
        // Predicated region
        $region37: #{discriminator_forward.1} parent=11 // pred_check
          %p332 = pneg %p194
        $region38: #{discriminator_forward.1} parent=11 // pred_check_branch
          %334 = sbr.rel (%p332) target = $region40
        $region39: #{discriminator_forward.1} parent=11 // pred_region
          _
        $region40: #{discriminator_forward.1} parent=11 // pred_fallthru
          _
        // Predicated region
        $region41: #{discriminator_forward.1} parent=11 // pred_check
          %p335 = pneg %p215
        $region42: #{discriminator_forward.1} parent=11 // pred_check_branch
          %337 = sbr.rel (%p335) target = $region44
        $region43: #{discriminator_forward.1} parent=11 // pred_region
          _
        $region44: #{discriminator_forward.1} parent=11 // pred_fallthru
          _
        // Predicated region
        $region45: #{discriminator_forward.1} parent=11 // pred_check
          %p338 = pneg %p236
        $region46: #{discriminator_forward.1} parent=11 // pred_check_branch
          %340 = sbr.rel (%p338) target = $region48
        $region47: #{discriminator_forward.1} parent=11 // pred_region
          _
        $region48: #{discriminator_forward.1} parent=11 // pred_fallthru
          _
        // Predicated region
        $region49: #{discriminator_forward.1} parent=11 // pred_check
          %p341 = pneg %p257
        $region50: #{discriminator_forward.1} parent=11 // pred_check_branch
          %343 = sbr.rel (%p341) target = $region52
        $region51: #{discriminator_forward.1} parent=11 // pred_region
          _
        $region52: #{discriminator_forward.1} parent=11 // pred_fallthru
          _
        // Predicated region
        $region53: #{discriminator_forward.1} parent=11 // pred_check
          %p344 = pneg %p278
        $region54: #{discriminator_forward.1} parent=11 // pred_check_branch
          %346 = sbr.rel (%p344) target = $region56
        $region55: #{discriminator_forward.1} parent=11 // pred_region
          _
        $region56: #{discriminator_forward.1} parent=11 // pred_fallthru
          _
      $region12: #{discriminator_forward.1} parent=5 // pred_fallthru
        _
      %p347 = scmp.lt.s32.totalorder %s21, 7
      // Predicated region
      $region57: #{discriminator_forward.1} parent=5 // pred_check
        %p348 = pneg %p347
      $region58: #{discriminator_forward.1} parent=5 // pred_check_branch
        %350 = sbr.rel (%p348) target = $region60
      $region59: #{discriminator_forward.1} parent=5 // pred_region
        // Predicated region
        $region61: #{discriminator_forward.1} parent=59 // pred_check
          %p351 = pneg %p167
        $region62: #{discriminator_forward.1} parent=59 // pred_check_branch
          %353 = sbr.rel (%p351) target = $region64
        $region63: #{discriminator_forward.1} parent=59 // pred_region
          %s354 = smul.u32 7, %s21
          %p355 = scmp.lt.s32.totalorder %s354, 48
          %s356 = scalar_select %p355, %s354, 48
          %s357 = smul.addr %s356, 128
          %s358 = smul.addr %s357, 4
          %s359 = scalar_lea.vmem %s6, %s358
          %s360 = smul.u32 7, %s21
        $region64: #{discriminator_forward.1} parent=59 // pred_fallthru
          _
      $region60: #{discriminator_forward.1} parent=5 // pred_fallthru
        _
      %p361 = scmp.le.s32.totalorder 1, %s21
      %p362 = scmp.lt.s32.totalorder %s21, 8
      %p363 = pnand %p361, %p362
      %p364 = pneg %p363
      // Predicated region
      $region65: #{discriminator_forward.1} parent=5 // pred_check
        _
      $region66: #{discriminator_forward.1} parent=5 // pred_check_branch
        %366 = sbr.rel (%p363) target = $region68
      $region67: #{discriminator_forward.1} parent=5 // pred_region
        %s367 = ssub.s32 %s21, 1
        %p368 = pneg %p42
        %p369 = pneg %p39
        %p370 = pneg %p63
        %p371 = pneg %p60
        %p372 = pneg %p84
        %p373 = pneg %p81
        %p374 = pneg %p105
        %p375 = pneg %p102
        %p376 = pneg %p126
        %p377 = pneg %p123
        %p378 = pneg %p147
        %p379 = pneg %p144
        %s380 = smul.u32 7, %s26
        %p381 = scmp.lt.s32.totalorder %s380, 48
        %s382 = scalar_select %p381, %s380, 48
        %s383 = smul.addr %s382, 128
        %s384 = smul.addr %s383, 4
        %s385 = scalar_lea.vmem %s6, %s384
        %p386 = pneg %p173
        %p387 = pneg %p170
        %p388 = pneg %p194
        %p389 = pneg %p191
        %p390 = pneg %p215
        %p391 = pneg %p212
        %p392 = pneg %p236
        %p393 = pneg %p233
        %p394 = pneg %p257
        %p395 = pneg %p254
        %p396 = pneg %p278
        %p397 = pneg %p275
        %p398 = pneg %p299
        %p399 = pneg %p296
        %s400 = smul.u32 7, %s26
        %p401 = scmp.lt.s32.totalorder %s400, 48
        %s402 = scalar_select %p401, %s400, 48
        %s403 = smul.addr %s402, 128
        %s404 = smul.addr %s403, 4
        %s405 = scalar_lea.vmem %s6, %s404
        %s406 = smul.u32 7, %s26
        %p407 = scmp.eq.s32.totalorder %s26, 0
        // Predicated region
        $region69: #{discriminator_forward.1} parent=67 // pred_check
          %p408 = pneg %p407
        $region70: #{discriminator_forward.1} parent=67 // pred_check_branch
          %410 = sbr.rel (%p408) target = $region72
        $region71: #{discriminator_forward.1} parent=67 // pred_region
          %411 = vst [vmem:[#allocation3] sm:$0xff] 0.0
          %412 = vst [vmem:[#allocation3 + $0x8] sm:$0xff] 0.0
          %413 = vst [vmem:[#allocation3 + $0x10] sm:$0xff] 0.0
          %414 = vst [vmem:[#allocation3 + $0x18] sm:$0xff] 0.0
          %v415 = vld [vmem:[%s0] sm:$0xff]
          %v416 = vld [vmem:[%s0 + $0x8] sm:$0xff]
          %v417 = vld [vmem:[%s0 + $0x10] sm:$0xff]
          %v418 = vld [vmem:[%s0 + $0x18] sm:$0xff]
          %v419 = vld [vmem:[%s0 + $0x20] sm:$0xff]
          %v420 = vld [vmem:[%s0 + $0x28] sm:$0xff]
          %v421 = vld [vmem:[%s0 + $0x30] sm:$0xff]
          %v422 = vld [vmem:[%s0 + $0x38] sm:$0xff]
          %v423 = vld [vmem:[%s0 + $0x40] sm:$0xff]
          %v424 = vld [vmem:[%s0 + $0x48] sm:$0xff]
          %v425 = vld [vmem:[%s0 + $0x50] sm:$0xff]
          %v426 = vld [vmem:[%s0 + $0x58] sm:$0xff]
          %v427 = vld [vmem:[%s0 + $0x60] sm:$0xff]
          %v428 = vld [vmem:[%s0 + $0x68] sm:$0xff]
          %v429 = vld [vmem:[%s0 + $0x70] sm:$0xff]
          %v430 = vld [vmem:[%s0 + $0x78] sm:$0xff]
          %v431 = vld [vmem:[%s0 + $0x80] sm:$0xff]
          %v432 = vld [vmem:[%s0 + $0x88] sm:$0xff]
          %v433 = vld [vmem:[%s0 + $0x90] sm:$0xff]
          %v434 = vld [vmem:[%s0 + $0x98] sm:$0xff]
          %v435 = vld [vmem:[%s0 + $0xa0] sm:$0xff]
          %v436 = vld [vmem:[%s0 + $0xa8] sm:$0xff]
          %v437 = vld [vmem:[%s0 + $0xb0] sm:$0xff]
          %v438 = vld [vmem:[%s0 + $0xb8] sm:$0xff]
          %v439 = vld [vmem:[%s0 + $0xc0] sm:$0xf]
          %v440 = vld [vmem:[%s1] sm:$0xff]
          %v441 = vld [vmem:[%s1 + $0x8] sm:$0xff]
          %v442 = vld [vmem:[%s1 + $0x10] sm:$0xff]
          %vm443 = vcmask 195584
          %v445 = vsel %vm443, %v415, 0
          %v448 = vsel %vm443, %v416, 0
          %v451 = vsel %vm443, %v417, 0
          %v454 = vsel %vm443, %v418, 0
          %v457 = vsel %vm443, %v419, 0
          %v460 = vsel %vm443, %v420, 0
          %v463 = vsel %vm443, %v421, 0
          %v466 = vsel %vm443, %v422, 0
          %v469 = vsel %vm443, %v423, 0
          %v472 = vsel %vm443, %v424, 0
          %v475 = vsel %vm443, %v425, 0
          %v478 = vsel %vm443, %v426, 0
          %v481 = vsel %vm443, %v427, 0
          %v484 = vsel %vm443, %v428, 0
          %v487 = vsel %vm443, %v429, 0
          %v490 = vsel %vm443, %v430, 0
          %v493 = vsel %vm443, %v431, 0
          %v496 = vsel %vm443, %v432, 0
          %v499 = vsel %vm443, %v433, 0
          %v502 = vsel %vm443, %v434, 0
          %v505 = vsel %vm443, %v435, 0
          %v508 = vsel %vm443, %v436, 0
          %v511 = vsel %vm443, %v437, 0
          %v514 = vsel %vm443, %v438, 0
          %v517 = vsel %vm443, %v439, 0
          %519 = vmatpush.msra.mxu0 0.0
          %520 = vmatpush.msra.mxu0 0.0
          %521 = vmatpush.msra.mxu0 0.0
          %522 = vmatpush.msra.mxu0 0.0
          %523 = vmatpush.msra.mxu0 0.0
          %524 = vmatpush.msra.mxu0 0.0
          %525 = vmatpush.msra.mxu0 0.0
          %526 = vmatpush.msra.mxu0 0.0
          %527 = vmatpush.msra.mxu0 0.0
          %528 = vmatpush.msra.mxu0 0.0
          %529 = vmatpush.msra.mxu0 0.0
          %530 = vmatpush.msra.mxu0 0.0
          %531 = vmatpush.msra.mxu0 0.0
          %532 = vmatpush.msra.mxu0 %v442
          %533 = vmatpush.msra.mxu0 %v441
          %534 = vmatpush.msra.mxu0 %v440
          %535 = vmatmul.f32.gmra.mxu0 %v445
          %v536 = vpop.f32.mrf.mxu0
          %v537 = vadd.f32 0.0, %v536
          %538 = vmatmul.f32.gmra.mxu0 %v448
          %v539 = vpop.f32.mrf.mxu0
          %v540 = vadd.f32 0.0, %v539
          %541 = vmatmul.f32.gmra.mxu0 %v451
          %v542 = vpop.f32.mrf.mxu0
          %v543 = vadd.f32 0.0, %v542
          %544 = vmatmul.f32.gmra.mxu0 %v454
          %v545 = vpop.f32.mrf.mxu0
          %v546 = vadd.f32 0.0, %v545
          %547 = vmatmul.f32.gmra.mxu0 %v457
          %v548 = vpop.f32.mrf.mxu0
          %v549 = vadd.f32 0.0, %v548
          %550 = vmatmul.f32.gmra.mxu0 %v460
          %v551 = vpop.f32.mrf.mxu0
          %v552 = vadd.f32 0.0, %v551
          %553 = vmatmul.f32.gmra.mxu0 %v463
          %v554 = vpop.f32.mrf.mxu0
          %v555 = vadd.f32 0.0, %v554
          %556 = vmatmul.f32.gmra.mxu0 %v466
          %v557 = vpop.f32.mrf.mxu0
          %v558 = vadd.f32 0.0, %v557
          %559 = vmatmul.f32.gmra.mxu0 %v469
          %v560 = vpop.f32.mrf.mxu0
          %v561 = vadd.f32 0.0, %v560
          %562 = vmatmul.f32.gmra.mxu0 %v472
          %v563 = vpop.f32.mrf.mxu0
          %v564 = vadd.f32 0.0, %v563
          %565 = vmatmul.f32.gmra.mxu0 %v475
          %v566 = vpop.f32.mrf.mxu0
          %v567 = vadd.f32 0.0, %v566
          %568 = vmatmul.f32.gmra.mxu0 %v478
          %v569 = vpop.f32.mrf.mxu0
          %v570 = vadd.f32 0.0, %v569
          %571 = vmatmul.f32.gmra.mxu0 %v481
          %v572 = vpop.f32.mrf.mxu0
          %v573 = vadd.f32 0.0, %v572
          %574 = vmatmul.f32.gmra.mxu0 %v484
          %v575 = vpop.f32.mrf.mxu0
          %v576 = vadd.f32 0.0, %v575
          %577 = vmatmul.f32.gmra.mxu0 %v487
          %v578 = vpop.f32.mrf.mxu0
          %v579 = vadd.f32 0.0, %v578
          %580 = vmatmul.f32.gmra.mxu0 %v490
          %v581 = vpop.f32.mrf.mxu0
          %v582 = vadd.f32 0.0, %v581
          %583 = vmatmul.f32.gmra.mxu0 %v493
          %v584 = vpop.f32.mrf.mxu0
          %v585 = vadd.f32 0.0, %v584
          %586 = vmatmul.f32.gmra.mxu0 %v496
          %v587 = vpop.f32.mrf.mxu0
          %v588 = vadd.f32 0.0, %v587
          %589 = vmatmul.f32.gmra.mxu0 %v499
          %v590 = vpop.f32.mrf.mxu0
          %v591 = vadd.f32 0.0, %v590
          %592 = vmatmul.f32.gmra.mxu0 %v502
          %v593 = vpop.f32.mrf.mxu0
          %v594 = vadd.f32 0.0, %v593
          %595 = vmatmul.f32.gmra.mxu0 %v505
          %v596 = vpop.f32.mrf.mxu0
          %v597 = vadd.f32 0.0, %v596
          %598 = vmatmul.f32.gmra.mxu0 %v508
          %v599 = vpop.f32.mrf.mxu0
          %v600 = vadd.f32 0.0, %v599
          %601 = vmatmul.f32.gmra.mxu0 %v511
          %v602 = vpop.f32.mrf.mxu0
          %v603 = vadd.f32 0.0, %v602
          %604 = vmatmul.f32.gmra.mxu0 %v514
          %v605 = vpop.f32.mrf.mxu0
          %v606 = vadd.f32 0.0, %v605
          %607 = vmatmul.f32.gmra.mxu0 %v517
          %v608 = vpop.f32.mrf.mxu0
          %v609 = vadd.f32 0.0, %v608
          %610 = vdwg.mxu0
          %v611 = vmul.f32 %v537, 0.2
          %v612 = vmul.f32 %v540, 0.2
          %v613 = vmul.f32 %v543, 0.2
          %v614 = vmul.f32 %v546, 0.2
          %v615 = vmul.f32 %v549, 0.2
          %v616 = vmul.f32 %v552, 0.2
          %v617 = vmul.f32 %v555, 0.2
          %v618 = vmul.f32 %v558, 0.2
          %v619 = vmul.f32 %v561, 0.2
          %v620 = vmul.f32 %v564, 0.2
          %v621 = vmul.f32 %v567, 0.2
          %v622 = vmul.f32 %v570, 0.2
          %v623 = vmul.f32 %v573, 0.2
          %v624 = vmul.f32 %v576, 0.2
          %v625 = vmul.f32 %v579, 0.2
          %v626 = vmul.f32 %v582, 0.2
          %v627 = vmul.f32 %v585, 0.2
          %v628 = vmul.f32 %v588, 0.2
          %v629 = vmul.f32 %v591, 0.2
          %v630 = vmul.f32 %v594, 0.2
          %v631 = vmul.f32 %v597, 0.2
          %v632 = vmul.f32 %v600, 0.2
          %v633 = vmul.f32 %v603, 0.2
          %v634 = vmul.f32 %v606, 0.2
          %v635 = vmul.f32 %v609, 0.2
          %v636 = vmax.f32 %v537, %v611
          %v637 = vmax.f32 %v540, %v612
          %v638 = vmax.f32 %v543, %v613
          %v639 = vmax.f32 %v546, %v614
          %v640 = vmax.f32 %v549, %v615
          %v641 = vmax.f32 %v552, %v616
          %v642 = vmax.f32 %v555, %v617
          %v643 = vmax.f32 %v558, %v618
          %v644 = vmax.f32 %v561, %v619
          %v645 = vmax.f32 %v564, %v620
          %v646 = vmax.f32 %v567, %v621
          %v647 = vmax.f32 %v570, %v622
          %v648 = vmax.f32 %v573, %v623
          %v649 = vmax.f32 %v576, %v624
          %v650 = vmax.f32 %v579, %v625
          %v651 = vmax.f32 %v582, %v626
          %v652 = vmax.f32 %v585, %v627
          %v653 = vmax.f32 %v588, %v628
          %v654 = vmax.f32 %v591, %v629
          %v655 = vmax.f32 %v594, %v630
          %v656 = vmax.f32 %v597, %v631
          %v657 = vmax.f32 %v600, %v632
          %v658 = vmax.f32 %v603, %v633
          %v659 = vmax.f32 %v606, %v634
          %v660 = vmax.f32 %v609, %v635
          %v661 = vld [vmem:[%s2] sm:$0xff]
          %v662 = vld [vmem:[%s2 + $0x8] sm:$0xff]
          %v663 = vld [vmem:[%s2 + $0x10] sm:$0xff]
          %v664 = vld [vmem:[%s2 + $0x18] sm:$0xff]
          %v665 = vld [vmem:[%s2 + $0x20] sm:$0xff]
          %v666 = vld [vmem:[%s2 + $0x28] sm:$0xff]
          %v667 = vld [vmem:[%s2 + $0x30] sm:$0xff]
          %v668 = vld [vmem:[%s2 + $0x38] sm:$0xff]
          %s669 = scalar_lea.vmem %s0, 200
          %v670 = vld [vmem:[%s669] sm:$0xff]
          %v671 = vld [vmem:[%s669 + $0x8] sm:$0xff]
          %v672 = vld [vmem:[%s669 + $0x10] sm:$0xff]
          %v673 = vld [vmem:[%s669 + $0x18] sm:$0xff]
          %v674 = vld [vmem:[%s669 + $0x20] sm:$0xff]
          %v675 = vld [vmem:[%s669 + $0x28] sm:$0xff]
          %v676 = vld [vmem:[%s669 + $0x30] sm:$0xff]
          %v677 = vld [vmem:[%s669 + $0x38] sm:$0xff]
          %v678 = vld [vmem:[%s669 + $0x40] sm:$0xff]
          %v679 = vld [vmem:[%s669 + $0x48] sm:$0xff]
          %v680 = vld [vmem:[%s669 + $0x50] sm:$0xff]
          %v681 = vld [vmem:[%s669 + $0x58] sm:$0xff]
          %v682 = vld [vmem:[%s669 + $0x60] sm:$0xff]
          %v683 = vld [vmem:[%s669 + $0x68] sm:$0xff]
          %v684 = vld [vmem:[%s669 + $0x70] sm:$0xff]
          %v685 = vld [vmem:[%s669 + $0x78] sm:$0xff]
          %v686 = vld [vmem:[%s669 + $0x80] sm:$0xff]
          %v687 = vld [vmem:[%s669 + $0x88] sm:$0xff]
          %v688 = vld [vmem:[%s669 + $0x90] sm:$0xff]
          %v689 = vld [vmem:[%s669 + $0x98] sm:$0xff]
          %v690 = vld [vmem:[%s669 + $0xa0] sm:$0xff]
          %v691 = vld [vmem:[%s669 + $0xa8] sm:$0xff]
          %v692 = vld [vmem:[%s669 + $0xb0] sm:$0xff]
          %v693 = vld [vmem:[%s669 + $0xb8] sm:$0xff]
          %v694 = vld [vmem:[%s669 + $0xc0] sm:$0xf]
          %v696 = vsel %vm443, %v670, 0
          %v699 = vsel %vm443, %v671, 0
          %v702 = vsel %vm443, %v672, 0
          %v705 = vsel %vm443, %v673, 0
          %v708 = vsel %vm443, %v674, 0
          %v711 = vsel %vm443, %v675, 0
          %v714 = vsel %vm443, %v676, 0
          %v717 = vsel %vm443, %v677, 0
          %v720 = vsel %vm443, %v678, 0
          %v723 = vsel %vm443, %v679, 0
          %v726 = vsel %vm443, %v680, 0
          %v729 = vsel %vm443, %v681, 0
          %v732 = vsel %vm443, %v682, 0
          %v735 = vsel %vm443, %v683, 0
          %v738 = vsel %vm443, %v684, 0
          %v741 = vsel %vm443, %v685, 0
          %v744 = vsel %vm443, %v686, 0
          %v747 = vsel %vm443, %v687, 0
          %v750 = vsel %vm443, %v688, 0
          %v753 = vsel %vm443, %v689, 0
          %v756 = vsel %vm443, %v690, 0
          %v759 = vsel %vm443, %v691, 0
          %v762 = vsel %vm443, %v692, 0
          %v765 = vsel %vm443, %v693, 0
          %v768 = vsel %vm443, %v694, 0
          %770 = vmatpush.msra.mxu0 0.0
          %771 = vmatpush.msra.mxu0 0.0
          %772 = vmatpush.msra.mxu0 0.0
          %773 = vmatpush.msra.mxu0 0.0
          %774 = vmatpush.msra.mxu0 0.0
          %775 = vmatpush.msra.mxu0 0.0
          %776 = vmatpush.msra.mxu0 0.0
          %777 = vmatpush.msra.mxu0 0.0
          %778 = vmatpush.msra.mxu0 0.0
          %779 = vmatpush.msra.mxu0 0.0
          %780 = vmatpush.msra.mxu0 0.0
          %781 = vmatpush.msra.mxu0 0.0
          %782 = vmatpush.msra.mxu0 0.0
          %783 = vmatpush.msra.mxu0 %v442
          %784 = vmatpush.msra.mxu0 %v441
          %785 = vmatpush.msra.mxu0 %v440
          %786 = vmatmul.f32.gmra.mxu0 %v696
          %v787 = vpop.f32.mrf.mxu0
          %v788 = vadd.f32 0.0, %v787
          %789 = vmatmul.f32.gmra.mxu0 %v699
          %v790 = vpop.f32.mrf.mxu0
          %v791 = vadd.f32 0.0, %v790
          %792 = vmatmul.f32.gmra.mxu0 %v702
          %v793 = vpop.f32.mrf.mxu0
          %v794 = vadd.f32 0.0, %v793
          %795 = vmatmul.f32.gmra.mxu0 %v705
          %v796 = vpop.f32.mrf.mxu0
          %v797 = vadd.f32 0.0, %v796
          %798 = vmatmul.f32.gmra.mxu0 %v708
          %v799 = vpop.f32.mrf.mxu0
          %v800 = vadd.f32 0.0, %v799
          %801 = vmatmul.f32.gmra.mxu0 %v711
          %v802 = vpop.f32.mrf.mxu0
          %v803 = vadd.f32 0.0, %v802
          %804 = vmatmul.f32.gmra.mxu0 %v714
          %v805 = vpop.f32.mrf.mxu0
          %v806 = vadd.f32 0.0, %v805
          %807 = vmatmul.f32.gmra.mxu0 %v717
          %v808 = vpop.f32.mrf.mxu0
          %v809 = vadd.f32 0.0, %v808
          %810 = vmatmul.f32.gmra.mxu0 %v720
          %v811 = vpop.f32.mrf.mxu0
          %v812 = vadd.f32 0.0, %v811
          %813 = vmatmul.f32.gmra.mxu0 %v723
          %v814 = vpop.f32.mrf.mxu0
          %v815 = vadd.f32 0.0, %v814
          %816 = vmatmul.f32.gmra.mxu0 %v726
          %v817 = vpop.f32.mrf.mxu0
          %v818 = vadd.f32 0.0, %v817
          %819 = vmatmul.f32.gmra.mxu0 %v729
          %v820 = vpop.f32.mrf.mxu0
          %v821 = vadd.f32 0.0, %v820
          %822 = vmatmul.f32.gmra.mxu0 %v732
          %v823 = vpop.f32.mrf.mxu0
          %v824 = vadd.f32 0.0, %v823
          %825 = vmatmul.f32.gmra.mxu0 %v735
          %v826 = vpop.f32.mrf.mxu0
          %v827 = vadd.f32 0.0, %v826
          %828 = vmatmul.f32.gmra.mxu0 %v738
          %v829 = vpop.f32.mrf.mxu0
          %v830 = vadd.f32 0.0, %v829
          %831 = vmatmul.f32.gmra.mxu0 %v741
          %v832 = vpop.f32.mrf.mxu0
          %v833 = vadd.f32 0.0, %v832
          %834 = vmatmul.f32.gmra.mxu0 %v744
          %v835 = vpop.f32.mrf.mxu0
          %v836 = vadd.f32 0.0, %v835
          %837 = vmatmul.f32.gmra.mxu0 %v747
          %v838 = vpop.f32.mrf.mxu0
          %v839 = vadd.f32 0.0, %v838
          %840 = vmatmul.f32.gmra.mxu0 %v750
          %v841 = vpop.f32.mrf.mxu0
          %v842 = vadd.f32 0.0, %v841
          %843 = vmatmul.f32.gmra.mxu0 %v753
          %v844 = vpop.f32.mrf.mxu0
          %v845 = vadd.f32 0.0, %v844
          %846 = vmatmul.f32.gmra.mxu0 %v756
          %v847 = vpop.f32.mrf.mxu0
          %v848 = vadd.f32 0.0, %v847
          %849 = vmatmul.f32.gmra.mxu0 %v759
          %v850 = vpop.f32.mrf.mxu0
          %v851 = vadd.f32 0.0, %v850
          %852 = vmatmul.f32.gmra.mxu0 %v762
          %v853 = vpop.f32.mrf.mxu0
          %v854 = vadd.f32 0.0, %v853
          %855 = vmatmul.f32.gmra.mxu0 %v765
          %v856 = vpop.f32.mrf.mxu0
          %v857 = vadd.f32 0.0, %v856
          %858 = vmatmul.f32.gmra.mxu0 %v768
          %v859 = vpop.f32.mrf.mxu0
          %v860 = vadd.f32 0.0, %v859
          %861 = vdwg.mxu0
          %v862 = vmul.f32 %v788, 0.2
          %v863 = vmul.f32 %v791, 0.2
          %v864 = vmul.f32 %v794, 0.2
          %v865 = vmul.f32 %v797, 0.2
          %v866 = vmul.f32 %v800, 0.2
          %v867 = vmul.f32 %v803, 0.2
          %v868 = vmul.f32 %v806, 0.2
          %v869 = vmul.f32 %v809, 0.2
          %v870 = vmul.f32 %v812, 0.2
          %v871 = vmul.f32 %v815, 0.2
          %v872 = vmul.f32 %v818, 0.2
          %v873 = vmul.f32 %v821, 0.2
          %v874 = vmul.f32 %v824, 0.2
          %v875 = vmul.f32 %v827, 0.2
          %v876 = vmul.f32 %v830, 0.2
          %v877 = vmul.f32 %v833, 0.2
          %v878 = vmul.f32 %v836, 0.2
          %v879 = vmul.f32 %v839, 0.2
          %v880 = vmul.f32 %v842, 0.2
          %v881 = vmul.f32 %v845, 0.2
          %v882 = vmul.f32 %v848, 0.2
          %v883 = vmul.f32 %v851, 0.2
          %v884 = vmul.f32 %v854, 0.2
          %v885 = vmul.f32 %v857, 0.2
          %v886 = vmul.f32 %v860, 0.2
          %v887 = vmax.f32 %v788, %v862
          %v888 = vmax.f32 %v791, %v863
          %v889 = vmax.f32 %v794, %v864
          %v890 = vmax.f32 %v797, %v865
          %v891 = vmax.f32 %v800, %v866
          %v892 = vmax.f32 %v803, %v867
          %v893 = vmax.f32 %v806, %v868
          %v894 = vmax.f32 %v809, %v869
          %v895 = vmax.f32 %v812, %v870
          %v896 = vmax.f32 %v815, %v871
          %v897 = vmax.f32 %v818, %v872
          %v898 = vmax.f32 %v821, %v873
          %v899 = vmax.f32 %v824, %v874
          %v900 = vmax.f32 %v827, %v875
          %v901 = vmax.f32 %v830, %v876
          %v902 = vmax.f32 %v833, %v877
          %v903 = vmax.f32 %v836, %v878
          %v904 = vmax.f32 %v839, %v879
          %v905 = vmax.f32 %v842, %v880
          %v906 = vmax.f32 %v845, %v881
          %v907 = vmax.f32 %v848, %v882
          %v908 = vmax.f32 %v851, %v883
          %v909 = vmax.f32 %v854, %v884
          %v910 = vmax.f32 %v857, %v885
          %v911 = vmax.f32 %v860, %v886
          %s912 = scalar_lea.vmem %s2, 64
          %v913 = vld [vmem:[%s912] sm:$0xff]
          %v914 = vld [vmem:[%s912 + $0x8] sm:$0xff]
          %v915 = vld [vmem:[%s912 + $0x10] sm:$0xff]
          %v916 = vld [vmem:[%s912 + $0x18] sm:$0xff]
          %v917 = vld [vmem:[%s912 + $0x20] sm:$0xff]
          %v918 = vld [vmem:[%s912 + $0x28] sm:$0xff]
          %v919 = vld [vmem:[%s912 + $0x30] sm:$0xff]
          %v920 = vld [vmem:[%s912 + $0x38] sm:$0xff]
          %vm921 = vcmask 523264
          %v923 = vsel %vm921, %v887, 0
          %v926 = vsel %vm921, %v888, 0
          %v929 = vsel %vm921, %v889, 0
          %v932 = vsel %vm921, %v890, 0
          %v935 = vsel %vm921, %v891, 0
          %v938 = vsel %vm921, %v892, 0
          %v941 = vsel %vm921, %v893, 0
          %v944 = vsel %vm921, %v894, 0
          %v947 = vsel %vm921, %v895, 0
          %v950 = vsel %vm921, %v896, 0
          %v953 = vsel %vm921, %v897, 0
          %v956 = vsel %vm921, %v898, 0
          %v959 = vsel %vm921, %v899, 0
          %v962 = vsel %vm921, %v900, 0
          %v965 = vsel %vm921, %v901, 0
          %v968 = vsel %vm921, %v902, 0
          %v971 = vsel %vm921, %v903, 0
          %v974 = vsel %vm921, %v904, 0
          %v977 = vsel %vm921, %v905, 0
          %v980 = vsel %vm921, %v906, 0
          %v983 = vsel %vm921, %v907, 0
          %v986 = vsel %vm921, %v908, 0
          %v989 = vsel %vm921, %v909, 0
          %v992 = vsel %vm921, %v910, 0
          %v995 = vsel %vm921, %v911, 0
          %997 = vmatpush.msra.mxu0 0.0
          %998 = vmatpush.msra.mxu0 0.0
          %999 = vmatpush.msra.mxu0 0.0
          %1000 = vmatpush.msra.mxu0 0.0
          %1001 = vmatpush.msra.mxu0 0.0
          %1002 = vmatpush.msra.mxu0 0.0
          %1003 = vmatpush.msra.mxu0 0.0
          %1004 = vmatpush.msra.mxu0 0.0
          %1005 = vmatpush.msra.mxu0 %v920
          %1006 = vmatpush.msra.mxu0 %v919
          %1007 = vmatpush.msra.mxu0 %v918
          %1008 = vmatpush.msra.mxu0 %v917
          %1009 = vmatpush.msra.mxu0 %v916
          %1010 = vmatpush.msra.mxu0 %v915
          %1011 = vmatpush.msra.mxu0 %v914
          %1012 = vmatpush.msra.mxu0 %v913
          %1013 = vmatmul.f32.gmra.mxu0 %v923
          %v1014 = vpop.f32.mrf.mxu0
          %v1015 = vadd.f32 0.0, %v1014
          %1016 = vmatmul.f32.gmra.mxu0 %v926
          %v1017 = vpop.f32.mrf.mxu0
          %v1018 = vadd.f32 0.0, %v1017
          %1019 = vmatmul.f32.gmra.mxu0 %v929
          %v1020 = vpop.f32.mrf.mxu0
          %v1021 = vadd.f32 0.0, %v1020
          %1022 = vmatmul.f32.gmra.mxu0 %v932
          %v1023 = vpop.f32.mrf.mxu0
          %v1024 = vadd.f32 0.0, %v1023
          %1025 = vmatmul.f32.gmra.mxu0 %v935
          %v1026 = vpop.f32.mrf.mxu0
          %v1027 = vadd.f32 0.0, %v1026
          %1028 = vmatmul.f32.gmra.mxu0 %v938
          %v1029 = vpop.f32.mrf.mxu0
          %v1030 = vadd.f32 0.0, %v1029
          %1031 = vmatmul.f32.gmra.mxu0 %v941
          %v1032 = vpop.f32.mrf.mxu0
          %v1033 = vadd.f32 0.0, %v1032
          %1034 = vmatmul.f32.gmra.mxu0 %v944
          %v1035 = vpop.f32.mrf.mxu0
          %v1036 = vadd.f32 0.0, %v1035
          %1037 = vmatmul.f32.gmra.mxu0 %v947
          %v1038 = vpop.f32.mrf.mxu0
          %v1039 = vadd.f32 0.0, %v1038
          %1040 = vmatmul.f32.gmra.mxu0 %v950
          %v1041 = vpop.f32.mrf.mxu0
          %v1042 = vadd.f32 0.0, %v1041
          %1043 = vmatmul.f32.gmra.mxu0 %v953
          %v1044 = vpop.f32.mrf.mxu0
          %v1045 = vadd.f32 0.0, %v1044
          %1046 = vmatmul.f32.gmra.mxu0 %v956
          %v1047 = vpop.f32.mrf.mxu0
          %v1048 = vadd.f32 0.0, %v1047
          %1049 = vmatmul.f32.gmra.mxu0 %v959
          %v1050 = vpop.f32.mrf.mxu0
          %v1051 = vadd.f32 0.0, %v1050
          %1052 = vmatmul.f32.gmra.mxu0 %v962
          %v1053 = vpop.f32.mrf.mxu0
          %v1054 = vadd.f32 0.0, %v1053
          %1055 = vmatmul.f32.gmra.mxu0 %v965
          %v1056 = vpop.f32.mrf.mxu0
          %v1057 = vadd.f32 0.0, %v1056
          %1058 = vmatmul.f32.gmra.mxu0 %v968
          %v1059 = vpop.f32.mrf.mxu0
          %v1060 = vadd.f32 0.0, %v1059
          %1061 = vmatmul.f32.gmra.mxu0 %v971
          %v1062 = vpop.f32.mrf.mxu0
          %v1063 = vadd.f32 0.0, %v1062
          %1064 = vmatmul.f32.gmra.mxu0 %v974
          %v1065 = vpop.f32.mrf.mxu0
          %v1066 = vadd.f32 0.0, %v1065
          %1067 = vmatmul.f32.gmra.mxu0 %v977
          %v1068 = vpop.f32.mrf.mxu0
          %v1069 = vadd.f32 0.0, %v1068
          %1070 = vmatmul.f32.gmra.mxu0 %v980
          %v1071 = vpop.f32.mrf.mxu0
          %v1072 = vadd.f32 0.0, %v1071
          %1073 = vmatmul.f32.gmra.mxu0 %v983
          %v1074 = vpop.f32.mrf.mxu0
          %v1075 = vadd.f32 0.0, %v1074
          %1076 = vmatmul.f32.gmra.mxu0 %v986
          %v1077 = vpop.f32.mrf.mxu0
          %v1078 = vadd.f32 0.0, %v1077
          %1079 = vmatmul.f32.gmra.mxu0 %v989
          %v1080 = vpop.f32.mrf.mxu0
          %v1081 = vadd.f32 0.0, %v1080
          %1082 = vmatmul.f32.gmra.mxu0 %v992
          %v1083 = vpop.f32.mrf.mxu0
          %v1084 = vadd.f32 0.0, %v1083
          %1085 = vmatmul.f32.gmra.mxu0 %v995
          %v1086 = vpop.f32.mrf.mxu0
          %v1087 = vadd.f32 0.0, %v1086
          %1088 = vdwg.mxu0
          %v1090 = vsel %vm921, %v636, 0
          %v1093 = vsel %vm921, %v637, 0
          %v1096 = vsel %vm921, %v638, 0
          %v1099 = vsel %vm921, %v639, 0
          %v1102 = vsel %vm921, %v640, 0
          %v1105 = vsel %vm921, %v641, 0
          %v1108 = vsel %vm921, %v642, 0
          %v1111 = vsel %vm921, %v643, 0
          %v1114 = vsel %vm921, %v644, 0
          %v1117 = vsel %vm921, %v645, 0
          %v1120 = vsel %vm921, %v646, 0
          %v1123 = vsel %vm921, %v647, 0
          %v1126 = vsel %vm921, %v648, 0
          %v1129 = vsel %vm921, %v649, 0
          %v1132 = vsel %vm921, %v650, 0
          %v1135 = vsel %vm921, %v651, 0
          %v1138 = vsel %vm921, %v652, 0
          %v1141 = vsel %vm921, %v653, 0
          %v1144 = vsel %vm921, %v654, 0
          %v1147 = vsel %vm921, %v655, 0
          %v1150 = vsel %vm921, %v656, 0
          %v1153 = vsel %vm921, %v657, 0
          %v1156 = vsel %vm921, %v658, 0
          %v1159 = vsel %vm921, %v659, 0
          %v1162 = vsel %vm921, %v660, 0
          %1164 = vmatpush.msra.mxu0 0.0
          %1165 = vmatpush.msra.mxu0 0.0
          %1166 = vmatpush.msra.mxu0 0.0
          %1167 = vmatpush.msra.mxu0 0.0
          %1168 = vmatpush.msra.mxu0 0.0
          %1169 = vmatpush.msra.mxu0 0.0
          %1170 = vmatpush.msra.mxu0 0.0
          %1171 = vmatpush.msra.mxu0 0.0
          %1172 = vmatpush.msra.mxu0 %v668
          %1173 = vmatpush.msra.mxu0 %v667
          %1174 = vmatpush.msra.mxu0 %v666
          %1175 = vmatpush.msra.mxu0 %v665
          %1176 = vmatpush.msra.mxu0 %v664
          %1177 = vmatpush.msra.mxu0 %v663
          %1178 = vmatpush.msra.mxu0 %v662
          %1179 = vmatpush.msra.mxu0 %v661
          %1180 = vmatmul.f32.gmra.mxu0 %v1090
          %v1181 = vpop.f32.mrf.mxu0
          %v1182 = vadd.f32 %v1015, %v1181
          %1183 = vmatmul.f32.gmra.mxu0 %v1093
          %v1184 = vpop.f32.mrf.mxu0
          %v1185 = vadd.f32 %v1018, %v1184
          %1186 = vmatmul.f32.gmra.mxu0 %v1096
          %v1187 = vpop.f32.mrf.mxu0
          %v1188 = vadd.f32 %v1021, %v1187
          %1189 = vmatmul.f32.gmra.mxu0 %v1099
          %v1190 = vpop.f32.mrf.mxu0
          %v1191 = vadd.f32 %v1024, %v1190
          %1192 = vmatmul.f32.gmra.mxu0 %v1102
          %v1193 = vpop.f32.mrf.mxu0
          %v1194 = vadd.f32 %v1027, %v1193
          %1195 = vmatmul.f32.gmra.mxu0 %v1105
          %v1196 = vpop.f32.mrf.mxu0
          %v1197 = vadd.f32 %v1030, %v1196
          %1198 = vmatmul.f32.gmra.mxu0 %v1108
          %v1199 = vpop.f32.mrf.mxu0
          %v1200 = vadd.f32 %v1033, %v1199
          %1201 = vmatmul.f32.gmra.mxu0 %v1111
          %v1202 = vpop.f32.mrf.mxu0
          %v1203 = vadd.f32 %v1036, %v1202
          %1204 = vmatmul.f32.gmra.mxu0 %v1114
          %v1205 = vpop.f32.mrf.mxu0
          %v1206 = vadd.f32 %v1039, %v1205
          %1207 = vmatmul.f32.gmra.mxu0 %v1117
          %v1208 = vpop.f32.mrf.mxu0
          %v1209 = vadd.f32 %v1042, %v1208
          %1210 = vmatmul.f32.gmra.mxu0 %v1120
          %v1211 = vpop.f32.mrf.mxu0
          %v1212 = vadd.f32 %v1045, %v1211
          %1213 = vmatmul.f32.gmra.mxu0 %v1123
          %v1214 = vpop.f32.mrf.mxu0
          %v1215 = vadd.f32 %v1048, %v1214
          %1216 = vmatmul.f32.gmra.mxu0 %v1126
          %v1217 = vpop.f32.mrf.mxu0
          %v1218 = vadd.f32 %v1051, %v1217
          %1219 = vmatmul.f32.gmra.mxu0 %v1129
          %v1220 = vpop.f32.mrf.mxu0
          %v1221 = vadd.f32 %v1054, %v1220
          %1222 = vmatmul.f32.gmra.mxu0 %v1132
          %v1223 = vpop.f32.mrf.mxu0
          %v1224 = vadd.f32 %v1057, %v1223
          %1225 = vmatmul.f32.gmra.mxu0 %v1135
          %v1226 = vpop.f32.mrf.mxu0
          %v1227 = vadd.f32 %v1060, %v1226
          %1228 = vmatmul.f32.gmra.mxu0 %v1138
          %v1229 = vpop.f32.mrf.mxu0
          %v1230 = vadd.f32 %v1063, %v1229
          %1231 = vmatmul.f32.gmra.mxu0 %v1141
          %v1232 = vpop.f32.mrf.mxu0
          %v1233 = vadd.f32 %v1066, %v1232
          %1234 = vmatmul.f32.gmra.mxu0 %v1144
          %v1235 = vpop.f32.mrf.mxu0
          %v1236 = vadd.f32 %v1069, %v1235
          %1237 = vmatmul.f32.gmra.mxu0 %v1147
          %v1238 = vpop.f32.mrf.mxu0
          %v1239 = vadd.f32 %v1072, %v1238
          %1240 = vmatmul.f32.gmra.mxu0 %v1150
          %v1241 = vpop.f32.mrf.mxu0
          %v1242 = vadd.f32 %v1075, %v1241
          %1243 = vmatmul.f32.gmra.mxu0 %v1153
          %v1244 = vpop.f32.mrf.mxu0
          %v1245 = vadd.f32 %v1078, %v1244
          %1246 = vmatmul.f32.gmra.mxu0 %v1156
          %v1247 = vpop.f32.mrf.mxu0
          %v1248 = vadd.f32 %v1081, %v1247
          %1249 = vmatmul.f32.gmra.mxu0 %v1159
          %v1250 = vpop.f32.mrf.mxu0
          %v1251 = vadd.f32 %v1084, %v1250
          %1252 = vmatmul.f32.gmra.mxu0 %v1162
          %v1253 = vpop.f32.mrf.mxu0
          %v1254 = vadd.f32 %v1087, %v1253
          %1255 = vdwg.mxu0
          %s1256 = scalar_lea.vmem %s0, 400
          %v1257 = vld [vmem:[%s1256] sm:$0xff]
          %v1258 = vld [vmem:[%s1256 + $0x8] sm:$0xff]
          %v1259 = vld [vmem:[%s1256 + $0x10] sm:$0xff]
          %v1260 = vld [vmem:[%s1256 + $0x18] sm:$0xff]
          %v1261 = vld [vmem:[%s1256 + $0x20] sm:$0xff]
          %v1262 = vld [vmem:[%s1256 + $0x28] sm:$0xff]
          %v1263 = vld [vmem:[%s1256 + $0x30] sm:$0xff]
          %v1264 = vld [vmem:[%s1256 + $0x38] sm:$0xff]
          %v1265 = vld [vmem:[%s1256 + $0x40] sm:$0xff]
          %v1266 = vld [vmem:[%s1256 + $0x48] sm:$0xff]
          %v1267 = vld [vmem:[%s1256 + $0x50] sm:$0xff]
          %v1268 = vld [vmem:[%s1256 + $0x58] sm:$0xff]
          %v1269 = vld [vmem:[%s1256 + $0x60] sm:$0xff]
          %v1270 = vld [vmem:[%s1256 + $0x68] sm:$0xff]
          %v1271 = vld [vmem:[%s1256 + $0x70] sm:$0xff]
          %v1272 = vld [vmem:[%s1256 + $0x78] sm:$0xff]
          %v1273 = vld [vmem:[%s1256 + $0x80] sm:$0xff]
          %v1274 = vld [vmem:[%s1256 + $0x88] sm:$0xff]
          %v1275 = vld [vmem:[%s1256 + $0x90] sm:$0xff]
          %v1276 = vld [vmem:[%s1256 + $0x98] sm:$0xff]
          %v1277 = vld [vmem:[%s1256 + $0xa0] sm:$0xff]
          %v1278 = vld [vmem:[%s1256 + $0xa8] sm:$0xff]
          %v1279 = vld [vmem:[%s1256 + $0xb0] sm:$0xff]
          %v1280 = vld [vmem:[%s1256 + $0xb8] sm:$0xff]
          %v1281 = vld [vmem:[%s1256 + $0xc0] sm:$0xf]
          %v1283 = vsel %vm443, %v1257, 0
          %v1286 = vsel %vm443, %v1258, 0
          %v1289 = vsel %vm443, %v1259, 0
          %v1292 = vsel %vm443, %v1260, 0
          %v1295 = vsel %vm443, %v1261, 0
          %v1298 = vsel %vm443, %v1262, 0
          %v1301 = vsel %vm443, %v1263, 0
          %v1304 = vsel %vm443, %v1264, 0
          %v1307 = vsel %vm443, %v1265, 0
          %v1310 = vsel %vm443, %v1266, 0
          %v1313 = vsel %vm443, %v1267, 0
          %v1316 = vsel %vm443, %v1268, 0
          %v1319 = vsel %vm443, %v1269, 0
          %v1322 = vsel %vm443, %v1270, 0
          %v1325 = vsel %vm443, %v1271, 0
          %v1328 = vsel %vm443, %v1272, 0
          %v1331 = vsel %vm443, %v1273, 0
          %v1334 = vsel %vm443, %v1274, 0
          %v1337 = vsel %vm443, %v1275, 0
          %v1340 = vsel %vm443, %v1276, 0
          %v1343 = vsel %vm443, %v1277, 0
          %v1346 = vsel %vm443, %v1278, 0
          %v1349 = vsel %vm443, %v1279, 0
          %v1352 = vsel %vm443, %v1280, 0
          %v1355 = vsel %vm443, %v1281, 0
          %1357 = vmatpush.msra.mxu0 0.0
          %1358 = vmatpush.msra.mxu0 0.0
          %1359 = vmatpush.msra.mxu0 0.0
          %1360 = vmatpush.msra.mxu0 0.0
          %1361 = vmatpush.msra.mxu0 0.0
          %1362 = vmatpush.msra.mxu0 0.0
          %1363 = vmatpush.msra.mxu0 0.0
          %1364 = vmatpush.msra.mxu0 0.0
          %1365 = vmatpush.msra.mxu0 0.0
          %1366 = vmatpush.msra.mxu0 0.0
          %1367 = vmatpush.msra.mxu0 0.0
          %1368 = vmatpush.msra.mxu0 0.0
          %1369 = vmatpush.msra.mxu0 0.0
          %1370 = vmatpush.msra.mxu0 %v442
          %1371 = vmatpush.msra.mxu0 %v441
          %1372 = vmatpush.msra.mxu0 %v440
          %1373 = vmatmul.f32.gmra.mxu0 %v1283
          %v1374 = vpop.f32.mrf.mxu0
          %v1375 = vadd.f32 0.0, %v1374
          %1376 = vmatmul.f32.gmra.mxu0 %v1286
          %v1377 = vpop.f32.mrf.mxu0
          %v1378 = vadd.f32 0.0, %v1377
          %1379 = vmatmul.f32.gmra.mxu0 %v1289
          %v1380 = vpop.f32.mrf.mxu0
          %v1381 = vadd.f32 0.0, %v1380
          %1382 = vmatmul.f32.gmra.mxu0 %v1292
          %v1383 = vpop.f32.mrf.mxu0
          %v1384 = vadd.f32 0.0, %v1383
          %1385 = vmatmul.f32.gmra.mxu0 %v1295
          %v1386 = vpop.f32.mrf.mxu0
          %v1387 = vadd.f32 0.0, %v1386
          %1388 = vmatmul.f32.gmra.mxu0 %v1298
          %v1389 = vpop.f32.mrf.mxu0
          %v1390 = vadd.f32 0.0, %v1389
          %1391 = vmatmul.f32.gmra.mxu0 %v1301
          %v1392 = vpop.f32.mrf.mxu0
          %v1393 = vadd.f32 0.0, %v1392
          %1394 = vmatmul.f32.gmra.mxu0 %v1304
          %v1395 = vpop.f32.mrf.mxu0
          %v1396 = vadd.f32 0.0, %v1395
          %1397 = vmatmul.f32.gmra.mxu0 %v1307
          %v1398 = vpop.f32.mrf.mxu0
          %v1399 = vadd.f32 0.0, %v1398
          %1400 = vmatmul.f32.gmra.mxu0 %v1310
          %v1401 = vpop.f32.mrf.mxu0
          %v1402 = vadd.f32 0.0, %v1401
          %1403 = vmatmul.f32.gmra.mxu0 %v1313
          %v1404 = vpop.f32.mrf.mxu0
          %v1405 = vadd.f32 0.0, %v1404
          %1406 = vmatmul.f32.gmra.mxu0 %v1316
          %v1407 = vpop.f32.mrf.mxu0
          %v1408 = vadd.f32 0.0, %v1407
          %1409 = vmatmul.f32.gmra.mxu0 %v1319
          %v1410 = vpop.f32.mrf.mxu0
          %v1411 = vadd.f32 0.0, %v1410
          %1412 = vmatmul.f32.gmra.mxu0 %v1322
          %v1413 = vpop.f32.mrf.mxu0
          %v1414 = vadd.f32 0.0, %v1413
          %1415 = vmatmul.f32.gmra.mxu0 %v1325
          %v1416 = vpop.f32.mrf.mxu0
          %v1417 = vadd.f32 0.0, %v1416
          %1418 = vmatmul.f32.gmra.mxu0 %v1328
          %v1419 = vpop.f32.mrf.mxu0
          %v1420 = vadd.f32 0.0, %v1419
          %1421 = vmatmul.f32.gmra.mxu0 %v1331
          %v1422 = vpop.f32.mrf.mxu0
          %v1423 = vadd.f32 0.0, %v1422
          %1424 = vmatmul.f32.gmra.mxu0 %v1334
          %v1425 = vpop.f32.mrf.mxu0
          %v1426 = vadd.f32 0.0, %v1425
          %1427 = vmatmul.f32.gmra.mxu0 %v1337
          %v1428 = vpop.f32.mrf.mxu0
          %v1429 = vadd.f32 0.0, %v1428
          %1430 = vmatmul.f32.gmra.mxu0 %v1340
          %v1431 = vpop.f32.mrf.mxu0
          %v1432 = vadd.f32 0.0, %v1431
          %1433 = vmatmul.f32.gmra.mxu0 %v1343
          %v1434 = vpop.f32.mrf.mxu0
          %v1435 = vadd.f32 0.0, %v1434
          %1436 = vmatmul.f32.gmra.mxu0 %v1346
          %v1437 = vpop.f32.mrf.mxu0
          %v1438 = vadd.f32 0.0, %v1437
          %1439 = vmatmul.f32.gmra.mxu0 %v1349
          %v1440 = vpop.f32.mrf.mxu0
          %v1441 = vadd.f32 0.0, %v1440
          %1442 = vmatmul.f32.gmra.mxu0 %v1352
          %v1443 = vpop.f32.mrf.mxu0
          %v1444 = vadd.f32 0.0, %v1443
          %1445 = vmatmul.f32.gmra.mxu0 %v1355
          %v1446 = vpop.f32.mrf.mxu0
          %v1447 = vadd.f32 0.0, %v1446
          %1448 = vdwg.mxu0
          %v1449 = vmul.f32 %v1375, 0.2
          %v1450 = vmul.f32 %v1378, 0.2
          %v1451 = vmul.f32 %v1381, 0.2
          %v1452 = vmul.f32 %v1384, 0.2
          %v1453 = vmul.f32 %v1387, 0.2
          %v1454 = vmul.f32 %v1390, 0.2
          %v1455 = vmul.f32 %v1393, 0.2
          %v1456 = vmul.f32 %v1396, 0.2
          %v1457 = vmul.f32 %v1399, 0.2
          %v1458 = vmul.f32 %v1402, 0.2
          %v1459 = vmul.f32 %v1405, 0.2
          %v1460 = vmul.f32 %v1408, 0.2
          %v1461 = vmul.f32 %v1411, 0.2
          %v1462 = vmul.f32 %v1414, 0.2
          %v1463 = vmul.f32 %v1417, 0.2
          %v1464 = vmul.f32 %v1420, 0.2
          %v1465 = vmul.f32 %v1423, 0.2
          %v1466 = vmul.f32 %v1426, 0.2
          %v1467 = vmul.f32 %v1429, 0.2
          %v1468 = vmul.f32 %v1432, 0.2
          %v1469 = vmul.f32 %v1435, 0.2
          %v1470 = vmul.f32 %v1438, 0.2
          %v1471 = vmul.f32 %v1441, 0.2
          %v1472 = vmul.f32 %v1444, 0.2
          %v1473 = vmul.f32 %v1447, 0.2
          %v1474 = vmax.f32 %v1375, %v1449
          %v1475 = vmax.f32 %v1378, %v1450
          %v1476 = vmax.f32 %v1381, %v1451
          %v1477 = vmax.f32 %v1384, %v1452
          %v1478 = vmax.f32 %v1387, %v1453
          %v1479 = vmax.f32 %v1390, %v1454
          %v1480 = vmax.f32 %v1393, %v1455
          %v1481 = vmax.f32 %v1396, %v1456
          %v1482 = vmax.f32 %v1399, %v1457
          %v1483 = vmax.f32 %v1402, %v1458
          %v1484 = vmax.f32 %v1405, %v1459
          %v1485 = vmax.f32 %v1408, %v1460
          %v1486 = vmax.f32 %v1411, %v1461
          %v1487 = vmax.f32 %v1414, %v1462
          %v1488 = vmax.f32 %v1417, %v1463
          %v1489 = vmax.f32 %v1420, %v1464
          %v1490 = vmax.f32 %v1423, %v1465
          %v1491 = vmax.f32 %v1426, %v1466
          %v1492 = vmax.f32 %v1429, %v1467
          %v1493 = vmax.f32 %v1432, %v1468
          %v1494 = vmax.f32 %v1435, %v1469
          %v1495 = vmax.f32 %v1438, %v1470
          %v1496 = vmax.f32 %v1441, %v1471
          %v1497 = vmax.f32 %v1444, %v1472
          %v1498 = vmax.f32 %v1447, %v1473
          %s1499 = scalar_lea.vmem %s2, 128
          %v1500 = vld [vmem:[%s1499] sm:$0xff]
          %v1501 = vld [vmem:[%s1499 + $0x8] sm:$0xff]
          %v1502 = vld [vmem:[%s1499 + $0x10] sm:$0xff]
          %v1503 = vld [vmem:[%s1499 + $0x18] sm:$0xff]
          %v1504 = vld [vmem:[%s1499 + $0x20] sm:$0xff]
          %v1505 = vld [vmem:[%s1499 + $0x28] sm:$0xff]
          %v1506 = vld [vmem:[%s1499 + $0x30] sm:$0xff]
          %v1507 = vld [vmem:[%s1499 + $0x38] sm:$0xff]
          %v1509 = vsel %vm921, %v1474, 0
          %v1512 = vsel %vm921, %v1475, 0
          %v1515 = vsel %vm921, %v1476, 0
          %v1518 = vsel %vm921, %v1477, 0
          %v1521 = vsel %vm921, %v1478, 0
          %v1524 = vsel %vm921, %v1479, 0
          %v1527 = vsel %vm921, %v1480, 0
          %v1530 = vsel %vm921, %v1481, 0
          %v1533 = vsel %vm921, %v1482, 0
          %v1536 = vsel %vm921, %v1483, 0
          %v1539 = vsel %vm921, %v1484, 0
          %v1542 = vsel %vm921, %v1485, 0
          %v1545 = vsel %vm921, %v1486, 0
          %v1548 = vsel %vm921, %v1487, 0
          %v1551 = vsel %vm921, %v1488, 0
          %v1554 = vsel %vm921, %v1489, 0
          %v1557 = vsel %vm921, %v1490, 0
          %v1560 = vsel %vm921, %v1491, 0
          %v1563 = vsel %vm921, %v1492, 0
          %v1566 = vsel %vm921, %v1493, 0
          %v1569 = vsel %vm921, %v1494, 0
          %v1572 = vsel %vm921, %v1495, 0
          %v1575 = vsel %vm921, %v1496, 0
          %v1578 = vsel %vm921, %v1497, 0
          %v1581 = vsel %vm921, %v1498, 0
          %1583 = vmatpush.msra.mxu0 0.0
          %1584 = vmatpush.msra.mxu0 0.0
          %1585 = vmatpush.msra.mxu0 0.0
          %1586 = vmatpush.msra.mxu0 0.0
          %1587 = vmatpush.msra.mxu0 0.0
          %1588 = vmatpush.msra.mxu0 0.0
          %1589 = vmatpush.msra.mxu0 0.0
          %1590 = vmatpush.msra.mxu0 0.0
          %1591 = vmatpush.msra.mxu0 %v1507
          %1592 = vmatpush.msra.mxu0 %v1506
          %1593 = vmatpush.msra.mxu0 %v1505
          %1594 = vmatpush.msra.mxu0 %v1504
          %1595 = vmatpush.msra.mxu0 %v1503
          %1596 = vmatpush.msra.mxu0 %v1502
          %1597 = vmatpush.msra.mxu0 %v1501
          %1598 = vmatpush.msra.mxu0 %v1500
          %1599 = vmatmul.f32.gmra.mxu0 %v1509
          %v1600 = vpop.f32.mrf.mxu0
          %v1601 = vadd.f32 0.0, %v1600
          %1602 = vmatmul.f32.gmra.mxu0 %v1512
          %v1603 = vpop.f32.mrf.mxu0
          %v1604 = vadd.f32 0.0, %v1603
          %1605 = vmatmul.f32.gmra.mxu0 %v1515
          %v1606 = vpop.f32.mrf.mxu0
          %v1607 = vadd.f32 0.0, %v1606
          %1608 = vmatmul.f32.gmra.mxu0 %v1518
          %v1609 = vpop.f32.mrf.mxu0
          %v1610 = vadd.f32 0.0, %v1609
          %1611 = vmatmul.f32.gmra.mxu0 %v1521
          %v1612 = vpop.f32.mrf.mxu0
          %v1613 = vadd.f32 0.0, %v1612
          %1614 = vmatmul.f32.gmra.mxu0 %v1524
          %v1615 = vpop.f32.mrf.mxu0
          %v1616 = vadd.f32 0.0, %v1615
          %1617 = vmatmul.f32.gmra.mxu0 %v1527
          %v1618 = vpop.f32.mrf.mxu0
          %v1619 = vadd.f32 0.0, %v1618
          %1620 = vmatmul.f32.gmra.mxu0 %v1530
          %v1621 = vpop.f32.mrf.mxu0
          %v1622 = vadd.f32 0.0, %v1621
          %1623 = vmatmul.f32.gmra.mxu0 %v1533
          %v1624 = vpop.f32.mrf.mxu0
          %v1625 = vadd.f32 0.0, %v1624
          %1626 = vmatmul.f32.gmra.mxu0 %v1536
          %v1627 = vpop.f32.mrf.mxu0
          %v1628 = vadd.f32 0.0, %v1627
          %1629 = vmatmul.f32.gmra.mxu0 %v1539
          %v1630 = vpop.f32.mrf.mxu0
          %v1631 = vadd.f32 0.0, %v1630
          %1632 = vmatmul.f32.gmra.mxu0 %v1542
          %v1633 = vpop.f32.mrf.mxu0
          %v1634 = vadd.f32 0.0, %v1633
          %1635 = vmatmul.f32.gmra.mxu0 %v1545
          %v1636 = vpop.f32.mrf.mxu0
          %v1637 = vadd.f32 0.0, %v1636
          %1638 = vmatmul.f32.gmra.mxu0 %v1548
          %v1639 = vpop.f32.mrf.mxu0
          %v1640 = vadd.f32 0.0, %v1639
          %1641 = vmatmul.f32.gmra.mxu0 %v1551
          %v1642 = vpop.f32.mrf.mxu0
          %v1643 = vadd.f32 0.0, %v1642
          %1644 = vmatmul.f32.gmra.mxu0 %v1554
          %v1645 = vpop.f32.mrf.mxu0
          %v1646 = vadd.f32 0.0, %v1645
          %1647 = vmatmul.f32.gmra.mxu0 %v1557
          %v1648 = vpop.f32.mrf.mxu0
          %v1649 = vadd.f32 0.0, %v1648
          %1650 = vmatmul.f32.gmra.mxu0 %v1560
          %v1651 = vpop.f32.mrf.mxu0
          %v1652 = vadd.f32 0.0, %v1651
          %1653 = vmatmul.f32.gmra.mxu0 %v1563
          %v1654 = vpop.f32.mrf.mxu0
          %v1655 = vadd.f32 0.0, %v1654
          %1656 = vmatmul.f32.gmra.mxu0 %v1566
          %v1657 = vpop.f32.mrf.mxu0
          %v1658 = vadd.f32 0.0, %v1657
          %1659 = vmatmul.f32.gmra.mxu0 %v1569
          %v1660 = vpop.f32.mrf.mxu0
          %v1661 = vadd.f32 0.0, %v1660
          %1662 = vmatmul.f32.gmra.mxu0 %v1572
          %v1663 = vpop.f32.mrf.mxu0
          %v1664 = vadd.f32 0.0, %v1663
          %1665 = vmatmul.f32.gmra.mxu0 %v1575
          %v1666 = vpop.f32.mrf.mxu0
          %v1667 = vadd.f32 0.0, %v1666
          %1668 = vmatmul.f32.gmra.mxu0 %v1578
          %v1669 = vpop.f32.mrf.mxu0
          %v1670 = vadd.f32 0.0, %v1669
          %1671 = vmatmul.f32.gmra.mxu0 %v1581
          %v1672 = vpop.f32.mrf.mxu0
          %v1673 = vadd.f32 0.0, %v1672
          %1674 = vdwg.mxu0
          %v1675 = vadd.f32 %v1182, %v1601
          %v1676 = vadd.f32 %v1185, %v1604
          %v1677 = vadd.f32 %v1188, %v1607
          %v1678 = vadd.f32 %v1191, %v1610
          %v1679 = vadd.f32 %v1194, %v1613
          %v1680 = vadd.f32 %v1197, %v1616
          %v1681 = vadd.f32 %v1200, %v1619
          %v1682 = vadd.f32 %v1203, %v1622
          %v1683 = vadd.f32 %v1206, %v1625
          %v1684 = vadd.f32 %v1209, %v1628
          %v1685 = vadd.f32 %v1212, %v1631
          %v1686 = vadd.f32 %v1215, %v1634
          %v1687 = vadd.f32 %v1218, %v1637
          %v1688 = vadd.f32 %v1221, %v1640
          %v1689 = vadd.f32 %v1224, %v1643
          %v1690 = vadd.f32 %v1227, %v1646
          %v1691 = vadd.f32 %v1230, %v1649
          %v1692 = vadd.f32 %v1233, %v1652
          %v1693 = vadd.f32 %v1236, %v1655
          %v1694 = vadd.f32 %v1239, %v1658
          %v1695 = vadd.f32 %v1242, %v1661
          %v1696 = vadd.f32 %v1245, %v1664
          %v1697 = vadd.f32 %v1248, %v1667
          %v1698 = vadd.f32 %v1251, %v1670
          %v1699 = vadd.f32 %v1254, %v1673
          %s1700 = scalar_lea.vmem %s0, 600
          %v1701 = vld [vmem:[%s1700] sm:$0xff]
          %v1702 = vld [vmem:[%s1700 + $0x8] sm:$0xff]
          %v1703 = vld [vmem:[%s1700 + $0x10] sm:$0xff]
          %v1704 = vld [vmem:[%s1700 + $0x18] sm:$0xff]
          %v1705 = vld [vmem:[%s1700 + $0x20] sm:$0xff]
          %v1706 = vld [vmem:[%s1700 + $0x28] sm:$0xff]
          %v1707 = vld [vmem:[%s1700 + $0x30] sm:$0xff]
          %v1708 = vld [vmem:[%s1700 + $0x38] sm:$0xff]
          %v1709 = vld [vmem:[%s1700 + $0x40] sm:$0xff]
          %v1710 = vld [vmem:[%s1700 + $0x48] sm:$0xff]
          %v1711 = vld [vmem:[%s1700 + $0x50] sm:$0xff]
          %v1712 = vld [vmem:[%s1700 + $0x58] sm:$0xff]
          %v1713 = vld [vmem:[%s1700 + $0x60] sm:$0xff]
          %v1714 = vld [vmem:[%s1700 + $0x68] sm:$0xff]
          %v1715 = vld [vmem:[%s1700 + $0x70] sm:$0xff]
          %v1716 = vld [vmem:[%s1700 + $0x78] sm:$0xff]
          %v1717 = vld [vmem:[%s1700 + $0x80] sm:$0xff]
          %v1718 = vld [vmem:[%s1700 + $0x88] sm:$0xff]
          %v1719 = vld [vmem:[%s1700 + $0x90] sm:$0xff]
          %v1720 = vld [vmem:[%s1700 + $0x98] sm:$0xff]
          %v1721 = vld [vmem:[%s1700 + $0xa0] sm:$0xff]
          %v1722 = vld [vmem:[%s1700 + $0xa8] sm:$0xff]
          %v1723 = vld [vmem:[%s1700 + $0xb0] sm:$0xff]
          %v1724 = vld [vmem:[%s1700 + $0xb8] sm:$0xff]
          %v1725 = vld [vmem:[%s1700 + $0xc0] sm:$0xf]
          %v1727 = vsel %vm443, %v1701, 0
          %v1730 = vsel %vm443, %v1702, 0
          %v1733 = vsel %vm443, %v1703, 0
          %v1736 = vsel %vm443, %v1704, 0
          %v1739 = vsel %vm443, %v1705, 0
          %v1742 = vsel %vm443, %v1706, 0
          %v1745 = vsel %vm443, %v1707, 0
          %v1748 = vsel %vm443, %v1708, 0
          %v1751 = vsel %vm443, %v1709, 0
          %v1754 = vsel %vm443, %v1710, 0
          %v1757 = vsel %vm443, %v1711, 0
          %v1760 = vsel %vm443, %v1712, 0
          %v1763 = vsel %vm443, %v1713, 0
          %v1766 = vsel %vm443, %v1714, 0
          %v1769 = vsel %vm443, %v1715, 0
          %v1772 = vsel %vm443, %v1716, 0
          %v1775 = vsel %vm443, %v1717, 0
          %v1778 = vsel %vm443, %v1718, 0
          %v1781 = vsel %vm443, %v1719, 0
          %v1784 = vsel %vm443, %v1720, 0
          %v1787 = vsel %vm443, %v1721, 0
          %v1790 = vsel %vm443, %v1722, 0
          %v1793 = vsel %vm443, %v1723, 0
          %v1796 = vsel %vm443, %v1724, 0
          %v1799 = vsel %vm443, %v1725, 0
          %1801 = vmatpush.msra.mxu0 0.0
          %1802 = vmatpush.msra.mxu0 0.0
          %1803 = vmatpush.msra.mxu0 0.0
          %1804 = vmatpush.msra.mxu0 0.0
          %1805 = vmatpush.msra.mxu0 0.0
          %1806 = vmatpush.msra.mxu0 0.0
          %1807 = vmatpush.msra.mxu0 0.0
          %1808 = vmatpush.msra.mxu0 0.0
          %1809 = vmatpush.msra.mxu0 0.0
          %1810 = vmatpush.msra.mxu0 0.0
          %1811 = vmatpush.msra.mxu0 0.0
          %1812 = vmatpush.msra.mxu0 0.0
          %1813 = vmatpush.msra.mxu0 0.0
          %1814 = vmatpush.msra.mxu0 %v442
          %1815 = vmatpush.msra.mxu0 %v441
          %1816 = vmatpush.msra.mxu0 %v440
          %1817 = vmatmul.f32.gmra.mxu0 %v1727
          %v1818 = vpop.f32.mrf.mxu0
          %v1819 = vadd.f32 0.0, %v1818
          %1820 = vmatmul.f32.gmra.mxu0 %v1730
          %v1821 = vpop.f32.mrf.mxu0
          %v1822 = vadd.f32 0.0, %v1821
          %1823 = vmatmul.f32.gmra.mxu0 %v1733
          %v1824 = vpop.f32.mrf.mxu0
          %v1825 = vadd.f32 0.0, %v1824
          %1826 = vmatmul.f32.gmra.mxu0 %v1736
          %v1827 = vpop.f32.mrf.mxu0
          %v1828 = vadd.f32 0.0, %v1827
          %1829 = vmatmul.f32.gmra.mxu0 %v1739
          %v1830 = vpop.f32.mrf.mxu0
          %v1831 = vadd.f32 0.0, %v1830
          %1832 = vmatmul.f32.gmra.mxu0 %v1742
          %v1833 = vpop.f32.mrf.mxu0
          %v1834 = vadd.f32 0.0, %v1833
          %1835 = vmatmul.f32.gmra.mxu0 %v1745
          %v1836 = vpop.f32.mrf.mxu0
          %v1837 = vadd.f32 0.0, %v1836
          %1838 = vmatmul.f32.gmra.mxu0 %v1748
          %v1839 = vpop.f32.mrf.mxu0
          %v1840 = vadd.f32 0.0, %v1839
          %1841 = vmatmul.f32.gmra.mxu0 %v1751
          %v1842 = vpop.f32.mrf.mxu0
          %v1843 = vadd.f32 0.0, %v1842
          %1844 = vmatmul.f32.gmra.mxu0 %v1754
          %v1845 = vpop.f32.mrf.mxu0
          %v1846 = vadd.f32 0.0, %v1845
          %1847 = vmatmul.f32.gmra.mxu0 %v1757
          %v1848 = vpop.f32.mrf.mxu0
          %v1849 = vadd.f32 0.0, %v1848
          %1850 = vmatmul.f32.gmra.mxu0 %v1760
          %v1851 = vpop.f32.mrf.mxu0
          %v1852 = vadd.f32 0.0, %v1851
          %1853 = vmatmul.f32.gmra.mxu0 %v1763
          %v1854 = vpop.f32.mrf.mxu0
          %v1855 = vadd.f32 0.0, %v1854
          %1856 = vmatmul.f32.gmra.mxu0 %v1766
          %v1857 = vpop.f32.mrf.mxu0
          %v1858 = vadd.f32 0.0, %v1857
          %1859 = vmatmul.f32.gmra.mxu0 %v1769
          %v1860 = vpop.f32.mrf.mxu0
          %v1861 = vadd.f32 0.0, %v1860
          %1862 = vmatmul.f32.gmra.mxu0 %v1772
          %v1863 = vpop.f32.mrf.mxu0
          %v1864 = vadd.f32 0.0, %v1863
          %1865 = vmatmul.f32.gmra.mxu0 %v1775
          %v1866 = vpop.f32.mrf.mxu0
          %v1867 = vadd.f32 0.0, %v1866
          %1868 = vmatmul.f32.gmra.mxu0 %v1778
          %v1869 = vpop.f32.mrf.mxu0
          %v1870 = vadd.f32 0.0, %v1869
          %1871 = vmatmul.f32.gmra.mxu0 %v1781
          %v1872 = vpop.f32.mrf.mxu0
          %v1873 = vadd.f32 0.0, %v1872
          %1874 = vmatmul.f32.gmra.mxu0 %v1784
          %v1875 = vpop.f32.mrf.mxu0
          %v1876 = vadd.f32 0.0, %v1875
          %1877 = vmatmul.f32.gmra.mxu0 %v1787
          %v1878 = vpop.f32.mrf.mxu0
          %v1879 = vadd.f32 0.0, %v1878
          %1880 = vmatmul.f32.gmra.mxu0 %v1790
          %v1881 = vpop.f32.mrf.mxu0
          %v1882 = vadd.f32 0.0, %v1881
          %1883 = vmatmul.f32.gmra.mxu0 %v1793
          %v1884 = vpop.f32.mrf.mxu0
          %v1885 = vadd.f32 0.0, %v1884
          %1886 = vmatmul.f32.gmra.mxu0 %v1796
          %v1887 = vpop.f32.mrf.mxu0
          %v1888 = vadd.f32 0.0, %v1887
          %1889 = vmatmul.f32.gmra.mxu0 %v1799
          %v1890 = vpop.f32.mrf.mxu0
          %v1891 = vadd.f32 0.0, %v1890
          %1892 = vdwg.mxu0
          %v1893 = vmul.f32 %v1819, 0.2
          %v1894 = vmul.f32 %v1822, 0.2
          %v1895 = vmul.f32 %v1825, 0.2
          %v1896 = vmul.f32 %v1828, 0.2
          %v1897 = vmul.f32 %v1831, 0.2
          %v1898 = vmul.f32 %v1834, 0.2
          %v1899 = vmul.f32 %v1837, 0.2
          %v1900 = vmul.f32 %v1840, 0.2
          %v1901 = vmul.f32 %v1843, 0.2
          %v1902 = vmul.f32 %v1846, 0.2
          %v1903 = vmul.f32 %v1849, 0.2
          %v1904 = vmul.f32 %v1852, 0.2
          %v1905 = vmul.f32 %v1855, 0.2
          %v1906 = vmul.f32 %v1858, 0.2
          %v1907 = vmul.f32 %v1861, 0.2
          %v1908 = vmul.f32 %v1864, 0.2
          %v1909 = vmul.f32 %v1867, 0.2
          %v1910 = vmul.f32 %v1870, 0.2
          %v1911 = vmul.f32 %v1873, 0.2
          %v1912 = vmul.f32 %v1876, 0.2
          %v1913 = vmul.f32 %v1879, 0.2
          %v1914 = vmul.f32 %v1882, 0.2
          %v1915 = vmul.f32 %v1885, 0.2
          %v1916 = vmul.f32 %v1888, 0.2
          %v1917 = vmul.f32 %v1891, 0.2
          %v1918 = vmax.f32 %v1819, %v1893
          %v1919 = vmax.f32 %v1822, %v1894
          %v1920 = vmax.f32 %v1825, %v1895
          %v1921 = vmax.f32 %v1828, %v1896
          %v1922 = vmax.f32 %v1831, %v1897
          %v1923 = vmax.f32 %v1834, %v1898
          %v1924 = vmax.f32 %v1837, %v1899
          %v1925 = vmax.f32 %v1840, %v1900
          %v1926 = vmax.f32 %v1843, %v1901
          %v1927 = vmax.f32 %v1846, %v1902
          %v1928 = vmax.f32 %v1849, %v1903
          %v1929 = vmax.f32 %v1852, %v1904
          %v1930 = vmax.f32 %v1855, %v1905
          %v1931 = vmax.f32 %v1858, %v1906
          %v1932 = vmax.f32 %v1861, %v1907
          %v1933 = vmax.f32 %v1864, %v1908
          %v1934 = vmax.f32 %v1867, %v1909
          %v1935 = vmax.f32 %v1870, %v1910
          %v1936 = vmax.f32 %v1873, %v1911
          %v1937 = vmax.f32 %v1876, %v1912
          %v1938 = vmax.f32 %v1879, %v1913
          %v1939 = vmax.f32 %v1882, %v1914
          %v1940 = vmax.f32 %v1885, %v1915
          %v1941 = vmax.f32 %v1888, %v1916
          %v1942 = vmax.f32 %v1891, %v1917
          %s1943 = scalar_lea.vmem %s2, 192
          %v1944 = vld [vmem:[%s1943] sm:$0xff]
          %v1945 = vld [vmem:[%s1943 + $0x8] sm:$0xff]
          %v1946 = vld [vmem:[%s1943 + $0x10] sm:$0xff]
          %v1947 = vld [vmem:[%s1943 + $0x18] sm:$0xff]
          %v1948 = vld [vmem:[%s1943 + $0x20] sm:$0xff]
          %v1949 = vld [vmem:[%s1943 + $0x28] sm:$0xff]
          %v1950 = vld [vmem:[%s1943 + $0x30] sm:$0xff]
          %v1951 = vld [vmem:[%s1943 + $0x38] sm:$0xff]
          %v1953 = vsel %vm921, %v1918, 0
          %v1956 = vsel %vm921, %v1919, 0
          %v1959 = vsel %vm921, %v1920, 0
          %v1962 = vsel %vm921, %v1921, 0
          %v1965 = vsel %vm921, %v1922, 0
          %v1968 = vsel %vm921, %v1923, 0
          %v1971 = vsel %vm921, %v1924, 0
          %v1974 = vsel %vm921, %v1925, 0
          %v1977 = vsel %vm921, %v1926, 0
          %v1980 = vsel %vm921, %v1927, 0
          %v1983 = vsel %vm921, %v1928, 0
          %v1986 = vsel %vm921, %v1929, 0
          %v1989 = vsel %vm921, %v1930, 0
          %v1992 = vsel %vm921, %v1931, 0
          %v1995 = vsel %vm921, %v1932, 0
          %v1998 = vsel %vm921, %v1933, 0
          %v2001 = vsel %vm921, %v1934, 0
          %v2004 = vsel %vm921, %v1935, 0
          %v2007 = vsel %vm921, %v1936, 0
          %v2010 = vsel %vm921, %v1937, 0
          %v2013 = vsel %vm921, %v1938, 0
          %v2016 = vsel %vm921, %v1939, 0
          %v2019 = vsel %vm921, %v1940, 0
          %v2022 = vsel %vm921, %v1941, 0
          %v2025 = vsel %vm921, %v1942, 0
          %2027 = vmatpush.msra.mxu0 0.0
          %2028 = vmatpush.msra.mxu0 0.0
          %2029 = vmatpush.msra.mxu0 0.0
          %2030 = vmatpush.msra.mxu0 0.0
          %2031 = vmatpush.msra.mxu0 0.0
          %2032 = vmatpush.msra.mxu0 0.0
          %2033 = vmatpush.msra.mxu0 0.0
          %2034 = vmatpush.msra.mxu0 0.0
          %2035 = vmatpush.msra.mxu0 %v1951
          %2036 = vmatpush.msra.mxu0 %v1950
          %2037 = vmatpush.msra.mxu0 %v1949
          %2038 = vmatpush.msra.mxu0 %v1948
          %2039 = vmatpush.msra.mxu0 %v1947
          %2040 = vmatpush.msra.mxu0 %v1946
          %2041 = vmatpush.msra.mxu0 %v1945
          %2042 = vmatpush.msra.mxu0 %v1944
          %2043 = vmatmul.f32.gmra.mxu0 %v1953
          %v2044 = vpop.f32.mrf.mxu0
          %v2045 = vadd.f32 0.0, %v2044
          %2046 = vmatmul.f32.gmra.mxu0 %v1956
          %v2047 = vpop.f32.mrf.mxu0
          %v2048 = vadd.f32 0.0, %v2047
          %2049 = vmatmul.f32.gmra.mxu0 %v1959
          %v2050 = vpop.f32.mrf.mxu0
          %v2051 = vadd.f32 0.0, %v2050
          %2052 = vmatmul.f32.gmra.mxu0 %v1962
          %v2053 = vpop.f32.mrf.mxu0
          %v2054 = vadd.f32 0.0, %v2053
          %2055 = vmatmul.f32.gmra.mxu0 %v1965
          %v2056 = vpop.f32.mrf.mxu0
          %v2057 = vadd.f32 0.0, %v2056
          %2058 = vmatmul.f32.gmra.mxu0 %v1968
          %v2059 = vpop.f32.mrf.mxu0
          %v2060 = vadd.f32 0.0, %v2059
          %2061 = vmatmul.f32.gmra.mxu0 %v1971
          %v2062 = vpop.f32.mrf.mxu0
          %v2063 = vadd.f32 0.0, %v2062
          %2064 = vmatmul.f32.gmra.mxu0 %v1974
          %v2065 = vpop.f32.mrf.mxu0
          %v2066 = vadd.f32 0.0, %v2065
          %2067 = vmatmul.f32.gmra.mxu0 %v1977
          %v2068 = vpop.f32.mrf.mxu0
          %v2069 = vadd.f32 0.0, %v2068
          %2070 = vmatmul.f32.gmra.mxu0 %v1980
          %v2071 = vpop.f32.mrf.mxu0
          %v2072 = vadd.f32 0.0, %v2071
          %2073 = vmatmul.f32.gmra.mxu0 %v1983
          %v2074 = vpop.f32.mrf.mxu0
          %v2075 = vadd.f32 0.0, %v2074
          %2076 = vmatmul.f32.gmra.mxu0 %v1986
          %v2077 = vpop.f32.mrf.mxu0
          %v2078 = vadd.f32 0.0, %v2077
          %2079 = vmatmul.f32.gmra.mxu0 %v1989
          %v2080 = vpop.f32.mrf.mxu0
          %v2081 = vadd.f32 0.0, %v2080
          %2082 = vmatmul.f32.gmra.mxu0 %v1992
          %v2083 = vpop.f32.mrf.mxu0
          %v2084 = vadd.f32 0.0, %v2083
          %2085 = vmatmul.f32.gmra.mxu0 %v1995
          %v2086 = vpop.f32.mrf.mxu0
          %v2087 = vadd.f32 0.0, %v2086
          %2088 = vmatmul.f32.gmra.mxu0 %v1998
          %v2089 = vpop.f32.mrf.mxu0
          %v2090 = vadd.f32 0.0, %v2089
          %2091 = vmatmul.f32.gmra.mxu0 %v2001
          %v2092 = vpop.f32.mrf.mxu0
          %v2093 = vadd.f32 0.0, %v2092
          %2094 = vmatmul.f32.gmra.mxu0 %v2004
          %v2095 = vpop.f32.mrf.mxu0
          %v2096 = vadd.f32 0.0, %v2095
          %2097 = vmatmul.f32.gmra.mxu0 %v2007
          %v2098 = vpop.f32.mrf.mxu0
          %v2099 = vadd.f32 0.0, %v2098
          %2100 = vmatmul.f32.gmra.mxu0 %v2010
          %v2101 = vpop.f32.mrf.mxu0
          %v2102 = vadd.f32 0.0, %v2101
          %2103 = vmatmul.f32.gmra.mxu0 %v2013
          %v2104 = vpop.f32.mrf.mxu0
          %v2105 = vadd.f32 0.0, %v2104
          %2106 = vmatmul.f32.gmra.mxu0 %v2016
          %v2107 = vpop.f32.mrf.mxu0
          %v2108 = vadd.f32 0.0, %v2107
          %2109 = vmatmul.f32.gmra.mxu0 %v2019
          %v2110 = vpop.f32.mrf.mxu0
          %v2111 = vadd.f32 0.0, %v2110
          %2112 = vmatmul.f32.gmra.mxu0 %v2022
          %v2113 = vpop.f32.mrf.mxu0
          %v2114 = vadd.f32 0.0, %v2113
          %2115 = vmatmul.f32.gmra.mxu0 %v2025
          %v2116 = vpop.f32.mrf.mxu0
          %v2117 = vadd.f32 0.0, %v2116
          %2118 = vdwg.mxu0
          %v2119 = vadd.f32 %v1675, %v2045
          %v2120 = vadd.f32 %v1676, %v2048
          %v2121 = vadd.f32 %v1677, %v2051
          %v2122 = vadd.f32 %v1678, %v2054
          %v2123 = vadd.f32 %v1679, %v2057
          %v2124 = vadd.f32 %v1680, %v2060
          %v2125 = vadd.f32 %v1681, %v2063
          %v2126 = vadd.f32 %v1682, %v2066
          %v2127 = vadd.f32 %v1683, %v2069
          %v2128 = vadd.f32 %v1684, %v2072
          %v2129 = vadd.f32 %v1685, %v2075
          %v2130 = vadd.f32 %v1686, %v2078
          %v2131 = vadd.f32 %v1687, %v2081
          %v2132 = vadd.f32 %v1688, %v2084
          %v2133 = vadd.f32 %v1689, %v2087
          %v2134 = vadd.f32 %v1690, %v2090
          %v2135 = vadd.f32 %v1691, %v2093
          %v2136 = vadd.f32 %v1692, %v2096
          %v2137 = vadd.f32 %v1693, %v2099
          %v2138 = vadd.f32 %v1694, %v2102
          %v2139 = vadd.f32 %v1695, %v2105
          %v2140 = vadd.f32 %v1696, %v2108
          %v2141 = vadd.f32 %v1697, %v2111
          %v2142 = vadd.f32 %v1698, %v2114
          %v2143 = vadd.f32 %v1699, %v2117
          %s2144 = scalar_lea.vmem %s0, 800
          %v2145 = vld [vmem:[%s2144] sm:$0xff]
          %v2146 = vld [vmem:[%s2144 + $0x8] sm:$0xff]
          %v2147 = vld [vmem:[%s2144 + $0x10] sm:$0xff]
          %v2148 = vld [vmem:[%s2144 + $0x18] sm:$0xff]
          %v2149 = vld [vmem:[%s2144 + $0x20] sm:$0xff]
          %v2150 = vld [vmem:[%s2144 + $0x28] sm:$0xff]
          %v2151 = vld [vmem:[%s2144 + $0x30] sm:$0xff]
          %v2152 = vld [vmem:[%s2144 + $0x38] sm:$0xff]
          %v2153 = vld [vmem:[%s2144 + $0x40] sm:$0xff]
          %v2154 = vld [vmem:[%s2144 + $0x48] sm:$0xff]
          %v2155 = vld [vmem:[%s2144 + $0x50] sm:$0xff]
          %v2156 = vld [vmem:[%s2144 + $0x58] sm:$0xff]
          %v2157 = vld [vmem:[%s2144 + $0x60] sm:$0xff]
          %v2158 = vld [vmem:[%s2144 + $0x68] sm:$0xff]
          %v2159 = vld [vmem:[%s2144 + $0x70] sm:$0xff]
          %v2160 = vld [vmem:[%s2144 + $0x78] sm:$0xff]
          %v2161 = vld [vmem:[%s2144 + $0x80] sm:$0xff]
          %v2162 = vld [vmem:[%s2144 + $0x88] sm:$0xff]
          %v2163 = vld [vmem:[%s2144 + $0x90] sm:$0xff]
          %v2164 = vld [vmem:[%s2144 + $0x98] sm:$0xff]
          %v2165 = vld [vmem:[%s2144 + $0xa0] sm:$0xff]
          %v2166 = vld [vmem:[%s2144 + $0xa8] sm:$0xff]
          %v2167 = vld [vmem:[%s2144 + $0xb0] sm:$0xff]
          %v2168 = vld [vmem:[%s2144 + $0xb8] sm:$0xff]
          %v2169 = vld [vmem:[%s2144 + $0xc0] sm:$0xf]
          %v2171 = vsel %vm443, %v2145, 0
          %v2174 = vsel %vm443, %v2146, 0
          %v2177 = vsel %vm443, %v2147, 0
          %v2180 = vsel %vm443, %v2148, 0
          %v2183 = vsel %vm443, %v2149, 0
          %v2186 = vsel %vm443, %v2150, 0
          %v2189 = vsel %vm443, %v2151, 0
          %v2192 = vsel %vm443, %v2152, 0
          %v2195 = vsel %vm443, %v2153, 0
          %v2198 = vsel %vm443, %v2154, 0
          %v2201 = vsel %vm443, %v2155, 0
          %v2204 = vsel %vm443, %v2156, 0
          %v2207 = vsel %vm443, %v2157, 0
          %v2210 = vsel %vm443, %v2158, 0
          %v2213 = vsel %vm443, %v2159, 0
          %v2216 = vsel %vm443, %v2160, 0
          %v2219 = vsel %vm443, %v2161, 0
          %v2222 = vsel %vm443, %v2162, 0
          %v2225 = vsel %vm443, %v2163, 0
          %v2228 = vsel %vm443, %v2164, 0
          %v2231 = vsel %vm443, %v2165, 0
          %v2234 = vsel %vm443, %v2166, 0
          %v2237 = vsel %vm443, %v2167, 0
          %v2240 = vsel %vm443, %v2168, 0
          %v2243 = vsel %vm443, %v2169, 0
          %2245 = vmatpush.msra.mxu0 0.0
          %2246 = vmatpush.msra.mxu0 0.0
          %2247 = vmatpush.msra.mxu0 0.0
          %2248 = vmatpush.msra.mxu0 0.0
          %2249 = vmatpush.msra.mxu0 0.0
          %2250 = vmatpush.msra.mxu0 0.0
          %2251 = vmatpush.msra.mxu0 0.0
          %2252 = vmatpush.msra.mxu0 0.0
          %2253 = vmatpush.msra.mxu0 0.0
          %2254 = vmatpush.msra.mxu0 0.0
          %2255 = vmatpush.msra.mxu0 0.0
          %2256 = vmatpush.msra.mxu0 0.0
          %2257 = vmatpush.msra.mxu0 0.0
          %2258 = vmatpush.msra.mxu0 %v442
          %2259 = vmatpush.msra.mxu0 %v441
          %2260 = vmatpush.msra.mxu0 %v440
          %2261 = vmatmul.f32.gmra.mxu0 %v2171
          %v2262 = vpop.f32.mrf.mxu0
          %v2263 = vadd.f32 0.0, %v2262
          %2264 = vmatmul.f32.gmra.mxu0 %v2174
          %v2265 = vpop.f32.mrf.mxu0
          %v2266 = vadd.f32 0.0, %v2265
          %2267 = vmatmul.f32.gmra.mxu0 %v2177
          %v2268 = vpop.f32.mrf.mxu0
          %v2269 = vadd.f32 0.0, %v2268
          %2270 = vmatmul.f32.gmra.mxu0 %v2180
          %v2271 = vpop.f32.mrf.mxu0
          %v2272 = vadd.f32 0.0, %v2271
          %2273 = vmatmul.f32.gmra.mxu0 %v2183
          %v2274 = vpop.f32.mrf.mxu0
          %v2275 = vadd.f32 0.0, %v2274
          %2276 = vmatmul.f32.gmra.mxu0 %v2186
          %v2277 = vpop.f32.mrf.mxu0
          %v2278 = vadd.f32 0.0, %v2277
          %2279 = vmatmul.f32.gmra.mxu0 %v2189
          %v2280 = vpop.f32.mrf.mxu0
          %v2281 = vadd.f32 0.0, %v2280
          %2282 = vmatmul.f32.gmra.mxu0 %v2192
          %v2283 = vpop.f32.mrf.mxu0
          %v2284 = vadd.f32 0.0, %v2283
          %2285 = vmatmul.f32.gmra.mxu0 %v2195
          %v2286 = vpop.f32.mrf.mxu0
          %v2287 = vadd.f32 0.0, %v2286
          %2288 = vmatmul.f32.gmra.mxu0 %v2198
          %v2289 = vpop.f32.mrf.mxu0
          %v2290 = vadd.f32 0.0, %v2289
          %2291 = vmatmul.f32.gmra.mxu0 %v2201
          %v2292 = vpop.f32.mrf.mxu0
          %v2293 = vadd.f32 0.0, %v2292
          %2294 = vmatmul.f32.gmra.mxu0 %v2204
          %v2295 = vpop.f32.mrf.mxu0
          %v2296 = vadd.f32 0.0, %v2295
          %2297 = vmatmul.f32.gmra.mxu0 %v2207
          %v2298 = vpop.f32.mrf.mxu0
          %v2299 = vadd.f32 0.0, %v2298
          %2300 = vmatmul.f32.gmra.mxu0 %v2210
          %v2301 = vpop.f32.mrf.mxu0
          %v2302 = vadd.f32 0.0, %v2301
          %2303 = vmatmul.f32.gmra.mxu0 %v2213
          %v2304 = vpop.f32.mrf.mxu0
          %v2305 = vadd.f32 0.0, %v2304
          %2306 = vmatmul.f32.gmra.mxu0 %v2216
          %v2307 = vpop.f32.mrf.mxu0
          %v2308 = vadd.f32 0.0, %v2307
          %2309 = vmatmul.f32.gmra.mxu0 %v2219
          %v2310 = vpop.f32.mrf.mxu0
          %v2311 = vadd.f32 0.0, %v2310
          %2312 = vmatmul.f32.gmra.mxu0 %v2222
          %v2313 = vpop.f32.mrf.mxu0
          %v2314 = vadd.f32 0.0, %v2313
          %2315 = vmatmul.f32.gmra.mxu0 %v2225
          %v2316 = vpop.f32.mrf.mxu0
          %v2317 = vadd.f32 0.0, %v2316
          %2318 = vmatmul.f32.gmra.mxu0 %v2228
          %v2319 = vpop.f32.mrf.mxu0
          %v2320 = vadd.f32 0.0, %v2319
          %2321 = vmatmul.f32.gmra.mxu0 %v2231
          %v2322 = vpop.f32.mrf.mxu0
          %v2323 = vadd.f32 0.0, %v2322
          %2324 = vmatmul.f32.gmra.mxu0 %v2234
          %v2325 = vpop.f32.mrf.mxu0
          %v2326 = vadd.f32 0.0, %v2325
          %2327 = vmatmul.f32.gmra.mxu0 %v2237
          %v2328 = vpop.f32.mrf.mxu0
          %v2329 = vadd.f32 0.0, %v2328
          %2330 = vmatmul.f32.gmra.mxu0 %v2240
          %v2331 = vpop.f32.mrf.mxu0
          %v2332 = vadd.f32 0.0, %v2331
          %2333 = vmatmul.f32.gmra.mxu0 %v2243
          %v2334 = vpop.f32.mrf.mxu0
          %v2335 = vadd.f32 0.0, %v2334
          %2336 = vdwg.mxu0
          %v2337 = vmul.f32 %v2263, 0.2
          %v2338 = vmul.f32 %v2266, 0.2
          %v2339 = vmul.f32 %v2269, 0.2
          %v2340 = vmul.f32 %v2272, 0.2
          %v2341 = vmul.f32 %v2275, 0.2
          %v2342 = vmul.f32 %v2278, 0.2
          %v2343 = vmul.f32 %v2281, 0.2
          %v2344 = vmul.f32 %v2284, 0.2
          %v2345 = vmul.f32 %v2287, 0.2
          %v2346 = vmul.f32 %v2290, 0.2
          %v2347 = vmul.f32 %v2293, 0.2
          %v2348 = vmul.f32 %v2296, 0.2
          %v2349 = vmul.f32 %v2299, 0.2
          %v2350 = vmul.f32 %v2302, 0.2
          %v2351 = vmul.f32 %v2305, 0.2
          %v2352 = vmul.f32 %v2308, 0.2
          %v2353 = vmul.f32 %v2311, 0.2
          %v2354 = vmul.f32 %v2314, 0.2
          %v2355 = vmul.f32 %v2317, 0.2
          %v2356 = vmul.f32 %v2320, 0.2
          %v2357 = vmul.f32 %v2323, 0.2
          %v2358 = vmul.f32 %v2326, 0.2
          %v2359 = vmul.f32 %v2329, 0.2
          %v2360 = vmul.f32 %v2332, 0.2
          %v2361 = vmul.f32 %v2335, 0.2
          %v2362 = vmax.f32 %v2263, %v2337
          %v2363 = vmax.f32 %v2266, %v2338
          %v2364 = vmax.f32 %v2269, %v2339
          %v2365 = vmax.f32 %v2272, %v2340
          %v2366 = vmax.f32 %v2275, %v2341
          %v2367 = vmax.f32 %v2278, %v2342
          %v2368 = vmax.f32 %v2281, %v2343
          %v2369 = vmax.f32 %v2284, %v2344
          %v2370 = vmax.f32 %v2287, %v2345
          %v2371 = vmax.f32 %v2290, %v2346
          %v2372 = vmax.f32 %v2293, %v2347
          %v2373 = vmax.f32 %v2296, %v2348
          %v2374 = vmax.f32 %v2299, %v2349
          %v2375 = vmax.f32 %v2302, %v2350
          %v2376 = vmax.f32 %v2305, %v2351
          %v2377 = vmax.f32 %v2308, %v2352
          %v2378 = vmax.f32 %v2311, %v2353
          %v2379 = vmax.f32 %v2314, %v2354
          %v2380 = vmax.f32 %v2317, %v2355
          %v2381 = vmax.f32 %v2320, %v2356
          %v2382 = vmax.f32 %v2323, %v2357
          %v2383 = vmax.f32 %v2326, %v2358
          %v2384 = vmax.f32 %v2329, %v2359
          %v2385 = vmax.f32 %v2332, %v2360
          %v2386 = vmax.f32 %v2335, %v2361
          %s2387 = scalar_lea.vmem %s2, 256
          %v2388 = vld [vmem:[%s2387] sm:$0xff]
          %v2389 = vld [vmem:[%s2387 + $0x8] sm:$0xff]
          %v2390 = vld [vmem:[%s2387 + $0x10] sm:$0xff]
          %v2391 = vld [vmem:[%s2387 + $0x18] sm:$0xff]
          %v2392 = vld [vmem:[%s2387 + $0x20] sm:$0xff]
          %v2393 = vld [vmem:[%s2387 + $0x28] sm:$0xff]
          %v2394 = vld [vmem:[%s2387 + $0x30] sm:$0xff]
          %v2395 = vld [vmem:[%s2387 + $0x38] sm:$0xff]
          %v2397 = vsel %vm921, %v2362, 0
          %v2400 = vsel %vm921, %v2363, 0
          %v2403 = vsel %vm921, %v2364, 0
          %v2406 = vsel %vm921, %v2365, 0
          %v2409 = vsel %vm921, %v2366, 0
          %v2412 = vsel %vm921, %v2367, 0
          %v2415 = vsel %vm921, %v2368, 0
          %v2418 = vsel %vm921, %v2369, 0
          %v2421 = vsel %vm921, %v2370, 0
          %v2424 = vsel %vm921, %v2371, 0
          %v2427 = vsel %vm921, %v2372, 0
          %v2430 = vsel %vm921, %v2373, 0
          %v2433 = vsel %vm921, %v2374, 0
          %v2436 = vsel %vm921, %v2375, 0
          %v2439 = vsel %vm921, %v2376, 0
          %v2442 = vsel %vm921, %v2377, 0
          %v2445 = vsel %vm921, %v2378, 0
          %v2448 = vsel %vm921, %v2379, 0
          %v2451 = vsel %vm921, %v2380, 0
          %v2454 = vsel %vm921, %v2381, 0
          %v2457 = vsel %vm921, %v2382, 0
          %v2460 = vsel %vm921, %v2383, 0
          %v2463 = vsel %vm921, %v2384, 0
          %v2466 = vsel %vm921, %v2385, 0
          %v2469 = vsel %vm921, %v2386, 0
          %2471 = vmatpush.msra.mxu0 0.0
          %2472 = vmatpush.msra.mxu0 0.0
          %2473 = vmatpush.msra.mxu0 0.0
          %2474 = vmatpush.msra.mxu0 0.0
          %2475 = vmatpush.msra.mxu0 0.0
          %2476 = vmatpush.msra.mxu0 0.0
          %2477 = vmatpush.msra.mxu0 0.0
          %2478 = vmatpush.msra.mxu0 0.0
          %2479 = vmatpush.msra.mxu0 %v2395
          %2480 = vmatpush.msra.mxu0 %v2394
          %2481 = vmatpush.msra.mxu0 %v2393
          %2482 = vmatpush.msra.mxu0 %v2392
          %2483 = vmatpush.msra.mxu0 %v2391
          %2484 = vmatpush.msra.mxu0 %v2390
          %2485 = vmatpush.msra.mxu0 %v2389
          %2486 = vmatpush.msra.mxu0 %v2388
          %2487 = vmatmul.f32.gmra.mxu0 %v2397
          %v2488 = vpop.f32.mrf.mxu0
          %v2489 = vadd.f32 0.0, %v2488
          %2490 = vmatmul.f32.gmra.mxu0 %v2400
          %v2491 = vpop.f32.mrf.mxu0
          %v2492 = vadd.f32 0.0, %v2491
          %2493 = vmatmul.f32.gmra.mxu0 %v2403
          %v2494 = vpop.f32.mrf.mxu0
          %v2495 = vadd.f32 0.0, %v2494
          %2496 = vmatmul.f32.gmra.mxu0 %v2406
          %v2497 = vpop.f32.mrf.mxu0
          %v2498 = vadd.f32 0.0, %v2497
          %2499 = vmatmul.f32.gmra.mxu0 %v2409
          %v2500 = vpop.f32.mrf.mxu0
          %v2501 = vadd.f32 0.0, %v2500
          %2502 = vmatmul.f32.gmra.mxu0 %v2412
          %v2503 = vpop.f32.mrf.mxu0
          %v2504 = vadd.f32 0.0, %v2503
          %2505 = vmatmul.f32.gmra.mxu0 %v2415
          %v2506 = vpop.f32.mrf.mxu0
          %v2507 = vadd.f32 0.0, %v2506
          %2508 = vmatmul.f32.gmra.mxu0 %v2418
          %v2509 = vpop.f32.mrf.mxu0
          %v2510 = vadd.f32 0.0, %v2509
          %2511 = vmatmul.f32.gmra.mxu0 %v2421
          %v2512 = vpop.f32.mrf.mxu0
          %v2513 = vadd.f32 0.0, %v2512
          %2514 = vmatmul.f32.gmra.mxu0 %v2424
          %v2515 = vpop.f32.mrf.mxu0
          %v2516 = vadd.f32 0.0, %v2515
          %2517 = vmatmul.f32.gmra.mxu0 %v2427
          %v2518 = vpop.f32.mrf.mxu0
          %v2519 = vadd.f32 0.0, %v2518
          %2520 = vmatmul.f32.gmra.mxu0 %v2430
          %v2521 = vpop.f32.mrf.mxu0
          %v2522 = vadd.f32 0.0, %v2521
          %2523 = vmatmul.f32.gmra.mxu0 %v2433
          %v2524 = vpop.f32.mrf.mxu0
          %v2525 = vadd.f32 0.0, %v2524
          %2526 = vmatmul.f32.gmra.mxu0 %v2436
          %v2527 = vpop.f32.mrf.mxu0
          %v2528 = vadd.f32 0.0, %v2527
          %2529 = vmatmul.f32.gmra.mxu0 %v2439
          %v2530 = vpop.f32.mrf.mxu0
          %v2531 = vadd.f32 0.0, %v2530
          %2532 = vmatmul.f32.gmra.mxu0 %v2442
          %v2533 = vpop.f32.mrf.mxu0
          %v2534 = vadd.f32 0.0, %v2533
          %2535 = vmatmul.f32.gmra.mxu0 %v2445
          %v2536 = vpop.f32.mrf.mxu0
          %v2537 = vadd.f32 0.0, %v2536
          %2538 = vmatmul.f32.gmra.mxu0 %v2448
          %v2539 = vpop.f32.mrf.mxu0
          %v2540 = vadd.f32 0.0, %v2539
          %2541 = vmatmul.f32.gmra.mxu0 %v2451
          %v2542 = vpop.f32.mrf.mxu0
          %v2543 = vadd.f32 0.0, %v2542
          %2544 = vmatmul.f32.gmra.mxu0 %v2454
          %v2545 = vpop.f32.mrf.mxu0
          %v2546 = vadd.f32 0.0, %v2545
          %2547 = vmatmul.f32.gmra.mxu0 %v2457
          %v2548 = vpop.f32.mrf.mxu0
          %v2549 = vadd.f32 0.0, %v2548
          %2550 = vmatmul.f32.gmra.mxu0 %v2460
          %v2551 = vpop.f32.mrf.mxu0
          %v2552 = vadd.f32 0.0, %v2551
          %2553 = vmatmul.f32.gmra.mxu0 %v2463
          %v2554 = vpop.f32.mrf.mxu0
          %v2555 = vadd.f32 0.0, %v2554
          %2556 = vmatmul.f32.gmra.mxu0 %v2466
          %v2557 = vpop.f32.mrf.mxu0
          %v2558 = vadd.f32 0.0, %v2557
          %2559 = vmatmul.f32.gmra.mxu0 %v2469
          %v2560 = vpop.f32.mrf.mxu0
          %v2561 = vadd.f32 0.0, %v2560
          %2562 = vdwg.mxu0
          %v2563 = vadd.f32 %v2119, %v2489
          %v2564 = vadd.f32 %v2120, %v2492
          %v2565 = vadd.f32 %v2121, %v2495
          %v2566 = vadd.f32 %v2122, %v2498
          %v2567 = vadd.f32 %v2123, %v2501
          %v2568 = vadd.f32 %v2124, %v2504
          %v2569 = vadd.f32 %v2125, %v2507
          %v2570 = vadd.f32 %v2126, %v2510
          %v2571 = vadd.f32 %v2127, %v2513
          %v2572 = vadd.f32 %v2128, %v2516
          %v2573 = vadd.f32 %v2129, %v2519
          %v2574 = vadd.f32 %v2130, %v2522
          %v2575 = vadd.f32 %v2131, %v2525
          %v2576 = vadd.f32 %v2132, %v2528
          %v2577 = vadd.f32 %v2133, %v2531
          %v2578 = vadd.f32 %v2134, %v2534
          %v2579 = vadd.f32 %v2135, %v2537
          %v2580 = vadd.f32 %v2136, %v2540
          %v2581 = vadd.f32 %v2137, %v2543
          %v2582 = vadd.f32 %v2138, %v2546
          %v2583 = vadd.f32 %v2139, %v2549
          %v2584 = vadd.f32 %v2140, %v2552
          %v2585 = vadd.f32 %v2141, %v2555
          %v2586 = vadd.f32 %v2142, %v2558
          %v2587 = vadd.f32 %v2143, %v2561
          %s2588 = scalar_lea.vmem %s0, 1000
          %v2589 = vld [vmem:[%s2588] sm:$0xff]
          %v2590 = vld [vmem:[%s2588 + $0x8] sm:$0xff]
          %v2591 = vld [vmem:[%s2588 + $0x10] sm:$0xff]
          %v2592 = vld [vmem:[%s2588 + $0x18] sm:$0xff]
          %v2593 = vld [vmem:[%s2588 + $0x20] sm:$0xff]
          %v2594 = vld [vmem:[%s2588 + $0x28] sm:$0xff]
          %v2595 = vld [vmem:[%s2588 + $0x30] sm:$0xff]
          %v2596 = vld [vmem:[%s2588 + $0x38] sm:$0xff]
          %v2597 = vld [vmem:[%s2588 + $0x40] sm:$0xff]
          %v2598 = vld [vmem:[%s2588 + $0x48] sm:$0xff]
          %v2599 = vld [vmem:[%s2588 + $0x50] sm:$0xff]
          %v2600 = vld [vmem:[%s2588 + $0x58] sm:$0xff]
          %v2601 = vld [vmem:[%s2588 + $0x60] sm:$0xff]
          %v2602 = vld [vmem:[%s2588 + $0x68] sm:$0xff]
          %v2603 = vld [vmem:[%s2588 + $0x70] sm:$0xff]
          %v2604 = vld [vmem:[%s2588 + $0x78] sm:$0xff]
          %v2605 = vld [vmem:[%s2588 + $0x80] sm:$0xff]
          %v2606 = vld [vmem:[%s2588 + $0x88] sm:$0xff]
          %v2607 = vld [vmem:[%s2588 + $0x90] sm:$0xff]
          %v2608 = vld [vmem:[%s2588 + $0x98] sm:$0xff]
          %v2609 = vld [vmem:[%s2588 + $0xa0] sm:$0xff]
          %v2610 = vld [vmem:[%s2588 + $0xa8] sm:$0xff]
          %v2611 = vld [vmem:[%s2588 + $0xb0] sm:$0xff]
          %v2612 = vld [vmem:[%s2588 + $0xb8] sm:$0xff]
          %v2613 = vld [vmem:[%s2588 + $0xc0] sm:$0xf]
          %v2615 = vsel %vm443, %v2589, 0
          %v2618 = vsel %vm443, %v2590, 0
          %v2621 = vsel %vm443, %v2591, 0
          %v2624 = vsel %vm443, %v2592, 0
          %v2627 = vsel %vm443, %v2593, 0
          %v2630 = vsel %vm443, %v2594, 0
          %v2633 = vsel %vm443, %v2595, 0
          %v2636 = vsel %vm443, %v2596, 0
          %v2639 = vsel %vm443, %v2597, 0
          %v2642 = vsel %vm443, %v2598, 0
          %v2645 = vsel %vm443, %v2599, 0
          %v2648 = vsel %vm443, %v2600, 0
          %v2651 = vsel %vm443, %v2601, 0
          %v2654 = vsel %vm443, %v2602, 0
          %v2657 = vsel %vm443, %v2603, 0
          %v2660 = vsel %vm443, %v2604, 0
          %v2663 = vsel %vm443, %v2605, 0
          %v2666 = vsel %vm443, %v2606, 0
          %v2669 = vsel %vm443, %v2607, 0
          %v2672 = vsel %vm443, %v2608, 0
          %v2675 = vsel %vm443, %v2609, 0
          %v2678 = vsel %vm443, %v2610, 0
          %v2681 = vsel %vm443, %v2611, 0
          %v2684 = vsel %vm443, %v2612, 0
          %v2687 = vsel %vm443, %v2613, 0
          %2689 = vmatpush.msra.mxu0 0.0
          %2690 = vmatpush.msra.mxu0 0.0
          %2691 = vmatpush.msra.mxu0 0.0
          %2692 = vmatpush.msra.mxu0 0.0
          %2693 = vmatpush.msra.mxu0 0.0
          %2694 = vmatpush.msra.mxu0 0.0
          %2695 = vmatpush.msra.mxu0 0.0
          %2696 = vmatpush.msra.mxu0 0.0
          %2697 = vmatpush.msra.mxu0 0.0
          %2698 = vmatpush.msra.mxu0 0.0
          %2699 = vmatpush.msra.mxu0 0.0
          %2700 = vmatpush.msra.mxu0 0.0
          %2701 = vmatpush.msra.mxu0 0.0
          %2702 = vmatpush.msra.mxu0 %v442
          %2703 = vmatpush.msra.mxu0 %v441
          %2704 = vmatpush.msra.mxu0 %v440
          %2705 = vmatmul.f32.gmra.mxu0 %v2615
          %v2706 = vpop.f32.mrf.mxu0
          %v2707 = vadd.f32 0.0, %v2706
          %2708 = vmatmul.f32.gmra.mxu0 %v2618
          %v2709 = vpop.f32.mrf.mxu0
          %v2710 = vadd.f32 0.0, %v2709
          %2711 = vmatmul.f32.gmra.mxu0 %v2621
          %v2712 = vpop.f32.mrf.mxu0
          %v2713 = vadd.f32 0.0, %v2712
          %2714 = vmatmul.f32.gmra.mxu0 %v2624
          %v2715 = vpop.f32.mrf.mxu0
          %v2716 = vadd.f32 0.0, %v2715
          %2717 = vmatmul.f32.gmra.mxu0 %v2627
          %v2718 = vpop.f32.mrf.mxu0
          %v2719 = vadd.f32 0.0, %v2718
          %2720 = vmatmul.f32.gmra.mxu0 %v2630
          %v2721 = vpop.f32.mrf.mxu0
          %v2722 = vadd.f32 0.0, %v2721
          %2723 = vmatmul.f32.gmra.mxu0 %v2633
          %v2724 = vpop.f32.mrf.mxu0
          %v2725 = vadd.f32 0.0, %v2724
          %2726 = vmatmul.f32.gmra.mxu0 %v2636
          %v2727 = vpop.f32.mrf.mxu0
          %v2728 = vadd.f32 0.0, %v2727
          %2729 = vmatmul.f32.gmra.mxu0 %v2639
          %v2730 = vpop.f32.mrf.mxu0
          %v2731 = vadd.f32 0.0, %v2730
          %2732 = vmatmul.f32.gmra.mxu0 %v2642
          %v2733 = vpop.f32.mrf.mxu0
          %v2734 = vadd.f32 0.0, %v2733
          %2735 = vmatmul.f32.gmra.mxu0 %v2645
          %v2736 = vpop.f32.mrf.mxu0
          %v2737 = vadd.f32 0.0, %v2736
          %2738 = vmatmul.f32.gmra.mxu0 %v2648
          %v2739 = vpop.f32.mrf.mxu0
          %v2740 = vadd.f32 0.0, %v2739
          %2741 = vmatmul.f32.gmra.mxu0 %v2651
          %v2742 = vpop.f32.mrf.mxu0
          %v2743 = vadd.f32 0.0, %v2742
          %2744 = vmatmul.f32.gmra.mxu0 %v2654
          %v2745 = vpop.f32.mrf.mxu0
          %v2746 = vadd.f32 0.0, %v2745
          %2747 = vmatmul.f32.gmra.mxu0 %v2657
          %v2748 = vpop.f32.mrf.mxu0
          %v2749 = vadd.f32 0.0, %v2748
          %2750 = vmatmul.f32.gmra.mxu0 %v2660
          %v2751 = vpop.f32.mrf.mxu0
          %v2752 = vadd.f32 0.0, %v2751
          %2753 = vmatmul.f32.gmra.mxu0 %v2663
          %v2754 = vpop.f32.mrf.mxu0
          %v2755 = vadd.f32 0.0, %v2754
          %2756 = vmatmul.f32.gmra.mxu0 %v2666
          %v2757 = vpop.f32.mrf.mxu0
          %v2758 = vadd.f32 0.0, %v2757
          %2759 = vmatmul.f32.gmra.mxu0 %v2669
          %v2760 = vpop.f32.mrf.mxu0
          %v2761 = vadd.f32 0.0, %v2760
          %2762 = vmatmul.f32.gmra.mxu0 %v2672
          %v2763 = vpop.f32.mrf.mxu0
          %v2764 = vadd.f32 0.0, %v2763
          %2765 = vmatmul.f32.gmra.mxu0 %v2675
          %v2766 = vpop.f32.mrf.mxu0
          %v2767 = vadd.f32 0.0, %v2766
          %2768 = vmatmul.f32.gmra.mxu0 %v2678
          %v2769 = vpop.f32.mrf.mxu0
          %v2770 = vadd.f32 0.0, %v2769
          %2771 = vmatmul.f32.gmra.mxu0 %v2681
          %v2772 = vpop.f32.mrf.mxu0
          %v2773 = vadd.f32 0.0, %v2772
          %2774 = vmatmul.f32.gmra.mxu0 %v2684
          %v2775 = vpop.f32.mrf.mxu0
          %v2776 = vadd.f32 0.0, %v2775
          %2777 = vmatmul.f32.gmra.mxu0 %v2687
          %v2778 = vpop.f32.mrf.mxu0
          %v2779 = vadd.f32 0.0, %v2778
          %2780 = vdwg.mxu0
          %v2781 = vmul.f32 %v2707, 0.2
          %v2782 = vmul.f32 %v2710, 0.2
          %v2783 = vmul.f32 %v2713, 0.2
          %v2784 = vmul.f32 %v2716, 0.2
          %v2785 = vmul.f32 %v2719, 0.2
          %v2786 = vmul.f32 %v2722, 0.2
          %v2787 = vmul.f32 %v2725, 0.2
          %v2788 = vmul.f32 %v2728, 0.2
          %v2789 = vmul.f32 %v2731, 0.2
          %v2790 = vmul.f32 %v2734, 0.2
          %v2791 = vmul.f32 %v2737, 0.2
          %v2792 = vmul.f32 %v2740, 0.2
          %v2793 = vmul.f32 %v2743, 0.2
          %v2794 = vmul.f32 %v2746, 0.2
          %v2795 = vmul.f32 %v2749, 0.2
          %v2796 = vmul.f32 %v2752, 0.2
          %v2797 = vmul.f32 %v2755, 0.2
          %v2798 = vmul.f32 %v2758, 0.2
          %v2799 = vmul.f32 %v2761, 0.2
          %v2800 = vmul.f32 %v2764, 0.2
          %v2801 = vmul.f32 %v2767, 0.2
          %v2802 = vmul.f32 %v2770, 0.2
          %v2803 = vmul.f32 %v2773, 0.2
          %v2804 = vmul.f32 %v2776, 0.2
          %v2805 = vmul.f32 %v2779, 0.2
          %v2806 = vmax.f32 %v2707, %v2781
          %v2807 = vmax.f32 %v2710, %v2782
          %v2808 = vmax.f32 %v2713, %v2783
          %v2809 = vmax.f32 %v2716, %v2784
          %v2810 = vmax.f32 %v2719, %v2785
          %v2811 = vmax.f32 %v2722, %v2786
          %v2812 = vmax.f32 %v2725, %v2787
          %v2813 = vmax.f32 %v2728, %v2788
          %v2814 = vmax.f32 %v2731, %v2789
          %v2815 = vmax.f32 %v2734, %v2790
          %v2816 = vmax.f32 %v2737, %v2791
          %v2817 = vmax.f32 %v2740, %v2792
          %v2818 = vmax.f32 %v2743, %v2793
          %v2819 = vmax.f32 %v2746, %v2794
          %v2820 = vmax.f32 %v2749, %v2795
          %v2821 = vmax.f32 %v2752, %v2796
          %v2822 = vmax.f32 %v2755, %v2797
          %v2823 = vmax.f32 %v2758, %v2798
          %v2824 = vmax.f32 %v2761, %v2799
          %v2825 = vmax.f32 %v2764, %v2800
          %v2826 = vmax.f32 %v2767, %v2801
          %v2827 = vmax.f32 %v2770, %v2802
          %v2828 = vmax.f32 %v2773, %v2803
          %v2829 = vmax.f32 %v2776, %v2804
          %v2830 = vmax.f32 %v2779, %v2805
          %s2831 = scalar_lea.vmem %s2, 320
          %v2832 = vld [vmem:[%s2831] sm:$0xff]
          %v2833 = vld [vmem:[%s2831 + $0x8] sm:$0xff]
          %v2834 = vld [vmem:[%s2831 + $0x10] sm:$0xff]
          %v2835 = vld [vmem:[%s2831 + $0x18] sm:$0xff]
          %v2836 = vld [vmem:[%s2831 + $0x20] sm:$0xff]
          %v2837 = vld [vmem:[%s2831 + $0x28] sm:$0xff]
          %v2838 = vld [vmem:[%s2831 + $0x30] sm:$0xff]
          %v2839 = vld [vmem:[%s2831 + $0x38] sm:$0xff]
          %v2841 = vsel %vm921, %v2806, 0
          %v2844 = vsel %vm921, %v2807, 0
          %v2847 = vsel %vm921, %v2808, 0
          %v2850 = vsel %vm921, %v2809, 0
          %v2853 = vsel %vm921, %v2810, 0
          %v2856 = vsel %vm921, %v2811, 0
          %v2859 = vsel %vm921, %v2812, 0
          %v2862 = vsel %vm921, %v2813, 0
          %v2865 = vsel %vm921, %v2814, 0
          %v2868 = vsel %vm921, %v2815, 0
          %v2871 = vsel %vm921, %v2816, 0
          %v2874 = vsel %vm921, %v2817, 0
          %v2877 = vsel %vm921, %v2818, 0
          %v2880 = vsel %vm921, %v2819, 0
          %v2883 = vsel %vm921, %v2820, 0
          %v2886 = vsel %vm921, %v2821, 0
          %v2889 = vsel %vm921, %v2822, 0
          %v2892 = vsel %vm921, %v2823, 0
          %v2895 = vsel %vm921, %v2824, 0
          %v2898 = vsel %vm921, %v2825, 0
          %v2901 = vsel %vm921, %v2826, 0
          %v2904 = vsel %vm921, %v2827, 0
          %v2907 = vsel %vm921, %v2828, 0
          %v2910 = vsel %vm921, %v2829, 0
          %v2913 = vsel %vm921, %v2830, 0
          %2915 = vmatpush.msra.mxu0 0.0
          %2916 = vmatpush.msra.mxu0 0.0
          %2917 = vmatpush.msra.mxu0 0.0
          %2918 = vmatpush.msra.mxu0 0.0
          %2919 = vmatpush.msra.mxu0 0.0
          %2920 = vmatpush.msra.mxu0 0.0
          %2921 = vmatpush.msra.mxu0 0.0
          %2922 = vmatpush.msra.mxu0 0.0
          %2923 = vmatpush.msra.mxu0 %v2839
          %2924 = vmatpush.msra.mxu0 %v2838
          %2925 = vmatpush.msra.mxu0 %v2837
          %2926 = vmatpush.msra.mxu0 %v2836
          %2927 = vmatpush.msra.mxu0 %v2835
          %2928 = vmatpush.msra.mxu0 %v2834
          %2929 = vmatpush.msra.mxu0 %v2833
          %2930 = vmatpush.msra.mxu0 %v2832
          %2931 = vmatmul.f32.gmra.mxu0 %v2841
          %v2932 = vpop.f32.mrf.mxu0
          %v2933 = vadd.f32 0.0, %v2932
          %2934 = vmatmul.f32.gmra.mxu0 %v2844
          %v2935 = vpop.f32.mrf.mxu0
          %v2936 = vadd.f32 0.0, %v2935
          %2937 = vmatmul.f32.gmra.mxu0 %v2847
          %v2938 = vpop.f32.mrf.mxu0
          %v2939 = vadd.f32 0.0, %v2938
          %2940 = vmatmul.f32.gmra.mxu0 %v2850
          %v2941 = vpop.f32.mrf.mxu0
          %v2942 = vadd.f32 0.0, %v2941
          %2943 = vmatmul.f32.gmra.mxu0 %v2853
          %v2944 = vpop.f32.mrf.mxu0
          %v2945 = vadd.f32 0.0, %v2944
          %2946 = vmatmul.f32.gmra.mxu0 %v2856
          %v2947 = vpop.f32.mrf.mxu0
          %v2948 = vadd.f32 0.0, %v2947
          %2949 = vmatmul.f32.gmra.mxu0 %v2859
          %v2950 = vpop.f32.mrf.mxu0
          %v2951 = vadd.f32 0.0, %v2950
          %2952 = vmatmul.f32.gmra.mxu0 %v2862
          %v2953 = vpop.f32.mrf.mxu0
          %v2954 = vadd.f32 0.0, %v2953
          %2955 = vmatmul.f32.gmra.mxu0 %v2865
          %v2956 = vpop.f32.mrf.mxu0
          %v2957 = vadd.f32 0.0, %v2956
          %2958 = vmatmul.f32.gmra.mxu0 %v2868
          %v2959 = vpop.f32.mrf.mxu0
          %v2960 = vadd.f32 0.0, %v2959
          %2961 = vmatmul.f32.gmra.mxu0 %v2871
          %v2962 = vpop.f32.mrf.mxu0
          %v2963 = vadd.f32 0.0, %v2962
          %2964 = vmatmul.f32.gmra.mxu0 %v2874
          %v2965 = vpop.f32.mrf.mxu0
          %v2966 = vadd.f32 0.0, %v2965
          %2967 = vmatmul.f32.gmra.mxu0 %v2877
          %v2968 = vpop.f32.mrf.mxu0
          %v2969 = vadd.f32 0.0, %v2968
          %2970 = vmatmul.f32.gmra.mxu0 %v2880
          %v2971 = vpop.f32.mrf.mxu0
          %v2972 = vadd.f32 0.0, %v2971
          %2973 = vmatmul.f32.gmra.mxu0 %v2883
          %v2974 = vpop.f32.mrf.mxu0
          %v2975 = vadd.f32 0.0, %v2974
          %2976 = vmatmul.f32.gmra.mxu0 %v2886
          %v2977 = vpop.f32.mrf.mxu0
          %v2978 = vadd.f32 0.0, %v2977
          %2979 = vmatmul.f32.gmra.mxu0 %v2889
          %v2980 = vpop.f32.mrf.mxu0
          %v2981 = vadd.f32 0.0, %v2980
          %2982 = vmatmul.f32.gmra.mxu0 %v2892
          %v2983 = vpop.f32.mrf.mxu0
          %v2984 = vadd.f32 0.0, %v2983
          %2985 = vmatmul.f32.gmra.mxu0 %v2895
          %v2986 = vpop.f32.mrf.mxu0
          %v2987 = vadd.f32 0.0, %v2986
          %2988 = vmatmul.f32.gmra.mxu0 %v2898
          %v2989 = vpop.f32.mrf.mxu0
          %v2990 = vadd.f32 0.0, %v2989
          %2991 = vmatmul.f32.gmra.mxu0 %v2901
          %v2992 = vpop.f32.mrf.mxu0
          %v2993 = vadd.f32 0.0, %v2992
          %2994 = vmatmul.f32.gmra.mxu0 %v2904
          %v2995 = vpop.f32.mrf.mxu0
          %v2996 = vadd.f32 0.0, %v2995
          %2997 = vmatmul.f32.gmra.mxu0 %v2907
          %v2998 = vpop.f32.mrf.mxu0
          %v2999 = vadd.f32 0.0, %v2998
          %3000 = vmatmul.f32.gmra.mxu0 %v2910
          %v3001 = vpop.f32.mrf.mxu0
          %v3002 = vadd.f32 0.0, %v3001
          %3003 = vmatmul.f32.gmra.mxu0 %v2913
          %v3004 = vpop.f32.mrf.mxu0
          %v3005 = vadd.f32 0.0, %v3004
          %3006 = vdwg.mxu0
          %v3007 = vadd.f32 %v2563, %v2933
          %v3008 = vadd.f32 %v2564, %v2936
          %v3009 = vadd.f32 %v2565, %v2939
          %v3010 = vadd.f32 %v2566, %v2942
          %v3011 = vadd.f32 %v2567, %v2945
          %v3012 = vadd.f32 %v2568, %v2948
          %v3013 = vadd.f32 %v2569, %v2951
          %v3014 = vadd.f32 %v2570, %v2954
          %v3015 = vadd.f32 %v2571, %v2957
          %v3016 = vadd.f32 %v2572, %v2960
          %v3017 = vadd.f32 %v2573, %v2963
          %v3018 = vadd.f32 %v2574, %v2966
          %v3019 = vadd.f32 %v2575, %v2969
          %v3020 = vadd.f32 %v2576, %v2972
          %v3021 = vadd.f32 %v2577, %v2975
          %v3022 = vadd.f32 %v2578, %v2978
          %v3023 = vadd.f32 %v2579, %v2981
          %v3024 = vadd.f32 %v2580, %v2984
          %v3025 = vadd.f32 %v2581, %v2987
          %v3026 = vadd.f32 %v2582, %v2990
          %v3027 = vadd.f32 %v2583, %v2993
          %v3028 = vadd.f32 %v2584, %v2996
          %v3029 = vadd.f32 %v2585, %v2999
          %v3030 = vadd.f32 %v2586, %v3002
          %v3031 = vadd.f32 %v2587, %v3005
          %s3032 = scalar_lea.vmem %s0, 1200
          %v3033 = vld [vmem:[%s3032] sm:$0xff]
          %v3034 = vld [vmem:[%s3032 + $0x8] sm:$0xff]
          %v3035 = vld [vmem:[%s3032 + $0x10] sm:$0xff]
          %v3036 = vld [vmem:[%s3032 + $0x18] sm:$0xff]
          %v3037 = vld [vmem:[%s3032 + $0x20] sm:$0xff]
          %v3038 = vld [vmem:[%s3032 + $0x28] sm:$0xff]
          %v3039 = vld [vmem:[%s3032 + $0x30] sm:$0xff]
          %v3040 = vld [vmem:[%s3032 + $0x38] sm:$0xff]
          %v3041 = vld [vmem:[%s3032 + $0x40] sm:$0xff]
          %v3042 = vld [vmem:[%s3032 + $0x48] sm:$0xff]
          %v3043 = vld [vmem:[%s3032 + $0x50] sm:$0xff]
          %v3044 = vld [vmem:[%s3032 + $0x58] sm:$0xff]
          %v3045 = vld [vmem:[%s3032 + $0x60] sm:$0xff]
          %v3046 = vld [vmem:[%s3032 + $0x68] sm:$0xff]
          %v3047 = vld [vmem:[%s3032 + $0x70] sm:$0xff]
          %v3048 = vld [vmem:[%s3032 + $0x78] sm:$0xff]
          %v3049 = vld [vmem:[%s3032 + $0x80] sm:$0xff]
          %v3050 = vld [vmem:[%s3032 + $0x88] sm:$0xff]
          %v3051 = vld [vmem:[%s3032 + $0x90] sm:$0xff]
          %v3052 = vld [vmem:[%s3032 + $0x98] sm:$0xff]
          %v3053 = vld [vmem:[%s3032 + $0xa0] sm:$0xff]
          %v3054 = vld [vmem:[%s3032 + $0xa8] sm:$0xff]
          %v3055 = vld [vmem:[%s3032 + $0xb0] sm:$0xff]
          %v3056 = vld [vmem:[%s3032 + $0xb8] sm:$0xff]
          %v3057 = vld [vmem:[%s3032 + $0xc0] sm:$0xf]
          %v3059 = vsel %vm443, %v3033, 0
          %v3062 = vsel %vm443, %v3034, 0
          %v3065 = vsel %vm443, %v3035, 0
          %v3068 = vsel %vm443, %v3036, 0
          %v3071 = vsel %vm443, %v3037, 0
          %v3074 = vsel %vm443, %v3038, 0
          %v3077 = vsel %vm443, %v3039, 0
          %v3080 = vsel %vm443, %v3040, 0
          %v3083 = vsel %vm443, %v3041, 0
          %v3086 = vsel %vm443, %v3042, 0
          %v3089 = vsel %vm443, %v3043, 0
          %v3092 = vsel %vm443, %v3044, 0
          %v3095 = vsel %vm443, %v3045, 0
          %v3098 = vsel %vm443, %v3046, 0
          %v3101 = vsel %vm443, %v3047, 0
          %v3104 = vsel %vm443, %v3048, 0
          %v3107 = vsel %vm443, %v3049, 0
          %v3110 = vsel %vm443, %v3050, 0
          %v3113 = vsel %vm443, %v3051, 0
          %v3116 = vsel %vm443, %v3052, 0
          %v3119 = vsel %vm443, %v3053, 0
          %v3122 = vsel %vm443, %v3054, 0
          %v3125 = vsel %vm443, %v3055, 0
          %v3128 = vsel %vm443, %v3056, 0
          %v3131 = vsel %vm443, %v3057, 0
          %3133 = vmatpush.msra.mxu0 0.0
          %3134 = vmatpush.msra.mxu0 0.0
          %3135 = vmatpush.msra.mxu0 0.0
          %3136 = vmatpush.msra.mxu0 0.0
          %3137 = vmatpush.msra.mxu0 0.0
          %3138 = vmatpush.msra.mxu0 0.0
          %3139 = vmatpush.msra.mxu0 0.0
          %3140 = vmatpush.msra.mxu0 0.0
          %3141 = vmatpush.msra.mxu0 0.0
          %3142 = vmatpush.msra.mxu0 0.0
          %3143 = vmatpush.msra.mxu0 0.0
          %3144 = vmatpush.msra.mxu0 0.0
          %3145 = vmatpush.msra.mxu0 0.0
          %3146 = vmatpush.msra.mxu0 %v442
          %3147 = vmatpush.msra.mxu0 %v441
          %3148 = vmatpush.msra.mxu0 %v440
          %3149 = vmatmul.f32.gmra.mxu0 %v3059
          %v3150 = vpop.f32.mrf.mxu0
          %v3151 = vadd.f32 0.0, %v3150
          %3152 = vmatmul.f32.gmra.mxu0 %v3062
          %v3153 = vpop.f32.mrf.mxu0
          %v3154 = vadd.f32 0.0, %v3153
          %3155 = vmatmul.f32.gmra.mxu0 %v3065
          %v3156 = vpop.f32.mrf.mxu0
          %v3157 = vadd.f32 0.0, %v3156
          %3158 = vmatmul.f32.gmra.mxu0 %v3068
          %v3159 = vpop.f32.mrf.mxu0
          %v3160 = vadd.f32 0.0, %v3159
          %3161 = vmatmul.f32.gmra.mxu0 %v3071
          %v3162 = vpop.f32.mrf.mxu0
          %v3163 = vadd.f32 0.0, %v3162
          %3164 = vmatmul.f32.gmra.mxu0 %v3074
          %v3165 = vpop.f32.mrf.mxu0
          %v3166 = vadd.f32 0.0, %v3165
          %3167 = vmatmul.f32.gmra.mxu0 %v3077
          %v3168 = vpop.f32.mrf.mxu0
          %v3169 = vadd.f32 0.0, %v3168
          %3170 = vmatmul.f32.gmra.mxu0 %v3080
          %v3171 = vpop.f32.mrf.mxu0
          %v3172 = vadd.f32 0.0, %v3171
          %3173 = vmatmul.f32.gmra.mxu0 %v3083
          %v3174 = vpop.f32.mrf.mxu0
          %v3175 = vadd.f32 0.0, %v3174
          %3176 = vmatmul.f32.gmra.mxu0 %v3086
          %v3177 = vpop.f32.mrf.mxu0
          %v3178 = vadd.f32 0.0, %v3177
          %3179 = vmatmul.f32.gmra.mxu0 %v3089
          %v3180 = vpop.f32.mrf.mxu0
          %v3181 = vadd.f32 0.0, %v3180
          %3182 = vmatmul.f32.gmra.mxu0 %v3092
          %v3183 = vpop.f32.mrf.mxu0
          %v3184 = vadd.f32 0.0, %v3183
          %3185 = vmatmul.f32.gmra.mxu0 %v3095
          %v3186 = vpop.f32.mrf.mxu0
          %v3187 = vadd.f32 0.0, %v3186
          %3188 = vmatmul.f32.gmra.mxu0 %v3098
          %v3189 = vpop.f32.mrf.mxu0
          %v3190 = vadd.f32 0.0, %v3189
          %3191 = vmatmul.f32.gmra.mxu0 %v3101
          %v3192 = vpop.f32.mrf.mxu0
          %v3193 = vadd.f32 0.0, %v3192
          %3194 = vmatmul.f32.gmra.mxu0 %v3104
          %v3195 = vpop.f32.mrf.mxu0
          %v3196 = vadd.f32 0.0, %v3195
          %3197 = vmatmul.f32.gmra.mxu0 %v3107
          %v3198 = vpop.f32.mrf.mxu0
          %v3199 = vadd.f32 0.0, %v3198
          %3200 = vmatmul.f32.gmra.mxu0 %v3110
          %v3201 = vpop.f32.mrf.mxu0
          %v3202 = vadd.f32 0.0, %v3201
          %3203 = vmatmul.f32.gmra.mxu0 %v3113
          %v3204 = vpop.f32.mrf.mxu0
          %v3205 = vadd.f32 0.0, %v3204
          %3206 = vmatmul.f32.gmra.mxu0 %v3116
          %v3207 = vpop.f32.mrf.mxu0
          %v3208 = vadd.f32 0.0, %v3207
          %3209 = vmatmul.f32.gmra.mxu0 %v3119
          %v3210 = vpop.f32.mrf.mxu0
          %v3211 = vadd.f32 0.0, %v3210
          %3212 = vmatmul.f32.gmra.mxu0 %v3122
          %v3213 = vpop.f32.mrf.mxu0
          %v3214 = vadd.f32 0.0, %v3213
          %3215 = vmatmul.f32.gmra.mxu0 %v3125
          %v3216 = vpop.f32.mrf.mxu0
          %v3217 = vadd.f32 0.0, %v3216
          %3218 = vmatmul.f32.gmra.mxu0 %v3128
          %v3219 = vpop.f32.mrf.mxu0
          %v3220 = vadd.f32 0.0, %v3219
          %3221 = vmatmul.f32.gmra.mxu0 %v3131
          %v3222 = vpop.f32.mrf.mxu0
          %v3223 = vadd.f32 0.0, %v3222
          %3224 = vdwg.mxu0
          %v3225 = vmul.f32 %v3151, 0.2
          %v3226 = vmul.f32 %v3154, 0.2
          %v3227 = vmul.f32 %v3157, 0.2
          %v3228 = vmul.f32 %v3160, 0.2
          %v3229 = vmul.f32 %v3163, 0.2
          %v3230 = vmul.f32 %v3166, 0.2
          %v3231 = vmul.f32 %v3169, 0.2
          %v3232 = vmul.f32 %v3172, 0.2
          %v3233 = vmul.f32 %v3175, 0.2
          %v3234 = vmul.f32 %v3178, 0.2
          %v3235 = vmul.f32 %v3181, 0.2
          %v3236 = vmul.f32 %v3184, 0.2
          %v3237 = vmul.f32 %v3187, 0.2
          %v3238 = vmul.f32 %v3190, 0.2
          %v3239 = vmul.f32 %v3193, 0.2
          %v3240 = vmul.f32 %v3196, 0.2
          %v3241 = vmul.f32 %v3199, 0.2
          %v3242 = vmul.f32 %v3202, 0.2
          %v3243 = vmul.f32 %v3205, 0.2
          %v3244 = vmul.f32 %v3208, 0.2
          %v3245 = vmul.f32 %v3211, 0.2
          %v3246 = vmul.f32 %v3214, 0.2
          %v3247 = vmul.f32 %v3217, 0.2
          %v3248 = vmul.f32 %v3220, 0.2
          %v3249 = vmul.f32 %v3223, 0.2
          %v3250 = vmax.f32 %v3151, %v3225
          %v3251 = vmax.f32 %v3154, %v3226
          %v3252 = vmax.f32 %v3157, %v3227
          %v3253 = vmax.f32 %v3160, %v3228
          %v3254 = vmax.f32 %v3163, %v3229
          %v3255 = vmax.f32 %v3166, %v3230
          %v3256 = vmax.f32 %v3169, %v3231
          %v3257 = vmax.f32 %v3172, %v3232
          %v3258 = vmax.f32 %v3175, %v3233
          %v3259 = vmax.f32 %v3178, %v3234
          %v3260 = vmax.f32 %v3181, %v3235
          %v3261 = vmax.f32 %v3184, %v3236
          %v3262 = vmax.f32 %v3187, %v3237
          %v3263 = vmax.f32 %v3190, %v3238
          %v3264 = vmax.f32 %v3193, %v3239
          %v3265 = vmax.f32 %v3196, %v3240
          %v3266 = vmax.f32 %v3199, %v3241
          %v3267 = vmax.f32 %v3202, %v3242
          %v3268 = vmax.f32 %v3205, %v3243
          %v3269 = vmax.f32 %v3208, %v3244
          %v3270 = vmax.f32 %v3211, %v3245
          %v3271 = vmax.f32 %v3214, %v3246
          %v3272 = vmax.f32 %v3217, %v3247
          %v3273 = vmax.f32 %v3220, %v3248
          %v3274 = vmax.f32 %v3223, %v3249
          %s3275 = scalar_lea.vmem %s2, 384
          %v3276 = vld [vmem:[%s3275] sm:$0xff]
          %v3277 = vld [vmem:[%s3275 + $0x8] sm:$0xff]
          %v3278 = vld [vmem:[%s3275 + $0x10] sm:$0xff]
          %v3279 = vld [vmem:[%s3275 + $0x18] sm:$0xff]
          %v3280 = vld [vmem:[%s3275 + $0x20] sm:$0xff]
          %v3281 = vld [vmem:[%s3275 + $0x28] sm:$0xff]
          %v3282 = vld [vmem:[%s3275 + $0x30] sm:$0xff]
          %v3283 = vld [vmem:[%s3275 + $0x38] sm:$0xff]
          %v3285 = vsel %vm921, %v3250, 0
          %v3288 = vsel %vm921, %v3251, 0
          %v3291 = vsel %vm921, %v3252, 0
          %v3294 = vsel %vm921, %v3253, 0
          %v3297 = vsel %vm921, %v3254, 0
          %v3300 = vsel %vm921, %v3255, 0
          %v3303 = vsel %vm921, %v3256, 0
          %v3306 = vsel %vm921, %v3257, 0
          %v3309 = vsel %vm921, %v3258, 0
          %v3312 = vsel %vm921, %v3259, 0
          %v3315 = vsel %vm921, %v3260, 0
          %v3318 = vsel %vm921, %v3261, 0
          %v3321 = vsel %vm921, %v3262, 0
          %v3324 = vsel %vm921, %v3263, 0
          %v3327 = vsel %vm921, %v3264, 0
          %v3330 = vsel %vm921, %v3265, 0
          %v3333 = vsel %vm921, %v3266, 0
          %v3336 = vsel %vm921, %v3267, 0
          %v3339 = vsel %vm921, %v3268, 0
          %v3342 = vsel %vm921, %v3269, 0
          %v3345 = vsel %vm921, %v3270, 0
          %v3348 = vsel %vm921, %v3271, 0
          %v3351 = vsel %vm921, %v3272, 0
          %v3354 = vsel %vm921, %v3273, 0
          %v3357 = vsel %vm921, %v3274, 0
          %3359 = vmatpush.msra.mxu0 0.0
          %3360 = vmatpush.msra.mxu0 0.0
          %3361 = vmatpush.msra.mxu0 0.0
          %3362 = vmatpush.msra.mxu0 0.0
          %3363 = vmatpush.msra.mxu0 0.0
          %3364 = vmatpush.msra.mxu0 0.0
          %3365 = vmatpush.msra.mxu0 0.0
          %3366 = vmatpush.msra.mxu0 0.0
          %3367 = vmatpush.msra.mxu0 %v3283
          %3368 = vmatpush.msra.mxu0 %v3282
          %3369 = vmatpush.msra.mxu0 %v3281
          %3370 = vmatpush.msra.mxu0 %v3280
          %3371 = vmatpush.msra.mxu0 %v3279
          %3372 = vmatpush.msra.mxu0 %v3278
          %3373 = vmatpush.msra.mxu0 %v3277
          %3374 = vmatpush.msra.mxu0 %v3276
          %3375 = vmatmul.f32.gmra.mxu0 %v3285
          %v3376 = vpop.f32.mrf.mxu0
          %v3377 = vadd.f32 0.0, %v3376
          %3378 = vmatmul.f32.gmra.mxu0 %v3288
          %v3379 = vpop.f32.mrf.mxu0
          %v3380 = vadd.f32 0.0, %v3379
          %3381 = vmatmul.f32.gmra.mxu0 %v3291
          %v3382 = vpop.f32.mrf.mxu0
          %v3383 = vadd.f32 0.0, %v3382
          %3384 = vmatmul.f32.gmra.mxu0 %v3294
          %v3385 = vpop.f32.mrf.mxu0
          %v3386 = vadd.f32 0.0, %v3385
          %3387 = vmatmul.f32.gmra.mxu0 %v3297
          %v3388 = vpop.f32.mrf.mxu0
          %v3389 = vadd.f32 0.0, %v3388
          %3390 = vmatmul.f32.gmra.mxu0 %v3300
          %v3391 = vpop.f32.mrf.mxu0
          %v3392 = vadd.f32 0.0, %v3391
          %3393 = vmatmul.f32.gmra.mxu0 %v3303
          %v3394 = vpop.f32.mrf.mxu0
          %v3395 = vadd.f32 0.0, %v3394
          %3396 = vmatmul.f32.gmra.mxu0 %v3306
          %v3397 = vpop.f32.mrf.mxu0
          %v3398 = vadd.f32 0.0, %v3397
          %3399 = vmatmul.f32.gmra.mxu0 %v3309
          %v3400 = vpop.f32.mrf.mxu0
          %v3401 = vadd.f32 0.0, %v3400
          %3402 = vmatmul.f32.gmra.mxu0 %v3312
          %v3403 = vpop.f32.mrf.mxu0
          %v3404 = vadd.f32 0.0, %v3403
          %3405 = vmatmul.f32.gmra.mxu0 %v3315
          %v3406 = vpop.f32.mrf.mxu0
          %v3407 = vadd.f32 0.0, %v3406
          %3408 = vmatmul.f32.gmra.mxu0 %v3318
          %v3409 = vpop.f32.mrf.mxu0
          %v3410 = vadd.f32 0.0, %v3409
          %3411 = vmatmul.f32.gmra.mxu0 %v3321
          %v3412 = vpop.f32.mrf.mxu0
          %v3413 = vadd.f32 0.0, %v3412
          %3414 = vmatmul.f32.gmra.mxu0 %v3324
          %v3415 = vpop.f32.mrf.mxu0
          %v3416 = vadd.f32 0.0, %v3415
          %3417 = vmatmul.f32.gmra.mxu0 %v3327
          %v3418 = vpop.f32.mrf.mxu0
          %v3419 = vadd.f32 0.0, %v3418
          %3420 = vmatmul.f32.gmra.mxu0 %v3330
          %v3421 = vpop.f32.mrf.mxu0
          %v3422 = vadd.f32 0.0, %v3421
          %3423 = vmatmul.f32.gmra.mxu0 %v3333
          %v3424 = vpop.f32.mrf.mxu0
          %v3425 = vadd.f32 0.0, %v3424
          %3426 = vmatmul.f32.gmra.mxu0 %v3336
          %v3427 = vpop.f32.mrf.mxu0
          %v3428 = vadd.f32 0.0, %v3427
          %3429 = vmatmul.f32.gmra.mxu0 %v3339
          %v3430 = vpop.f32.mrf.mxu0
          %v3431 = vadd.f32 0.0, %v3430
          %3432 = vmatmul.f32.gmra.mxu0 %v3342
          %v3433 = vpop.f32.mrf.mxu0
          %v3434 = vadd.f32 0.0, %v3433
          %3435 = vmatmul.f32.gmra.mxu0 %v3345
          %v3436 = vpop.f32.mrf.mxu0
          %v3437 = vadd.f32 0.0, %v3436
          %3438 = vmatmul.f32.gmra.mxu0 %v3348
          %v3439 = vpop.f32.mrf.mxu0
          %v3440 = vadd.f32 0.0, %v3439
          %3441 = vmatmul.f32.gmra.mxu0 %v3351
          %v3442 = vpop.f32.mrf.mxu0
          %v3443 = vadd.f32 0.0, %v3442
          %3444 = vmatmul.f32.gmra.mxu0 %v3354
          %v3445 = vpop.f32.mrf.mxu0
          %v3446 = vadd.f32 0.0, %v3445
          %3447 = vmatmul.f32.gmra.mxu0 %v3357
          %v3448 = vpop.f32.mrf.mxu0
          %v3449 = vadd.f32 0.0, %v3448
          %3450 = vdwg.mxu0
          %v3451 = vadd.f32 %v3007, %v3377
          %v3452 = vadd.f32 %v3008, %v3380
          %v3453 = vadd.f32 %v3009, %v3383
          %v3454 = vadd.f32 %v3010, %v3386
          %v3455 = vadd.f32 %v3011, %v3389
          %v3456 = vadd.f32 %v3012, %v3392
          %v3457 = vadd.f32 %v3013, %v3395
          %v3458 = vadd.f32 %v3014, %v3398
          %v3459 = vadd.f32 %v3015, %v3401
          %v3460 = vadd.f32 %v3016, %v3404
          %v3461 = vadd.f32 %v3017, %v3407
          %v3462 = vadd.f32 %v3018, %v3410
          %v3463 = vadd.f32 %v3019, %v3413
          %v3464 = vadd.f32 %v3020, %v3416
          %v3465 = vadd.f32 %v3021, %v3419
          %v3466 = vadd.f32 %v3022, %v3422
          %v3467 = vadd.f32 %v3023, %v3425
          %v3468 = vadd.f32 %v3024, %v3428
          %v3469 = vadd.f32 %v3025, %v3431
          %v3470 = vadd.f32 %v3026, %v3434
          %v3471 = vadd.f32 %v3027, %v3437
          %v3472 = vadd.f32 %v3028, %v3440
          %v3473 = vadd.f32 %v3029, %v3443
          %v3474 = vadd.f32 %v3030, %v3446
          %v3475 = vadd.f32 %v3031, %v3449
          %s3476 = scalar_lea.vmem %s0, 1400
          %v3477 = vld [vmem:[%s3476] sm:$0xff]
          %v3478 = vld [vmem:[%s3476 + $0x8] sm:$0xff]
          %v3479 = vld [vmem:[%s3476 + $0x10] sm:$0xff]
          %v3480 = vld [vmem:[%s3476 + $0x18] sm:$0xff]
          %v3481 = vld [vmem:[%s3476 + $0x20] sm:$0xff]
          %v3482 = vld [vmem:[%s3476 + $0x28] sm:$0xff]
          %v3483 = vld [vmem:[%s3476 + $0x30] sm:$0xff]
          %v3484 = vld [vmem:[%s3476 + $0x38] sm:$0xff]
          %v3485 = vld [vmem:[%s3476 + $0x40] sm:$0xff]
          %v3486 = vld [vmem:[%s3476 + $0x48] sm:$0xff]
          %v3487 = vld [vmem:[%s3476 + $0x50] sm:$0xff]
          %v3488 = vld [vmem:[%s3476 + $0x58] sm:$0xff]
          %v3489 = vld [vmem:[%s3476 + $0x60] sm:$0xff]
          %v3490 = vld [vmem:[%s3476 + $0x68] sm:$0xff]
          %v3491 = vld [vmem:[%s3476 + $0x70] sm:$0xff]
          %v3492 = vld [vmem:[%s3476 + $0x78] sm:$0xff]
          %v3493 = vld [vmem:[%s3476 + $0x80] sm:$0xff]
          %v3494 = vld [vmem:[%s3476 + $0x88] sm:$0xff]
          %v3495 = vld [vmem:[%s3476 + $0x90] sm:$0xff]
          %v3496 = vld [vmem:[%s3476 + $0x98] sm:$0xff]
          %v3497 = vld [vmem:[%s3476 + $0xa0] sm:$0xff]
          %v3498 = vld [vmem:[%s3476 + $0xa8] sm:$0xff]
          %v3499 = vld [vmem:[%s3476 + $0xb0] sm:$0xff]
          %v3500 = vld [vmem:[%s3476 + $0xb8] sm:$0xff]
          %v3501 = vld [vmem:[%s3476 + $0xc0] sm:$0xf]
          %v3503 = vsel %vm443, %v3477, 0
          %v3506 = vsel %vm443, %v3478, 0
          %v3509 = vsel %vm443, %v3479, 0
          %v3512 = vsel %vm443, %v3480, 0
          %v3515 = vsel %vm443, %v3481, 0
          %v3518 = vsel %vm443, %v3482, 0
          %v3521 = vsel %vm443, %v3483, 0
          %v3524 = vsel %vm443, %v3484, 0
          %v3527 = vsel %vm443, %v3485, 0
          %v3530 = vsel %vm443, %v3486, 0
          %v3533 = vsel %vm443, %v3487, 0
          %v3536 = vsel %vm443, %v3488, 0
          %v3539 = vsel %vm443, %v3489, 0
          %v3542 = vsel %vm443, %v3490, 0
          %v3545 = vsel %vm443, %v3491, 0
          %v3548 = vsel %vm443, %v3492, 0
          %v3551 = vsel %vm443, %v3493, 0
          %v3554 = vsel %vm443, %v3494, 0
          %v3557 = vsel %vm443, %v3495, 0
          %v3560 = vsel %vm443, %v3496, 0
          %v3563 = vsel %vm443, %v3497, 0
          %v3566 = vsel %vm443, %v3498, 0
          %v3569 = vsel %vm443, %v3499, 0
          %v3572 = vsel %vm443, %v3500, 0
          %v3575 = vsel %vm443, %v3501, 0
          %3577 = vmatpush.msra.mxu0 0.0
          %3578 = vmatpush.msra.mxu0 0.0
          %3579 = vmatpush.msra.mxu0 0.0
          %3580 = vmatpush.msra.mxu0 0.0
          %3581 = vmatpush.msra.mxu0 0.0
          %3582 = vmatpush.msra.mxu0 0.0
          %3583 = vmatpush.msra.mxu0 0.0
          %3584 = vmatpush.msra.mxu0 0.0
          %3585 = vmatpush.msra.mxu0 0.0
          %3586 = vmatpush.msra.mxu0 0.0
          %3587 = vmatpush.msra.mxu0 0.0
          %3588 = vmatpush.msra.mxu0 0.0
          %3589 = vmatpush.msra.mxu0 0.0
          %3590 = vmatpush.msra.mxu0 %v442
          %3591 = vmatpush.msra.mxu0 %v441
          %3592 = vmatpush.msra.mxu0 %v440
          %3593 = vmatmul.f32.gmra.mxu0 %v3503
          %v3594 = vpop.f32.mrf.mxu0
          %v3595 = vadd.f32 0.0, %v3594
          %3596 = vmatmul.f32.gmra.mxu0 %v3506
          %v3597 = vpop.f32.mrf.mxu0
          %v3598 = vadd.f32 0.0, %v3597
          %3599 = vmatmul.f32.gmra.mxu0 %v3509
          %v3600 = vpop.f32.mrf.mxu0
          %v3601 = vadd.f32 0.0, %v3600
          %3602 = vmatmul.f32.gmra.mxu0 %v3512
          %v3603 = vpop.f32.mrf.mxu0
          %v3604 = vadd.f32 0.0, %v3603
          %3605 = vmatmul.f32.gmra.mxu0 %v3515
          %v3606 = vpop.f32.mrf.mxu0
          %v3607 = vadd.f32 0.0, %v3606
          %3608 = vmatmul.f32.gmra.mxu0 %v3518
          %v3609 = vpop.f32.mrf.mxu0
          %v3610 = vadd.f32 0.0, %v3609
          %3611 = vmatmul.f32.gmra.mxu0 %v3521
          %v3612 = vpop.f32.mrf.mxu0
          %v3613 = vadd.f32 0.0, %v3612
          %3614 = vmatmul.f32.gmra.mxu0 %v3524
          %v3615 = vpop.f32.mrf.mxu0
          %v3616 = vadd.f32 0.0, %v3615
          %3617 = vmatmul.f32.gmra.mxu0 %v3527
          %v3618 = vpop.f32.mrf.mxu0
          %v3619 = vadd.f32 0.0, %v3618
          %3620 = vmatmul.f32.gmra.mxu0 %v3530
          %v3621 = vpop.f32.mrf.mxu0
          %v3622 = vadd.f32 0.0, %v3621
          %3623 = vmatmul.f32.gmra.mxu0 %v3533
          %v3624 = vpop.f32.mrf.mxu0
          %v3625 = vadd.f32 0.0, %v3624
          %3626 = vmatmul.f32.gmra.mxu0 %v3536
          %v3627 = vpop.f32.mrf.mxu0
          %v3628 = vadd.f32 0.0, %v3627
          %3629 = vmatmul.f32.gmra.mxu0 %v3539
          %v3630 = vpop.f32.mrf.mxu0
          %v3631 = vadd.f32 0.0, %v3630
          %3632 = vmatmul.f32.gmra.mxu0 %v3542
          %v3633 = vpop.f32.mrf.mxu0
          %v3634 = vadd.f32 0.0, %v3633
          %3635 = vmatmul.f32.gmra.mxu0 %v3545
          %v3636 = vpop.f32.mrf.mxu0
          %v3637 = vadd.f32 0.0, %v3636
          %3638 = vmatmul.f32.gmra.mxu0 %v3548
          %v3639 = vpop.f32.mrf.mxu0
          %v3640 = vadd.f32 0.0, %v3639
          %3641 = vmatmul.f32.gmra.mxu0 %v3551
          %v3642 = vpop.f32.mrf.mxu0
          %v3643 = vadd.f32 0.0, %v3642
          %3644 = vmatmul.f32.gmra.mxu0 %v3554
          %v3645 = vpop.f32.mrf.mxu0
          %v3646 = vadd.f32 0.0, %v3645
          %3647 = vmatmul.f32.gmra.mxu0 %v3557
          %v3648 = vpop.f32.mrf.mxu0
          %v3649 = vadd.f32 0.0, %v3648
          %3650 = vmatmul.f32.gmra.mxu0 %v3560
          %v3651 = vpop.f32.mrf.mxu0
          %v3652 = vadd.f32 0.0, %v3651
          %3653 = vmatmul.f32.gmra.mxu0 %v3563
          %v3654 = vpop.f32.mrf.mxu0
          %v3655 = vadd.f32 0.0, %v3654
          %3656 = vmatmul.f32.gmra.mxu0 %v3566
          %v3657 = vpop.f32.mrf.mxu0
          %v3658 = vadd.f32 0.0, %v3657
          %3659 = vmatmul.f32.gmra.mxu0 %v3569
          %v3660 = vpop.f32.mrf.mxu0
          %v3661 = vadd.f32 0.0, %v3660
          %3662 = vmatmul.f32.gmra.mxu0 %v3572
          %v3663 = vpop.f32.mrf.mxu0
          %v3664 = vadd.f32 0.0, %v3663
          %3665 = vmatmul.f32.gmra.mxu0 %v3575
          %v3666 = vpop.f32.mrf.mxu0
          %v3667 = vadd.f32 0.0, %v3666
          %3668 = vdwg.mxu0
          %v3669 = vmul.f32 %v3595, 0.2
          %v3670 = vmul.f32 %v3598, 0.2
          %v3671 = vmul.f32 %v3601, 0.2
          %v3672 = vmul.f32 %v3604, 0.2
          %v3673 = vmul.f32 %v3607, 0.2
          %v3674 = vmul.f32 %v3610, 0.2
          %v3675 = vmul.f32 %v3613, 0.2
          %v3676 = vmul.f32 %v3616, 0.2
          %v3677 = vmul.f32 %v3619, 0.2
          %v3678 = vmul.f32 %v3622, 0.2
          %v3679 = vmul.f32 %v3625, 0.2
          %v3680 = vmul.f32 %v3628, 0.2
          %v3681 = vmul.f32 %v3631, 0.2
          %v3682 = vmul.f32 %v3634, 0.2
          %v3683 = vmul.f32 %v3637, 0.2
          %v3684 = vmul.f32 %v3640, 0.2
          %v3685 = vmul.f32 %v3643, 0.2
          %v3686 = vmul.f32 %v3646, 0.2
          %v3687 = vmul.f32 %v3649, 0.2
          %v3688 = vmul.f32 %v3652, 0.2
          %v3689 = vmul.f32 %v3655, 0.2
          %v3690 = vmul.f32 %v3658, 0.2
          %v3691 = vmul.f32 %v3661, 0.2
          %v3692 = vmul.f32 %v3664, 0.2
          %v3693 = vmul.f32 %v3667, 0.2
          %v3694 = vmax.f32 %v3595, %v3669
          %v3695 = vmax.f32 %v3598, %v3670
          %v3696 = vmax.f32 %v3601, %v3671
          %v3697 = vmax.f32 %v3604, %v3672
          %v3698 = vmax.f32 %v3607, %v3673
          %v3699 = vmax.f32 %v3610, %v3674
          %v3700 = vmax.f32 %v3613, %v3675
          %v3701 = vmax.f32 %v3616, %v3676
          %v3702 = vmax.f32 %v3619, %v3677
          %v3703 = vmax.f32 %v3622, %v3678
          %v3704 = vmax.f32 %v3625, %v3679
          %v3705 = vmax.f32 %v3628, %v3680
          %v3706 = vmax.f32 %v3631, %v3681
          %v3707 = vmax.f32 %v3634, %v3682
          %v3708 = vmax.f32 %v3637, %v3683
          %v3709 = vmax.f32 %v3640, %v3684
          %v3710 = vmax.f32 %v3643, %v3685
          %v3711 = vmax.f32 %v3646, %v3686
          %v3712 = vmax.f32 %v3649, %v3687
          %v3713 = vmax.f32 %v3652, %v3688
          %v3714 = vmax.f32 %v3655, %v3689
          %v3715 = vmax.f32 %v3658, %v3690
          %v3716 = vmax.f32 %v3661, %v3691
          %v3717 = vmax.f32 %v3664, %v3692
          %v3718 = vmax.f32 %v3667, %v3693
          %s3719 = scalar_lea.vmem %s2, 448
          %v3720 = vld [vmem:[%s3719] sm:$0xff]
          %v3721 = vld [vmem:[%s3719 + $0x8] sm:$0xff]
          %v3722 = vld [vmem:[%s3719 + $0x10] sm:$0xff]
          %v3723 = vld [vmem:[%s3719 + $0x18] sm:$0xff]
          %v3724 = vld [vmem:[%s3719 + $0x20] sm:$0xff]
          %v3725 = vld [vmem:[%s3719 + $0x28] sm:$0xff]
          %v3726 = vld [vmem:[%s3719 + $0x30] sm:$0xff]
          %v3727 = vld [vmem:[%s3719 + $0x38] sm:$0xff]
          %v3729 = vsel %vm921, %v3694, 0
          %v3732 = vsel %vm921, %v3695, 0
          %v3735 = vsel %vm921, %v3696, 0
          %v3738 = vsel %vm921, %v3697, 0
          %v3741 = vsel %vm921, %v3698, 0
          %v3744 = vsel %vm921, %v3699, 0
          %v3747 = vsel %vm921, %v3700, 0
          %v3750 = vsel %vm921, %v3701, 0
          %v3753 = vsel %vm921, %v3702, 0
          %v3756 = vsel %vm921, %v3703, 0
          %v3759 = vsel %vm921, %v3704, 0
          %v3762 = vsel %vm921, %v3705, 0
          %v3765 = vsel %vm921, %v3706, 0
          %v3768 = vsel %vm921, %v3707, 0
          %v3771 = vsel %vm921, %v3708, 0
          %v3774 = vsel %vm921, %v3709, 0
          %v3777 = vsel %vm921, %v3710, 0
          %v3780 = vsel %vm921, %v3711, 0
          %v3783 = vsel %vm921, %v3712, 0
          %v3786 = vsel %vm921, %v3713, 0
          %v3789 = vsel %vm921, %v3714, 0
          %v3792 = vsel %vm921, %v3715, 0
          %v3795 = vsel %vm921, %v3716, 0
          %v3798 = vsel %vm921, %v3717, 0
          %v3801 = vsel %vm921, %v3718, 0
          %3803 = vmatpush.msra.mxu0 0.0
          %3804 = vmatpush.msra.mxu0 0.0
          %3805 = vmatpush.msra.mxu0 0.0
          %3806 = vmatpush.msra.mxu0 0.0
          %3807 = vmatpush.msra.mxu0 0.0
          %3808 = vmatpush.msra.mxu0 0.0
          %3809 = vmatpush.msra.mxu0 0.0
          %3810 = vmatpush.msra.mxu0 0.0
          %3811 = vmatpush.msra.mxu0 %v3727
          %3812 = vmatpush.msra.mxu0 %v3726
          %3813 = vmatpush.msra.mxu0 %v3725
          %3814 = vmatpush.msra.mxu0 %v3724
          %3815 = vmatpush.msra.mxu0 %v3723
          %3816 = vmatpush.msra.mxu0 %v3722
          %3817 = vmatpush.msra.mxu0 %v3721
          %3818 = vmatpush.msra.mxu0 %v3720
          %3819 = vmatmul.f32.gmra.mxu0 %v3729
          %v3820 = vpop.f32.mrf.mxu0
          %v3821 = vadd.f32 0.0, %v3820
          %3822 = vmatmul.f32.gmra.mxu0 %v3732
          %v3823 = vpop.f32.mrf.mxu0
          %v3824 = vadd.f32 0.0, %v3823
          %3825 = vmatmul.f32.gmra.mxu0 %v3735
          %v3826 = vpop.f32.mrf.mxu0
          %v3827 = vadd.f32 0.0, %v3826
          %3828 = vmatmul.f32.gmra.mxu0 %v3738
          %v3829 = vpop.f32.mrf.mxu0
          %v3830 = vadd.f32 0.0, %v3829
          %3831 = vmatmul.f32.gmra.mxu0 %v3741
          %v3832 = vpop.f32.mrf.mxu0
          %v3833 = vadd.f32 0.0, %v3832
          %3834 = vmatmul.f32.gmra.mxu0 %v3744
          %v3835 = vpop.f32.mrf.mxu0
          %v3836 = vadd.f32 0.0, %v3835
          %3837 = vmatmul.f32.gmra.mxu0 %v3747
          %v3838 = vpop.f32.mrf.mxu0
          %v3839 = vadd.f32 0.0, %v3838
          %3840 = vmatmul.f32.gmra.mxu0 %v3750
          %v3841 = vpop.f32.mrf.mxu0
          %v3842 = vadd.f32 0.0, %v3841
          %3843 = vmatmul.f32.gmra.mxu0 %v3753
          %v3844 = vpop.f32.mrf.mxu0
          %v3845 = vadd.f32 0.0, %v3844
          %3846 = vmatmul.f32.gmra.mxu0 %v3756
          %v3847 = vpop.f32.mrf.mxu0
          %v3848 = vadd.f32 0.0, %v3847
          %3849 = vmatmul.f32.gmra.mxu0 %v3759
          %v3850 = vpop.f32.mrf.mxu0
          %v3851 = vadd.f32 0.0, %v3850
          %3852 = vmatmul.f32.gmra.mxu0 %v3762
          %v3853 = vpop.f32.mrf.mxu0
          %v3854 = vadd.f32 0.0, %v3853
          %3855 = vmatmul.f32.gmra.mxu0 %v3765
          %v3856 = vpop.f32.mrf.mxu0
          %v3857 = vadd.f32 0.0, %v3856
          %3858 = vmatmul.f32.gmra.mxu0 %v3768
          %v3859 = vpop.f32.mrf.mxu0
          %v3860 = vadd.f32 0.0, %v3859
          %3861 = vmatmul.f32.gmra.mxu0 %v3771
          %v3862 = vpop.f32.mrf.mxu0
          %v3863 = vadd.f32 0.0, %v3862
          %3864 = vmatmul.f32.gmra.mxu0 %v3774
          %v3865 = vpop.f32.mrf.mxu0
          %v3866 = vadd.f32 0.0, %v3865
          %3867 = vmatmul.f32.gmra.mxu0 %v3777
          %v3868 = vpop.f32.mrf.mxu0
          %v3869 = vadd.f32 0.0, %v3868
          %3870 = vmatmul.f32.gmra.mxu0 %v3780
          %v3871 = vpop.f32.mrf.mxu0
          %v3872 = vadd.f32 0.0, %v3871
          %3873 = vmatmul.f32.gmra.mxu0 %v3783
          %v3874 = vpop.f32.mrf.mxu0
          %v3875 = vadd.f32 0.0, %v3874
          %3876 = vmatmul.f32.gmra.mxu0 %v3786
          %v3877 = vpop.f32.mrf.mxu0
          %v3878 = vadd.f32 0.0, %v3877
          %3879 = vmatmul.f32.gmra.mxu0 %v3789
          %v3880 = vpop.f32.mrf.mxu0
          %v3881 = vadd.f32 0.0, %v3880
          %3882 = vmatmul.f32.gmra.mxu0 %v3792
          %v3883 = vpop.f32.mrf.mxu0
          %v3884 = vadd.f32 0.0, %v3883
          %3885 = vmatmul.f32.gmra.mxu0 %v3795
          %v3886 = vpop.f32.mrf.mxu0
          %v3887 = vadd.f32 0.0, %v3886
          %3888 = vmatmul.f32.gmra.mxu0 %v3798
          %v3889 = vpop.f32.mrf.mxu0
          %v3890 = vadd.f32 0.0, %v3889
          %3891 = vmatmul.f32.gmra.mxu0 %v3801
          %v3892 = vpop.f32.mrf.mxu0
          %v3893 = vadd.f32 0.0, %v3892
          %3894 = vdwg.mxu0
          %v3895 = vadd.f32 %v3451, %v3821
          %v3896 = vadd.f32 %v3452, %v3824
          %v3897 = vadd.f32 %v3453, %v3827
          %v3898 = vadd.f32 %v3454, %v3830
          %v3899 = vadd.f32 %v3455, %v3833
          %v3900 = vadd.f32 %v3456, %v3836
          %v3901 = vadd.f32 %v3457, %v3839
          %v3902 = vadd.f32 %v3458, %v3842
          %v3903 = vadd.f32 %v3459, %v3845
          %v3904 = vadd.f32 %v3460, %v3848
          %v3905 = vadd.f32 %v3461, %v3851
          %v3906 = vadd.f32 %v3462, %v3854
          %v3907 = vadd.f32 %v3463, %v3857
          %v3908 = vadd.f32 %v3464, %v3860
          %v3909 = vadd.f32 %v3465, %v3863
          %v3910 = vadd.f32 %v3466, %v3866
          %v3911 = vadd.f32 %v3467, %v3869
          %v3912 = vadd.f32 %v3468, %v3872
          %v3913 = vadd.f32 %v3469, %v3875
          %v3914 = vadd.f32 %v3470, %v3878
          %v3915 = vadd.f32 %v3471, %v3881
          %v3916 = vadd.f32 %v3472, %v3884
          %v3917 = vadd.f32 %v3473, %v3887
          %v3918 = vadd.f32 %v3474, %v3890
          %v3919 = vadd.f32 %v3475, %v3893
          %s3920 = scalar_lea.vmem %s0, 1600
          %v3921 = vld [vmem:[%s3920] sm:$0xff]
          %v3922 = vld [vmem:[%s3920 + $0x8] sm:$0xff]
          %v3923 = vld [vmem:[%s3920 + $0x10] sm:$0xff]
          %v3924 = vld [vmem:[%s3920 + $0x18] sm:$0xff]
          %v3925 = vld [vmem:[%s3920 + $0x20] sm:$0xff]
          %v3926 = vld [vmem:[%s3920 + $0x28] sm:$0xff]
          %v3927 = vld [vmem:[%s3920 + $0x30] sm:$0xff]
          %v3928 = vld [vmem:[%s3920 + $0x38] sm:$0xff]
          %v3929 = vld [vmem:[%s3920 + $0x40] sm:$0xff]
          %v3930 = vld [vmem:[%s3920 + $0x48] sm:$0xff]
          %v3931 = vld [vmem:[%s3920 + $0x50] sm:$0xff]
          %v3932 = vld [vmem:[%s3920 + $0x58] sm:$0xff]
          %v3933 = vld [vmem:[%s3920 + $0x60] sm:$0xff]
          %v3934 = vld [vmem:[%s3920 + $0x68] sm:$0xff]
          %v3935 = vld [vmem:[%s3920 + $0x70] sm:$0xff]
          %v3936 = vld [vmem:[%s3920 + $0x78] sm:$0xff]
          %v3937 = vld [vmem:[%s3920 + $0x80] sm:$0xff]
          %v3938 = vld [vmem:[%s3920 + $0x88] sm:$0xff]
          %v3939 = vld [vmem:[%s3920 + $0x90] sm:$0xff]
          %v3940 = vld [vmem:[%s3920 + $0x98] sm:$0xff]
          %v3941 = vld [vmem:[%s3920 + $0xa0] sm:$0xff]
          %v3942 = vld [vmem:[%s3920 + $0xa8] sm:$0xff]
          %v3943 = vld [vmem:[%s3920 + $0xb0] sm:$0xff]
          %v3944 = vld [vmem:[%s3920 + $0xb8] sm:$0xff]
          %v3945 = vld [vmem:[%s3920 + $0xc0] sm:$0xf]
          %v3947 = vsel %vm443, %v3921, 0
          %v3950 = vsel %vm443, %v3922, 0
          %v3953 = vsel %vm443, %v3923, 0
          %v3956 = vsel %vm443, %v3924, 0
          %v3959 = vsel %vm443, %v3925, 0
          %v3962 = vsel %vm443, %v3926, 0
          %v3965 = vsel %vm443, %v3927, 0
          %v3968 = vsel %vm443, %v3928, 0
          %v3971 = vsel %vm443, %v3929, 0
          %v3974 = vsel %vm443, %v3930, 0
          %v3977 = vsel %vm443, %v3931, 0
          %v3980 = vsel %vm443, %v3932, 0
          %v3983 = vsel %vm443, %v3933, 0
          %v3986 = vsel %vm443, %v3934, 0
          %v3989 = vsel %vm443, %v3935, 0
          %v3992 = vsel %vm443, %v3936, 0
          %v3995 = vsel %vm443, %v3937, 0
          %v3998 = vsel %vm443, %v3938, 0
          %v4001 = vsel %vm443, %v3939, 0
          %v4004 = vsel %vm443, %v3940, 0
          %v4007 = vsel %vm443, %v3941, 0
          %v4010 = vsel %vm443, %v3942, 0
          %v4013 = vsel %vm443, %v3943, 0
          %v4016 = vsel %vm443, %v3944, 0
          %v4019 = vsel %vm443, %v3945, 0
          %4021 = vmatpush.msra.mxu0 0.0
          %4022 = vmatpush.msra.mxu0 0.0
          %4023 = vmatpush.msra.mxu0 0.0
          %4024 = vmatpush.msra.mxu0 0.0
          %4025 = vmatpush.msra.mxu0 0.0
          %4026 = vmatpush.msra.mxu0 0.0
          %4027 = vmatpush.msra.mxu0 0.0
          %4028 = vmatpush.msra.mxu0 0.0
          %4029 = vmatpush.msra.mxu0 0.0
          %4030 = vmatpush.msra.mxu0 0.0
          %4031 = vmatpush.msra.mxu0 0.0
          %4032 = vmatpush.msra.mxu0 0.0
          %4033 = vmatpush.msra.mxu0 0.0
          %4034 = vmatpush.msra.mxu0 %v442
          %4035 = vmatpush.msra.mxu0 %v441
          %4036 = vmatpush.msra.mxu0 %v440
          %4037 = vmatmul.f32.gmra.mxu0 %v3947
          %v4038 = vpop.f32.mrf.mxu0
          %v4039 = vadd.f32 0.0, %v4038
          %4040 = vmatmul.f32.gmra.mxu0 %v3950
          %v4041 = vpop.f32.mrf.mxu0
          %v4042 = vadd.f32 0.0, %v4041
          %4043 = vmatmul.f32.gmra.mxu0 %v3953
          %v4044 = vpop.f32.mrf.mxu0
          %v4045 = vadd.f32 0.0, %v4044
          %4046 = vmatmul.f32.gmra.mxu0 %v3956
          %v4047 = vpop.f32.mrf.mxu0
          %v4048 = vadd.f32 0.0, %v4047
          %4049 = vmatmul.f32.gmra.mxu0 %v3959
          %v4050 = vpop.f32.mrf.mxu0
          %v4051 = vadd.f32 0.0, %v4050
          %4052 = vmatmul.f32.gmra.mxu0 %v3962
          %v4053 = vpop.f32.mrf.mxu0
          %v4054 = vadd.f32 0.0, %v4053
          %4055 = vmatmul.f32.gmra.mxu0 %v3965
          %v4056 = vpop.f32.mrf.mxu0
          %v4057 = vadd.f32 0.0, %v4056
          %4058 = vmatmul.f32.gmra.mxu0 %v3968
          %v4059 = vpop.f32.mrf.mxu0
          %v4060 = vadd.f32 0.0, %v4059
          %4061 = vmatmul.f32.gmra.mxu0 %v3971
          %v4062 = vpop.f32.mrf.mxu0
          %v4063 = vadd.f32 0.0, %v4062
          %4064 = vmatmul.f32.gmra.mxu0 %v3974
          %v4065 = vpop.f32.mrf.mxu0
          %v4066 = vadd.f32 0.0, %v4065
          %4067 = vmatmul.f32.gmra.mxu0 %v3977
          %v4068 = vpop.f32.mrf.mxu0
          %v4069 = vadd.f32 0.0, %v4068
          %4070 = vmatmul.f32.gmra.mxu0 %v3980
          %v4071 = vpop.f32.mrf.mxu0
          %v4072 = vadd.f32 0.0, %v4071
          %4073 = vmatmul.f32.gmra.mxu0 %v3983
          %v4074 = vpop.f32.mrf.mxu0
          %v4075 = vadd.f32 0.0, %v4074
          %4076 = vmatmul.f32.gmra.mxu0 %v3986
          %v4077 = vpop.f32.mrf.mxu0
          %v4078 = vadd.f32 0.0, %v4077
          %4079 = vmatmul.f32.gmra.mxu0 %v3989
          %v4080 = vpop.f32.mrf.mxu0
          %v4081 = vadd.f32 0.0, %v4080
          %4082 = vmatmul.f32.gmra.mxu0 %v3992
          %v4083 = vpop.f32.mrf.mxu0
          %v4084 = vadd.f32 0.0, %v4083
          %4085 = vmatmul.f32.gmra.mxu0 %v3995
          %v4086 = vpop.f32.mrf.mxu0
          %v4087 = vadd.f32 0.0, %v4086
          %4088 = vmatmul.f32.gmra.mxu0 %v3998
          %v4089 = vpop.f32.mrf.mxu0
          %v4090 = vadd.f32 0.0, %v4089
          %4091 = vmatmul.f32.gmra.mxu0 %v4001
          %v4092 = vpop.f32.mrf.mxu0
          %v4093 = vadd.f32 0.0, %v4092
          %4094 = vmatmul.f32.gmra.mxu0 %v4004
          %v4095 = vpop.f32.mrf.mxu0
          %v4096 = vadd.f32 0.0, %v4095
          %4097 = vmatmul.f32.gmra.mxu0 %v4007
          %v4098 = vpop.f32.mrf.mxu0
          %v4099 = vadd.f32 0.0, %v4098
          %4100 = vmatmul.f32.gmra.mxu0 %v4010
          %v4101 = vpop.f32.mrf.mxu0
          %v4102 = vadd.f32 0.0, %v4101
          %4103 = vmatmul.f32.gmra.mxu0 %v4013
          %v4104 = vpop.f32.mrf.mxu0
          %v4105 = vadd.f32 0.0, %v4104
          %4106 = vmatmul.f32.gmra.mxu0 %v4016
          %v4107 = vpop.f32.mrf.mxu0
          %v4108 = vadd.f32 0.0, %v4107
          %4109 = vmatmul.f32.gmra.mxu0 %v4019
          %v4110 = vpop.f32.mrf.mxu0
          %v4111 = vadd.f32 0.0, %v4110
          %4112 = vdwg.mxu0
          %v4113 = vmul.f32 %v4039, 0.2
          %v4114 = vmul.f32 %v4042, 0.2
          %v4115 = vmul.f32 %v4045, 0.2
          %v4116 = vmul.f32 %v4048, 0.2
          %v4117 = vmul.f32 %v4051, 0.2
          %v4118 = vmul.f32 %v4054, 0.2
          %v4119 = vmul.f32 %v4057, 0.2
          %v4120 = vmul.f32 %v4060, 0.2
          %v4121 = vmul.f32 %v4063, 0.2
          %v4122 = vmul.f32 %v4066, 0.2
          %v4123 = vmul.f32 %v4069, 0.2
          %v4124 = vmul.f32 %v4072, 0.2
          %v4125 = vmul.f32 %v4075, 0.2
          %v4126 = vmul.f32 %v4078, 0.2
          %v4127 = vmul.f32 %v4081, 0.2
          %v4128 = vmul.f32 %v4084, 0.2
          %v4129 = vmul.f32 %v4087, 0.2
          %v4130 = vmul.f32 %v4090, 0.2
          %v4131 = vmul.f32 %v4093, 0.2
          %v4132 = vmul.f32 %v4096, 0.2
          %v4133 = vmul.f32 %v4099, 0.2
          %v4134 = vmul.f32 %v4102, 0.2
          %v4135 = vmul.f32 %v4105, 0.2
          %v4136 = vmul.f32 %v4108, 0.2
          %v4137 = vmul.f32 %v4111, 0.2
          %v4138 = vmax.f32 %v4039, %v4113
          %v4139 = vmax.f32 %v4042, %v4114
          %v4140 = vmax.f32 %v4045, %v4115
          %v4141 = vmax.f32 %v4048, %v4116
          %v4142 = vmax.f32 %v4051, %v4117
          %v4143 = vmax.f32 %v4054, %v4118
          %v4144 = vmax.f32 %v4057, %v4119
          %v4145 = vmax.f32 %v4060, %v4120
          %v4146 = vmax.f32 %v4063, %v4121
          %v4147 = vmax.f32 %v4066, %v4122
          %v4148 = vmax.f32 %v4069, %v4123
          %v4149 = vmax.f32 %v4072, %v4124
          %v4150 = vmax.f32 %v4075, %v4125
          %v4151 = vmax.f32 %v4078, %v4126
          %v4152 = vmax.f32 %v4081, %v4127
          %v4153 = vmax.f32 %v4084, %v4128
          %v4154 = vmax.f32 %v4087, %v4129
          %v4155 = vmax.f32 %v4090, %v4130
          %v4156 = vmax.f32 %v4093, %v4131
          %v4157 = vmax.f32 %v4096, %v4132
          %v4158 = vmax.f32 %v4099, %v4133
          %v4159 = vmax.f32 %v4102, %v4134
          %v4160 = vmax.f32 %v4105, %v4135
          %v4161 = vmax.f32 %v4108, %v4136
          %v4162 = vmax.f32 %v4111, %v4137
          %s4163 = scalar_lea.vmem %s2, 512
          %v4164 = vld [vmem:[%s4163] sm:$0xff]
          %v4165 = vld [vmem:[%s4163 + $0x8] sm:$0xff]
          %v4166 = vld [vmem:[%s4163 + $0x10] sm:$0xff]
          %v4167 = vld [vmem:[%s4163 + $0x18] sm:$0xff]
          %v4168 = vld [vmem:[%s4163 + $0x20] sm:$0xff]
          %v4169 = vld [vmem:[%s4163 + $0x28] sm:$0xff]
          %v4170 = vld [vmem:[%s4163 + $0x30] sm:$0xff]
          %v4171 = vld [vmem:[%s4163 + $0x38] sm:$0xff]
          %v4173 = vsel %vm921, %v4138, 0
          %v4176 = vsel %vm921, %v4139, 0
          %v4179 = vsel %vm921, %v4140, 0
          %v4182 = vsel %vm921, %v4141, 0
          %v4185 = vsel %vm921, %v4142, 0
          %v4188 = vsel %vm921, %v4143, 0
          %v4191 = vsel %vm921, %v4144, 0
          %v4194 = vsel %vm921, %v4145, 0
          %v4197 = vsel %vm921, %v4146, 0
          %v4200 = vsel %vm921, %v4147, 0
          %v4203 = vsel %vm921, %v4148, 0
          %v4206 = vsel %vm921, %v4149, 0
          %v4209 = vsel %vm921, %v4150, 0
          %v4212 = vsel %vm921, %v4151, 0
          %v4215 = vsel %vm921, %v4152, 0
          %v4218 = vsel %vm921, %v4153, 0
          %v4221 = vsel %vm921, %v4154, 0
          %v4224 = vsel %vm921, %v4155, 0
          %v4227 = vsel %vm921, %v4156, 0
          %v4230 = vsel %vm921, %v4157, 0
          %v4233 = vsel %vm921, %v4158, 0
          %v4236 = vsel %vm921, %v4159, 0
          %v4239 = vsel %vm921, %v4160, 0
          %v4242 = vsel %vm921, %v4161, 0
          %v4245 = vsel %vm921, %v4162, 0
          %4247 = vmatpush.msra.mxu0 0.0
          %4248 = vmatpush.msra.mxu0 0.0
          %4249 = vmatpush.msra.mxu0 0.0
          %4250 = vmatpush.msra.mxu0 0.0
          %4251 = vmatpush.msra.mxu0 0.0
          %4252 = vmatpush.msra.mxu0 0.0
          %4253 = vmatpush.msra.mxu0 0.0
          %4254 = vmatpush.msra.mxu0 0.0
          %4255 = vmatpush.msra.mxu0 %v4171
          %4256 = vmatpush.msra.mxu0 %v4170
          %4257 = vmatpush.msra.mxu0 %v4169
          %4258 = vmatpush.msra.mxu0 %v4168
          %4259 = vmatpush.msra.mxu0 %v4167
          %4260 = vmatpush.msra.mxu0 %v4166
          %4261 = vmatpush.msra.mxu0 %v4165
          %4262 = vmatpush.msra.mxu0 %v4164
          %4263 = vmatmul.f32.gmra.mxu0 %v4173
          %v4264 = vpop.f32.mrf.mxu0
          %v4265 = vadd.f32 0.0, %v4264
          %4266 = vmatmul.f32.gmra.mxu0 %v4176
          %v4267 = vpop.f32.mrf.mxu0
          %v4268 = vadd.f32 0.0, %v4267
          %4269 = vmatmul.f32.gmra.mxu0 %v4179
          %v4270 = vpop.f32.mrf.mxu0
          %v4271 = vadd.f32 0.0, %v4270
          %4272 = vmatmul.f32.gmra.mxu0 %v4182
          %v4273 = vpop.f32.mrf.mxu0
          %v4274 = vadd.f32 0.0, %v4273
          %4275 = vmatmul.f32.gmra.mxu0 %v4185
          %v4276 = vpop.f32.mrf.mxu0
          %v4277 = vadd.f32 0.0, %v4276
          %4278 = vmatmul.f32.gmra.mxu0 %v4188
          %v4279 = vpop.f32.mrf.mxu0
          %v4280 = vadd.f32 0.0, %v4279
          %4281 = vmatmul.f32.gmra.mxu0 %v4191
          %v4282 = vpop.f32.mrf.mxu0
          %v4283 = vadd.f32 0.0, %v4282
          %4284 = vmatmul.f32.gmra.mxu0 %v4194
          %v4285 = vpop.f32.mrf.mxu0
          %v4286 = vadd.f32 0.0, %v4285
          %4287 = vmatmul.f32.gmra.mxu0 %v4197
          %v4288 = vpop.f32.mrf.mxu0
          %v4289 = vadd.f32 0.0, %v4288
          %4290 = vmatmul.f32.gmra.mxu0 %v4200
          %v4291 = vpop.f32.mrf.mxu0
          %v4292 = vadd.f32 0.0, %v4291
          %4293 = vmatmul.f32.gmra.mxu0 %v4203
          %v4294 = vpop.f32.mrf.mxu0
          %v4295 = vadd.f32 0.0, %v4294
          %4296 = vmatmul.f32.gmra.mxu0 %v4206
          %v4297 = vpop.f32.mrf.mxu0
          %v4298 = vadd.f32 0.0, %v4297
          %4299 = vmatmul.f32.gmra.mxu0 %v4209
          %v4300 = vpop.f32.mrf.mxu0
          %v4301 = vadd.f32 0.0, %v4300
          %4302 = vmatmul.f32.gmra.mxu0 %v4212
          %v4303 = vpop.f32.mrf.mxu0
          %v4304 = vadd.f32 0.0, %v4303
          %4305 = vmatmul.f32.gmra.mxu0 %v4215
          %v4306 = vpop.f32.mrf.mxu0
          %v4307 = vadd.f32 0.0, %v4306
          %4308 = vmatmul.f32.gmra.mxu0 %v4218
          %v4309 = vpop.f32.mrf.mxu0
          %v4310 = vadd.f32 0.0, %v4309
          %4311 = vmatmul.f32.gmra.mxu0 %v4221
          %v4312 = vpop.f32.mrf.mxu0
          %v4313 = vadd.f32 0.0, %v4312
          %4314 = vmatmul.f32.gmra.mxu0 %v4224
          %v4315 = vpop.f32.mrf.mxu0
          %v4316 = vadd.f32 0.0, %v4315
          %4317 = vmatmul.f32.gmra.mxu0 %v4227
          %v4318 = vpop.f32.mrf.mxu0
          %v4319 = vadd.f32 0.0, %v4318
          %4320 = vmatmul.f32.gmra.mxu0 %v4230
          %v4321 = vpop.f32.mrf.mxu0
          %v4322 = vadd.f32 0.0, %v4321
          %4323 = vmatmul.f32.gmra.mxu0 %v4233
          %v4324 = vpop.f32.mrf.mxu0
          %v4325 = vadd.f32 0.0, %v4324
          %4326 = vmatmul.f32.gmra.mxu0 %v4236
          %v4327 = vpop.f32.mrf.mxu0
          %v4328 = vadd.f32 0.0, %v4327
          %4329 = vmatmul.f32.gmra.mxu0 %v4239
          %v4330 = vpop.f32.mrf.mxu0
          %v4331 = vadd.f32 0.0, %v4330
          %4332 = vmatmul.f32.gmra.mxu0 %v4242
          %v4333 = vpop.f32.mrf.mxu0
          %v4334 = vadd.f32 0.0, %v4333
          %4335 = vmatmul.f32.gmra.mxu0 %v4245
          %v4336 = vpop.f32.mrf.mxu0
          %v4337 = vadd.f32 0.0, %v4336
          %4338 = vdwg.mxu0
          %v4339 = vadd.f32 %v3895, %v4265
          %v4340 = vadd.f32 %v3896, %v4268
          %v4341 = vadd.f32 %v3897, %v4271
          %v4342 = vadd.f32 %v3898, %v4274
          %v4343 = vadd.f32 %v3899, %v4277
          %v4344 = vadd.f32 %v3900, %v4280
          %v4345 = vadd.f32 %v3901, %v4283
          %v4346 = vadd.f32 %v3902, %v4286
          %v4347 = vadd.f32 %v3903, %v4289
          %v4348 = vadd.f32 %v3904, %v4292
          %v4349 = vadd.f32 %v3905, %v4295
          %v4350 = vadd.f32 %v3906, %v4298
          %v4351 = vadd.f32 %v3907, %v4301
          %v4352 = vadd.f32 %v3908, %v4304
          %v4353 = vadd.f32 %v3909, %v4307
          %v4354 = vadd.f32 %v3910, %v4310
          %v4355 = vadd.f32 %v3911, %v4313
          %v4356 = vadd.f32 %v3912, %v4316
          %v4357 = vadd.f32 %v3913, %v4319
          %v4358 = vadd.f32 %v3914, %v4322
          %v4359 = vadd.f32 %v3915, %v4325
          %v4360 = vadd.f32 %v3916, %v4328
          %v4361 = vadd.f32 %v3917, %v4331
          %v4362 = vadd.f32 %v3918, %v4334
          %v4363 = vadd.f32 %v3919, %v4337
          %s4364 = scalar_lea.vmem %s0, 1800
          %v4365 = vld [vmem:[%s4364] sm:$0xff]
          %v4366 = vld [vmem:[%s4364 + $0x8] sm:$0xff]
          %v4367 = vld [vmem:[%s4364 + $0x10] sm:$0xff]
          %v4368 = vld [vmem:[%s4364 + $0x18] sm:$0xff]
          %v4369 = vld [vmem:[%s4364 + $0x20] sm:$0xff]
          %v4370 = vld [vmem:[%s4364 + $0x28] sm:$0xff]
          %v4371 = vld [vmem:[%s4364 + $0x30] sm:$0xff]
          %v4372 = vld [vmem:[%s4364 + $0x38] sm:$0xff]
          %v4373 = vld [vmem:[%s4364 + $0x40] sm:$0xff]
          %v4374 = vld [vmem:[%s4364 + $0x48] sm:$0xff]
          %v4375 = vld [vmem:[%s4364 + $0x50] sm:$0xff]
          %v4376 = vld [vmem:[%s4364 + $0x58] sm:$0xff]
          %v4377 = vld [vmem:[%s4364 + $0x60] sm:$0xff]
          %v4378 = vld [vmem:[%s4364 + $0x68] sm:$0xff]
          %v4379 = vld [vmem:[%s4364 + $0x70] sm:$0xff]
          %v4380 = vld [vmem:[%s4364 + $0x78] sm:$0xff]
          %v4381 = vld [vmem:[%s4364 + $0x80] sm:$0xff]
          %v4382 = vld [vmem:[%s4364 + $0x88] sm:$0xff]
          %v4383 = vld [vmem:[%s4364 + $0x90] sm:$0xff]
          %v4384 = vld [vmem:[%s4364 + $0x98] sm:$0xff]
          %v4385 = vld [vmem:[%s4364 + $0xa0] sm:$0xff]
          %v4386 = vld [vmem:[%s4364 + $0xa8] sm:$0xff]
          %v4387 = vld [vmem:[%s4364 + $0xb0] sm:$0xff]
          %v4388 = vld [vmem:[%s4364 + $0xb8] sm:$0xff]
          %v4389 = vld [vmem:[%s4364 + $0xc0] sm:$0xf]
          %v4391 = vsel %vm443, %v4365, 0
          %v4394 = vsel %vm443, %v4366, 0
          %v4397 = vsel %vm443, %v4367, 0
          %v4400 = vsel %vm443, %v4368, 0
          %v4403 = vsel %vm443, %v4369, 0
          %v4406 = vsel %vm443, %v4370, 0
          %v4409 = vsel %vm443, %v4371, 0
          %v4412 = vsel %vm443, %v4372, 0
          %v4415 = vsel %vm443, %v4373, 0
          %v4418 = vsel %vm443, %v4374, 0
          %v4421 = vsel %vm443, %v4375, 0
          %v4424 = vsel %vm443, %v4376, 0
          %v4427 = vsel %vm443, %v4377, 0
          %v4430 = vsel %vm443, %v4378, 0
          %v4433 = vsel %vm443, %v4379, 0
          %v4436 = vsel %vm443, %v4380, 0
          %v4439 = vsel %vm443, %v4381, 0
          %v4442 = vsel %vm443, %v4382, 0
          %v4445 = vsel %vm443, %v4383, 0
          %v4448 = vsel %vm443, %v4384, 0
          %v4451 = vsel %vm443, %v4385, 0
          %v4454 = vsel %vm443, %v4386, 0
          %v4457 = vsel %vm443, %v4387, 0
          %v4460 = vsel %vm443, %v4388, 0
          %v4463 = vsel %vm443, %v4389, 0
          %4465 = vmatpush.msra.mxu0 0.0
          %4466 = vmatpush.msra.mxu0 0.0
          %4467 = vmatpush.msra.mxu0 0.0
          %4468 = vmatpush.msra.mxu0 0.0
          %4469 = vmatpush.msra.mxu0 0.0
          %4470 = vmatpush.msra.mxu0 0.0
          %4471 = vmatpush.msra.mxu0 0.0
          %4472 = vmatpush.msra.mxu0 0.0
          %4473 = vmatpush.msra.mxu0 0.0
          %4474 = vmatpush.msra.mxu0 0.0
          %4475 = vmatpush.msra.mxu0 0.0
          %4476 = vmatpush.msra.mxu0 0.0
          %4477 = vmatpush.msra.mxu0 0.0
          %4478 = vmatpush.msra.mxu0 %v442
          %4479 = vmatpush.msra.mxu0 %v441
          %4480 = vmatpush.msra.mxu0 %v440
          %4481 = vmatmul.f32.gmra.mxu0 %v4391
          %v4482 = vpop.f32.mrf.mxu0
          %v4483 = vadd.f32 0.0, %v4482
          %4484 = vmatmul.f32.gmra.mxu0 %v4394
          %v4485 = vpop.f32.mrf.mxu0
          %v4486 = vadd.f32 0.0, %v4485
          %4487 = vmatmul.f32.gmra.mxu0 %v4397
          %v4488 = vpop.f32.mrf.mxu0
          %v4489 = vadd.f32 0.0, %v4488
          %4490 = vmatmul.f32.gmra.mxu0 %v4400
          %v4491 = vpop.f32.mrf.mxu0
          %v4492 = vadd.f32 0.0, %v4491
          %4493 = vmatmul.f32.gmra.mxu0 %v4403
          %v4494 = vpop.f32.mrf.mxu0
          %v4495 = vadd.f32 0.0, %v4494
          %4496 = vmatmul.f32.gmra.mxu0 %v4406
          %v4497 = vpop.f32.mrf.mxu0
          %v4498 = vadd.f32 0.0, %v4497
          %4499 = vmatmul.f32.gmra.mxu0 %v4409
          %v4500 = vpop.f32.mrf.mxu0
          %v4501 = vadd.f32 0.0, %v4500
          %4502 = vmatmul.f32.gmra.mxu0 %v4412
          %v4503 = vpop.f32.mrf.mxu0
          %v4504 = vadd.f32 0.0, %v4503
          %4505 = vmatmul.f32.gmra.mxu0 %v4415
          %v4506 = vpop.f32.mrf.mxu0
          %v4507 = vadd.f32 0.0, %v4506
          %4508 = vmatmul.f32.gmra.mxu0 %v4418
          %v4509 = vpop.f32.mrf.mxu0
          %v4510 = vadd.f32 0.0, %v4509
          %4511 = vmatmul.f32.gmra.mxu0 %v4421
          %v4512 = vpop.f32.mrf.mxu0
          %v4513 = vadd.f32 0.0, %v4512
          %4514 = vmatmul.f32.gmra.mxu0 %v4424
          %v4515 = vpop.f32.mrf.mxu0
          %v4516 = vadd.f32 0.0, %v4515
          %4517 = vmatmul.f32.gmra.mxu0 %v4427
          %v4518 = vpop.f32.mrf.mxu0
          %v4519 = vadd.f32 0.0, %v4518
          %4520 = vmatmul.f32.gmra.mxu0 %v4430
          %v4521 = vpop.f32.mrf.mxu0
          %v4522 = vadd.f32 0.0, %v4521
          %4523 = vmatmul.f32.gmra.mxu0 %v4433
          %v4524 = vpop.f32.mrf.mxu0
          %v4525 = vadd.f32 0.0, %v4524
          %4526 = vmatmul.f32.gmra.mxu0 %v4436
          %v4527 = vpop.f32.mrf.mxu0
          %v4528 = vadd.f32 0.0, %v4527
          %4529 = vmatmul.f32.gmra.mxu0 %v4439
          %v4530 = vpop.f32.mrf.mxu0
          %v4531 = vadd.f32 0.0, %v4530
          %4532 = vmatmul.f32.gmra.mxu0 %v4442
          %v4533 = vpop.f32.mrf.mxu0
          %v4534 = vadd.f32 0.0, %v4533
          %4535 = vmatmul.f32.gmra.mxu0 %v4445
          %v4536 = vpop.f32.mrf.mxu0
          %v4537 = vadd.f32 0.0, %v4536
          %4538 = vmatmul.f32.gmra.mxu0 %v4448
          %v4539 = vpop.f32.mrf.mxu0
          %v4540 = vadd.f32 0.0, %v4539
          %4541 = vmatmul.f32.gmra.mxu0 %v4451
          %v4542 = vpop.f32.mrf.mxu0
          %v4543 = vadd.f32 0.0, %v4542
          %4544 = vmatmul.f32.gmra.mxu0 %v4454
          %v4545 = vpop.f32.mrf.mxu0
          %v4546 = vadd.f32 0.0, %v4545
          %4547 = vmatmul.f32.gmra.mxu0 %v4457
          %v4548 = vpop.f32.mrf.mxu0
          %v4549 = vadd.f32 0.0, %v4548
          %4550 = vmatmul.f32.gmra.mxu0 %v4460
          %v4551 = vpop.f32.mrf.mxu0
          %v4552 = vadd.f32 0.0, %v4551
          %4553 = vmatmul.f32.gmra.mxu0 %v4463
          %v4554 = vpop.f32.mrf.mxu0
          %v4555 = vadd.f32 0.0, %v4554
          %4556 = vdwg.mxu0
          %v4557 = vmul.f32 %v4483, 0.2
          %v4558 = vmul.f32 %v4486, 0.2
          %v4559 = vmul.f32 %v4489, 0.2
          %v4560 = vmul.f32 %v4492, 0.2
          %v4561 = vmul.f32 %v4495, 0.2
          %v4562 = vmul.f32 %v4498, 0.2
          %v4563 = vmul.f32 %v4501, 0.2
          %v4564 = vmul.f32 %v4504, 0.2
          %v4565 = vmul.f32 %v4507, 0.2
          %v4566 = vmul.f32 %v4510, 0.2
          %v4567 = vmul.f32 %v4513, 0.2
          %v4568 = vmul.f32 %v4516, 0.2
          %v4569 = vmul.f32 %v4519, 0.2
          %v4570 = vmul.f32 %v4522, 0.2
          %v4571 = vmul.f32 %v4525, 0.2
          %v4572 = vmul.f32 %v4528, 0.2
          %v4573 = vmul.f32 %v4531, 0.2
          %v4574 = vmul.f32 %v4534, 0.2
          %v4575 = vmul.f32 %v4537, 0.2
          %v4576 = vmul.f32 %v4540, 0.2
          %v4577 = vmul.f32 %v4543, 0.2
          %v4578 = vmul.f32 %v4546, 0.2
          %v4579 = vmul.f32 %v4549, 0.2
          %v4580 = vmul.f32 %v4552, 0.2
          %v4581 = vmul.f32 %v4555, 0.2
          %v4582 = vmax.f32 %v4483, %v4557
          %v4583 = vmax.f32 %v4486, %v4558
          %v4584 = vmax.f32 %v4489, %v4559
          %v4585 = vmax.f32 %v4492, %v4560
          %v4586 = vmax.f32 %v4495, %v4561
          %v4587 = vmax.f32 %v4498, %v4562
          %v4588 = vmax.f32 %v4501, %v4563
          %v4589 = vmax.f32 %v4504, %v4564
          %v4590 = vmax.f32 %v4507, %v4565
          %v4591 = vmax.f32 %v4510, %v4566
          %v4592 = vmax.f32 %v4513, %v4567
          %v4593 = vmax.f32 %v4516, %v4568
          %v4594 = vmax.f32 %v4519, %v4569
          %v4595 = vmax.f32 %v4522, %v4570
          %v4596 = vmax.f32 %v4525, %v4571
          %v4597 = vmax.f32 %v4528, %v4572
          %v4598 = vmax.f32 %v4531, %v4573
          %v4599 = vmax.f32 %v4534, %v4574
          %v4600 = vmax.f32 %v4537, %v4575
          %v4601 = vmax.f32 %v4540, %v4576
          %v4602 = vmax.f32 %v4543, %v4577
          %v4603 = vmax.f32 %v4546, %v4578
          %v4604 = vmax.f32 %v4549, %v4579
          %v4605 = vmax.f32 %v4552, %v4580
          %v4606 = vmax.f32 %v4555, %v4581
          %s4607 = scalar_lea.vmem %s2, 576
          %v4608 = vld [vmem:[%s4607] sm:$0xff]
          %v4609 = vld [vmem:[%s4607 + $0x8] sm:$0xff]
          %v4610 = vld [vmem:[%s4607 + $0x10] sm:$0xff]
          %v4611 = vld [vmem:[%s4607 + $0x18] sm:$0xff]
          %v4612 = vld [vmem:[%s4607 + $0x20] sm:$0xff]
          %v4613 = vld [vmem:[%s4607 + $0x28] sm:$0xff]
          %v4614 = vld [vmem:[%s4607 + $0x30] sm:$0xff]
          %v4615 = vld [vmem:[%s4607 + $0x38] sm:$0xff]
          %v4617 = vsel %vm921, %v4582, 0
          %v4620 = vsel %vm921, %v4583, 0
          %v4623 = vsel %vm921, %v4584, 0
          %v4626 = vsel %vm921, %v4585, 0
          %v4629 = vsel %vm921, %v4586, 0
          %v4632 = vsel %vm921, %v4587, 0
          %v4635 = vsel %vm921, %v4588, 0
          %v4638 = vsel %vm921, %v4589, 0
          %v4641 = vsel %vm921, %v4590, 0
          %v4644 = vsel %vm921, %v4591, 0
          %v4647 = vsel %vm921, %v4592, 0
          %v4650 = vsel %vm921, %v4593, 0
          %v4653 = vsel %vm921, %v4594, 0
          %v4656 = vsel %vm921, %v4595, 0
          %v4659 = vsel %vm921, %v4596, 0
          %v4662 = vsel %vm921, %v4597, 0
          %v4665 = vsel %vm921, %v4598, 0
          %v4668 = vsel %vm921, %v4599, 0
          %v4671 = vsel %vm921, %v4600, 0
          %v4674 = vsel %vm921, %v4601, 0
          %v4677 = vsel %vm921, %v4602, 0
          %v4680 = vsel %vm921, %v4603, 0
          %v4683 = vsel %vm921, %v4604, 0
          %v4686 = vsel %vm921, %v4605, 0
          %v4689 = vsel %vm921, %v4606, 0
          %4691 = vmatpush.msra.mxu0 0.0
          %4692 = vmatpush.msra.mxu0 0.0
          %4693 = vmatpush.msra.mxu0 0.0
          %4694 = vmatpush.msra.mxu0 0.0
          %4695 = vmatpush.msra.mxu0 0.0
          %4696 = vmatpush.msra.mxu0 0.0
          %4697 = vmatpush.msra.mxu0 0.0
          %4698 = vmatpush.msra.mxu0 0.0
          %4699 = vmatpush.msra.mxu0 %v4615
          %4700 = vmatpush.msra.mxu0 %v4614
          %4701 = vmatpush.msra.mxu0 %v4613
          %4702 = vmatpush.msra.mxu0 %v4612
          %4703 = vmatpush.msra.mxu0 %v4611
          %4704 = vmatpush.msra.mxu0 %v4610
          %4705 = vmatpush.msra.mxu0 %v4609
          %4706 = vmatpush.msra.mxu0 %v4608
          %4707 = vmatmul.f32.gmra.mxu0 %v4617
          %v4708 = vpop.f32.mrf.mxu0
          %v4709 = vadd.f32 0.0, %v4708
          %4710 = vmatmul.f32.gmra.mxu0 %v4620
          %v4711 = vpop.f32.mrf.mxu0
          %v4712 = vadd.f32 0.0, %v4711
          %4713 = vmatmul.f32.gmra.mxu0 %v4623
          %v4714 = vpop.f32.mrf.mxu0
          %v4715 = vadd.f32 0.0, %v4714
          %4716 = vmatmul.f32.gmra.mxu0 %v4626
          %v4717 = vpop.f32.mrf.mxu0
          %v4718 = vadd.f32 0.0, %v4717
          %4719 = vmatmul.f32.gmra.mxu0 %v4629
          %v4720 = vpop.f32.mrf.mxu0
          %v4721 = vadd.f32 0.0, %v4720
          %4722 = vmatmul.f32.gmra.mxu0 %v4632
          %v4723 = vpop.f32.mrf.mxu0
          %v4724 = vadd.f32 0.0, %v4723
          %4725 = vmatmul.f32.gmra.mxu0 %v4635
          %v4726 = vpop.f32.mrf.mxu0
          %v4727 = vadd.f32 0.0, %v4726
          %4728 = vmatmul.f32.gmra.mxu0 %v4638
          %v4729 = vpop.f32.mrf.mxu0
          %v4730 = vadd.f32 0.0, %v4729
          %4731 = vmatmul.f32.gmra.mxu0 %v4641
          %v4732 = vpop.f32.mrf.mxu0
          %v4733 = vadd.f32 0.0, %v4732
          %4734 = vmatmul.f32.gmra.mxu0 %v4644
          %v4735 = vpop.f32.mrf.mxu0
          %v4736 = vadd.f32 0.0, %v4735
          %4737 = vmatmul.f32.gmra.mxu0 %v4647
          %v4738 = vpop.f32.mrf.mxu0
          %v4739 = vadd.f32 0.0, %v4738
          %4740 = vmatmul.f32.gmra.mxu0 %v4650
          %v4741 = vpop.f32.mrf.mxu0
          %v4742 = vadd.f32 0.0, %v4741
          %4743 = vmatmul.f32.gmra.mxu0 %v4653
          %v4744 = vpop.f32.mrf.mxu0
          %v4745 = vadd.f32 0.0, %v4744
          %4746 = vmatmul.f32.gmra.mxu0 %v4656
          %v4747 = vpop.f32.mrf.mxu0
          %v4748 = vadd.f32 0.0, %v4747
          %4749 = vmatmul.f32.gmra.mxu0 %v4659
          %v4750 = vpop.f32.mrf.mxu0
          %v4751 = vadd.f32 0.0, %v4750
          %4752 = vmatmul.f32.gmra.mxu0 %v4662
          %v4753 = vpop.f32.mrf.mxu0
          %v4754 = vadd.f32 0.0, %v4753
          %4755 = vmatmul.f32.gmra.mxu0 %v4665
          %v4756 = vpop.f32.mrf.mxu0
          %v4757 = vadd.f32 0.0, %v4756
          %4758 = vmatmul.f32.gmra.mxu0 %v4668
          %v4759 = vpop.f32.mrf.mxu0
          %v4760 = vadd.f32 0.0, %v4759
          %4761 = vmatmul.f32.gmra.mxu0 %v4671
          %v4762 = vpop.f32.mrf.mxu0
          %v4763 = vadd.f32 0.0, %v4762
          %4764 = vmatmul.f32.gmra.mxu0 %v4674
          %v4765 = vpop.f32.mrf.mxu0
          %v4766 = vadd.f32 0.0, %v4765
          %4767 = vmatmul.f32.gmra.mxu0 %v4677
          %v4768 = vpop.f32.mrf.mxu0
          %v4769 = vadd.f32 0.0, %v4768
          %4770 = vmatmul.f32.gmra.mxu0 %v4680
          %v4771 = vpop.f32.mrf.mxu0
          %v4772 = vadd.f32 0.0, %v4771
          %4773 = vmatmul.f32.gmra.mxu0 %v4683
          %v4774 = vpop.f32.mrf.mxu0
          %v4775 = vadd.f32 0.0, %v4774
          %4776 = vmatmul.f32.gmra.mxu0 %v4686
          %v4777 = vpop.f32.mrf.mxu0
          %v4778 = vadd.f32 0.0, %v4777
          %4779 = vmatmul.f32.gmra.mxu0 %v4689
          %v4780 = vpop.f32.mrf.mxu0
          %v4781 = vadd.f32 0.0, %v4780
          %4782 = vdwg.mxu0
          %v4783 = vadd.f32 %v4339, %v4709
          %v4784 = vadd.f32 %v4340, %v4712
          %v4785 = vadd.f32 %v4341, %v4715
          %v4786 = vadd.f32 %v4342, %v4718
          %v4787 = vadd.f32 %v4343, %v4721
          %v4788 = vadd.f32 %v4344, %v4724
          %v4789 = vadd.f32 %v4345, %v4727
          %v4790 = vadd.f32 %v4346, %v4730
          %v4791 = vadd.f32 %v4347, %v4733
          %v4792 = vadd.f32 %v4348, %v4736
          %v4793 = vadd.f32 %v4349, %v4739
          %v4794 = vadd.f32 %v4350, %v4742
          %v4795 = vadd.f32 %v4351, %v4745
          %v4796 = vadd.f32 %v4352, %v4748
          %v4797 = vadd.f32 %v4353, %v4751
          %v4798 = vadd.f32 %v4354, %v4754
          %v4799 = vadd.f32 %v4355, %v4757
          %v4800 = vadd.f32 %v4356, %v4760
          %v4801 = vadd.f32 %v4357, %v4763
          %v4802 = vadd.f32 %v4358, %v4766
          %v4803 = vadd.f32 %v4359, %v4769
          %v4804 = vadd.f32 %v4360, %v4772
          %v4805 = vadd.f32 %v4361, %v4775
          %v4806 = vadd.f32 %v4362, %v4778
          %v4807 = vadd.f32 %v4363, %v4781
          %s4808 = scalar_lea.vmem %s0, 2000
          %v4809 = vld [vmem:[%s4808] sm:$0xff]
          %v4810 = vld [vmem:[%s4808 + $0x8] sm:$0xff]
          %v4811 = vld [vmem:[%s4808 + $0x10] sm:$0xff]
          %v4812 = vld [vmem:[%s4808 + $0x18] sm:$0xff]
          %v4813 = vld [vmem:[%s4808 + $0x20] sm:$0xff]
          %v4814 = vld [vmem:[%s4808 + $0x28] sm:$0xff]
          %v4815 = vld [vmem:[%s4808 + $0x30] sm:$0xff]
          %v4816 = vld [vmem:[%s4808 + $0x38] sm:$0xff]
          %v4817 = vld [vmem:[%s4808 + $0x40] sm:$0xff]
          %v4818 = vld [vmem:[%s4808 + $0x48] sm:$0xff]
          %v4819 = vld [vmem:[%s4808 + $0x50] sm:$0xff]
          %v4820 = vld [vmem:[%s4808 + $0x58] sm:$0xff]
          %v4821 = vld [vmem:[%s4808 + $0x60] sm:$0xff]
          %v4822 = vld [vmem:[%s4808 + $0x68] sm:$0xff]
          %v4823 = vld [vmem:[%s4808 + $0x70] sm:$0xff]
          %v4824 = vld [vmem:[%s4808 + $0x78] sm:$0xff]
          %v4825 = vld [vmem:[%s4808 + $0x80] sm:$0xff]
          %v4826 = vld [vmem:[%s4808 + $0x88] sm:$0xff]
          %v4827 = vld [vmem:[%s4808 + $0x90] sm:$0xff]
          %v4828 = vld [vmem:[%s4808 + $0x98] sm:$0xff]
          %v4829 = vld [vmem:[%s4808 + $0xa0] sm:$0xff]
          %v4830 = vld [vmem:[%s4808 + $0xa8] sm:$0xff]
          %v4831 = vld [vmem:[%s4808 + $0xb0] sm:$0xff]
          %v4832 = vld [vmem:[%s4808 + $0xb8] sm:$0xff]
          %v4833 = vld [vmem:[%s4808 + $0xc0] sm:$0xf]
          %v4835 = vsel %vm443, %v4809, 0
          %v4838 = vsel %vm443, %v4810, 0
          %v4841 = vsel %vm443, %v4811, 0
          %v4844 = vsel %vm443, %v4812, 0
          %v4847 = vsel %vm443, %v4813, 0
          %v4850 = vsel %vm443, %v4814, 0
          %v4853 = vsel %vm443, %v4815, 0
          %v4856 = vsel %vm443, %v4816, 0
          %v4859 = vsel %vm443, %v4817, 0
          %v4862 = vsel %vm443, %v4818, 0
          %v4865 = vsel %vm443, %v4819, 0
          %v4868 = vsel %vm443, %v4820, 0
          %v4871 = vsel %vm443, %v4821, 0
          %v4874 = vsel %vm443, %v4822, 0
          %v4877 = vsel %vm443, %v4823, 0
          %v4880 = vsel %vm443, %v4824, 0
          %v4883 = vsel %vm443, %v4825, 0
          %v4886 = vsel %vm443, %v4826, 0
          %v4889 = vsel %vm443, %v4827, 0
          %v4892 = vsel %vm443, %v4828, 0
          %v4895 = vsel %vm443, %v4829, 0
          %v4898 = vsel %vm443, %v4830, 0
          %v4901 = vsel %vm443, %v4831, 0
          %v4904 = vsel %vm443, %v4832, 0
          %v4907 = vsel %vm443, %v4833, 0
          %4909 = vmatpush.msra.mxu0 0.0
          %4910 = vmatpush.msra.mxu0 0.0
          %4911 = vmatpush.msra.mxu0 0.0
          %4912 = vmatpush.msra.mxu0 0.0
          %4913 = vmatpush.msra.mxu0 0.0
          %4914 = vmatpush.msra.mxu0 0.0
          %4915 = vmatpush.msra.mxu0 0.0
          %4916 = vmatpush.msra.mxu0 0.0
          %4917 = vmatpush.msra.mxu0 0.0
          %4918 = vmatpush.msra.mxu0 0.0
          %4919 = vmatpush.msra.mxu0 0.0
          %4920 = vmatpush.msra.mxu0 0.0
          %4921 = vmatpush.msra.mxu0 0.0
          %4922 = vmatpush.msra.mxu0 %v442
          %4923 = vmatpush.msra.mxu0 %v441
          %4924 = vmatpush.msra.mxu0 %v440
          %4925 = vmatmul.f32.gmra.mxu0 %v4835
          %v4926 = vpop.f32.mrf.mxu0
          %v4927 = vadd.f32 0.0, %v4926
          %4928 = vmatmul.f32.gmra.mxu0 %v4838
          %v4929 = vpop.f32.mrf.mxu0
          %v4930 = vadd.f32 0.0, %v4929
          %4931 = vmatmul.f32.gmra.mxu0 %v4841
          %v4932 = vpop.f32.mrf.mxu0
          %v4933 = vadd.f32 0.0, %v4932
          %4934 = vmatmul.f32.gmra.mxu0 %v4844
          %v4935 = vpop.f32.mrf.mxu0
          %v4936 = vadd.f32 0.0, %v4935
          %4937 = vmatmul.f32.gmra.mxu0 %v4847
          %v4938 = vpop.f32.mrf.mxu0
          %v4939 = vadd.f32 0.0, %v4938
          %4940 = vmatmul.f32.gmra.mxu0 %v4850
          %v4941 = vpop.f32.mrf.mxu0
          %v4942 = vadd.f32 0.0, %v4941
          %4943 = vmatmul.f32.gmra.mxu0 %v4853
          %v4944 = vpop.f32.mrf.mxu0
          %v4945 = vadd.f32 0.0, %v4944
          %4946 = vmatmul.f32.gmra.mxu0 %v4856
          %v4947 = vpop.f32.mrf.mxu0
          %v4948 = vadd.f32 0.0, %v4947
          %4949 = vmatmul.f32.gmra.mxu0 %v4859
          %v4950 = vpop.f32.mrf.mxu0
          %v4951 = vadd.f32 0.0, %v4950
          %4952 = vmatmul.f32.gmra.mxu0 %v4862
          %v4953 = vpop.f32.mrf.mxu0
          %v4954 = vadd.f32 0.0, %v4953
          %4955 = vmatmul.f32.gmra.mxu0 %v4865
          %v4956 = vpop.f32.mrf.mxu0
          %v4957 = vadd.f32 0.0, %v4956
          %4958 = vmatmul.f32.gmra.mxu0 %v4868
          %v4959 = vpop.f32.mrf.mxu0
          %v4960 = vadd.f32 0.0, %v4959
          %4961 = vmatmul.f32.gmra.mxu0 %v4871
          %v4962 = vpop.f32.mrf.mxu0
          %v4963 = vadd.f32 0.0, %v4962
          %4964 = vmatmul.f32.gmra.mxu0 %v4874
          %v4965 = vpop.f32.mrf.mxu0
          %v4966 = vadd.f32 0.0, %v4965
          %4967 = vmatmul.f32.gmra.mxu0 %v4877
          %v4968 = vpop.f32.mrf.mxu0
          %v4969 = vadd.f32 0.0, %v4968
          %4970 = vmatmul.f32.gmra.mxu0 %v4880
          %v4971 = vpop.f32.mrf.mxu0
          %v4972 = vadd.f32 0.0, %v4971
          %4973 = vmatmul.f32.gmra.mxu0 %v4883
          %v4974 = vpop.f32.mrf.mxu0
          %v4975 = vadd.f32 0.0, %v4974
          %4976 = vmatmul.f32.gmra.mxu0 %v4886
          %v4977 = vpop.f32.mrf.mxu0
          %v4978 = vadd.f32 0.0, %v4977
          %4979 = vmatmul.f32.gmra.mxu0 %v4889
          %v4980 = vpop.f32.mrf.mxu0
          %v4981 = vadd.f32 0.0, %v4980
          %4982 = vmatmul.f32.gmra.mxu0 %v4892
          %v4983 = vpop.f32.mrf.mxu0
          %v4984 = vadd.f32 0.0, %v4983
          %4985 = vmatmul.f32.gmra.mxu0 %v4895
          %v4986 = vpop.f32.mrf.mxu0
          %v4987 = vadd.f32 0.0, %v4986
          %4988 = vmatmul.f32.gmra.mxu0 %v4898
          %v4989 = vpop.f32.mrf.mxu0
          %v4990 = vadd.f32 0.0, %v4989
          %4991 = vmatmul.f32.gmra.mxu0 %v4901
          %v4992 = vpop.f32.mrf.mxu0
          %v4993 = vadd.f32 0.0, %v4992
          %4994 = vmatmul.f32.gmra.mxu0 %v4904
          %v4995 = vpop.f32.mrf.mxu0
          %v4996 = vadd.f32 0.0, %v4995
          %4997 = vmatmul.f32.gmra.mxu0 %v4907
          %v4998 = vpop.f32.mrf.mxu0
          %v4999 = vadd.f32 0.0, %v4998
          %5000 = vdwg.mxu0
          %v5001 = vmul.f32 %v4927, 0.2
          %v5002 = vmul.f32 %v4930, 0.2
          %v5003 = vmul.f32 %v4933, 0.2
          %v5004 = vmul.f32 %v4936, 0.2
          %v5005 = vmul.f32 %v4939, 0.2
          %v5006 = vmul.f32 %v4942, 0.2
          %v5007 = vmul.f32 %v4945, 0.2
          %v5008 = vmul.f32 %v4948, 0.2
          %v5009 = vmul.f32 %v4951, 0.2
          %v5010 = vmul.f32 %v4954, 0.2
          %v5011 = vmul.f32 %v4957, 0.2
          %v5012 = vmul.f32 %v4960, 0.2
          %v5013 = vmul.f32 %v4963, 0.2
          %v5014 = vmul.f32 %v4966, 0.2
          %v5015 = vmul.f32 %v4969, 0.2
          %v5016 = vmul.f32 %v4972, 0.2
          %v5017 = vmul.f32 %v4975, 0.2
          %v5018 = vmul.f32 %v4978, 0.2
          %v5019 = vmul.f32 %v4981, 0.2
          %v5020 = vmul.f32 %v4984, 0.2
          %v5021 = vmul.f32 %v4987, 0.2
          %v5022 = vmul.f32 %v4990, 0.2
          %v5023 = vmul.f32 %v4993, 0.2
          %v5024 = vmul.f32 %v4996, 0.2
          %v5025 = vmul.f32 %v4999, 0.2
          %v5026 = vmax.f32 %v4927, %v5001
          %v5027 = vmax.f32 %v4930, %v5002
          %v5028 = vmax.f32 %v4933, %v5003
          %v5029 = vmax.f32 %v4936, %v5004
          %v5030 = vmax.f32 %v4939, %v5005
          %v5031 = vmax.f32 %v4942, %v5006
          %v5032 = vmax.f32 %v4945, %v5007
          %v5033 = vmax.f32 %v4948, %v5008
          %v5034 = vmax.f32 %v4951, %v5009
          %v5035 = vmax.f32 %v4954, %v5010
          %v5036 = vmax.f32 %v4957, %v5011
          %v5037 = vmax.f32 %v4960, %v5012
          %v5038 = vmax.f32 %v4963, %v5013
          %v5039 = vmax.f32 %v4966, %v5014
          %v5040 = vmax.f32 %v4969, %v5015
          %v5041 = vmax.f32 %v4972, %v5016
          %v5042 = vmax.f32 %v4975, %v5017
          %v5043 = vmax.f32 %v4978, %v5018
          %v5044 = vmax.f32 %v4981, %v5019
          %v5045 = vmax.f32 %v4984, %v5020
          %v5046 = vmax.f32 %v4987, %v5021
          %v5047 = vmax.f32 %v4990, %v5022
          %v5048 = vmax.f32 %v4993, %v5023
          %v5049 = vmax.f32 %v4996, %v5024
          %v5050 = vmax.f32 %v4999, %v5025
          %s5051 = scalar_lea.vmem %s2, 640
          %v5052 = vld [vmem:[%s5051] sm:$0xff]
          %v5053 = vld [vmem:[%s5051 + $0x8] sm:$0xff]
          %v5054 = vld [vmem:[%s5051 + $0x10] sm:$0xff]
          %v5055 = vld [vmem:[%s5051 + $0x18] sm:$0xff]
          %v5056 = vld [vmem:[%s5051 + $0x20] sm:$0xff]
          %v5057 = vld [vmem:[%s5051 + $0x28] sm:$0xff]
          %v5058 = vld [vmem:[%s5051 + $0x30] sm:$0xff]
          %v5059 = vld [vmem:[%s5051 + $0x38] sm:$0xff]
          %v5061 = vsel %vm921, %v5026, 0
          %v5064 = vsel %vm921, %v5027, 0
          %v5067 = vsel %vm921, %v5028, 0
          %v5070 = vsel %vm921, %v5029, 0
          %v5073 = vsel %vm921, %v5030, 0
          %v5076 = vsel %vm921, %v5031, 0
          %v5079 = vsel %vm921, %v5032, 0
          %v5082 = vsel %vm921, %v5033, 0
          %v5085 = vsel %vm921, %v5034, 0
          %v5088 = vsel %vm921, %v5035, 0
          %v5091 = vsel %vm921, %v5036, 0
          %v5094 = vsel %vm921, %v5037, 0
          %v5097 = vsel %vm921, %v5038, 0
          %v5100 = vsel %vm921, %v5039, 0
          %v5103 = vsel %vm921, %v5040, 0
          %v5106 = vsel %vm921, %v5041, 0
          %v5109 = vsel %vm921, %v5042, 0
          %v5112 = vsel %vm921, %v5043, 0
          %v5115 = vsel %vm921, %v5044, 0
          %v5118 = vsel %vm921, %v5045, 0
          %v5121 = vsel %vm921, %v5046, 0
          %v5124 = vsel %vm921, %v5047, 0
          %v5127 = vsel %vm921, %v5048, 0
          %v5130 = vsel %vm921, %v5049, 0
          %v5133 = vsel %vm921, %v5050, 0
          %5135 = vmatpush.msra.mxu0 0.0
          %5136 = vmatpush.msra.mxu0 0.0
          %5137 = vmatpush.msra.mxu0 0.0
          %5138 = vmatpush.msra.mxu0 0.0
          %5139 = vmatpush.msra.mxu0 0.0
          %5140 = vmatpush.msra.mxu0 0.0
          %5141 = vmatpush.msra.mxu0 0.0
          %5142 = vmatpush.msra.mxu0 0.0
          %5143 = vmatpush.msra.mxu0 %v5059
          %5144 = vmatpush.msra.mxu0 %v5058
          %5145 = vmatpush.msra.mxu0 %v5057
          %5146 = vmatpush.msra.mxu0 %v5056
          %5147 = vmatpush.msra.mxu0 %v5055
          %5148 = vmatpush.msra.mxu0 %v5054
          %5149 = vmatpush.msra.mxu0 %v5053
          %5150 = vmatpush.msra.mxu0 %v5052
          %5151 = vmatmul.f32.gmra.mxu0 %v5061
          %v5152 = vpop.f32.mrf.mxu0
          %v5153 = vadd.f32 0.0, %v5152
          %5154 = vmatmul.f32.gmra.mxu0 %v5064
          %v5155 = vpop.f32.mrf.mxu0
          %v5156 = vadd.f32 0.0, %v5155
          %5157 = vmatmul.f32.gmra.mxu0 %v5067
          %v5158 = vpop.f32.mrf.mxu0
          %v5159 = vadd.f32 0.0, %v5158
          %5160 = vmatmul.f32.gmra.mxu0 %v5070
          %v5161 = vpop.f32.mrf.mxu0
          %v5162 = vadd.f32 0.0, %v5161
          %5163 = vmatmul.f32.gmra.mxu0 %v5073
          %v5164 = vpop.f32.mrf.mxu0
          %v5165 = vadd.f32 0.0, %v5164
          %5166 = vmatmul.f32.gmra.mxu0 %v5076
          %v5167 = vpop.f32.mrf.mxu0
          %v5168 = vadd.f32 0.0, %v5167
          %5169 = vmatmul.f32.gmra.mxu0 %v5079
          %v5170 = vpop.f32.mrf.mxu0
          %v5171 = vadd.f32 0.0, %v5170
          %5172 = vmatmul.f32.gmra.mxu0 %v5082
          %v5173 = vpop.f32.mrf.mxu0
          %v5174 = vadd.f32 0.0, %v5173
          %5175 = vmatmul.f32.gmra.mxu0 %v5085
          %v5176 = vpop.f32.mrf.mxu0
          %v5177 = vadd.f32 0.0, %v5176
          %5178 = vmatmul.f32.gmra.mxu0 %v5088
          %v5179 = vpop.f32.mrf.mxu0
          %v5180 = vadd.f32 0.0, %v5179
          %5181 = vmatmul.f32.gmra.mxu0 %v5091
          %v5182 = vpop.f32.mrf.mxu0
          %v5183 = vadd.f32 0.0, %v5182
          %5184 = vmatmul.f32.gmra.mxu0 %v5094
          %v5185 = vpop.f32.mrf.mxu0
          %v5186 = vadd.f32 0.0, %v5185
          %5187 = vmatmul.f32.gmra.mxu0 %v5097
          %v5188 = vpop.f32.mrf.mxu0
          %v5189 = vadd.f32 0.0, %v5188
          %5190 = vmatmul.f32.gmra.mxu0 %v5100
          %v5191 = vpop.f32.mrf.mxu0
          %v5192 = vadd.f32 0.0, %v5191
          %5193 = vmatmul.f32.gmra.mxu0 %v5103
          %v5194 = vpop.f32.mrf.mxu0
          %v5195 = vadd.f32 0.0, %v5194
          %5196 = vmatmul.f32.gmra.mxu0 %v5106
          %v5197 = vpop.f32.mrf.mxu0
          %v5198 = vadd.f32 0.0, %v5197
          %5199 = vmatmul.f32.gmra.mxu0 %v5109
          %v5200 = vpop.f32.mrf.mxu0
          %v5201 = vadd.f32 0.0, %v5200
          %5202 = vmatmul.f32.gmra.mxu0 %v5112
          %v5203 = vpop.f32.mrf.mxu0
          %v5204 = vadd.f32 0.0, %v5203
          %5205 = vmatmul.f32.gmra.mxu0 %v5115
          %v5206 = vpop.f32.mrf.mxu0
          %v5207 = vadd.f32 0.0, %v5206
          %5208 = vmatmul.f32.gmra.mxu0 %v5118
          %v5209 = vpop.f32.mrf.mxu0
          %v5210 = vadd.f32 0.0, %v5209
          %5211 = vmatmul.f32.gmra.mxu0 %v5121
          %v5212 = vpop.f32.mrf.mxu0
          %v5213 = vadd.f32 0.0, %v5212
          %5214 = vmatmul.f32.gmra.mxu0 %v5124
          %v5215 = vpop.f32.mrf.mxu0
          %v5216 = vadd.f32 0.0, %v5215
          %5217 = vmatmul.f32.gmra.mxu0 %v5127
          %v5218 = vpop.f32.mrf.mxu0
          %v5219 = vadd.f32 0.0, %v5218
          %5220 = vmatmul.f32.gmra.mxu0 %v5130
          %v5221 = vpop.f32.mrf.mxu0
          %v5222 = vadd.f32 0.0, %v5221
          %5223 = vmatmul.f32.gmra.mxu0 %v5133
          %v5224 = vpop.f32.mrf.mxu0
          %v5225 = vadd.f32 0.0, %v5224
          %5226 = vdwg.mxu0
          %v5227 = vadd.f32 %v4783, %v5153
          %v5228 = vadd.f32 %v4784, %v5156
          %v5229 = vadd.f32 %v4785, %v5159
          %v5230 = vadd.f32 %v4786, %v5162
          %v5231 = vadd.f32 %v4787, %v5165
          %v5232 = vadd.f32 %v4788, %v5168
          %v5233 = vadd.f32 %v4789, %v5171
          %v5234 = vadd.f32 %v4790, %v5174
          %v5235 = vadd.f32 %v4791, %v5177
          %v5236 = vadd.f32 %v4792, %v5180
          %v5237 = vadd.f32 %v4793, %v5183
          %v5238 = vadd.f32 %v4794, %v5186
          %v5239 = vadd.f32 %v4795, %v5189
          %v5240 = vadd.f32 %v4796, %v5192
          %v5241 = vadd.f32 %v4797, %v5195
          %v5242 = vadd.f32 %v4798, %v5198
          %v5243 = vadd.f32 %v4799, %v5201
          %v5244 = vadd.f32 %v4800, %v5204
          %v5245 = vadd.f32 %v4801, %v5207
          %v5246 = vadd.f32 %v4802, %v5210
          %v5247 = vadd.f32 %v4803, %v5213
          %v5248 = vadd.f32 %v4804, %v5216
          %v5249 = vadd.f32 %v4805, %v5219
          %v5250 = vadd.f32 %v4806, %v5222
          %v5251 = vadd.f32 %v4807, %v5225
          %s5252 = scalar_lea.vmem %s0, 2200
          %v5253 = vld [vmem:[%s5252] sm:$0xff]
          %v5254 = vld [vmem:[%s5252 + $0x8] sm:$0xff]
          %v5255 = vld [vmem:[%s5252 + $0x10] sm:$0xff]
          %v5256 = vld [vmem:[%s5252 + $0x18] sm:$0xff]
          %v5257 = vld [vmem:[%s5252 + $0x20] sm:$0xff]
          %v5258 = vld [vmem:[%s5252 + $0x28] sm:$0xff]
          %v5259 = vld [vmem:[%s5252 + $0x30] sm:$0xff]
          %v5260 = vld [vmem:[%s5252 + $0x38] sm:$0xff]
          %v5261 = vld [vmem:[%s5252 + $0x40] sm:$0xff]
          %v5262 = vld [vmem:[%s5252 + $0x48] sm:$0xff]
          %v5263 = vld [vmem:[%s5252 + $0x50] sm:$0xff]
          %v5264 = vld [vmem:[%s5252 + $0x58] sm:$0xff]
          %v5265 = vld [vmem:[%s5252 + $0x60] sm:$0xff]
          %v5266 = vld [vmem:[%s5252 + $0x68] sm:$0xff]
          %v5267 = vld [vmem:[%s5252 + $0x70] sm:$0xff]
          %v5268 = vld [vmem:[%s5252 + $0x78] sm:$0xff]
          %v5269 = vld [vmem:[%s5252 + $0x80] sm:$0xff]
          %v5270 = vld [vmem:[%s5252 + $0x88] sm:$0xff]
          %v5271 = vld [vmem:[%s5252 + $0x90] sm:$0xff]
          %v5272 = vld [vmem:[%s5252 + $0x98] sm:$0xff]
          %v5273 = vld [vmem:[%s5252 + $0xa0] sm:$0xff]
          %v5274 = vld [vmem:[%s5252 + $0xa8] sm:$0xff]
          %v5275 = vld [vmem:[%s5252 + $0xb0] sm:$0xff]
          %v5276 = vld [vmem:[%s5252 + $0xb8] sm:$0xff]
          %v5277 = vld [vmem:[%s5252 + $0xc0] sm:$0xf]
          %v5279 = vsel %vm443, %v5253, 0
          %v5282 = vsel %vm443, %v5254, 0
          %v5285 = vsel %vm443, %v5255, 0
          %v5288 = vsel %vm443, %v5256, 0
          %v5291 = vsel %vm443, %v5257, 0
          %v5294 = vsel %vm443, %v5258, 0
          %v5297 = vsel %vm443, %v5259, 0
          %v5300 = vsel %vm443, %v5260, 0
          %v5303 = vsel %vm443, %v5261, 0
          %v5306 = vsel %vm443, %v5262, 0
          %v5309 = vsel %vm443, %v5263, 0
          %v5312 = vsel %vm443, %v5264, 0
          %v5315 = vsel %vm443, %v5265, 0
          %v5318 = vsel %vm443, %v5266, 0
          %v5321 = vsel %vm443, %v5267, 0
          %v5324 = vsel %vm443, %v5268, 0
          %v5327 = vsel %vm443, %v5269, 0
          %v5330 = vsel %vm443, %v5270, 0
          %v5333 = vsel %vm443, %v5271, 0
          %v5336 = vsel %vm443, %v5272, 0
          %v5339 = vsel %vm443, %v5273, 0
          %v5342 = vsel %vm443, %v5274, 0
          %v5345 = vsel %vm443, %v5275, 0
          %v5348 = vsel %vm443, %v5276, 0
          %v5351 = vsel %vm443, %v5277, 0
          %5353 = vmatpush.msra.mxu0 0.0
          %5354 = vmatpush.msra.mxu0 0.0
          %5355 = vmatpush.msra.mxu0 0.0
          %5356 = vmatpush.msra.mxu0 0.0
          %5357 = vmatpush.msra.mxu0 0.0
          %5358 = vmatpush.msra.mxu0 0.0
          %5359 = vmatpush.msra.mxu0 0.0
          %5360 = vmatpush.msra.mxu0 0.0
          %5361 = vmatpush.msra.mxu0 0.0
          %5362 = vmatpush.msra.mxu0 0.0
          %5363 = vmatpush.msra.mxu0 0.0
          %5364 = vmatpush.msra.mxu0 0.0
          %5365 = vmatpush.msra.mxu0 0.0
          %5366 = vmatpush.msra.mxu0 %v442
          %5367 = vmatpush.msra.mxu0 %v441
          %5368 = vmatpush.msra.mxu0 %v440
          %5369 = vmatmul.f32.gmra.mxu0 %v5279
          %v5370 = vpop.f32.mrf.mxu0
          %v5371 = vadd.f32 0.0, %v5370
          %5372 = vmatmul.f32.gmra.mxu0 %v5282
          %v5373 = vpop.f32.mrf.mxu0
          %v5374 = vadd.f32 0.0, %v5373
          %5375 = vmatmul.f32.gmra.mxu0 %v5285
          %v5376 = vpop.f32.mrf.mxu0
          %v5377 = vadd.f32 0.0, %v5376
          %5378 = vmatmul.f32.gmra.mxu0 %v5288
          %v5379 = vpop.f32.mrf.mxu0
          %v5380 = vadd.f32 0.0, %v5379
          %5381 = vmatmul.f32.gmra.mxu0 %v5291
          %v5382 = vpop.f32.mrf.mxu0
          %v5383 = vadd.f32 0.0, %v5382
          %5384 = vmatmul.f32.gmra.mxu0 %v5294
          %v5385 = vpop.f32.mrf.mxu0
          %v5386 = vadd.f32 0.0, %v5385
          %5387 = vmatmul.f32.gmra.mxu0 %v5297
          %v5388 = vpop.f32.mrf.mxu0
          %v5389 = vadd.f32 0.0, %v5388
          %5390 = vmatmul.f32.gmra.mxu0 %v5300
          %v5391 = vpop.f32.mrf.mxu0
          %v5392 = vadd.f32 0.0, %v5391
          %5393 = vmatmul.f32.gmra.mxu0 %v5303
          %v5394 = vpop.f32.mrf.mxu0
          %v5395 = vadd.f32 0.0, %v5394
          %5396 = vmatmul.f32.gmra.mxu0 %v5306
          %v5397 = vpop.f32.mrf.mxu0
          %v5398 = vadd.f32 0.0, %v5397
          %5399 = vmatmul.f32.gmra.mxu0 %v5309
          %v5400 = vpop.f32.mrf.mxu0
          %v5401 = vadd.f32 0.0, %v5400
          %5402 = vmatmul.f32.gmra.mxu0 %v5312
          %v5403 = vpop.f32.mrf.mxu0
          %v5404 = vadd.f32 0.0, %v5403
          %5405 = vmatmul.f32.gmra.mxu0 %v5315
          %v5406 = vpop.f32.mrf.mxu0
          %v5407 = vadd.f32 0.0, %v5406
          %5408 = vmatmul.f32.gmra.mxu0 %v5318
          %v5409 = vpop.f32.mrf.mxu0
          %v5410 = vadd.f32 0.0, %v5409
          %5411 = vmatmul.f32.gmra.mxu0 %v5321
          %v5412 = vpop.f32.mrf.mxu0
          %v5413 = vadd.f32 0.0, %v5412
          %5414 = vmatmul.f32.gmra.mxu0 %v5324
          %v5415 = vpop.f32.mrf.mxu0
          %v5416 = vadd.f32 0.0, %v5415
          %5417 = vmatmul.f32.gmra.mxu0 %v5327
          %v5418 = vpop.f32.mrf.mxu0
          %v5419 = vadd.f32 0.0, %v5418
          %5420 = vmatmul.f32.gmra.mxu0 %v5330
          %v5421 = vpop.f32.mrf.mxu0
          %v5422 = vadd.f32 0.0, %v5421
          %5423 = vmatmul.f32.gmra.mxu0 %v5333
          %v5424 = vpop.f32.mrf.mxu0
          %v5425 = vadd.f32 0.0, %v5424
          %5426 = vmatmul.f32.gmra.mxu0 %v5336
          %v5427 = vpop.f32.mrf.mxu0
          %v5428 = vadd.f32 0.0, %v5427
          %5429 = vmatmul.f32.gmra.mxu0 %v5339
          %v5430 = vpop.f32.mrf.mxu0
          %v5431 = vadd.f32 0.0, %v5430
          %5432 = vmatmul.f32.gmra.mxu0 %v5342
          %v5433 = vpop.f32.mrf.mxu0
          %v5434 = vadd.f32 0.0, %v5433
          %5435 = vmatmul.f32.gmra.mxu0 %v5345
          %v5436 = vpop.f32.mrf.mxu0
          %v5437 = vadd.f32 0.0, %v5436
          %5438 = vmatmul.f32.gmra.mxu0 %v5348
          %v5439 = vpop.f32.mrf.mxu0
          %v5440 = vadd.f32 0.0, %v5439
          %5441 = vmatmul.f32.gmra.mxu0 %v5351
          %v5442 = vpop.f32.mrf.mxu0
          %v5443 = vadd.f32 0.0, %v5442
          %5444 = vdwg.mxu0
          %v5445 = vmul.f32 %v5371, 0.2
          %v5446 = vmul.f32 %v5374, 0.2
          %v5447 = vmul.f32 %v5377, 0.2
          %v5448 = vmul.f32 %v5380, 0.2
          %v5449 = vmul.f32 %v5383, 0.2
          %v5450 = vmul.f32 %v5386, 0.2
          %v5451 = vmul.f32 %v5389, 0.2
          %v5452 = vmul.f32 %v5392, 0.2
          %v5453 = vmul.f32 %v5395, 0.2
          %v5454 = vmul.f32 %v5398, 0.2
          %v5455 = vmul.f32 %v5401, 0.2
          %v5456 = vmul.f32 %v5404, 0.2
          %v5457 = vmul.f32 %v5407, 0.2
          %v5458 = vmul.f32 %v5410, 0.2
          %v5459 = vmul.f32 %v5413, 0.2
          %v5460 = vmul.f32 %v5416, 0.2
          %v5461 = vmul.f32 %v5419, 0.2
          %v5462 = vmul.f32 %v5422, 0.2
          %v5463 = vmul.f32 %v5425, 0.2
          %v5464 = vmul.f32 %v5428, 0.2
          %v5465 = vmul.f32 %v5431, 0.2
          %v5466 = vmul.f32 %v5434, 0.2
          %v5467 = vmul.f32 %v5437, 0.2
          %v5468 = vmul.f32 %v5440, 0.2
          %v5469 = vmul.f32 %v5443, 0.2
          %v5470 = vmax.f32 %v5371, %v5445
          %v5471 = vmax.f32 %v5374, %v5446
          %v5472 = vmax.f32 %v5377, %v5447
          %v5473 = vmax.f32 %v5380, %v5448
          %v5474 = vmax.f32 %v5383, %v5449
          %v5475 = vmax.f32 %v5386, %v5450
          %v5476 = vmax.f32 %v5389, %v5451
          %v5477 = vmax.f32 %v5392, %v5452
          %v5478 = vmax.f32 %v5395, %v5453
          %v5479 = vmax.f32 %v5398, %v5454
          %v5480 = vmax.f32 %v5401, %v5455
          %v5481 = vmax.f32 %v5404, %v5456
          %v5482 = vmax.f32 %v5407, %v5457
          %v5483 = vmax.f32 %v5410, %v5458
          %v5484 = vmax.f32 %v5413, %v5459
          %v5485 = vmax.f32 %v5416, %v5460
          %v5486 = vmax.f32 %v5419, %v5461
          %v5487 = vmax.f32 %v5422, %v5462
          %v5488 = vmax.f32 %v5425, %v5463
          %v5489 = vmax.f32 %v5428, %v5464
          %v5490 = vmax.f32 %v5431, %v5465
          %v5491 = vmax.f32 %v5434, %v5466
          %v5492 = vmax.f32 %v5437, %v5467
          %v5493 = vmax.f32 %v5440, %v5468
          %v5494 = vmax.f32 %v5443, %v5469
          %s5495 = scalar_lea.vmem %s2, 704
          %v5496 = vld [vmem:[%s5495] sm:$0xff]
          %v5497 = vld [vmem:[%s5495 + $0x8] sm:$0xff]
          %v5498 = vld [vmem:[%s5495 + $0x10] sm:$0xff]
          %v5499 = vld [vmem:[%s5495 + $0x18] sm:$0xff]
          %v5500 = vld [vmem:[%s5495 + $0x20] sm:$0xff]
          %v5501 = vld [vmem:[%s5495 + $0x28] sm:$0xff]
          %v5502 = vld [vmem:[%s5495 + $0x30] sm:$0xff]
          %v5503 = vld [vmem:[%s5495 + $0x38] sm:$0xff]
          %v5505 = vsel %vm921, %v5470, 0
          %v5508 = vsel %vm921, %v5471, 0
          %v5511 = vsel %vm921, %v5472, 0
          %v5514 = vsel %vm921, %v5473, 0
          %v5517 = vsel %vm921, %v5474, 0
          %v5520 = vsel %vm921, %v5475, 0
          %v5523 = vsel %vm921, %v5476, 0
          %v5526 = vsel %vm921, %v5477, 0
          %v5529 = vsel %vm921, %v5478, 0
          %v5532 = vsel %vm921, %v5479, 0
          %v5535 = vsel %vm921, %v5480, 0
          %v5538 = vsel %vm921, %v5481, 0
          %v5541 = vsel %vm921, %v5482, 0
          %v5544 = vsel %vm921, %v5483, 0
          %v5547 = vsel %vm921, %v5484, 0
          %v5550 = vsel %vm921, %v5485, 0
          %v5553 = vsel %vm921, %v5486, 0
          %v5556 = vsel %vm921, %v5487, 0
          %v5559 = vsel %vm921, %v5488, 0
          %v5562 = vsel %vm921, %v5489, 0
          %v5565 = vsel %vm921, %v5490, 0
          %v5568 = vsel %vm921, %v5491, 0
          %v5571 = vsel %vm921, %v5492, 0
          %v5574 = vsel %vm921, %v5493, 0
          %v5577 = vsel %vm921, %v5494, 0
          %5579 = vmatpush.msra.mxu0 0.0
          %5580 = vmatpush.msra.mxu0 0.0
          %5581 = vmatpush.msra.mxu0 0.0
          %5582 = vmatpush.msra.mxu0 0.0
          %5583 = vmatpush.msra.mxu0 0.0
          %5584 = vmatpush.msra.mxu0 0.0
          %5585 = vmatpush.msra.mxu0 0.0
          %5586 = vmatpush.msra.mxu0 0.0
          %5587 = vmatpush.msra.mxu0 %v5503
          %5588 = vmatpush.msra.mxu0 %v5502
          %5589 = vmatpush.msra.mxu0 %v5501
          %5590 = vmatpush.msra.mxu0 %v5500
          %5591 = vmatpush.msra.mxu0 %v5499
          %5592 = vmatpush.msra.mxu0 %v5498
          %5593 = vmatpush.msra.mxu0 %v5497
          %5594 = vmatpush.msra.mxu0 %v5496
          %5595 = vmatmul.f32.gmra.mxu0 %v5505
          %v5596 = vpop.f32.mrf.mxu0
          %v5597 = vadd.f32 0.0, %v5596
          %5598 = vmatmul.f32.gmra.mxu0 %v5508
          %v5599 = vpop.f32.mrf.mxu0
          %v5600 = vadd.f32 0.0, %v5599
          %5601 = vmatmul.f32.gmra.mxu0 %v5511
          %v5602 = vpop.f32.mrf.mxu0
          %v5603 = vadd.f32 0.0, %v5602
          %5604 = vmatmul.f32.gmra.mxu0 %v5514
          %v5605 = vpop.f32.mrf.mxu0
          %v5606 = vadd.f32 0.0, %v5605
          %5607 = vmatmul.f32.gmra.mxu0 %v5517
          %v5608 = vpop.f32.mrf.mxu0
          %v5609 = vadd.f32 0.0, %v5608
          %5610 = vmatmul.f32.gmra.mxu0 %v5520
          %v5611 = vpop.f32.mrf.mxu0
          %v5612 = vadd.f32 0.0, %v5611
          %5613 = vmatmul.f32.gmra.mxu0 %v5523
          %v5614 = vpop.f32.mrf.mxu0
          %v5615 = vadd.f32 0.0, %v5614
          %5616 = vmatmul.f32.gmra.mxu0 %v5526
          %v5617 = vpop.f32.mrf.mxu0
          %v5618 = vadd.f32 0.0, %v5617
          %5619 = vmatmul.f32.gmra.mxu0 %v5529
          %v5620 = vpop.f32.mrf.mxu0
          %v5621 = vadd.f32 0.0, %v5620
          %5622 = vmatmul.f32.gmra.mxu0 %v5532
          %v5623 = vpop.f32.mrf.mxu0
          %v5624 = vadd.f32 0.0, %v5623
          %5625 = vmatmul.f32.gmra.mxu0 %v5535
          %v5626 = vpop.f32.mrf.mxu0
          %v5627 = vadd.f32 0.0, %v5626
          %5628 = vmatmul.f32.gmra.mxu0 %v5538
          %v5629 = vpop.f32.mrf.mxu0
          %v5630 = vadd.f32 0.0, %v5629
          %5631 = vmatmul.f32.gmra.mxu0 %v5541
          %v5632 = vpop.f32.mrf.mxu0
          %v5633 = vadd.f32 0.0, %v5632
          %5634 = vmatmul.f32.gmra.mxu0 %v5544
          %v5635 = vpop.f32.mrf.mxu0
          %v5636 = vadd.f32 0.0, %v5635
          %5637 = vmatmul.f32.gmra.mxu0 %v5547
          %v5638 = vpop.f32.mrf.mxu0
          %v5639 = vadd.f32 0.0, %v5638
          %5640 = vmatmul.f32.gmra.mxu0 %v5550
          %v5641 = vpop.f32.mrf.mxu0
          %v5642 = vadd.f32 0.0, %v5641
          %5643 = vmatmul.f32.gmra.mxu0 %v5553
          %v5644 = vpop.f32.mrf.mxu0
          %v5645 = vadd.f32 0.0, %v5644
          %5646 = vmatmul.f32.gmra.mxu0 %v5556
          %v5647 = vpop.f32.mrf.mxu0
          %v5648 = vadd.f32 0.0, %v5647
          %5649 = vmatmul.f32.gmra.mxu0 %v5559
          %v5650 = vpop.f32.mrf.mxu0
          %v5651 = vadd.f32 0.0, %v5650
          %5652 = vmatmul.f32.gmra.mxu0 %v5562
          %v5653 = vpop.f32.mrf.mxu0
          %v5654 = vadd.f32 0.0, %v5653
          %5655 = vmatmul.f32.gmra.mxu0 %v5565
          %v5656 = vpop.f32.mrf.mxu0
          %v5657 = vadd.f32 0.0, %v5656
          %5658 = vmatmul.f32.gmra.mxu0 %v5568
          %v5659 = vpop.f32.mrf.mxu0
          %v5660 = vadd.f32 0.0, %v5659
          %5661 = vmatmul.f32.gmra.mxu0 %v5571
          %v5662 = vpop.f32.mrf.mxu0
          %v5663 = vadd.f32 0.0, %v5662
          %5664 = vmatmul.f32.gmra.mxu0 %v5574
          %v5665 = vpop.f32.mrf.mxu0
          %v5666 = vadd.f32 0.0, %v5665
          %5667 = vmatmul.f32.gmra.mxu0 %v5577
          %v5668 = vpop.f32.mrf.mxu0
          %v5669 = vadd.f32 0.0, %v5668
          %5670 = vdwg.mxu0
          %v5671 = vadd.f32 %v5227, %v5597
          %v5672 = vadd.f32 %v5228, %v5600
          %v5673 = vadd.f32 %v5229, %v5603
          %v5674 = vadd.f32 %v5230, %v5606
          %v5675 = vadd.f32 %v5231, %v5609
          %v5676 = vadd.f32 %v5232, %v5612
          %v5677 = vadd.f32 %v5233, %v5615
          %v5678 = vadd.f32 %v5234, %v5618
          %v5679 = vadd.f32 %v5235, %v5621
          %v5680 = vadd.f32 %v5236, %v5624
          %v5681 = vadd.f32 %v5237, %v5627
          %v5682 = vadd.f32 %v5238, %v5630
          %v5683 = vadd.f32 %v5239, %v5633
          %v5684 = vadd.f32 %v5240, %v5636
          %v5685 = vadd.f32 %v5241, %v5639
          %v5686 = vadd.f32 %v5242, %v5642
          %v5687 = vadd.f32 %v5243, %v5645
          %v5688 = vadd.f32 %v5244, %v5648
          %v5689 = vadd.f32 %v5245, %v5651
          %v5690 = vadd.f32 %v5246, %v5654
          %v5691 = vadd.f32 %v5247, %v5657
          %v5692 = vadd.f32 %v5248, %v5660
          %v5693 = vadd.f32 %v5249, %v5663
          %v5694 = vadd.f32 %v5250, %v5666
          %v5695 = vadd.f32 %v5251, %v5669
          %s5696 = scalar_lea.vmem %s0, 2400
          %v5697 = vld [vmem:[%s5696] sm:$0xff]
          %v5698 = vld [vmem:[%s5696 + $0x8] sm:$0xff]
          %v5699 = vld [vmem:[%s5696 + $0x10] sm:$0xff]
          %v5700 = vld [vmem:[%s5696 + $0x18] sm:$0xff]
          %v5701 = vld [vmem:[%s5696 + $0x20] sm:$0xff]
          %v5702 = vld [vmem:[%s5696 + $0x28] sm:$0xff]
          %v5703 = vld [vmem:[%s5696 + $0x30] sm:$0xff]
          %v5704 = vld [vmem:[%s5696 + $0x38] sm:$0xff]
          %v5705 = vld [vmem:[%s5696 + $0x40] sm:$0xff]
          %v5706 = vld [vmem:[%s5696 + $0x48] sm:$0xff]
          %v5707 = vld [vmem:[%s5696 + $0x50] sm:$0xff]
          %v5708 = vld [vmem:[%s5696 + $0x58] sm:$0xff]
          %v5709 = vld [vmem:[%s5696 + $0x60] sm:$0xff]
          %v5710 = vld [vmem:[%s5696 + $0x68] sm:$0xff]
          %v5711 = vld [vmem:[%s5696 + $0x70] sm:$0xff]
          %v5712 = vld [vmem:[%s5696 + $0x78] sm:$0xff]
          %v5713 = vld [vmem:[%s5696 + $0x80] sm:$0xff]
          %v5714 = vld [vmem:[%s5696 + $0x88] sm:$0xff]
          %v5715 = vld [vmem:[%s5696 + $0x90] sm:$0xff]
          %v5716 = vld [vmem:[%s5696 + $0x98] sm:$0xff]
          %v5717 = vld [vmem:[%s5696 + $0xa0] sm:$0xff]
          %v5718 = vld [vmem:[%s5696 + $0xa8] sm:$0xff]
          %v5719 = vld [vmem:[%s5696 + $0xb0] sm:$0xff]
          %v5720 = vld [vmem:[%s5696 + $0xb8] sm:$0xff]
          %v5721 = vld [vmem:[%s5696 + $0xc0] sm:$0xf]
          %v5723 = vsel %vm443, %v5697, 0
          %v5726 = vsel %vm443, %v5698, 0
          %v5729 = vsel %vm443, %v5699, 0
          %v5732 = vsel %vm443, %v5700, 0
          %v5735 = vsel %vm443, %v5701, 0
          %v5738 = vsel %vm443, %v5702, 0
          %v5741 = vsel %vm443, %v5703, 0
          %v5744 = vsel %vm443, %v5704, 0
          %v5747 = vsel %vm443, %v5705, 0
          %v5750 = vsel %vm443, %v5706, 0
          %v5753 = vsel %vm443, %v5707, 0
          %v5756 = vsel %vm443, %v5708, 0
          %v5759 = vsel %vm443, %v5709, 0
          %v5762 = vsel %vm443, %v5710, 0
          %v5765 = vsel %vm443, %v5711, 0
          %v5768 = vsel %vm443, %v5712, 0
          %v5771 = vsel %vm443, %v5713, 0
          %v5774 = vsel %vm443, %v5714, 0
          %v5777 = vsel %vm443, %v5715, 0
          %v5780 = vsel %vm443, %v5716, 0
          %v5783 = vsel %vm443, %v5717, 0
          %v5786 = vsel %vm443, %v5718, 0
          %v5789 = vsel %vm443, %v5719, 0
          %v5792 = vsel %vm443, %v5720, 0
          %v5795 = vsel %vm443, %v5721, 0
          %5797 = vmatpush.msra.mxu0 0.0
          %5798 = vmatpush.msra.mxu0 0.0
          %5799 = vmatpush.msra.mxu0 0.0
          %5800 = vmatpush.msra.mxu0 0.0
          %5801 = vmatpush.msra.mxu0 0.0
          %5802 = vmatpush.msra.mxu0 0.0
          %5803 = vmatpush.msra.mxu0 0.0
          %5804 = vmatpush.msra.mxu0 0.0
          %5805 = vmatpush.msra.mxu0 0.0
          %5806 = vmatpush.msra.mxu0 0.0
          %5807 = vmatpush.msra.mxu0 0.0
          %5808 = vmatpush.msra.mxu0 0.0
          %5809 = vmatpush.msra.mxu0 0.0
          %5810 = vmatpush.msra.mxu0 %v442
          %5811 = vmatpush.msra.mxu0 %v441
          %5812 = vmatpush.msra.mxu0 %v440
          %5813 = vmatmul.f32.gmra.mxu0 %v5723
          %v5814 = vpop.f32.mrf.mxu0
          %v5815 = vadd.f32 0.0, %v5814
          %5816 = vmatmul.f32.gmra.mxu0 %v5726
          %v5817 = vpop.f32.mrf.mxu0
          %v5818 = vadd.f32 0.0, %v5817
          %5819 = vmatmul.f32.gmra.mxu0 %v5729
          %v5820 = vpop.f32.mrf.mxu0
          %v5821 = vadd.f32 0.0, %v5820
          %5822 = vmatmul.f32.gmra.mxu0 %v5732
          %v5823 = vpop.f32.mrf.mxu0
          %v5824 = vadd.f32 0.0, %v5823
          %5825 = vmatmul.f32.gmra.mxu0 %v5735
          %v5826 = vpop.f32.mrf.mxu0
          %v5827 = vadd.f32 0.0, %v5826
          %5828 = vmatmul.f32.gmra.mxu0 %v5738
          %v5829 = vpop.f32.mrf.mxu0
          %v5830 = vadd.f32 0.0, %v5829
          %5831 = vmatmul.f32.gmra.mxu0 %v5741
          %v5832 = vpop.f32.mrf.mxu0
          %v5833 = vadd.f32 0.0, %v5832
          %5834 = vmatmul.f32.gmra.mxu0 %v5744
          %v5835 = vpop.f32.mrf.mxu0
          %v5836 = vadd.f32 0.0, %v5835
          %5837 = vmatmul.f32.gmra.mxu0 %v5747
          %v5838 = vpop.f32.mrf.mxu0
          %v5839 = vadd.f32 0.0, %v5838
          %5840 = vmatmul.f32.gmra.mxu0 %v5750
          %v5841 = vpop.f32.mrf.mxu0
          %v5842 = vadd.f32 0.0, %v5841
          %5843 = vmatmul.f32.gmra.mxu0 %v5753
          %v5844 = vpop.f32.mrf.mxu0
          %v5845 = vadd.f32 0.0, %v5844
          %5846 = vmatmul.f32.gmra.mxu0 %v5756
          %v5847 = vpop.f32.mrf.mxu0
          %v5848 = vadd.f32 0.0, %v5847
          %5849 = vmatmul.f32.gmra.mxu0 %v5759
          %v5850 = vpop.f32.mrf.mxu0
          %v5851 = vadd.f32 0.0, %v5850
          %5852 = vmatmul.f32.gmra.mxu0 %v5762
          %v5853 = vpop.f32.mrf.mxu0
          %v5854 = vadd.f32 0.0, %v5853
          %5855 = vmatmul.f32.gmra.mxu0 %v5765
          %v5856 = vpop.f32.mrf.mxu0
          %v5857 = vadd.f32 0.0, %v5856
          %5858 = vmatmul.f32.gmra.mxu0 %v5768
          %v5859 = vpop.f32.mrf.mxu0
          %v5860 = vadd.f32 0.0, %v5859
          %5861 = vmatmul.f32.gmra.mxu0 %v5771
          %v5862 = vpop.f32.mrf.mxu0
          %v5863 = vadd.f32 0.0, %v5862
          %5864 = vmatmul.f32.gmra.mxu0 %v5774
          %v5865 = vpop.f32.mrf.mxu0
          %v5866 = vadd.f32 0.0, %v5865
          %5867 = vmatmul.f32.gmra.mxu0 %v5777
          %v5868 = vpop.f32.mrf.mxu0
          %v5869 = vadd.f32 0.0, %v5868
          %5870 = vmatmul.f32.gmra.mxu0 %v5780
          %v5871 = vpop.f32.mrf.mxu0
          %v5872 = vadd.f32 0.0, %v5871
          %5873 = vmatmul.f32.gmra.mxu0 %v5783
          %v5874 = vpop.f32.mrf.mxu0
          %v5875 = vadd.f32 0.0, %v5874
          %5876 = vmatmul.f32.gmra.mxu0 %v5786
          %v5877 = vpop.f32.mrf.mxu0
          %v5878 = vadd.f32 0.0, %v5877
          %5879 = vmatmul.f32.gmra.mxu0 %v5789
          %v5880 = vpop.f32.mrf.mxu0
          %v5881 = vadd.f32 0.0, %v5880
          %5882 = vmatmul.f32.gmra.mxu0 %v5792
          %v5883 = vpop.f32.mrf.mxu0
          %v5884 = vadd.f32 0.0, %v5883
          %5885 = vmatmul.f32.gmra.mxu0 %v5795
          %v5886 = vpop.f32.mrf.mxu0
          %v5887 = vadd.f32 0.0, %v5886
          %5888 = vdwg.mxu0
          %v5889 = vmul.f32 %v5815, 0.2
          %v5890 = vmul.f32 %v5818, 0.2
          %v5891 = vmul.f32 %v5821, 0.2
          %v5892 = vmul.f32 %v5824, 0.2
          %v5893 = vmul.f32 %v5827, 0.2
          %v5894 = vmul.f32 %v5830, 0.2
          %v5895 = vmul.f32 %v5833, 0.2
          %v5896 = vmul.f32 %v5836, 0.2
          %v5897 = vmul.f32 %v5839, 0.2
          %v5898 = vmul.f32 %v5842, 0.2
          %v5899 = vmul.f32 %v5845, 0.2
          %v5900 = vmul.f32 %v5848, 0.2
          %v5901 = vmul.f32 %v5851, 0.2
          %v5902 = vmul.f32 %v5854, 0.2
          %v5903 = vmul.f32 %v5857, 0.2
          %v5904 = vmul.f32 %v5860, 0.2
          %v5905 = vmul.f32 %v5863, 0.2
          %v5906 = vmul.f32 %v5866, 0.2
          %v5907 = vmul.f32 %v5869, 0.2
          %v5908 = vmul.f32 %v5872, 0.2
          %v5909 = vmul.f32 %v5875, 0.2
          %v5910 = vmul.f32 %v5878, 0.2
          %v5911 = vmul.f32 %v5881, 0.2
          %v5912 = vmul.f32 %v5884, 0.2
          %v5913 = vmul.f32 %v5887, 0.2
          %v5914 = vmax.f32 %v5815, %v5889
          %v5915 = vmax.f32 %v5818, %v5890
          %v5916 = vmax.f32 %v5821, %v5891
          %v5917 = vmax.f32 %v5824, %v5892
          %v5918 = vmax.f32 %v5827, %v5893
          %v5919 = vmax.f32 %v5830, %v5894
          %v5920 = vmax.f32 %v5833, %v5895
          %v5921 = vmax.f32 %v5836, %v5896
          %v5922 = vmax.f32 %v5839, %v5897
          %v5923 = vmax.f32 %v5842, %v5898
          %v5924 = vmax.f32 %v5845, %v5899
          %v5925 = vmax.f32 %v5848, %v5900
          %v5926 = vmax.f32 %v5851, %v5901
          %v5927 = vmax.f32 %v5854, %v5902
          %v5928 = vmax.f32 %v5857, %v5903
          %v5929 = vmax.f32 %v5860, %v5904
          %v5930 = vmax.f32 %v5863, %v5905
          %v5931 = vmax.f32 %v5866, %v5906
          %v5932 = vmax.f32 %v5869, %v5907
          %v5933 = vmax.f32 %v5872, %v5908
          %v5934 = vmax.f32 %v5875, %v5909
          %v5935 = vmax.f32 %v5878, %v5910
          %v5936 = vmax.f32 %v5881, %v5911
          %v5937 = vmax.f32 %v5884, %v5912
          %v5938 = vmax.f32 %v5887, %v5913
          %s5939 = scalar_lea.vmem %s2, 768
          %v5940 = vld [vmem:[%s5939] sm:$0xff]
          %v5941 = vld [vmem:[%s5939 + $0x8] sm:$0xff]
          %v5942 = vld [vmem:[%s5939 + $0x10] sm:$0xff]
          %v5943 = vld [vmem:[%s5939 + $0x18] sm:$0xff]
          %v5944 = vld [vmem:[%s5939 + $0x20] sm:$0xff]
          %v5945 = vld [vmem:[%s5939 + $0x28] sm:$0xff]
          %v5946 = vld [vmem:[%s5939 + $0x30] sm:$0xff]
          %v5947 = vld [vmem:[%s5939 + $0x38] sm:$0xff]
          %v5949 = vsel %vm921, %v5914, 0
          %v5952 = vsel %vm921, %v5915, 0
          %v5955 = vsel %vm921, %v5916, 0
          %v5958 = vsel %vm921, %v5917, 0
          %v5961 = vsel %vm921, %v5918, 0
          %v5964 = vsel %vm921, %v5919, 0
          %v5967 = vsel %vm921, %v5920, 0
          %v5970 = vsel %vm921, %v5921, 0
          %v5973 = vsel %vm921, %v5922, 0
          %v5976 = vsel %vm921, %v5923, 0
          %v5979 = vsel %vm921, %v5924, 0
          %v5982 = vsel %vm921, %v5925, 0
          %v5985 = vsel %vm921, %v5926, 0
          %v5988 = vsel %vm921, %v5927, 0
          %v5991 = vsel %vm921, %v5928, 0
          %v5994 = vsel %vm921, %v5929, 0
          %v5997 = vsel %vm921, %v5930, 0
          %v6000 = vsel %vm921, %v5931, 0
          %v6003 = vsel %vm921, %v5932, 0
          %v6006 = vsel %vm921, %v5933, 0
          %v6009 = vsel %vm921, %v5934, 0
          %v6012 = vsel %vm921, %v5935, 0
          %v6015 = vsel %vm921, %v5936, 0
          %v6018 = vsel %vm921, %v5937, 0
          %v6021 = vsel %vm921, %v5938, 0
          %6023 = vmatpush.msra.mxu0 0.0
          %6024 = vmatpush.msra.mxu0 0.0
          %6025 = vmatpush.msra.mxu0 0.0
          %6026 = vmatpush.msra.mxu0 0.0
          %6027 = vmatpush.msra.mxu0 0.0
          %6028 = vmatpush.msra.mxu0 0.0
          %6029 = vmatpush.msra.mxu0 0.0
          %6030 = vmatpush.msra.mxu0 0.0
          %6031 = vmatpush.msra.mxu0 %v5947
          %6032 = vmatpush.msra.mxu0 %v5946
          %6033 = vmatpush.msra.mxu0 %v5945
          %6034 = vmatpush.msra.mxu0 %v5944
          %6035 = vmatpush.msra.mxu0 %v5943
          %6036 = vmatpush.msra.mxu0 %v5942
          %6037 = vmatpush.msra.mxu0 %v5941
          %6038 = vmatpush.msra.mxu0 %v5940
          %6039 = vmatmul.f32.gmra.mxu0 %v5949
          %v6040 = vpop.f32.mrf.mxu0
          %v6041 = vadd.f32 0.0, %v6040
          %6042 = vmatmul.f32.gmra.mxu0 %v5952
          %v6043 = vpop.f32.mrf.mxu0
          %v6044 = vadd.f32 0.0, %v6043
          %6045 = vmatmul.f32.gmra.mxu0 %v5955
          %v6046 = vpop.f32.mrf.mxu0
          %v6047 = vadd.f32 0.0, %v6046
          %6048 = vmatmul.f32.gmra.mxu0 %v5958
          %v6049 = vpop.f32.mrf.mxu0
          %v6050 = vadd.f32 0.0, %v6049
          %6051 = vmatmul.f32.gmra.mxu0 %v5961
          %v6052 = vpop.f32.mrf.mxu0
          %v6053 = vadd.f32 0.0, %v6052
          %6054 = vmatmul.f32.gmra.mxu0 %v5964
          %v6055 = vpop.f32.mrf.mxu0
          %v6056 = vadd.f32 0.0, %v6055
          %6057 = vmatmul.f32.gmra.mxu0 %v5967
          %v6058 = vpop.f32.mrf.mxu0
          %v6059 = vadd.f32 0.0, %v6058
          %6060 = vmatmul.f32.gmra.mxu0 %v5970
          %v6061 = vpop.f32.mrf.mxu0
          %v6062 = vadd.f32 0.0, %v6061
          %6063 = vmatmul.f32.gmra.mxu0 %v5973
          %v6064 = vpop.f32.mrf.mxu0
          %v6065 = vadd.f32 0.0, %v6064
          %6066 = vmatmul.f32.gmra.mxu0 %v5976
          %v6067 = vpop.f32.mrf.mxu0
          %v6068 = vadd.f32 0.0, %v6067
          %6069 = vmatmul.f32.gmra.mxu0 %v5979
          %v6070 = vpop.f32.mrf.mxu0
          %v6071 = vadd.f32 0.0, %v6070
          %6072 = vmatmul.f32.gmra.mxu0 %v5982
          %v6073 = vpop.f32.mrf.mxu0
          %v6074 = vadd.f32 0.0, %v6073
          %6075 = vmatmul.f32.gmra.mxu0 %v5985
          %v6076 = vpop.f32.mrf.mxu0
          %v6077 = vadd.f32 0.0, %v6076
          %6078 = vmatmul.f32.gmra.mxu0 %v5988
          %v6079 = vpop.f32.mrf.mxu0
          %v6080 = vadd.f32 0.0, %v6079
          %6081 = vmatmul.f32.gmra.mxu0 %v5991
          %v6082 = vpop.f32.mrf.mxu0
          %v6083 = vadd.f32 0.0, %v6082
          %6084 = vmatmul.f32.gmra.mxu0 %v5994
          %v6085 = vpop.f32.mrf.mxu0
          %v6086 = vadd.f32 0.0, %v6085
          %6087 = vmatmul.f32.gmra.mxu0 %v5997
          %v6088 = vpop.f32.mrf.mxu0
          %v6089 = vadd.f32 0.0, %v6088
          %6090 = vmatmul.f32.gmra.mxu0 %v6000
          %v6091 = vpop.f32.mrf.mxu0
          %v6092 = vadd.f32 0.0, %v6091
          %6093 = vmatmul.f32.gmra.mxu0 %v6003
          %v6094 = vpop.f32.mrf.mxu0
          %v6095 = vadd.f32 0.0, %v6094
          %6096 = vmatmul.f32.gmra.mxu0 %v6006
          %v6097 = vpop.f32.mrf.mxu0
          %v6098 = vadd.f32 0.0, %v6097
          %6099 = vmatmul.f32.gmra.mxu0 %v6009
          %v6100 = vpop.f32.mrf.mxu0
          %v6101 = vadd.f32 0.0, %v6100
          %6102 = vmatmul.f32.gmra.mxu0 %v6012
          %v6103 = vpop.f32.mrf.mxu0
          %v6104 = vadd.f32 0.0, %v6103
          %6105 = vmatmul.f32.gmra.mxu0 %v6015
          %v6106 = vpop.f32.mrf.mxu0
          %v6107 = vadd.f32 0.0, %v6106
          %6108 = vmatmul.f32.gmra.mxu0 %v6018
          %v6109 = vpop.f32.mrf.mxu0
          %v6110 = vadd.f32 0.0, %v6109
          %6111 = vmatmul.f32.gmra.mxu0 %v6021
          %v6112 = vpop.f32.mrf.mxu0
          %v6113 = vadd.f32 0.0, %v6112
          %6114 = vdwg.mxu0
          %v6115 = vadd.f32 %v5671, %v6041
          %v6116 = vadd.f32 %v5672, %v6044
          %v6117 = vadd.f32 %v5673, %v6047
          %v6118 = vadd.f32 %v5674, %v6050
          %v6119 = vadd.f32 %v5675, %v6053
          %v6120 = vadd.f32 %v5676, %v6056
          %v6121 = vadd.f32 %v5677, %v6059
          %v6122 = vadd.f32 %v5678, %v6062
          %v6123 = vadd.f32 %v5679, %v6065
          %v6124 = vadd.f32 %v5680, %v6068
          %v6125 = vadd.f32 %v5681, %v6071
          %v6126 = vadd.f32 %v5682, %v6074
          %v6127 = vadd.f32 %v5683, %v6077
          %v6128 = vadd.f32 %v5684, %v6080
          %v6129 = vadd.f32 %v5685, %v6083
          %v6130 = vadd.f32 %v5686, %v6086
          %v6131 = vadd.f32 %v5687, %v6089
          %v6132 = vadd.f32 %v5688, %v6092
          %v6133 = vadd.f32 %v5689, %v6095
          %v6134 = vadd.f32 %v5690, %v6098
          %v6135 = vadd.f32 %v5691, %v6101
          %v6136 = vadd.f32 %v5692, %v6104
          %v6137 = vadd.f32 %v5693, %v6107
          %v6138 = vadd.f32 %v5694, %v6110
          %v6139 = vadd.f32 %v5695, %v6113
          %s6140 = scalar_lea.vmem %s0, 2600
          %v6141 = vld [vmem:[%s6140] sm:$0xff]
          %v6142 = vld [vmem:[%s6140 + $0x8] sm:$0xff]
          %v6143 = vld [vmem:[%s6140 + $0x10] sm:$0xff]
          %v6144 = vld [vmem:[%s6140 + $0x18] sm:$0xff]
          %v6145 = vld [vmem:[%s6140 + $0x20] sm:$0xff]
          %v6146 = vld [vmem:[%s6140 + $0x28] sm:$0xff]
          %v6147 = vld [vmem:[%s6140 + $0x30] sm:$0xff]
          %v6148 = vld [vmem:[%s6140 + $0x38] sm:$0xff]
          %v6149 = vld [vmem:[%s6140 + $0x40] sm:$0xff]
          %v6150 = vld [vmem:[%s6140 + $0x48] sm:$0xff]
          %v6151 = vld [vmem:[%s6140 + $0x50] sm:$0xff]
          %v6152 = vld [vmem:[%s6140 + $0x58] sm:$0xff]
          %v6153 = vld [vmem:[%s6140 + $0x60] sm:$0xff]
          %v6154 = vld [vmem:[%s6140 + $0x68] sm:$0xff]
          %v6155 = vld [vmem:[%s6140 + $0x70] sm:$0xff]
          %v6156 = vld [vmem:[%s6140 + $0x78] sm:$0xff]
          %v6157 = vld [vmem:[%s6140 + $0x80] sm:$0xff]
          %v6158 = vld [vmem:[%s6140 + $0x88] sm:$0xff]
          %v6159 = vld [vmem:[%s6140 + $0x90] sm:$0xff]
          %v6160 = vld [vmem:[%s6140 + $0x98] sm:$0xff]
          %v6161 = vld [vmem:[%s6140 + $0xa0] sm:$0xff]
          %v6162 = vld [vmem:[%s6140 + $0xa8] sm:$0xff]
          %v6163 = vld [vmem:[%s6140 + $0xb0] sm:$0xff]
          %v6164 = vld [vmem:[%s6140 + $0xb8] sm:$0xff]
          %v6165 = vld [vmem:[%s6140 + $0xc0] sm:$0xf]
          %v6167 = vsel %vm443, %v6141, 0
          %v6170 = vsel %vm443, %v6142, 0
          %v6173 = vsel %vm443, %v6143, 0
          %v6176 = vsel %vm443, %v6144, 0
          %v6179 = vsel %vm443, %v6145, 0
          %v6182 = vsel %vm443, %v6146, 0
          %v6185 = vsel %vm443, %v6147, 0
          %v6188 = vsel %vm443, %v6148, 0
          %v6191 = vsel %vm443, %v6149, 0
          %v6194 = vsel %vm443, %v6150, 0
          %v6197 = vsel %vm443, %v6151, 0
          %v6200 = vsel %vm443, %v6152, 0
          %v6203 = vsel %vm443, %v6153, 0
          %v6206 = vsel %vm443, %v6154, 0
          %v6209 = vsel %vm443, %v6155, 0
          %v6212 = vsel %vm443, %v6156, 0
          %v6215 = vsel %vm443, %v6157, 0
          %v6218 = vsel %vm443, %v6158, 0
          %v6221 = vsel %vm443, %v6159, 0
          %v6224 = vsel %vm443, %v6160, 0
          %v6227 = vsel %vm443, %v6161, 0
          %v6230 = vsel %vm443, %v6162, 0
          %v6233 = vsel %vm443, %v6163, 0
          %v6236 = vsel %vm443, %v6164, 0
          %v6239 = vsel %vm443, %v6165, 0
          %6241 = vmatpush.msra.mxu0 0.0
          %6242 = vmatpush.msra.mxu0 0.0
          %6243 = vmatpush.msra.mxu0 0.0
          %6244 = vmatpush.msra.mxu0 0.0
          %6245 = vmatpush.msra.mxu0 0.0
          %6246 = vmatpush.msra.mxu0 0.0
          %6247 = vmatpush.msra.mxu0 0.0
          %6248 = vmatpush.msra.mxu0 0.0
          %6249 = vmatpush.msra.mxu0 0.0
          %6250 = vmatpush.msra.mxu0 0.0
          %6251 = vmatpush.msra.mxu0 0.0
          %6252 = vmatpush.msra.mxu0 0.0
          %6253 = vmatpush.msra.mxu0 0.0
          %6254 = vmatpush.msra.mxu0 %v442
          %6255 = vmatpush.msra.mxu0 %v441
          %6256 = vmatpush.msra.mxu0 %v440
          %6257 = vmatmul.f32.gmra.mxu0 %v6167
          %v6258 = vpop.f32.mrf.mxu0
          %v6259 = vadd.f32 0.0, %v6258
          %6260 = vmatmul.f32.gmra.mxu0 %v6170
          %v6261 = vpop.f32.mrf.mxu0
          %v6262 = vadd.f32 0.0, %v6261
          %6263 = vmatmul.f32.gmra.mxu0 %v6173
          %v6264 = vpop.f32.mrf.mxu0
          %v6265 = vadd.f32 0.0, %v6264
          %6266 = vmatmul.f32.gmra.mxu0 %v6176
          %v6267 = vpop.f32.mrf.mxu0
          %v6268 = vadd.f32 0.0, %v6267
          %6269 = vmatmul.f32.gmra.mxu0 %v6179
          %v6270 = vpop.f32.mrf.mxu0
          %v6271 = vadd.f32 0.0, %v6270
          %6272 = vmatmul.f32.gmra.mxu0 %v6182
          %v6273 = vpop.f32.mrf.mxu0
          %v6274 = vadd.f32 0.0, %v6273
          %6275 = vmatmul.f32.gmra.mxu0 %v6185
          %v6276 = vpop.f32.mrf.mxu0
          %v6277 = vadd.f32 0.0, %v6276
          %6278 = vmatmul.f32.gmra.mxu0 %v6188
          %v6279 = vpop.f32.mrf.mxu0
          %v6280 = vadd.f32 0.0, %v6279
          %6281 = vmatmul.f32.gmra.mxu0 %v6191
          %v6282 = vpop.f32.mrf.mxu0
          %v6283 = vadd.f32 0.0, %v6282
          %6284 = vmatmul.f32.gmra.mxu0 %v6194
          %v6285 = vpop.f32.mrf.mxu0
          %v6286 = vadd.f32 0.0, %v6285
          %6287 = vmatmul.f32.gmra.mxu0 %v6197
          %v6288 = vpop.f32.mrf.mxu0
          %v6289 = vadd.f32 0.0, %v6288
          %6290 = vmatmul.f32.gmra.mxu0 %v6200
          %v6291 = vpop.f32.mrf.mxu0
          %v6292 = vadd.f32 0.0, %v6291
          %6293 = vmatmul.f32.gmra.mxu0 %v6203
          %v6294 = vpop.f32.mrf.mxu0
          %v6295 = vadd.f32 0.0, %v6294
          %6296 = vmatmul.f32.gmra.mxu0 %v6206
          %v6297 = vpop.f32.mrf.mxu0
          %v6298 = vadd.f32 0.0, %v6297
          %6299 = vmatmul.f32.gmra.mxu0 %v6209
          %v6300 = vpop.f32.mrf.mxu0
          %v6301 = vadd.f32 0.0, %v6300
          %6302 = vmatmul.f32.gmra.mxu0 %v6212
          %v6303 = vpop.f32.mrf.mxu0
          %v6304 = vadd.f32 0.0, %v6303
          %6305 = vmatmul.f32.gmra.mxu0 %v6215
          %v6306 = vpop.f32.mrf.mxu0
          %v6307 = vadd.f32 0.0, %v6306
          %6308 = vmatmul.f32.gmra.mxu0 %v6218
          %v6309 = vpop.f32.mrf.mxu0
          %v6310 = vadd.f32 0.0, %v6309
          %6311 = vmatmul.f32.gmra.mxu0 %v6221
          %v6312 = vpop.f32.mrf.mxu0
          %v6313 = vadd.f32 0.0, %v6312
          %6314 = vmatmul.f32.gmra.mxu0 %v6224
          %v6315 = vpop.f32.mrf.mxu0
          %v6316 = vadd.f32 0.0, %v6315
          %6317 = vmatmul.f32.gmra.mxu0 %v6227
          %v6318 = vpop.f32.mrf.mxu0
          %v6319 = vadd.f32 0.0, %v6318
          %6320 = vmatmul.f32.gmra.mxu0 %v6230
          %v6321 = vpop.f32.mrf.mxu0
          %v6322 = vadd.f32 0.0, %v6321
          %6323 = vmatmul.f32.gmra.mxu0 %v6233
          %v6324 = vpop.f32.mrf.mxu0
          %v6325 = vadd.f32 0.0, %v6324
          %6326 = vmatmul.f32.gmra.mxu0 %v6236
          %v6327 = vpop.f32.mrf.mxu0
          %v6328 = vadd.f32 0.0, %v6327
          %6329 = vmatmul.f32.gmra.mxu0 %v6239
          %v6330 = vpop.f32.mrf.mxu0
          %v6331 = vadd.f32 0.0, %v6330
          %6332 = vdwg.mxu0
          %v6333 = vmul.f32 %v6259, 0.2
          %v6334 = vmul.f32 %v6262, 0.2
          %v6335 = vmul.f32 %v6265, 0.2
          %v6336 = vmul.f32 %v6268, 0.2
          %v6337 = vmul.f32 %v6271, 0.2
          %v6338 = vmul.f32 %v6274, 0.2
          %v6339 = vmul.f32 %v6277, 0.2
          %v6340 = vmul.f32 %v6280, 0.2
          %v6341 = vmul.f32 %v6283, 0.2
          %v6342 = vmul.f32 %v6286, 0.2
          %v6343 = vmul.f32 %v6289, 0.2
          %v6344 = vmul.f32 %v6292, 0.2
          %v6345 = vmul.f32 %v6295, 0.2
          %v6346 = vmul.f32 %v6298, 0.2
          %v6347 = vmul.f32 %v6301, 0.2
          %v6348 = vmul.f32 %v6304, 0.2
          %v6349 = vmul.f32 %v6307, 0.2
          %v6350 = vmul.f32 %v6310, 0.2
          %v6351 = vmul.f32 %v6313, 0.2
          %v6352 = vmul.f32 %v6316, 0.2
          %v6353 = vmul.f32 %v6319, 0.2
          %v6354 = vmul.f32 %v6322, 0.2
          %v6355 = vmul.f32 %v6325, 0.2
          %v6356 = vmul.f32 %v6328, 0.2
          %v6357 = vmul.f32 %v6331, 0.2
          %v6358 = vmax.f32 %v6259, %v6333
          %v6359 = vmax.f32 %v6262, %v6334
          %v6360 = vmax.f32 %v6265, %v6335
          %v6361 = vmax.f32 %v6268, %v6336
          %v6362 = vmax.f32 %v6271, %v6337
          %v6363 = vmax.f32 %v6274, %v6338
          %v6364 = vmax.f32 %v6277, %v6339
          %v6365 = vmax.f32 %v6280, %v6340
          %v6366 = vmax.f32 %v6283, %v6341
          %v6367 = vmax.f32 %v6286, %v6342
          %v6368 = vmax.f32 %v6289, %v6343
          %v6369 = vmax.f32 %v6292, %v6344
          %v6370 = vmax.f32 %v6295, %v6345
          %v6371 = vmax.f32 %v6298, %v6346
          %v6372 = vmax.f32 %v6301, %v6347
          %v6373 = vmax.f32 %v6304, %v6348
          %v6374 = vmax.f32 %v6307, %v6349
          %v6375 = vmax.f32 %v6310, %v6350
          %v6376 = vmax.f32 %v6313, %v6351
          %v6377 = vmax.f32 %v6316, %v6352
          %v6378 = vmax.f32 %v6319, %v6353
          %v6379 = vmax.f32 %v6322, %v6354
          %v6380 = vmax.f32 %v6325, %v6355
          %v6381 = vmax.f32 %v6328, %v6356
          %v6382 = vmax.f32 %v6331, %v6357
          %s6383 = scalar_lea.vmem %s2, 832
          %v6384 = vld [vmem:[%s6383] sm:$0xff]
          %v6385 = vld [vmem:[%s6383 + $0x8] sm:$0xff]
          %v6386 = vld [vmem:[%s6383 + $0x10] sm:$0xff]
          %v6387 = vld [vmem:[%s6383 + $0x18] sm:$0xff]
          %v6388 = vld [vmem:[%s6383 + $0x20] sm:$0xff]
          %v6389 = vld [vmem:[%s6383 + $0x28] sm:$0xff]
          %v6390 = vld [vmem:[%s6383 + $0x30] sm:$0xff]
          %v6391 = vld [vmem:[%s6383 + $0x38] sm:$0xff]
          %v6393 = vsel %vm921, %v6358, 0
          %v6396 = vsel %vm921, %v6359, 0
          %v6399 = vsel %vm921, %v6360, 0
          %v6402 = vsel %vm921, %v6361, 0
          %v6405 = vsel %vm921, %v6362, 0
          %v6408 = vsel %vm921, %v6363, 0
          %v6411 = vsel %vm921, %v6364, 0
          %v6414 = vsel %vm921, %v6365, 0
          %v6417 = vsel %vm921, %v6366, 0
          %v6420 = vsel %vm921, %v6367, 0
          %v6423 = vsel %vm921, %v6368, 0
          %v6426 = vsel %vm921, %v6369, 0
          %v6429 = vsel %vm921, %v6370, 0
          %v6432 = vsel %vm921, %v6371, 0
          %v6435 = vsel %vm921, %v6372, 0
          %v6438 = vsel %vm921, %v6373, 0
          %v6441 = vsel %vm921, %v6374, 0
          %v6444 = vsel %vm921, %v6375, 0
          %v6447 = vsel %vm921, %v6376, 0
          %v6450 = vsel %vm921, %v6377, 0
          %v6453 = vsel %vm921, %v6378, 0
          %v6456 = vsel %vm921, %v6379, 0
          %v6459 = vsel %vm921, %v6380, 0
          %v6462 = vsel %vm921, %v6381, 0
          %v6465 = vsel %vm921, %v6382, 0
          %6467 = vmatpush.msra.mxu0 0.0
          %6468 = vmatpush.msra.mxu0 0.0
          %6469 = vmatpush.msra.mxu0 0.0
          %6470 = vmatpush.msra.mxu0 0.0
          %6471 = vmatpush.msra.mxu0 0.0
          %6472 = vmatpush.msra.mxu0 0.0
          %6473 = vmatpush.msra.mxu0 0.0
          %6474 = vmatpush.msra.mxu0 0.0
          %6475 = vmatpush.msra.mxu0 %v6391
          %6476 = vmatpush.msra.mxu0 %v6390
          %6477 = vmatpush.msra.mxu0 %v6389
          %6478 = vmatpush.msra.mxu0 %v6388
          %6479 = vmatpush.msra.mxu0 %v6387
          %6480 = vmatpush.msra.mxu0 %v6386
          %6481 = vmatpush.msra.mxu0 %v6385
          %6482 = vmatpush.msra.mxu0 %v6384
          %6483 = vmatmul.f32.gmra.mxu0 %v6393
          %v6484 = vpop.f32.mrf.mxu0
          %v6485 = vadd.f32 0.0, %v6484
          %6486 = vmatmul.f32.gmra.mxu0 %v6396
          %v6487 = vpop.f32.mrf.mxu0
          %v6488 = vadd.f32 0.0, %v6487
          %6489 = vmatmul.f32.gmra.mxu0 %v6399
          %v6490 = vpop.f32.mrf.mxu0
          %v6491 = vadd.f32 0.0, %v6490
          %6492 = vmatmul.f32.gmra.mxu0 %v6402
          %v6493 = vpop.f32.mrf.mxu0
          %v6494 = vadd.f32 0.0, %v6493
          %6495 = vmatmul.f32.gmra.mxu0 %v6405
          %v6496 = vpop.f32.mrf.mxu0
          %v6497 = vadd.f32 0.0, %v6496
          %6498 = vmatmul.f32.gmra.mxu0 %v6408
          %v6499 = vpop.f32.mrf.mxu0
          %v6500 = vadd.f32 0.0, %v6499
          %6501 = vmatmul.f32.gmra.mxu0 %v6411
          %v6502 = vpop.f32.mrf.mxu0
          %v6503 = vadd.f32 0.0, %v6502
          %6504 = vmatmul.f32.gmra.mxu0 %v6414
          %v6505 = vpop.f32.mrf.mxu0
          %v6506 = vadd.f32 0.0, %v6505
          %6507 = vmatmul.f32.gmra.mxu0 %v6417
          %v6508 = vpop.f32.mrf.mxu0
          %v6509 = vadd.f32 0.0, %v6508
          %6510 = vmatmul.f32.gmra.mxu0 %v6420
          %v6511 = vpop.f32.mrf.mxu0
          %v6512 = vadd.f32 0.0, %v6511
          %6513 = vmatmul.f32.gmra.mxu0 %v6423
          %v6514 = vpop.f32.mrf.mxu0
          %v6515 = vadd.f32 0.0, %v6514
          %6516 = vmatmul.f32.gmra.mxu0 %v6426
          %v6517 = vpop.f32.mrf.mxu0
          %v6518 = vadd.f32 0.0, %v6517
          %6519 = vmatmul.f32.gmra.mxu0 %v6429
          %v6520 = vpop.f32.mrf.mxu0
          %v6521 = vadd.f32 0.0, %v6520
          %6522 = vmatmul.f32.gmra.mxu0 %v6432
          %v6523 = vpop.f32.mrf.mxu0
          %v6524 = vadd.f32 0.0, %v6523
          %6525 = vmatmul.f32.gmra.mxu0 %v6435
          %v6526 = vpop.f32.mrf.mxu0
          %v6527 = vadd.f32 0.0, %v6526
          %6528 = vmatmul.f32.gmra.mxu0 %v6438
          %v6529 = vpop.f32.mrf.mxu0
          %v6530 = vadd.f32 0.0, %v6529
          %6531 = vmatmul.f32.gmra.mxu0 %v6441
          %v6532 = vpop.f32.mrf.mxu0
          %v6533 = vadd.f32 0.0, %v6532
          %6534 = vmatmul.f32.gmra.mxu0 %v6444
          %v6535 = vpop.f32.mrf.mxu0
          %v6536 = vadd.f32 0.0, %v6535
          %6537 = vmatmul.f32.gmra.mxu0 %v6447
          %v6538 = vpop.f32.mrf.mxu0
          %v6539 = vadd.f32 0.0, %v6538
          %6540 = vmatmul.f32.gmra.mxu0 %v6450
          %v6541 = vpop.f32.mrf.mxu0
          %v6542 = vadd.f32 0.0, %v6541
          %6543 = vmatmul.f32.gmra.mxu0 %v6453
          %v6544 = vpop.f32.mrf.mxu0
          %v6545 = vadd.f32 0.0, %v6544
          %6546 = vmatmul.f32.gmra.mxu0 %v6456
          %v6547 = vpop.f32.mrf.mxu0
          %v6548 = vadd.f32 0.0, %v6547
          %6549 = vmatmul.f32.gmra.mxu0 %v6459
          %v6550 = vpop.f32.mrf.mxu0
          %v6551 = vadd.f32 0.0, %v6550
          %6552 = vmatmul.f32.gmra.mxu0 %v6462
          %v6553 = vpop.f32.mrf.mxu0
          %v6554 = vadd.f32 0.0, %v6553
          %6555 = vmatmul.f32.gmra.mxu0 %v6465
          %v6556 = vpop.f32.mrf.mxu0
          %v6557 = vadd.f32 0.0, %v6556
          %6558 = vdwg.mxu0
          %v6559 = vadd.f32 %v6115, %v6485
          %v6560 = vadd.f32 %v6116, %v6488
          %v6561 = vadd.f32 %v6117, %v6491
          %v6562 = vadd.f32 %v6118, %v6494
          %v6563 = vadd.f32 %v6119, %v6497
          %v6564 = vadd.f32 %v6120, %v6500
          %v6565 = vadd.f32 %v6121, %v6503
          %v6566 = vadd.f32 %v6122, %v6506
          %v6567 = vadd.f32 %v6123, %v6509
          %v6568 = vadd.f32 %v6124, %v6512
          %v6569 = vadd.f32 %v6125, %v6515
          %v6570 = vadd.f32 %v6126, %v6518
          %v6571 = vadd.f32 %v6127, %v6521
          %v6572 = vadd.f32 %v6128, %v6524
          %v6573 = vadd.f32 %v6129, %v6527
          %v6574 = vadd.f32 %v6130, %v6530
          %v6575 = vadd.f32 %v6131, %v6533
          %v6576 = vadd.f32 %v6132, %v6536
          %v6577 = vadd.f32 %v6133, %v6539
          %v6578 = vadd.f32 %v6134, %v6542
          %v6579 = vadd.f32 %v6135, %v6545
          %v6580 = vadd.f32 %v6136, %v6548
          %v6581 = vadd.f32 %v6137, %v6551
          %v6582 = vadd.f32 %v6138, %v6554
          %v6583 = vadd.f32 %v6139, %v6557
          %s6584 = scalar_lea.vmem %s0, 2800
          %v6585 = vld [vmem:[%s6584] sm:$0xff]
          %v6586 = vld [vmem:[%s6584 + $0x8] sm:$0xff]
          %v6587 = vld [vmem:[%s6584 + $0x10] sm:$0xff]
          %v6588 = vld [vmem:[%s6584 + $0x18] sm:$0xff]
          %v6589 = vld [vmem:[%s6584 + $0x20] sm:$0xff]
          %v6590 = vld [vmem:[%s6584 + $0x28] sm:$0xff]
          %v6591 = vld [vmem:[%s6584 + $0x30] sm:$0xff]
          %v6592 = vld [vmem:[%s6584 + $0x38] sm:$0xff]
          %v6593 = vld [vmem:[%s6584 + $0x40] sm:$0xff]
          %v6594 = vld [vmem:[%s6584 + $0x48] sm:$0xff]
          %v6595 = vld [vmem:[%s6584 + $0x50] sm:$0xff]
          %v6596 = vld [vmem:[%s6584 + $0x58] sm:$0xff]
          %v6597 = vld [vmem:[%s6584 + $0x60] sm:$0xff]
          %v6598 = vld [vmem:[%s6584 + $0x68] sm:$0xff]
          %v6599 = vld [vmem:[%s6584 + $0x70] sm:$0xff]
          %v6600 = vld [vmem:[%s6584 + $0x78] sm:$0xff]
          %v6601 = vld [vmem:[%s6584 + $0x80] sm:$0xff]
          %v6602 = vld [vmem:[%s6584 + $0x88] sm:$0xff]
          %v6603 = vld [vmem:[%s6584 + $0x90] sm:$0xff]
          %v6604 = vld [vmem:[%s6584 + $0x98] sm:$0xff]
          %v6605 = vld [vmem:[%s6584 + $0xa0] sm:$0xff]
          %v6606 = vld [vmem:[%s6584 + $0xa8] sm:$0xff]
          %v6607 = vld [vmem:[%s6584 + $0xb0] sm:$0xff]
          %v6608 = vld [vmem:[%s6584 + $0xb8] sm:$0xff]
          %v6609 = vld [vmem:[%s6584 + $0xc0] sm:$0xf]
          %v6611 = vsel %vm443, %v6585, 0
          %v6614 = vsel %vm443, %v6586, 0
          %v6617 = vsel %vm443, %v6587, 0
          %v6620 = vsel %vm443, %v6588, 0
          %v6623 = vsel %vm443, %v6589, 0
          %v6626 = vsel %vm443, %v6590, 0
          %v6629 = vsel %vm443, %v6591, 0
          %v6632 = vsel %vm443, %v6592, 0
          %v6635 = vsel %vm443, %v6593, 0
          %v6638 = vsel %vm443, %v6594, 0
          %v6641 = vsel %vm443, %v6595, 0
          %v6644 = vsel %vm443, %v6596, 0
          %v6647 = vsel %vm443, %v6597, 0
          %v6650 = vsel %vm443, %v6598, 0
          %v6653 = vsel %vm443, %v6599, 0
          %v6656 = vsel %vm443, %v6600, 0
          %v6659 = vsel %vm443, %v6601, 0
          %v6662 = vsel %vm443, %v6602, 0
          %v6665 = vsel %vm443, %v6603, 0
          %v6668 = vsel %vm443, %v6604, 0
          %v6671 = vsel %vm443, %v6605, 0
          %v6674 = vsel %vm443, %v6606, 0
          %v6677 = vsel %vm443, %v6607, 0
          %v6680 = vsel %vm443, %v6608, 0
          %v6683 = vsel %vm443, %v6609, 0
          %6685 = vmatpush.msra.mxu0 0.0
          %6686 = vmatpush.msra.mxu0 0.0
          %6687 = vmatpush.msra.mxu0 0.0
          %6688 = vmatpush.msra.mxu0 0.0
          %6689 = vmatpush.msra.mxu0 0.0
          %6690 = vmatpush.msra.mxu0 0.0
          %6691 = vmatpush.msra.mxu0 0.0
          %6692 = vmatpush.msra.mxu0 0.0
          %6693 = vmatpush.msra.mxu0 0.0
          %6694 = vmatpush.msra.mxu0 0.0
          %6695 = vmatpush.msra.mxu0 0.0
          %6696 = vmatpush.msra.mxu0 0.0
          %6697 = vmatpush.msra.mxu0 0.0
          %6698 = vmatpush.msra.mxu0 %v442
          %6699 = vmatpush.msra.mxu0 %v441
          %6700 = vmatpush.msra.mxu0 %v440
          %6701 = vmatmul.f32.gmra.mxu0 %v6611
          %v6702 = vpop.f32.mrf.mxu0
          %v6703 = vadd.f32 0.0, %v6702
          %6704 = vmatmul.f32.gmra.mxu0 %v6614
          %v6705 = vpop.f32.mrf.mxu0
          %v6706 = vadd.f32 0.0, %v6705
          %6707 = vmatmul.f32.gmra.mxu0 %v6617
          %v6708 = vpop.f32.mrf.mxu0
          %v6709 = vadd.f32 0.0, %v6708
          %6710 = vmatmul.f32.gmra.mxu0 %v6620
          %v6711 = vpop.f32.mrf.mxu0
          %v6712 = vadd.f32 0.0, %v6711
          %6713 = vmatmul.f32.gmra.mxu0 %v6623
          %v6714 = vpop.f32.mrf.mxu0
          %v6715 = vadd.f32 0.0, %v6714
          %6716 = vmatmul.f32.gmra.mxu0 %v6626
          %v6717 = vpop.f32.mrf.mxu0
          %v6718 = vadd.f32 0.0, %v6717
          %6719 = vmatmul.f32.gmra.mxu0 %v6629
          %v6720 = vpop.f32.mrf.mxu0
          %v6721 = vadd.f32 0.0, %v6720
          %6722 = vmatmul.f32.gmra.mxu0 %v6632
          %v6723 = vpop.f32.mrf.mxu0
          %v6724 = vadd.f32 0.0, %v6723
          %6725 = vmatmul.f32.gmra.mxu0 %v6635
          %v6726 = vpop.f32.mrf.mxu0
          %v6727 = vadd.f32 0.0, %v6726
          %6728 = vmatmul.f32.gmra.mxu0 %v6638
          %v6729 = vpop.f32.mrf.mxu0
          %v6730 = vadd.f32 0.0, %v6729
          %6731 = vmatmul.f32.gmra.mxu0 %v6641
          %v6732 = vpop.f32.mrf.mxu0
          %v6733 = vadd.f32 0.0, %v6732
          %6734 = vmatmul.f32.gmra.mxu0 %v6644
          %v6735 = vpop.f32.mrf.mxu0
          %v6736 = vadd.f32 0.0, %v6735
          %6737 = vmatmul.f32.gmra.mxu0 %v6647
          %v6738 = vpop.f32.mrf.mxu0
          %v6739 = vadd.f32 0.0, %v6738
          %6740 = vmatmul.f32.gmra.mxu0 %v6650
          %v6741 = vpop.f32.mrf.mxu0
          %v6742 = vadd.f32 0.0, %v6741
          %6743 = vmatmul.f32.gmra.mxu0 %v6653
          %v6744 = vpop.f32.mrf.mxu0
          %v6745 = vadd.f32 0.0, %v6744
          %6746 = vmatmul.f32.gmra.mxu0 %v6656
          %v6747 = vpop.f32.mrf.mxu0
          %v6748 = vadd.f32 0.0, %v6747
          %6749 = vmatmul.f32.gmra.mxu0 %v6659
          %v6750 = vpop.f32.mrf.mxu0
          %v6751 = vadd.f32 0.0, %v6750
          %6752 = vmatmul.f32.gmra.mxu0 %v6662
          %v6753 = vpop.f32.mrf.mxu0
          %v6754 = vadd.f32 0.0, %v6753
          %6755 = vmatmul.f32.gmra.mxu0 %v6665
          %v6756 = vpop.f32.mrf.mxu0
          %v6757 = vadd.f32 0.0, %v6756
          %6758 = vmatmul.f32.gmra.mxu0 %v6668
          %v6759 = vpop.f32.mrf.mxu0
          %v6760 = vadd.f32 0.0, %v6759
          %6761 = vmatmul.f32.gmra.mxu0 %v6671
          %v6762 = vpop.f32.mrf.mxu0
          %v6763 = vadd.f32 0.0, %v6762
          %6764 = vmatmul.f32.gmra.mxu0 %v6674
          %v6765 = vpop.f32.mrf.mxu0
          %v6766 = vadd.f32 0.0, %v6765
          %6767 = vmatmul.f32.gmra.mxu0 %v6677
          %v6768 = vpop.f32.mrf.mxu0
          %v6769 = vadd.f32 0.0, %v6768
          %6770 = vmatmul.f32.gmra.mxu0 %v6680
          %v6771 = vpop.f32.mrf.mxu0
          %v6772 = vadd.f32 0.0, %v6771
          %6773 = vmatmul.f32.gmra.mxu0 %v6683
          %v6774 = vpop.f32.mrf.mxu0
          %v6775 = vadd.f32 0.0, %v6774
          %6776 = vdwg.mxu0
          %v6777 = vmul.f32 %v6703, 0.2
          %v6778 = vmul.f32 %v6706, 0.2
          %v6779 = vmul.f32 %v6709, 0.2
          %v6780 = vmul.f32 %v6712, 0.2
          %v6781 = vmul.f32 %v6715, 0.2
          %v6782 = vmul.f32 %v6718, 0.2
          %v6783 = vmul.f32 %v6721, 0.2
          %v6784 = vmul.f32 %v6724, 0.2
          %v6785 = vmul.f32 %v6727, 0.2
          %v6786 = vmul.f32 %v6730, 0.2
          %v6787 = vmul.f32 %v6733, 0.2
          %v6788 = vmul.f32 %v6736, 0.2
          %v6789 = vmul.f32 %v6739, 0.2
          %v6790 = vmul.f32 %v6742, 0.2
          %v6791 = vmul.f32 %v6745, 0.2
          %v6792 = vmul.f32 %v6748, 0.2
          %v6793 = vmul.f32 %v6751, 0.2
          %v6794 = vmul.f32 %v6754, 0.2
          %v6795 = vmul.f32 %v6757, 0.2
          %v6796 = vmul.f32 %v6760, 0.2
          %v6797 = vmul.f32 %v6763, 0.2
          %v6798 = vmul.f32 %v6766, 0.2
          %v6799 = vmul.f32 %v6769, 0.2
          %v6800 = vmul.f32 %v6772, 0.2
          %v6801 = vmul.f32 %v6775, 0.2
          %v6802 = vmax.f32 %v6703, %v6777
          %v6803 = vmax.f32 %v6706, %v6778
          %v6804 = vmax.f32 %v6709, %v6779
          %v6805 = vmax.f32 %v6712, %v6780
          %v6806 = vmax.f32 %v6715, %v6781
          %v6807 = vmax.f32 %v6718, %v6782
          %v6808 = vmax.f32 %v6721, %v6783
          %v6809 = vmax.f32 %v6724, %v6784
          %v6810 = vmax.f32 %v6727, %v6785
          %v6811 = vmax.f32 %v6730, %v6786
          %v6812 = vmax.f32 %v6733, %v6787
          %v6813 = vmax.f32 %v6736, %v6788
          %v6814 = vmax.f32 %v6739, %v6789
          %v6815 = vmax.f32 %v6742, %v6790
          %v6816 = vmax.f32 %v6745, %v6791
          %v6817 = vmax.f32 %v6748, %v6792
          %v6818 = vmax.f32 %v6751, %v6793
          %v6819 = vmax.f32 %v6754, %v6794
          %v6820 = vmax.f32 %v6757, %v6795
          %v6821 = vmax.f32 %v6760, %v6796
          %v6822 = vmax.f32 %v6763, %v6797
          %v6823 = vmax.f32 %v6766, %v6798
          %v6824 = vmax.f32 %v6769, %v6799
          %v6825 = vmax.f32 %v6772, %v6800
          %v6826 = vmax.f32 %v6775, %v6801
          %s6827 = scalar_lea.vmem %s2, 896
          %v6828 = vld [vmem:[%s6827] sm:$0xff]
          %v6829 = vld [vmem:[%s6827 + $0x8] sm:$0xff]
          %v6830 = vld [vmem:[%s6827 + $0x10] sm:$0xff]
          %v6831 = vld [vmem:[%s6827 + $0x18] sm:$0xff]
          %v6832 = vld [vmem:[%s6827 + $0x20] sm:$0xff]
          %v6833 = vld [vmem:[%s6827 + $0x28] sm:$0xff]
          %v6834 = vld [vmem:[%s6827 + $0x30] sm:$0xff]
          %v6835 = vld [vmem:[%s6827 + $0x38] sm:$0xff]
          %v6837 = vsel %vm921, %v6802, 0
          %v6840 = vsel %vm921, %v6803, 0
          %v6843 = vsel %vm921, %v6804, 0
          %v6846 = vsel %vm921, %v6805, 0
          %v6849 = vsel %vm921, %v6806, 0
          %v6852 = vsel %vm921, %v6807, 0
          %v6855 = vsel %vm921, %v6808, 0
          %v6858 = vsel %vm921, %v6809, 0
          %v6861 = vsel %vm921, %v6810, 0
          %v6864 = vsel %vm921, %v6811, 0
          %v6867 = vsel %vm921, %v6812, 0
          %v6870 = vsel %vm921, %v6813, 0
          %v6873 = vsel %vm921, %v6814, 0
          %v6876 = vsel %vm921, %v6815, 0
          %v6879 = vsel %vm921, %v6816, 0
          %v6882 = vsel %vm921, %v6817, 0
          %v6885 = vsel %vm921, %v6818, 0
          %v6888 = vsel %vm921, %v6819, 0
          %v6891 = vsel %vm921, %v6820, 0
          %v6894 = vsel %vm921, %v6821, 0
          %v6897 = vsel %vm921, %v6822, 0
          %v6900 = vsel %vm921, %v6823, 0
          %v6903 = vsel %vm921, %v6824, 0
          %v6906 = vsel %vm921, %v6825, 0
          %v6909 = vsel %vm921, %v6826, 0
          %6911 = vmatpush.msra.mxu0 0.0
          %6912 = vmatpush.msra.mxu0 0.0
          %6913 = vmatpush.msra.mxu0 0.0
          %6914 = vmatpush.msra.mxu0 0.0
          %6915 = vmatpush.msra.mxu0 0.0
          %6916 = vmatpush.msra.mxu0 0.0
          %6917 = vmatpush.msra.mxu0 0.0
          %6918 = vmatpush.msra.mxu0 0.0
          %6919 = vmatpush.msra.mxu0 %v6835
          %6920 = vmatpush.msra.mxu0 %v6834
          %6921 = vmatpush.msra.mxu0 %v6833
          %6922 = vmatpush.msra.mxu0 %v6832
          %6923 = vmatpush.msra.mxu0 %v6831
          %6924 = vmatpush.msra.mxu0 %v6830
          %6925 = vmatpush.msra.mxu0 %v6829
          %6926 = vmatpush.msra.mxu0 %v6828
          %6927 = vmatmul.f32.gmra.mxu0 %v6837
          %v6928 = vpop.f32.mrf.mxu0
          %v6929 = vadd.f32 0.0, %v6928
          %6930 = vmatmul.f32.gmra.mxu0 %v6840
          %v6931 = vpop.f32.mrf.mxu0
          %v6932 = vadd.f32 0.0, %v6931
          %6933 = vmatmul.f32.gmra.mxu0 %v6843
          %v6934 = vpop.f32.mrf.mxu0
          %v6935 = vadd.f32 0.0, %v6934
          %6936 = vmatmul.f32.gmra.mxu0 %v6846
          %v6937 = vpop.f32.mrf.mxu0
          %v6938 = vadd.f32 0.0, %v6937
          %6939 = vmatmul.f32.gmra.mxu0 %v6849
          %v6940 = vpop.f32.mrf.mxu0
          %v6941 = vadd.f32 0.0, %v6940
          %6942 = vmatmul.f32.gmra.mxu0 %v6852
          %v6943 = vpop.f32.mrf.mxu0
          %v6944 = vadd.f32 0.0, %v6943
          %6945 = vmatmul.f32.gmra.mxu0 %v6855
          %v6946 = vpop.f32.mrf.mxu0
          %v6947 = vadd.f32 0.0, %v6946
          %6948 = vmatmul.f32.gmra.mxu0 %v6858
          %v6949 = vpop.f32.mrf.mxu0
          %v6950 = vadd.f32 0.0, %v6949
          %6951 = vmatmul.f32.gmra.mxu0 %v6861
          %v6952 = vpop.f32.mrf.mxu0
          %v6953 = vadd.f32 0.0, %v6952
          %6954 = vmatmul.f32.gmra.mxu0 %v6864
          %v6955 = vpop.f32.mrf.mxu0
          %v6956 = vadd.f32 0.0, %v6955
          %6957 = vmatmul.f32.gmra.mxu0 %v6867
          %v6958 = vpop.f32.mrf.mxu0
          %v6959 = vadd.f32 0.0, %v6958
          %6960 = vmatmul.f32.gmra.mxu0 %v6870
          %v6961 = vpop.f32.mrf.mxu0
          %v6962 = vadd.f32 0.0, %v6961
          %6963 = vmatmul.f32.gmra.mxu0 %v6873
          %v6964 = vpop.f32.mrf.mxu0
          %v6965 = vadd.f32 0.0, %v6964
          %6966 = vmatmul.f32.gmra.mxu0 %v6876
          %v6967 = vpop.f32.mrf.mxu0
          %v6968 = vadd.f32 0.0, %v6967
          %6969 = vmatmul.f32.gmra.mxu0 %v6879
          %v6970 = vpop.f32.mrf.mxu0
          %v6971 = vadd.f32 0.0, %v6970
          %6972 = vmatmul.f32.gmra.mxu0 %v6882
          %v6973 = vpop.f32.mrf.mxu0
          %v6974 = vadd.f32 0.0, %v6973
          %6975 = vmatmul.f32.gmra.mxu0 %v6885
          %v6976 = vpop.f32.mrf.mxu0
          %v6977 = vadd.f32 0.0, %v6976
          %6978 = vmatmul.f32.gmra.mxu0 %v6888
          %v6979 = vpop.f32.mrf.mxu0
          %v6980 = vadd.f32 0.0, %v6979
          %6981 = vmatmul.f32.gmra.mxu0 %v6891
          %v6982 = vpop.f32.mrf.mxu0
          %v6983 = vadd.f32 0.0, %v6982
          %6984 = vmatmul.f32.gmra.mxu0 %v6894
          %v6985 = vpop.f32.mrf.mxu0
          %v6986 = vadd.f32 0.0, %v6985
          %6987 = vmatmul.f32.gmra.mxu0 %v6897
          %v6988 = vpop.f32.mrf.mxu0
          %v6989 = vadd.f32 0.0, %v6988
          %6990 = vmatmul.f32.gmra.mxu0 %v6900
          %v6991 = vpop.f32.mrf.mxu0
          %v6992 = vadd.f32 0.0, %v6991
          %6993 = vmatmul.f32.gmra.mxu0 %v6903
          %v6994 = vpop.f32.mrf.mxu0
          %v6995 = vadd.f32 0.0, %v6994
          %6996 = vmatmul.f32.gmra.mxu0 %v6906
          %v6997 = vpop.f32.mrf.mxu0
          %v6998 = vadd.f32 0.0, %v6997
          %6999 = vmatmul.f32.gmra.mxu0 %v6909
          %v7000 = vpop.f32.mrf.mxu0
          %v7001 = vadd.f32 0.0, %v7000
          %7002 = vdwg.mxu0
          %v7003 = vadd.f32 %v6559, %v6929
          %v7004 = vadd.f32 %v6560, %v6932
          %v7005 = vadd.f32 %v6561, %v6935
          %v7006 = vadd.f32 %v6562, %v6938
          %v7007 = vadd.f32 %v6563, %v6941
          %v7008 = vadd.f32 %v6564, %v6944
          %v7009 = vadd.f32 %v6565, %v6947
          %v7010 = vadd.f32 %v6566, %v6950
          %v7011 = vadd.f32 %v6567, %v6953
          %v7012 = vadd.f32 %v6568, %v6956
          %v7013 = vadd.f32 %v6569, %v6959
          %v7014 = vadd.f32 %v6570, %v6962
          %v7015 = vadd.f32 %v6571, %v6965
          %v7016 = vadd.f32 %v6572, %v6968
          %v7017 = vadd.f32 %v6573, %v6971
          %v7018 = vadd.f32 %v6574, %v6974
          %v7019 = vadd.f32 %v6575, %v6977
          %v7020 = vadd.f32 %v6576, %v6980
          %v7021 = vadd.f32 %v6577, %v6983
          %v7022 = vadd.f32 %v6578, %v6986
          %v7023 = vadd.f32 %v6579, %v6989
          %v7024 = vadd.f32 %v6580, %v6992
          %v7025 = vadd.f32 %v6581, %v6995
          %v7026 = vadd.f32 %v6582, %v6998
          %v7027 = vadd.f32 %v6583, %v7001
          %s7028 = scalar_lea.vmem %s0, 3000
          %v7029 = vld [vmem:[%s7028] sm:$0xff]
          %v7030 = vld [vmem:[%s7028 + $0x8] sm:$0xff]
          %v7031 = vld [vmem:[%s7028 + $0x10] sm:$0xff]
          %v7032 = vld [vmem:[%s7028 + $0x18] sm:$0xff]
          %v7033 = vld [vmem:[%s7028 + $0x20] sm:$0xff]
          %v7034 = vld [vmem:[%s7028 + $0x28] sm:$0xff]
          %v7035 = vld [vmem:[%s7028 + $0x30] sm:$0xff]
          %v7036 = vld [vmem:[%s7028 + $0x38] sm:$0xff]
          %v7037 = vld [vmem:[%s7028 + $0x40] sm:$0xff]
          %v7038 = vld [vmem:[%s7028 + $0x48] sm:$0xff]
          %v7039 = vld [vmem:[%s7028 + $0x50] sm:$0xff]
          %v7040 = vld [vmem:[%s7028 + $0x58] sm:$0xff]
          %v7041 = vld [vmem:[%s7028 + $0x60] sm:$0xff]
          %v7042 = vld [vmem:[%s7028 + $0x68] sm:$0xff]
          %v7043 = vld [vmem:[%s7028 + $0x70] sm:$0xff]
          %v7044 = vld [vmem:[%s7028 + $0x78] sm:$0xff]
          %v7045 = vld [vmem:[%s7028 + $0x80] sm:$0xff]
          %v7046 = vld [vmem:[%s7028 + $0x88] sm:$0xff]
          %v7047 = vld [vmem:[%s7028 + $0x90] sm:$0xff]
          %v7048 = vld [vmem:[%s7028 + $0x98] sm:$0xff]
          %v7049 = vld [vmem:[%s7028 + $0xa0] sm:$0xff]
          %v7050 = vld [vmem:[%s7028 + $0xa8] sm:$0xff]
          %v7051 = vld [vmem:[%s7028 + $0xb0] sm:$0xff]
          %v7052 = vld [vmem:[%s7028 + $0xb8] sm:$0xff]
          %v7053 = vld [vmem:[%s7028 + $0xc0] sm:$0xf]
          %v7055 = vsel %vm443, %v7029, 0
          %v7058 = vsel %vm443, %v7030, 0
          %v7061 = vsel %vm443, %v7031, 0
          %v7064 = vsel %vm443, %v7032, 0
          %v7067 = vsel %vm443, %v7033, 0
          %v7070 = vsel %vm443, %v7034, 0
          %v7073 = vsel %vm443, %v7035, 0
          %v7076 = vsel %vm443, %v7036, 0
          %v7079 = vsel %vm443, %v7037, 0
          %v7082 = vsel %vm443, %v7038, 0
          %v7085 = vsel %vm443, %v7039, 0
          %v7088 = vsel %vm443, %v7040, 0
          %v7091 = vsel %vm443, %v7041, 0
          %v7094 = vsel %vm443, %v7042, 0
          %v7097 = vsel %vm443, %v7043, 0
          %v7100 = vsel %vm443, %v7044, 0
          %v7103 = vsel %vm443, %v7045, 0
          %v7106 = vsel %vm443, %v7046, 0
          %v7109 = vsel %vm443, %v7047, 0
          %v7112 = vsel %vm443, %v7048, 0
          %v7115 = vsel %vm443, %v7049, 0
          %v7118 = vsel %vm443, %v7050, 0
          %v7121 = vsel %vm443, %v7051, 0
          %v7124 = vsel %vm443, %v7052, 0
          %v7127 = vsel %vm443, %v7053, 0
          %7129 = vmatpush.msra.mxu0 0.0
          %7130 = vmatpush.msra.mxu0 0.0
          %7131 = vmatpush.msra.mxu0 0.0
          %7132 = vmatpush.msra.mxu0 0.0
          %7133 = vmatpush.msra.mxu0 0.0
          %7134 = vmatpush.msra.mxu0 0.0
          %7135 = vmatpush.msra.mxu0 0.0
          %7136 = vmatpush.msra.mxu0 0.0
          %7137 = vmatpush.msra.mxu0 0.0
          %7138 = vmatpush.msra.mxu0 0.0
          %7139 = vmatpush.msra.mxu0 0.0
          %7140 = vmatpush.msra.mxu0 0.0
          %7141 = vmatpush.msra.mxu0 0.0
          %7142 = vmatpush.msra.mxu0 %v442
          %7143 = vmatpush.msra.mxu0 %v441
          %7144 = vmatpush.msra.mxu0 %v440
          %7145 = vmatmul.f32.gmra.mxu0 %v7055
          %v7146 = vpop.f32.mrf.mxu0
          %v7147 = vadd.f32 0.0, %v7146
          %7148 = vmatmul.f32.gmra.mxu0 %v7058
          %v7149 = vpop.f32.mrf.mxu0
          %v7150 = vadd.f32 0.0, %v7149
          %7151 = vmatmul.f32.gmra.mxu0 %v7061
          %v7152 = vpop.f32.mrf.mxu0
          %v7153 = vadd.f32 0.0, %v7152
          %7154 = vmatmul.f32.gmra.mxu0 %v7064
          %v7155 = vpop.f32.mrf.mxu0
          %v7156 = vadd.f32 0.0, %v7155
          %7157 = vmatmul.f32.gmra.mxu0 %v7067
          %v7158 = vpop.f32.mrf.mxu0
          %v7159 = vadd.f32 0.0, %v7158
          %7160 = vmatmul.f32.gmra.mxu0 %v7070
          %v7161 = vpop.f32.mrf.mxu0
          %v7162 = vadd.f32 0.0, %v7161
          %7163 = vmatmul.f32.gmra.mxu0 %v7073
          %v7164 = vpop.f32.mrf.mxu0
          %v7165 = vadd.f32 0.0, %v7164
          %7166 = vmatmul.f32.gmra.mxu0 %v7076
          %v7167 = vpop.f32.mrf.mxu0
          %v7168 = vadd.f32 0.0, %v7167
          %7169 = vmatmul.f32.gmra.mxu0 %v7079
          %v7170 = vpop.f32.mrf.mxu0
          %v7171 = vadd.f32 0.0, %v7170
          %7172 = vmatmul.f32.gmra.mxu0 %v7082
          %v7173 = vpop.f32.mrf.mxu0
          %v7174 = vadd.f32 0.0, %v7173
          %7175 = vmatmul.f32.gmra.mxu0 %v7085
          %v7176 = vpop.f32.mrf.mxu0
          %v7177 = vadd.f32 0.0, %v7176
          %7178 = vmatmul.f32.gmra.mxu0 %v7088
          %v7179 = vpop.f32.mrf.mxu0
          %v7180 = vadd.f32 0.0, %v7179
          %7181 = vmatmul.f32.gmra.mxu0 %v7091
          %v7182 = vpop.f32.mrf.mxu0
          %v7183 = vadd.f32 0.0, %v7182
          %7184 = vmatmul.f32.gmra.mxu0 %v7094
          %v7185 = vpop.f32.mrf.mxu0
          %v7186 = vadd.f32 0.0, %v7185
          %7187 = vmatmul.f32.gmra.mxu0 %v7097
          %v7188 = vpop.f32.mrf.mxu0
          %v7189 = vadd.f32 0.0, %v7188
          %7190 = vmatmul.f32.gmra.mxu0 %v7100
          %v7191 = vpop.f32.mrf.mxu0
          %v7192 = vadd.f32 0.0, %v7191
          %7193 = vmatmul.f32.gmra.mxu0 %v7103
          %v7194 = vpop.f32.mrf.mxu0
          %v7195 = vadd.f32 0.0, %v7194
          %7196 = vmatmul.f32.gmra.mxu0 %v7106
          %v7197 = vpop.f32.mrf.mxu0
          %v7198 = vadd.f32 0.0, %v7197
          %7199 = vmatmul.f32.gmra.mxu0 %v7109
          %v7200 = vpop.f32.mrf.mxu0
          %v7201 = vadd.f32 0.0, %v7200
          %7202 = vmatmul.f32.gmra.mxu0 %v7112
          %v7203 = vpop.f32.mrf.mxu0
          %v7204 = vadd.f32 0.0, %v7203
          %7205 = vmatmul.f32.gmra.mxu0 %v7115
          %v7206 = vpop.f32.mrf.mxu0
          %v7207 = vadd.f32 0.0, %v7206
          %7208 = vmatmul.f32.gmra.mxu0 %v7118
          %v7209 = vpop.f32.mrf.mxu0
          %v7210 = vadd.f32 0.0, %v7209
          %7211 = vmatmul.f32.gmra.mxu0 %v7121
          %v7212 = vpop.f32.mrf.mxu0
          %v7213 = vadd.f32 0.0, %v7212
          %7214 = vmatmul.f32.gmra.mxu0 %v7124
          %v7215 = vpop.f32.mrf.mxu0
          %v7216 = vadd.f32 0.0, %v7215
          %7217 = vmatmul.f32.gmra.mxu0 %v7127
          %v7218 = vpop.f32.mrf.mxu0
          %v7219 = vadd.f32 0.0, %v7218
          %7220 = vdwg.mxu0
          %v7221 = vmul.f32 %v7147, 0.2
          %v7222 = vmul.f32 %v7150, 0.2
          %v7223 = vmul.f32 %v7153, 0.2
          %v7224 = vmul.f32 %v7156, 0.2
          %v7225 = vmul.f32 %v7159, 0.2
          %v7226 = vmul.f32 %v7162, 0.2
          %v7227 = vmul.f32 %v7165, 0.2
          %v7228 = vmul.f32 %v7168, 0.2
          %v7229 = vmul.f32 %v7171, 0.2
          %v7230 = vmul.f32 %v7174, 0.2
          %v7231 = vmul.f32 %v7177, 0.2
          %v7232 = vmul.f32 %v7180, 0.2
          %v7233 = vmul.f32 %v7183, 0.2
          %v7234 = vmul.f32 %v7186, 0.2
          %v7235 = vmul.f32 %v7189, 0.2
          %v7236 = vmul.f32 %v7192, 0.2
          %v7237 = vmul.f32 %v7195, 0.2
          %v7238 = vmul.f32 %v7198, 0.2
          %v7239 = vmul.f32 %v7201, 0.2
          %v7240 = vmul.f32 %v7204, 0.2
          %v7241 = vmul.f32 %v7207, 0.2
          %v7242 = vmul.f32 %v7210, 0.2
          %v7243 = vmul.f32 %v7213, 0.2
          %v7244 = vmul.f32 %v7216, 0.2
          %v7245 = vmul.f32 %v7219, 0.2
          %v7246 = vmax.f32 %v7147, %v7221
          %v7247 = vmax.f32 %v7150, %v7222
          %v7248 = vmax.f32 %v7153, %v7223
          %v7249 = vmax.f32 %v7156, %v7224
          %v7250 = vmax.f32 %v7159, %v7225
          %v7251 = vmax.f32 %v7162, %v7226
          %v7252 = vmax.f32 %v7165, %v7227
          %v7253 = vmax.f32 %v7168, %v7228
          %v7254 = vmax.f32 %v7171, %v7229
          %v7255 = vmax.f32 %v7174, %v7230
          %v7256 = vmax.f32 %v7177, %v7231
          %v7257 = vmax.f32 %v7180, %v7232
          %v7258 = vmax.f32 %v7183, %v7233
          %v7259 = vmax.f32 %v7186, %v7234
          %v7260 = vmax.f32 %v7189, %v7235
          %v7261 = vmax.f32 %v7192, %v7236
          %v7262 = vmax.f32 %v7195, %v7237
          %v7263 = vmax.f32 %v7198, %v7238
          %v7264 = vmax.f32 %v7201, %v7239
          %v7265 = vmax.f32 %v7204, %v7240
          %v7266 = vmax.f32 %v7207, %v7241
          %v7267 = vmax.f32 %v7210, %v7242
          %v7268 = vmax.f32 %v7213, %v7243
          %v7269 = vmax.f32 %v7216, %v7244
          %v7270 = vmax.f32 %v7219, %v7245
          %s7271 = scalar_lea.vmem %s2, 960
          %v7272 = vld [vmem:[%s7271] sm:$0xff]
          %v7273 = vld [vmem:[%s7271 + $0x8] sm:$0xff]
          %v7274 = vld [vmem:[%s7271 + $0x10] sm:$0xff]
          %v7275 = vld [vmem:[%s7271 + $0x18] sm:$0xff]
          %v7276 = vld [vmem:[%s7271 + $0x20] sm:$0xff]
          %v7277 = vld [vmem:[%s7271 + $0x28] sm:$0xff]
          %v7278 = vld [vmem:[%s7271 + $0x30] sm:$0xff]
          %v7279 = vld [vmem:[%s7271 + $0x38] sm:$0xff]
          %v7281 = vsel %vm921, %v7246, 0
          %v7284 = vsel %vm921, %v7247, 0
          %v7287 = vsel %vm921, %v7248, 0
          %v7290 = vsel %vm921, %v7249, 0
          %v7293 = vsel %vm921, %v7250, 0
          %v7296 = vsel %vm921, %v7251, 0
          %v7299 = vsel %vm921, %v7252, 0
          %v7302 = vsel %vm921, %v7253, 0
          %v7305 = vsel %vm921, %v7254, 0
          %v7308 = vsel %vm921, %v7255, 0
          %v7311 = vsel %vm921, %v7256, 0
          %v7314 = vsel %vm921, %v7257, 0
          %v7317 = vsel %vm921, %v7258, 0
          %v7320 = vsel %vm921, %v7259, 0
          %v7323 = vsel %vm921, %v7260, 0
          %v7326 = vsel %vm921, %v7261, 0
          %v7329 = vsel %vm921, %v7262, 0
          %v7332 = vsel %vm921, %v7263, 0
          %v7335 = vsel %vm921, %v7264, 0
          %v7338 = vsel %vm921, %v7265, 0
          %v7341 = vsel %vm921, %v7266, 0
          %v7344 = vsel %vm921, %v7267, 0
          %v7347 = vsel %vm921, %v7268, 0
          %v7350 = vsel %vm921, %v7269, 0
          %v7353 = vsel %vm921, %v7270, 0
          %7355 = vmatpush.msra.mxu0 0.0
          %7356 = vmatpush.msra.mxu0 0.0
          %7357 = vmatpush.msra.mxu0 0.0
          %7358 = vmatpush.msra.mxu0 0.0
          %7359 = vmatpush.msra.mxu0 0.0
          %7360 = vmatpush.msra.mxu0 0.0
          %7361 = vmatpush.msra.mxu0 0.0
          %7362 = vmatpush.msra.mxu0 0.0
          %7363 = vmatpush.msra.mxu0 %v7279
          %7364 = vmatpush.msra.mxu0 %v7278
          %7365 = vmatpush.msra.mxu0 %v7277
          %7366 = vmatpush.msra.mxu0 %v7276
          %7367 = vmatpush.msra.mxu0 %v7275
          %7368 = vmatpush.msra.mxu0 %v7274
          %7369 = vmatpush.msra.mxu0 %v7273
          %7370 = vmatpush.msra.mxu0 %v7272
          %7371 = vmatmul.f32.gmra.mxu0 %v7281
          %v7372 = vpop.f32.mrf.mxu0
          %v7373 = vadd.f32 0.0, %v7372
          %7374 = vmatmul.f32.gmra.mxu0 %v7284
          %v7375 = vpop.f32.mrf.mxu0
          %v7376 = vadd.f32 0.0, %v7375
          %7377 = vmatmul.f32.gmra.mxu0 %v7287
          %v7378 = vpop.f32.mrf.mxu0
          %v7379 = vadd.f32 0.0, %v7378
          %7380 = vmatmul.f32.gmra.mxu0 %v7290
          %v7381 = vpop.f32.mrf.mxu0
          %v7382 = vadd.f32 0.0, %v7381
          %7383 = vmatmul.f32.gmra.mxu0 %v7293
          %v7384 = vpop.f32.mrf.mxu0
          %v7385 = vadd.f32 0.0, %v7384
          %7386 = vmatmul.f32.gmra.mxu0 %v7296
          %v7387 = vpop.f32.mrf.mxu0
          %v7388 = vadd.f32 0.0, %v7387
          %7389 = vmatmul.f32.gmra.mxu0 %v7299
          %v7390 = vpop.f32.mrf.mxu0
          %v7391 = vadd.f32 0.0, %v7390
          %7392 = vmatmul.f32.gmra.mxu0 %v7302
          %v7393 = vpop.f32.mrf.mxu0
          %v7394 = vadd.f32 0.0, %v7393
          %7395 = vmatmul.f32.gmra.mxu0 %v7305
          %v7396 = vpop.f32.mrf.mxu0
          %v7397 = vadd.f32 0.0, %v7396
          %7398 = vmatmul.f32.gmra.mxu0 %v7308
          %v7399 = vpop.f32.mrf.mxu0
          %v7400 = vadd.f32 0.0, %v7399
          %7401 = vmatmul.f32.gmra.mxu0 %v7311
          %v7402 = vpop.f32.mrf.mxu0
          %v7403 = vadd.f32 0.0, %v7402
          %7404 = vmatmul.f32.gmra.mxu0 %v7314
          %v7405 = vpop.f32.mrf.mxu0
          %v7406 = vadd.f32 0.0, %v7405
          %7407 = vmatmul.f32.gmra.mxu0 %v7317
          %v7408 = vpop.f32.mrf.mxu0
          %v7409 = vadd.f32 0.0, %v7408
          %7410 = vmatmul.f32.gmra.mxu0 %v7320
          %v7411 = vpop.f32.mrf.mxu0
          %v7412 = vadd.f32 0.0, %v7411
          %7413 = vmatmul.f32.gmra.mxu0 %v7323
          %v7414 = vpop.f32.mrf.mxu0
          %v7415 = vadd.f32 0.0, %v7414
          %7416 = vmatmul.f32.gmra.mxu0 %v7326
          %v7417 = vpop.f32.mrf.mxu0
          %v7418 = vadd.f32 0.0, %v7417
          %7419 = vmatmul.f32.gmra.mxu0 %v7329
          %v7420 = vpop.f32.mrf.mxu0
          %v7421 = vadd.f32 0.0, %v7420
          %7422 = vmatmul.f32.gmra.mxu0 %v7332
          %v7423 = vpop.f32.mrf.mxu0
          %v7424 = vadd.f32 0.0, %v7423
          %7425 = vmatmul.f32.gmra.mxu0 %v7335
          %v7426 = vpop.f32.mrf.mxu0
          %v7427 = vadd.f32 0.0, %v7426
          %7428 = vmatmul.f32.gmra.mxu0 %v7338
          %v7429 = vpop.f32.mrf.mxu0
          %v7430 = vadd.f32 0.0, %v7429
          %7431 = vmatmul.f32.gmra.mxu0 %v7341
          %v7432 = vpop.f32.mrf.mxu0
          %v7433 = vadd.f32 0.0, %v7432
          %7434 = vmatmul.f32.gmra.mxu0 %v7344
          %v7435 = vpop.f32.mrf.mxu0
          %v7436 = vadd.f32 0.0, %v7435
          %7437 = vmatmul.f32.gmra.mxu0 %v7347
          %v7438 = vpop.f32.mrf.mxu0
          %v7439 = vadd.f32 0.0, %v7438
          %7440 = vmatmul.f32.gmra.mxu0 %v7350
          %v7441 = vpop.f32.mrf.mxu0
          %v7442 = vadd.f32 0.0, %v7441
          %7443 = vmatmul.f32.gmra.mxu0 %v7353
          %v7444 = vpop.f32.mrf.mxu0
          %v7445 = vadd.f32 0.0, %v7444
          %7446 = vdwg.mxu0
          %v7447 = vadd.f32 %v7003, %v7373
          %v7448 = vadd.f32 %v7004, %v7376
          %v7449 = vadd.f32 %v7005, %v7379
          %v7450 = vadd.f32 %v7006, %v7382
          %v7451 = vadd.f32 %v7007, %v7385
          %v7452 = vadd.f32 %v7008, %v7388
          %v7453 = vadd.f32 %v7009, %v7391
          %v7454 = vadd.f32 %v7010, %v7394
          %v7455 = vadd.f32 %v7011, %v7397
          %v7456 = vadd.f32 %v7012, %v7400
          %v7457 = vadd.f32 %v7013, %v7403
          %v7458 = vadd.f32 %v7014, %v7406
          %v7459 = vadd.f32 %v7015, %v7409
          %v7460 = vadd.f32 %v7016, %v7412
          %v7461 = vadd.f32 %v7017, %v7415
          %v7462 = vadd.f32 %v7018, %v7418
          %v7463 = vadd.f32 %v7019, %v7421
          %v7464 = vadd.f32 %v7020, %v7424
          %v7465 = vadd.f32 %v7021, %v7427
          %v7466 = vadd.f32 %v7022, %v7430
          %v7467 = vadd.f32 %v7023, %v7433
          %v7468 = vadd.f32 %v7024, %v7436
          %v7469 = vadd.f32 %v7025, %v7439
          %v7470 = vadd.f32 %v7026, %v7442
          %v7471 = vadd.f32 %v7027, %v7445
          %v7472 = vld [vmem:[%s3] sm:$0x1]
          %v7474 = vperm.slane %v7472, 0
          %v7476 = vadd.f32 %v7447, %v7474
          %v7477 = vadd.f32 %v7448, %v7474
          %v7478 = vadd.f32 %v7449, %v7474
          %v7479 = vadd.f32 %v7450, %v7474
          %v7480 = vadd.f32 %v7451, %v7474
          %v7481 = vadd.f32 %v7452, %v7474
          %v7482 = vadd.f32 %v7453, %v7474
          %v7483 = vadd.f32 %v7454, %v7474
          %v7484 = vadd.f32 %v7455, %v7474
          %v7485 = vadd.f32 %v7456, %v7474
          %v7486 = vadd.f32 %v7457, %v7474
          %v7487 = vadd.f32 %v7458, %v7474
          %v7488 = vadd.f32 %v7459, %v7474
          %v7489 = vadd.f32 %v7460, %v7474
          %v7490 = vadd.f32 %v7461, %v7474
          %v7491 = vadd.f32 %v7462, %v7474
          %v7492 = vadd.f32 %v7463, %v7474
          %v7493 = vadd.f32 %v7464, %v7474
          %v7494 = vadd.f32 %v7465, %v7474
          %v7495 = vadd.f32 %v7466, %v7474
          %v7496 = vadd.f32 %v7467, %v7474
          %v7497 = vadd.f32 %v7468, %v7474
          %v7498 = vadd.f32 %v7469, %v7474
          %v7499 = vadd.f32 %v7470, %v7474
          %v7500 = vadd.f32 %v7471, %v7474
          %v7501 = vadd.f32 %v7476, %v7477
          %v7502 = vadd.f32 %v7501, %v7478
          %v7503 = vadd.f32 %v7502, %v7479
          %v7504 = vadd.f32 %v7503, %v7480
          %v7505 = vadd.f32 %v7504, %v7481
          %v7506 = vadd.f32 %v7505, %v7482
          %v7507 = vadd.f32 %v7506, %v7483
          %v7508 = vadd.f32 %v7507, %v7484
          %v7509 = vadd.f32 %v7508, %v7485
          %v7510 = vadd.f32 %v7509, %v7486
          %v7511 = vadd.f32 %v7510, %v7487
          %v7512 = vadd.f32 %v7511, %v7488
          %v7513 = vadd.f32 %v7512, %v7489
          %v7514 = vadd.f32 %v7513, %v7490
          %v7515 = vadd.f32 %v7514, %v7491
          %v7516 = vadd.f32 %v7515, %v7492
          %v7517 = vadd.f32 %v7516, %v7493
          %v7518 = vadd.f32 %v7517, %v7494
          %v7519 = vadd.f32 %v7518, %v7495
          %v7520 = vadd.f32 %v7519, %v7496
          %v7521 = vadd.f32 %v7520, %v7497
          %v7522 = vadd.f32 %v7521, %v7498
          %v7523 = vadd.f32 %v7522, %v7499
          %vm7524 = vcmask 1043456
          %v7525 = vsel %vm7524, %v7500, 0.0
          %v7526 = vadd.f32 %v7523, %v7525
          %v7527 = vrot.slane %v7526, 4
          %v7528 = vadd.f32 %v7526, %v7527
          %v7529 = vrot.slane %v7528, 2
          %v7530 = vadd.f32 %v7528, %v7529
          %v7531 = vrot.slane %v7530, 1
          %v7532 = vadd.f32 %v7530, %v7531
          %v7533 = vrcp.pop 196.0
          %v7534 = vmul.f32 196.0, %v7533
          %v7535 = vsub.f32 1.0, %v7534
          %v7536 = vmul.f32 %v7533, %v7535
          %v7537 = vadd.f32 %v7533, %v7536
          %vm7538 = vweird.f32 %v7533
          %v7539 = vsel %vm7538, %v7533, %v7537
          %v7540 = vmul.f32 %v7532, %v7539
          %v7541 = vsub.f32 %v7476, %v7540
          %v7542 = vsub.f32 %v7477, %v7540
          %v7543 = vsub.f32 %v7478, %v7540
          %v7544 = vsub.f32 %v7479, %v7540
          %v7545 = vsub.f32 %v7480, %v7540
          %v7546 = vsub.f32 %v7481, %v7540
          %v7547 = vsub.f32 %v7482, %v7540
          %v7548 = vsub.f32 %v7483, %v7540
          %v7549 = vsub.f32 %v7484, %v7540
          %v7550 = vsub.f32 %v7485, %v7540
          %v7551 = vsub.f32 %v7486, %v7540
          %v7552 = vsub.f32 %v7487, %v7540
          %v7553 = vsub.f32 %v7488, %v7540
          %v7554 = vsub.f32 %v7489, %v7540
          %v7555 = vsub.f32 %v7490, %v7540
          %v7556 = vsub.f32 %v7491, %v7540
          %v7557 = vsub.f32 %v7492, %v7540
          %v7558 = vsub.f32 %v7493, %v7540
          %v7559 = vsub.f32 %v7494, %v7540
          %v7560 = vsub.f32 %v7495, %v7540
          %v7561 = vsub.f32 %v7496, %v7540
          %v7562 = vsub.f32 %v7497, %v7540
          %v7563 = vsub.f32 %v7498, %v7540
          %v7564 = vsub.f32 %v7499, %v7540
          %v7565 = vsub.f32 %v7500, %v7540
          %v7566 = vmul.f32 %v7541, %v7541
          %v7567 = vmul.f32 %v7542, %v7542
          %v7568 = vmul.f32 %v7543, %v7543
          %v7569 = vmul.f32 %v7544, %v7544
          %v7570 = vmul.f32 %v7545, %v7545
          %v7571 = vmul.f32 %v7546, %v7546
          %v7572 = vmul.f32 %v7547, %v7547
          %v7573 = vmul.f32 %v7548, %v7548
          %v7574 = vmul.f32 %v7549, %v7549
          %v7575 = vmul.f32 %v7550, %v7550
          %v7576 = vmul.f32 %v7551, %v7551
          %v7577 = vmul.f32 %v7552, %v7552
          %v7578 = vmul.f32 %v7553, %v7553
          %v7579 = vmul.f32 %v7554, %v7554
          %v7580 = vmul.f32 %v7555, %v7555
          %v7581 = vmul.f32 %v7556, %v7556
          %v7582 = vmul.f32 %v7557, %v7557
          %v7583 = vmul.f32 %v7558, %v7558
          %v7584 = vmul.f32 %v7559, %v7559
          %v7585 = vmul.f32 %v7560, %v7560
          %v7586 = vmul.f32 %v7561, %v7561
          %v7587 = vmul.f32 %v7562, %v7562
          %v7588 = vmul.f32 %v7563, %v7563
          %v7589 = vmul.f32 %v7564, %v7564
          %v7590 = vmul.f32 %v7565, %v7565
          %v7591 = vadd.f32 %v7566, %v7567
          %v7592 = vadd.f32 %v7591, %v7568
          %v7593 = vadd.f32 %v7592, %v7569
          %v7594 = vadd.f32 %v7593, %v7570
          %v7595 = vadd.f32 %v7594, %v7571
          %v7596 = vadd.f32 %v7595, %v7572
          %v7597 = vadd.f32 %v7596, %v7573
          %v7598 = vadd.f32 %v7597, %v7574
          %v7599 = vadd.f32 %v7598, %v7575
          %v7600 = vadd.f32 %v7599, %v7576
          %v7601 = vadd.f32 %v7600, %v7577
          %v7602 = vadd.f32 %v7601, %v7578
          %v7603 = vadd.f32 %v7602, %v7579
          %v7604 = vadd.f32 %v7603, %v7580
          %v7605 = vadd.f32 %v7604, %v7581
          %v7606 = vadd.f32 %v7605, %v7582
          %v7607 = vadd.f32 %v7606, %v7583
          %v7608 = vadd.f32 %v7607, %v7584
          %v7609 = vadd.f32 %v7608, %v7585
          %v7610 = vadd.f32 %v7609, %v7586
          %v7611 = vadd.f32 %v7610, %v7587
          %v7612 = vadd.f32 %v7611, %v7588
          %v7613 = vadd.f32 %v7612, %v7589
          %v7614 = vsel %vm7524, %v7590, 0.0
          %v7615 = vadd.f32 %v7613, %v7614
          %v7616 = vrot.slane %v7615, 4
          %v7617 = vadd.f32 %v7615, %v7616
          %v7618 = vrot.slane %v7617, 2
          %v7619 = vadd.f32 %v7617, %v7618
          %v7620 = vrot.slane %v7619, 1
          %v7621 = vadd.f32 %v7619, %v7620
          %v7622 = vmul.f32 %v7621, %v7539
          %v7623 = vadd.f32 %v7622, 1e-05
          %v7624 = vrsqrt.pop %v7623
          %v7625 = vmul.f32 %v7624, %v7623
          %v7626 = vmul.f32 %v7625, %v7624
          %v7627 = vmul.f32 0.5, %v7626
          %v7628 = vsub.f32 1.5, %v7627
          %v7629 = vmul.f32 %v7624, %v7628
          %vm7630 = vweird.f32 %v7623
          %vm7631 = vweird.f32 %v7624
          %vm7632 = vmor %vm7630, %vm7631
          %v7633 = vsel %vm7632, %v7624, %v7629
          %v7634 = vmul.f32 %v7541, %v7633
          %v7635 = vmul.f32 %v7542, %v7633
          %v7636 = vmul.f32 %v7543, %v7633
          %v7637 = vmul.f32 %v7544, %v7633
          %v7638 = vmul.f32 %v7545, %v7633
          %v7639 = vmul.f32 %v7546, %v7633
          %v7640 = vmul.f32 %v7547, %v7633
          %v7641 = vmul.f32 %v7548, %v7633
          %v7642 = vmul.f32 %v7549, %v7633
          %v7643 = vmul.f32 %v7550, %v7633
          %v7644 = vmul.f32 %v7551, %v7633
          %v7645 = vmul.f32 %v7552, %v7633
          %v7646 = vmul.f32 %v7553, %v7633
          %v7647 = vmul.f32 %v7554, %v7633
          %v7648 = vmul.f32 %v7555, %v7633
          %v7649 = vmul.f32 %v7556, %v7633
          %v7650 = vmul.f32 %v7557, %v7633
          %v7651 = vmul.f32 %v7558, %v7633
          %v7652 = vmul.f32 %v7559, %v7633
          %v7653 = vmul.f32 %v7560, %v7633
          %v7654 = vmul.f32 %v7561, %v7633
          %v7655 = vmul.f32 %v7562, %v7633
          %v7656 = vmul.f32 %v7563, %v7633
          %v7657 = vmul.f32 %v7564, %v7633
          %v7658 = vmul.f32 %v7565, %v7633
          %v7659 = vld [vmem:[%s4] sm:$0x1]
          %v7661 = vperm.slane %v7659, 0
          %v7663 = vmul.f32 %v7634, %v7661
          %v7664 = vmul.f32 %v7635, %v7661
          %v7665 = vmul.f32 %v7636, %v7661
          %v7666 = vmul.f32 %v7637, %v7661
          %v7667 = vmul.f32 %v7638, %v7661
          %v7668 = vmul.f32 %v7639, %v7661
          %v7669 = vmul.f32 %v7640, %v7661
          %v7670 = vmul.f32 %v7641, %v7661
          %v7671 = vmul.f32 %v7642, %v7661
          %v7672 = vmul.f32 %v7643, %v7661
          %v7673 = vmul.f32 %v7644, %v7661
          %v7674 = vmul.f32 %v7645, %v7661
          %v7675 = vmul.f32 %v7646, %v7661
          %v7676 = vmul.f32 %v7647, %v7661
          %v7677 = vmul.f32 %v7648, %v7661
          %v7678 = vmul.f32 %v7649, %v7661
          %v7679 = vmul.f32 %v7650, %v7661
          %v7680 = vmul.f32 %v7651, %v7661
          %v7681 = vmul.f32 %v7652, %v7661
          %v7682 = vmul.f32 %v7653, %v7661
          %v7683 = vmul.f32 %v7654, %v7661
          %v7684 = vmul.f32 %v7655, %v7661
          %v7685 = vmul.f32 %v7656, %v7661
          %v7686 = vmul.f32 %v7657, %v7661
          %v7687 = vmul.f32 %v7658, %v7661
          %v7688 = vld [vmem:[%s5] sm:$0x1]
          %v7690 = vperm.slane %v7688, 0
          %v7692 = vadd.f32 %v7663, %v7690
          %v7693 = vadd.f32 %v7664, %v7690
          %v7694 = vadd.f32 %v7665, %v7690
          %v7695 = vadd.f32 %v7666, %v7690
          %v7696 = vadd.f32 %v7667, %v7690
          %v7697 = vadd.f32 %v7668, %v7690
          %v7698 = vadd.f32 %v7669, %v7690
          %v7699 = vadd.f32 %v7670, %v7690
          %v7700 = vadd.f32 %v7671, %v7690
          %v7701 = vadd.f32 %v7672, %v7690
          %v7702 = vadd.f32 %v7673, %v7690
          %v7703 = vadd.f32 %v7674, %v7690
          %v7704 = vadd.f32 %v7675, %v7690
          %v7705 = vadd.f32 %v7676, %v7690
          %v7706 = vadd.f32 %v7677, %v7690
          %v7707 = vadd.f32 %v7678, %v7690
          %v7708 = vadd.f32 %v7679, %v7690
          %v7709 = vadd.f32 %v7680, %v7690
          %v7710 = vadd.f32 %v7681, %v7690
          %v7711 = vadd.f32 %v7682, %v7690
          %v7712 = vadd.f32 %v7683, %v7690
          %v7713 = vadd.f32 %v7684, %v7690
          %v7714 = vadd.f32 %v7685, %v7690
          %v7715 = vadd.f32 %v7686, %v7690
          %v7716 = vadd.f32 %v7687, %v7690
          %v7717 = vmul.f32 %v7692, 0.2
          %v7718 = vmul.f32 %v7693, 0.2
          %v7719 = vmul.f32 %v7694, 0.2
          %v7720 = vmul.f32 %v7695, 0.2
          %v7721 = vmul.f32 %v7696, 0.2
          %v7722 = vmul.f32 %v7697, 0.2
          %v7723 = vmul.f32 %v7698, 0.2
          %v7724 = vmul.f32 %v7699, 0.2
          %v7725 = vmul.f32 %v7700, 0.2
          %v7726 = vmul.f32 %v7701, 0.2
          %v7727 = vmul.f32 %v7702, 0.2
          %v7728 = vmul.f32 %v7703, 0.2
          %v7729 = vmul.f32 %v7704, 0.2
          %v7730 = vmul.f32 %v7705, 0.2
          %v7731 = vmul.f32 %v7706, 0.2
          %v7732 = vmul.f32 %v7707, 0.2
          %v7733 = vmul.f32 %v7708, 0.2
          %v7734 = vmul.f32 %v7709, 0.2
          %v7735 = vmul.f32 %v7710, 0.2
          %v7736 = vmul.f32 %v7711, 0.2
          %v7737 = vmul.f32 %v7712, 0.2
          %v7738 = vmul.f32 %v7713, 0.2
          %v7739 = vmul.f32 %v7714, 0.2
          %v7740 = vmul.f32 %v7715, 0.2
          %v7741 = vmul.f32 %v7716, 0.2
          %v7742 = vmax.f32 %v7692, %v7717
          %v7743 = vmax.f32 %v7693, %v7718
          %v7744 = vmax.f32 %v7694, %v7719
          %v7745 = vmax.f32 %v7695, %v7720
          %v7746 = vmax.f32 %v7696, %v7721
          %v7747 = vmax.f32 %v7697, %v7722
          %v7748 = vmax.f32 %v7698, %v7723
          %v7749 = vmax.f32 %v7699, %v7724
          %v7750 = vmax.f32 %v7700, %v7725
          %v7751 = vmax.f32 %v7701, %v7726
          %v7752 = vmax.f32 %v7702, %v7727
          %v7753 = vmax.f32 %v7703, %v7728
          %v7754 = vmax.f32 %v7704, %v7729
          %v7755 = vmax.f32 %v7705, %v7730
          %v7756 = vmax.f32 %v7706, %v7731
          %v7757 = vmax.f32 %v7707, %v7732
          %v7758 = vmax.f32 %v7708, %v7733
          %v7759 = vmax.f32 %v7709, %v7734
          %v7760 = vmax.f32 %v7710, %v7735
          %v7761 = vmax.f32 %v7711, %v7736
          %v7762 = vmax.f32 %v7712, %v7737
          %v7763 = vmax.f32 %v7713, %v7738
          %v7764 = vmax.f32 %v7714, %v7739
          %v7765 = vmax.f32 %v7715, %v7740
          %v7766 = vmax.f32 %v7716, %v7741
          %7767 = vst [vmem:[#allocation2] sm:$0xff] %v7742
          %7768 = vst [vmem:[#allocation2 + $0x8] sm:$0xff] %v7743
          %7769 = vst [vmem:[#allocation2 + $0x10] sm:$0xff] %v7744
          %7770 = vst [vmem:[#allocation2 + $0x18] sm:$0xff] %v7745
          %7771 = vst [vmem:[#allocation2 + $0x20] sm:$0xff] %v7746
          %7772 = vst [vmem:[#allocation2 + $0x28] sm:$0xff] %v7747
          %7773 = vst [vmem:[#allocation2 + $0x30] sm:$0xff] %v7748
          %7774 = vst [vmem:[#allocation2 + $0x38] sm:$0xff] %v7749
          %7775 = vst [vmem:[#allocation2 + $0x40] sm:$0xff] %v7750
          %7776 = vst [vmem:[#allocation2 + $0x48] sm:$0xff] %v7751
          %7777 = vst [vmem:[#allocation2 + $0x50] sm:$0xff] %v7752
          %7778 = vst [vmem:[#allocation2 + $0x58] sm:$0xff] %v7753
          %7779 = vst [vmem:[#allocation2 + $0x60] sm:$0xff] %v7754
          %7780 = vst [vmem:[#allocation2 + $0x68] sm:$0xff] %v7755
          %7781 = vst [vmem:[#allocation2 + $0x70] sm:$0xff] %v7756
          %7782 = vst [vmem:[#allocation2 + $0x78] sm:$0xff] %v7757
          %7783 = vst [vmem:[#allocation2 + $0x80] sm:$0xff] %v7758
          %7784 = vst [vmem:[#allocation2 + $0x88] sm:$0xff] %v7759
          %7785 = vst [vmem:[#allocation2 + $0x90] sm:$0xff] %v7760
          %7786 = vst [vmem:[#allocation2 + $0x98] sm:$0xff] %v7761
          %7787 = vst [vmem:[#allocation2 + $0xa0] sm:$0xff] %v7762
          %7788 = vst [vmem:[#allocation2 + $0xa8] sm:$0xff] %v7763
          %7789 = vst [vmem:[#allocation2 + $0xb0] sm:$0xff] %v7764
          %7790 = vst [vmem:[#allocation2 + $0xb8] sm:$0xff] %v7765
          %7791 = vst [vmem:[#allocation2 + $0xc0] sm:$0xf] %v7766
        $region72: #{discriminator_forward.1} parent=67 // pred_fallthru
          _
        %s7792 = smul.u32 %s26, 28
        %s7793 = scalar_lea.vmem [#allocation2], %s7792
        %v7794 = vld [vmem:[%s7793] sm:$0xf]
        %v7795 = vpack.c.bf16 %v7794, %v7794
        %v7796 = vld [vmem:[%s405] sm:$0xff]
        %v7797 = vld [vmem:[%s405 + $0x8] sm:$0xff]
        %v7798 = vld [vmem:[%s405 + $0x10] sm:$0xff]
        %v7799 = vld [vmem:[%s405 + $0x18] sm:$0xff]
        %v7800 = vld [vmem:[%s405 + $0x20] sm:$0xff]
        %v7801 = vld [vmem:[%s405 + $0x28] sm:$0xff]
        %v7802 = vld [vmem:[%s405 + $0x30] sm:$0xff]
        %v7803 = vld [vmem:[%s405 + $0x38] sm:$0xff]
        %v7804 = vld [vmem:[%s405 + $0x40] sm:$0xff]
        %v7805 = vld [vmem:[%s405 + $0x48] sm:$0xff]
        %v7806 = vld [vmem:[%s405 + $0x50] sm:$0xff]
        %v7807 = vld [vmem:[%s405 + $0x58] sm:$0xff]
        %v7808 = vld [vmem:[%s405 + $0x60] sm:$0xff]
        %v7809 = vld [vmem:[%s405 + $0x68] sm:$0xff]
        %v7810 = vld [vmem:[%s405 + $0x70] sm:$0xff]
        %v7811 = vld [vmem:[%s405 + $0x78] sm:$0xff]
        %v7812 = vld [vmem:[%s405 + $0x80] sm:$0xff]
        %v7813 = vld [vmem:[%s405 + $0x88] sm:$0xff]
        %v7814 = vld [vmem:[%s405 + $0x90] sm:$0xff]
        %v7815 = vld [vmem:[%s405 + $0x98] sm:$0xff]
        %v7816 = vld [vmem:[%s405 + $0xa0] sm:$0xff]
        %v7817 = vld [vmem:[%s405 + $0xa8] sm:$0xff]
        %v7818 = vld [vmem:[%s405 + $0xb0] sm:$0xff]
        %v7819 = vld [vmem:[%s405 + $0xb8] sm:$0xff]
        %v7820 = vld [vmem:[%s405 + $0xc0] sm:$0xff]
        %v7821 = vld [vmem:[%s405 + $0xc8] sm:$0xff]
        %v7822 = vld [vmem:[%s405 + $0xd0] sm:$0xff]
        %v7823 = vld [vmem:[%s405 + $0xd8] sm:$0xff]
        %v7824 = vld [vmem:[%s405 + $0xe0] sm:$0xff]
        %v7825 = vld [vmem:[%s405 + $0xe8] sm:$0xff]
        %v7826 = vld [vmem:[%s405 + $0xf0] sm:$0xff]
        %v7827 = vld [vmem:[%s405 + $0xf8] sm:$0xff]
        %v7828 = vld [vmem:[%s405 + $0x100] sm:$0xff]
        %v7829 = vld [vmem:[%s405 + $0x108] sm:$0xff]
        %v7830 = vld [vmem:[%s405 + $0x110] sm:$0xff]
        %v7831 = vld [vmem:[%s405 + $0x118] sm:$0xff]
        %v7832 = vld [vmem:[%s405 + $0x120] sm:$0xff]
        %v7833 = vld [vmem:[%s405 + $0x128] sm:$0xff]
        %v7834 = vld [vmem:[%s405 + $0x130] sm:$0xff]
        %v7835 = vld [vmem:[%s405 + $0x138] sm:$0xff]
        %v7836 = vld [vmem:[%s405 + $0x140] sm:$0xff]
        %v7837 = vld [vmem:[%s405 + $0x148] sm:$0xff]
        %v7838 = vld [vmem:[%s405 + $0x150] sm:$0xff]
        %v7839 = vld [vmem:[%s405 + $0x158] sm:$0xff]
        %v7840 = vld [vmem:[%s405 + $0x160] sm:$0xff]
        %v7841 = vld [vmem:[%s405 + $0x168] sm:$0xff]
        %v7842 = vld [vmem:[%s405 + $0x170] sm:$0xff]
        %v7843 = vld [vmem:[%s405 + $0x178] sm:$0xff]
        %v7844 = vld [vmem:[%s405 + $0x180] sm:$0xff]
        %v7845 = vld [vmem:[%s405 + $0x188] sm:$0xff]
        %v7846 = vld [vmem:[%s405 + $0x190] sm:$0xff]
        %v7847 = vld [vmem:[%s405 + $0x198] sm:$0xff]
        %v7848 = vld [vmem:[%s405 + $0x1a0] sm:$0xff]
        %v7849 = vld [vmem:[%s405 + $0x1a8] sm:$0xff]
        %v7850 = vld [vmem:[%s405 + $0x1b0] sm:$0xff]
        %v7851 = vld [vmem:[%s405 + $0x1b8] sm:$0xff]
        %v7852 = vld [vmem:[%s405 + $0x1c0] sm:$0xff]
        %v7853 = vld [vmem:[%s405 + $0x1c8] sm:$0xff]
        %v7854 = vld [vmem:[%s405 + $0x1d0] sm:$0xff]
        %v7855 = vld [vmem:[%s405 + $0x1d8] sm:$0xff]
        %v7856 = vld [vmem:[%s405 + $0x1e0] sm:$0xff]
        %v7857 = vld [vmem:[%s405 + $0x1e8] sm:$0xff]
        %v7858 = vld [vmem:[%s405 + $0x1f0] sm:$0xff]
        %v7859 = vld [vmem:[%s405 + $0x1f8] sm:$0xff]
        %s7860 = smul.u32 %s26, 7
        %s7861 = sadd.s32 %s7860, 1
        %s7862 = smul.u32 %s7861, 4
        %s7863 = scalar_lea.vmem [#allocation2], %s7862
        %v7864 = vld [vmem:[%s7863] sm:$0xf]
        %v7865 = vpack.c.bf16 %v7864, %v7864
        %s7866 = scalar_lea.vmem %s405, 512
        %v7867 = vld [vmem:[%s7866] sm:$0xff]
        %v7868 = vld [vmem:[%s7866 + $0x8] sm:$0xff]
        %v7869 = vld [vmem:[%s7866 + $0x10] sm:$0xff]
        %v7870 = vld [vmem:[%s7866 + $0x18] sm:$0xff]
        %v7871 = vld [vmem:[%s7866 + $0x20] sm:$0xff]
        %v7872 = vld [vmem:[%s7866 + $0x28] sm:$0xff]
        %v7873 = vld [vmem:[%s7866 + $0x30] sm:$0xff]
        %v7874 = vld [vmem:[%s7866 + $0x38] sm:$0xff]
        %v7875 = vld [vmem:[%s7866 + $0x40] sm:$0xff]
        %v7876 = vld [vmem:[%s7866 + $0x48] sm:$0xff]
        %v7877 = vld [vmem:[%s7866 + $0x50] sm:$0xff]
        %v7878 = vld [vmem:[%s7866 + $0x58] sm:$0xff]
        %v7879 = vld [vmem:[%s7866 + $0x60] sm:$0xff]
        %v7880 = vld [vmem:[%s7866 + $0x68] sm:$0xff]
        %v7881 = vld [vmem:[%s7866 + $0x70] sm:$0xff]
        %v7882 = vld [vmem:[%s7866 + $0x78] sm:$0xff]
        %v7883 = vld [vmem:[%s7866 + $0x80] sm:$0xff]
        %v7884 = vld [vmem:[%s7866 + $0x88] sm:$0xff]
        %v7885 = vld [vmem:[%s7866 + $0x90] sm:$0xff]
        %v7886 = vld [vmem:[%s7866 + $0x98] sm:$0xff]
        %v7887 = vld [vmem:[%s7866 + $0xa0] sm:$0xff]
        %v7888 = vld [vmem:[%s7866 + $0xa8] sm:$0xff]
        %v7889 = vld [vmem:[%s7866 + $0xb0] sm:$0xff]
        %v7890 = vld [vmem:[%s7866 + $0xb8] sm:$0xff]
        %v7891 = vld [vmem:[%s7866 + $0xc0] sm:$0xff]
        %v7892 = vld [vmem:[%s7866 + $0xc8] sm:$0xff]
        %v7893 = vld [vmem:[%s7866 + $0xd0] sm:$0xff]
        %v7894 = vld [vmem:[%s7866 + $0xd8] sm:$0xff]
        %v7895 = vld [vmem:[%s7866 + $0xe0] sm:$0xff]
        %v7896 = vld [vmem:[%s7866 + $0xe8] sm:$0xff]
        %v7897 = vld [vmem:[%s7866 + $0xf0] sm:$0xff]
        %v7898 = vld [vmem:[%s7866 + $0xf8] sm:$0xff]
        %v7899 = vld [vmem:[%s7866 + $0x100] sm:$0xff]
        %v7900 = vld [vmem:[%s7866 + $0x108] sm:$0xff]
        %v7901 = vld [vmem:[%s7866 + $0x110] sm:$0xff]
        %v7902 = vld [vmem:[%s7866 + $0x118] sm:$0xff]
        %v7903 = vld [vmem:[%s7866 + $0x120] sm:$0xff]
        %v7904 = vld [vmem:[%s7866 + $0x128] sm:$0xff]
        %v7905 = vld [vmem:[%s7866 + $0x130] sm:$0xff]
        %v7906 = vld [vmem:[%s7866 + $0x138] sm:$0xff]
        %v7907 = vld [vmem:[%s7866 + $0x140] sm:$0xff]
        %v7908 = vld [vmem:[%s7866 + $0x148] sm:$0xff]
        %v7909 = vld [vmem:[%s7866 + $0x150] sm:$0xff]
        %v7910 = vld [vmem:[%s7866 + $0x158] sm:$0xff]
        %v7911 = vld [vmem:[%s7866 + $0x160] sm:$0xff]
        %v7912 = vld [vmem:[%s7866 + $0x168] sm:$0xff]
        %v7913 = vld [vmem:[%s7866 + $0x170] sm:$0xff]
        %v7914 = vld [vmem:[%s7866 + $0x178] sm:$0xff]
        %v7915 = vld [vmem:[%s7866 + $0x180] sm:$0xff]
        %v7916 = vld [vmem:[%s7866 + $0x188] sm:$0xff]
        %v7917 = vld [vmem:[%s7866 + $0x190] sm:$0xff]
        %v7918 = vld [vmem:[%s7866 + $0x198] sm:$0xff]
        %v7919 = vld [vmem:[%s7866 + $0x1a0] sm:$0xff]
        %v7920 = vld [vmem:[%s7866 + $0x1a8] sm:$0xff]
        %v7921 = vld [vmem:[%s7866 + $0x1b0] sm:$0xff]
        %v7922 = vld [vmem:[%s7866 + $0x1b8] sm:$0xff]
        %v7923 = vld [vmem:[%s7866 + $0x1c0] sm:$0xff]
        %v7924 = vld [vmem:[%s7866 + $0x1c8] sm:$0xff]
        %v7925 = vld [vmem:[%s7866 + $0x1d0] sm:$0xff]
        %v7926 = vld [vmem:[%s7866 + $0x1d8] sm:$0xff]
        %v7927 = vld [vmem:[%s7866 + $0x1e0] sm:$0xff]
        %v7928 = vld [vmem:[%s7866 + $0x1e8] sm:$0xff]
        %v7929 = vld [vmem:[%s7866 + $0x1f0] sm:$0xff]
        %v7930 = vld [vmem:[%s7866 + $0x1f8] sm:$0xff]
        %v7995 = vunpack.c.l.b16 %v7867
        %v7996 = vunpack.c.h.b16 %v7867
        %v7997 = vunpack.c.l.b16 %v7868
        %v7998 = vunpack.c.h.b16 %v7868
        %v7999 = vunpack.c.l.b16 %v7869
        %v8000 = vunpack.c.h.b16 %v7869
        %v8001 = vunpack.c.l.b16 %v7870
        %v8002 = vunpack.c.h.b16 %v7870
        %v8003 = vunpack.c.l.b16 %v7871
        %v8004 = vunpack.c.h.b16 %v7871
        %v8005 = vunpack.c.l.b16 %v7872
        %v8006 = vunpack.c.h.b16 %v7872
        %v8007 = vunpack.c.l.b16 %v7873
        %v8008 = vunpack.c.h.b16 %v7873
        %v8009 = vunpack.c.l.b16 %v7874
        %v8010 = vunpack.c.h.b16 %v7874
        %v8011 = vunpack.c.l.b16 %v7875
        %v8012 = vunpack.c.h.b16 %v7875
        %v8013 = vunpack.c.l.b16 %v7876
        %v8014 = vunpack.c.h.b16 %v7876
        %v8015 = vunpack.c.l.b16 %v7877
        %v8016 = vunpack.c.h.b16 %v7877
        %v8017 = vunpack.c.l.b16 %v7878
        %v8018 = vunpack.c.h.b16 %v7878
        %v8019 = vunpack.c.l.b16 %v7879
        %v8020 = vunpack.c.h.b16 %v7879
        %v8021 = vunpack.c.l.b16 %v7880
        %v8022 = vunpack.c.h.b16 %v7880
        %v8023 = vunpack.c.l.b16 %v7881
        %v8024 = vunpack.c.h.b16 %v7881
        %v8025 = vunpack.c.l.b16 %v7882
        %v8026 = vunpack.c.h.b16 %v7882
        %v8027 = vunpack.c.l.b16 %v7883
        %v8028 = vunpack.c.h.b16 %v7883
        %v8029 = vunpack.c.l.b16 %v7884
        %v8030 = vunpack.c.h.b16 %v7884
        %v8031 = vunpack.c.l.b16 %v7885
        %v8032 = vunpack.c.h.b16 %v7885
        %v8033 = vunpack.c.l.b16 %v7886
        %v8034 = vunpack.c.h.b16 %v7886
        %v8035 = vunpack.c.l.b16 %v7887
        %v8036 = vunpack.c.h.b16 %v7887
        %v8037 = vunpack.c.l.b16 %v7888
        %v8038 = vunpack.c.h.b16 %v7888
        %v8039 = vunpack.c.l.b16 %v7889
        %v8040 = vunpack.c.h.b16 %v7889
        %v8041 = vunpack.c.l.b16 %v7890
        %v8042 = vunpack.c.h.b16 %v7890
        %v8043 = vunpack.c.l.b16 %v7891
        %v8044 = vunpack.c.h.b16 %v7891
        %v8045 = vunpack.c.l.b16 %v7892
        %v8046 = vunpack.c.h.b16 %v7892
        %v8047 = vunpack.c.l.b16 %v7893
        %v8048 = vunpack.c.h.b16 %v7893
        %v8049 = vunpack.c.l.b16 %v7894
        %v8050 = vunpack.c.h.b16 %v7894
        %v8051 = vunpack.c.l.b16 %v7895
        %v8052 = vunpack.c.h.b16 %v7895
        %v8053 = vunpack.c.l.b16 %v7896
        %v8054 = vunpack.c.h.b16 %v7896
        %v8055 = vunpack.c.l.b16 %v7897
        %v8056 = vunpack.c.h.b16 %v7897
        %v8057 = vunpack.c.l.b16 %v7898
        %v8058 = vunpack.c.h.b16 %v7898
        %v8059 = vunpack.c.l.b16 %v7899
        %v8060 = vunpack.c.h.b16 %v7899
        %v8061 = vunpack.c.l.b16 %v7900
        %v8062 = vunpack.c.h.b16 %v7900
        %v8063 = vunpack.c.l.b16 %v7901
        %v8064 = vunpack.c.h.b16 %v7901
        %v8065 = vunpack.c.l.b16 %v7902
        %v8066 = vunpack.c.h.b16 %v7902
        %v8067 = vunpack.c.l.b16 %v7903
        %v8068 = vunpack.c.h.b16 %v7903
        %v8069 = vunpack.c.l.b16 %v7904
        %v8070 = vunpack.c.h.b16 %v7904
        %v8071 = vunpack.c.l.b16 %v7905
        %v8072 = vunpack.c.h.b16 %v7905
        %v8073 = vunpack.c.l.b16 %v7906
        %v8074 = vunpack.c.h.b16 %v7906
        %v8075 = vunpack.c.l.b16 %v7907
        %v8076 = vunpack.c.h.b16 %v7907
        %v8077 = vunpack.c.l.b16 %v7908
        %v8078 = vunpack.c.h.b16 %v7908
        %v8079 = vunpack.c.l.b16 %v7909
        %v8080 = vunpack.c.h.b16 %v7909
        %v8081 = vunpack.c.l.b16 %v7910
        %v8082 = vunpack.c.h.b16 %v7910
        %v8083 = vunpack.c.l.b16 %v7911
        %v8084 = vunpack.c.h.b16 %v7911
        %v8085 = vunpack.c.l.b16 %v7912
        %v8086 = vunpack.c.h.b16 %v7912
        %v8087 = vunpack.c.l.b16 %v7913
        %v8088 = vunpack.c.h.b16 %v7913
        %v8089 = vunpack.c.l.b16 %v7914
        %v8090 = vunpack.c.h.b16 %v7914
        %v8091 = vunpack.c.l.b16 %v7915
        %v8092 = vunpack.c.h.b16 %v7915
        %v8093 = vunpack.c.l.b16 %v7916
        %v8094 = vunpack.c.h.b16 %v7916
        %v8095 = vunpack.c.l.b16 %v7917
        %v8096 = vunpack.c.h.b16 %v7917
        %v8097 = vunpack.c.l.b16 %v7918
        %v8098 = vunpack.c.h.b16 %v7918
        %v8099 = vunpack.c.l.b16 %v7919
        %v8100 = vunpack.c.h.b16 %v7919
        %v8101 = vunpack.c.l.b16 %v7920
        %v8102 = vunpack.c.h.b16 %v7920
        %v8103 = vunpack.c.l.b16 %v7921
        %v8104 = vunpack.c.h.b16 %v7921
        %v8105 = vunpack.c.l.b16 %v7922
        %v8106 = vunpack.c.h.b16 %v7922
        %v8107 = vunpack.c.l.b16 %v7923
        %v8108 = vunpack.c.h.b16 %v7923
        %v8109 = vunpack.c.l.b16 %v7924
        %v8110 = vunpack.c.h.b16 %v7924
        %v8111 = vunpack.c.l.b16 %v7925
        %v8112 = vunpack.c.h.b16 %v7925
        %v8113 = vunpack.c.l.b16 %v7926
        %v8114 = vunpack.c.h.b16 %v7926
        %v8115 = vunpack.c.l.b16 %v7927
        %v8116 = vunpack.c.h.b16 %v7927
        %v8117 = vunpack.c.l.b16 %v7928
        %v8118 = vunpack.c.h.b16 %v7928
        %v8119 = vunpack.c.l.b16 %v7929
        %v8120 = vunpack.c.h.b16 %v7929
        %v8121 = vunpack.c.l.b16 %v7930
        %v8122 = vunpack.c.h.b16 %v7930
        %v8123 = vpack.c.b16 %v8003, %v7995
        %v8124 = vpack.c.b16 %v8004, %v7996
        %v8125 = vpack.c.b16 %v8005, %v7997
        %v8126 = vpack.c.b16 %v8006, %v7998
        %v8127 = vpack.c.b16 %v8007, %v7999
        %v8128 = vpack.c.b16 %v8008, %v8000
        %v8129 = vpack.c.b16 %v8009, %v8001
        %v8130 = vpack.c.b16 %v8010, %v8002
        %v8131 = vpack.c.b16 %v8019, %v8011
        %v8132 = vpack.c.b16 %v8020, %v8012
        %v8133 = vpack.c.b16 %v8021, %v8013
        %v8134 = vpack.c.b16 %v8022, %v8014
        %v8135 = vpack.c.b16 %v8023, %v8015
        %v8136 = vpack.c.b16 %v8024, %v8016
        %v8137 = vpack.c.b16 %v8025, %v8017
        %v8138 = vpack.c.b16 %v8026, %v8018
        %v8139 = vpack.c.b16 %v8035, %v8027
        %v8140 = vpack.c.b16 %v8036, %v8028
        %v8141 = vpack.c.b16 %v8037, %v8029
        %v8142 = vpack.c.b16 %v8038, %v8030
        %v8143 = vpack.c.b16 %v8039, %v8031
        %v8144 = vpack.c.b16 %v8040, %v8032
        %v8145 = vpack.c.b16 %v8041, %v8033
        %v8146 = vpack.c.b16 %v8042, %v8034
        %v8147 = vpack.c.b16 %v8051, %v8043
        %v8148 = vpack.c.b16 %v8052, %v8044
        %v8149 = vpack.c.b16 %v8053, %v8045
        %v8150 = vpack.c.b16 %v8054, %v8046
        %v8151 = vpack.c.b16 %v8055, %v8047
        %v8152 = vpack.c.b16 %v8056, %v8048
        %v8153 = vpack.c.b16 %v8057, %v8049
        %v8154 = vpack.c.b16 %v8058, %v8050
        %v8155 = vpack.c.b16 %v8067, %v8059
        %v8156 = vpack.c.b16 %v8068, %v8060
        %v8157 = vpack.c.b16 %v8069, %v8061
        %v8158 = vpack.c.b16 %v8070, %v8062
        %v8159 = vpack.c.b16 %v8071, %v8063
        %v8160 = vpack.c.b16 %v8072, %v8064
        %v8161 = vpack.c.b16 %v8073, %v8065
        %v8162 = vpack.c.b16 %v8074, %v8066
        %v8163 = vpack.c.b16 %v8083, %v8075
        %v8164 = vpack.c.b16 %v8084, %v8076
        %v8165 = vpack.c.b16 %v8085, %v8077
        %v8166 = vpack.c.b16 %v8086, %v8078
        %v8167 = vpack.c.b16 %v8087, %v8079
        %v8168 = vpack.c.b16 %v8088, %v8080
        %v8169 = vpack.c.b16 %v8089, %v8081
        %v8170 = vpack.c.b16 %v8090, %v8082
        %v8171 = vpack.c.b16 %v8099, %v8091
        %v8172 = vpack.c.b16 %v8100, %v8092
        %v8173 = vpack.c.b16 %v8101, %v8093
        %v8174 = vpack.c.b16 %v8102, %v8094
        %v8175 = vpack.c.b16 %v8103, %v8095
        %v8176 = vpack.c.b16 %v8104, %v8096
        %v8177 = vpack.c.b16 %v8105, %v8097
        %v8178 = vpack.c.b16 %v8106, %v8098
        %v8179 = vpack.c.b16 %v8115, %v8107
        %v8180 = vpack.c.b16 %v8116, %v8108
        %v8181 = vpack.c.b16 %v8117, %v8109
        %v8182 = vpack.c.b16 %v8118, %v8110
        %v8183 = vpack.c.b16 %v8119, %v8111
        %v8184 = vpack.c.b16 %v8120, %v8112
        %v8185 = vpack.c.b16 %v8121, %v8113
        %v8186 = vpack.c.b16 %v8122, %v8114
        %8251 = vmatpush.bf16.msra.mxu0 %v8179
        %8252 = vmatpush.bf16.msra.mxu0 %v8171
        %8253 = vmatpush.bf16.msra.mxu0 %v8163
        %8254 = vmatpush.bf16.msra.mxu0 %v8155
        %8255 = vmatpush.bf16.msra.mxu0 %v8147
        %8256 = vmatpush.bf16.msra.mxu0 %v8139
        %8257 = vmatpush.bf16.msra.mxu0 %v8131
        %8258 = vmatpush.bf16.msra.mxu0 %v8123
        %8259 = vmatmul.bf16.gmra.mxu0 %v7865
        %v8260 = vpop.f32.mrf.mxu0
        %v8261 = vadd.f32 0.0, %v8260
        %v8262 = vpop.f32.mrf.mxu0
        %8263 = vdwg.mxu0
        %8264 = vmatpush.bf16.msra.mxu0 %v8180
        %8265 = vmatpush.bf16.msra.mxu0 %v8172
        %8266 = vmatpush.bf16.msra.mxu0 %v8164
        %8267 = vmatpush.bf16.msra.mxu0 %v8156
        %8268 = vmatpush.bf16.msra.mxu0 %v8148
        %8269 = vmatpush.bf16.msra.mxu0 %v8140
        %8270 = vmatpush.bf16.msra.mxu0 %v8132
        %8271 = vmatpush.bf16.msra.mxu0 %v8124
        %8272 = vmatmul.bf16.gmra.mxu0 %v7865
        %v8273 = vpop.f32.mrf.mxu0
        %v8274 = vadd.f32 0.0, %v8273
        %v8275 = vpop.f32.mrf.mxu0
        %8276 = vdwg.mxu0
        %8277 = vmatpush.bf16.msra.mxu0 %v8181
        %8278 = vmatpush.bf16.msra.mxu0 %v8173
        %8279 = vmatpush.bf16.msra.mxu0 %v8165
        %8280 = vmatpush.bf16.msra.mxu0 %v8157
        %8281 = vmatpush.bf16.msra.mxu0 %v8149
        %8282 = vmatpush.bf16.msra.mxu0 %v8141
        %8283 = vmatpush.bf16.msra.mxu0 %v8133
        %8284 = vmatpush.bf16.msra.mxu0 %v8125
        %8285 = vmatmul.bf16.gmra.mxu0 %v7865
        %v8286 = vpop.f32.mrf.mxu0
        %v8287 = vadd.f32 0.0, %v8286
        %v8288 = vpop.f32.mrf.mxu0
        %8289 = vdwg.mxu0
        %8290 = vmatpush.bf16.msra.mxu0 %v8182
        %8291 = vmatpush.bf16.msra.mxu0 %v8174
        %8292 = vmatpush.bf16.msra.mxu0 %v8166
        %8293 = vmatpush.bf16.msra.mxu0 %v8158
        %8294 = vmatpush.bf16.msra.mxu0 %v8150
        %8295 = vmatpush.bf16.msra.mxu0 %v8142
        %8296 = vmatpush.bf16.msra.mxu0 %v8134
        %8297 = vmatpush.bf16.msra.mxu0 %v8126
        %8298 = vmatmul.bf16.gmra.mxu0 %v7865
        %v8299 = vpop.f32.mrf.mxu0
        %v8300 = vadd.f32 0.0, %v8299
        %v8301 = vpop.f32.mrf.mxu0
        %8302 = vdwg.mxu0
        %8303 = vmatpush.bf16.msra.mxu0 %v8183
        %8304 = vmatpush.bf16.msra.mxu0 %v8175
        %8305 = vmatpush.bf16.msra.mxu0 %v8167
        %8306 = vmatpush.bf16.msra.mxu0 %v8159
        %8307 = vmatpush.bf16.msra.mxu0 %v8151
        %8308 = vmatpush.bf16.msra.mxu0 %v8143
        %8309 = vmatpush.bf16.msra.mxu0 %v8135
        %8310 = vmatpush.bf16.msra.mxu0 %v8127
        %8311 = vmatmul.bf16.gmra.mxu0 %v7865
        %v8312 = vpop.f32.mrf.mxu0
        %v8313 = vadd.f32 0.0, %v8312
        %v8314 = vpop.f32.mrf.mxu0
        %8315 = vdwg.mxu0
        %8316 = vmatpush.bf16.msra.mxu0 %v8184
        %8317 = vmatpush.bf16.msra.mxu0 %v8176
        %8318 = vmatpush.bf16.msra.mxu0 %v8168
        %8319 = vmatpush.bf16.msra.mxu0 %v8160
        %8320 = vmatpush.bf16.msra.mxu0 %v8152
        %8321 = vmatpush.bf16.msra.mxu0 %v8144
        %8322 = vmatpush.bf16.msra.mxu0 %v8136
        %8323 = vmatpush.bf16.msra.mxu0 %v8128
        %8324 = vmatmul.bf16.gmra.mxu0 %v7865
        %v8325 = vpop.f32.mrf.mxu0
        %v8326 = vadd.f32 0.0, %v8325
        %v8327 = vpop.f32.mrf.mxu0
        %8328 = vdwg.mxu0
        %8329 = vmatpush.bf16.msra.mxu0 %v8185
        %8330 = vmatpush.bf16.msra.mxu0 %v8177
        %8331 = vmatpush.bf16.msra.mxu0 %v8169
        %8332 = vmatpush.bf16.msra.mxu0 %v8161
        %8333 = vmatpush.bf16.msra.mxu0 %v8153
        %8334 = vmatpush.bf16.msra.mxu0 %v8145
        %8335 = vmatpush.bf16.msra.mxu0 %v8137
        %8336 = vmatpush.bf16.msra.mxu0 %v8129
        %8337 = vmatmul.bf16.gmra.mxu0 %v7865
        %v8338 = vpop.f32.mrf.mxu0
        %v8339 = vadd.f32 0.0, %v8338
        %v8340 = vpop.f32.mrf.mxu0
        %8341 = vdwg.mxu0
        %8342 = vmatpush.bf16.msra.mxu0 %v8186
        %8343 = vmatpush.bf16.msra.mxu0 %v8178
        %8344 = vmatpush.bf16.msra.mxu0 %v8170
        %8345 = vmatpush.bf16.msra.mxu0 %v8162
        %8346 = vmatpush.bf16.msra.mxu0 %v8154
        %8347 = vmatpush.bf16.msra.mxu0 %v8146
        %8348 = vmatpush.bf16.msra.mxu0 %v8138
        %8349 = vmatpush.bf16.msra.mxu0 %v8130
        %8350 = vmatmul.bf16.gmra.mxu0 %v7865
        %v8351 = vpop.f32.mrf.mxu0
        %v8352 = vadd.f32 0.0, %v8351
        %v8353 = vpop.f32.mrf.mxu0
        %8354 = vdwg.mxu0
        %v8419 = vunpack.c.l.b16 %v7796
        %v8420 = vunpack.c.h.b16 %v7796
        %v8421 = vunpack.c.l.b16 %v7797
        %v8422 = vunpack.c.h.b16 %v7797
        %v8423 = vunpack.c.l.b16 %v7798
        %v8424 = vunpack.c.h.b16 %v7798
        %v8425 = vunpack.c.l.b16 %v7799
        %v8426 = vunpack.c.h.b16 %v7799
        %v8427 = vunpack.c.l.b16 %v7800
        %v8428 = vunpack.c.h.b16 %v7800
        %v8429 = vunpack.c.l.b16 %v7801
        %v8430 = vunpack.c.h.b16 %v7801
        %v8431 = vunpack.c.l.b16 %v7802
        %v8432 = vunpack.c.h.b16 %v7802
        %v8433 = vunpack.c.l.b16 %v7803
        %v8434 = vunpack.c.h.b16 %v7803
        %v8435 = vunpack.c.l.b16 %v7804
        %v8436 = vunpack.c.h.b16 %v7804
        %v8437 = vunpack.c.l.b16 %v7805
        %v8438 = vunpack.c.h.b16 %v7805
        %v8439 = vunpack.c.l.b16 %v7806
        %v8440 = vunpack.c.h.b16 %v7806
        %v8441 = vunpack.c.l.b16 %v7807
        %v8442 = vunpack.c.h.b16 %v7807
        %v8443 = vunpack.c.l.b16 %v7808
        %v8444 = vunpack.c.h.b16 %v7808
        %v8445 = vunpack.c.l.b16 %v7809
        %v8446 = vunpack.c.h.b16 %v7809
        %v8447 = vunpack.c.l.b16 %v7810
        %v8448 = vunpack.c.h.b16 %v7810
        %v8449 = vunpack.c.l.b16 %v7811
        %v8450 = vunpack.c.h.b16 %v7811
        %v8451 = vunpack.c.l.b16 %v7812
        %v8452 = vunpack.c.h.b16 %v7812
        %v8453 = vunpack.c.l.b16 %v7813
        %v8454 = vunpack.c.h.b16 %v7813
        %v8455 = vunpack.c.l.b16 %v7814
        %v8456 = vunpack.c.h.b16 %v7814
        %v8457 = vunpack.c.l.b16 %v7815
        %v8458 = vunpack.c.h.b16 %v7815
        %v8459 = vunpack.c.l.b16 %v7816
        %v8460 = vunpack.c.h.b16 %v7816
        %v8461 = vunpack.c.l.b16 %v7817
        %v8462 = vunpack.c.h.b16 %v7817
        %v8463 = vunpack.c.l.b16 %v7818
        %v8464 = vunpack.c.h.b16 %v7818
        %v8465 = vunpack.c.l.b16 %v7819
        %v8466 = vunpack.c.h.b16 %v7819
        %v8467 = vunpack.c.l.b16 %v7820
        %v8468 = vunpack.c.h.b16 %v7820
        %v8469 = vunpack.c.l.b16 %v7821
        %v8470 = vunpack.c.h.b16 %v7821
        %v8471 = vunpack.c.l.b16 %v7822
        %v8472 = vunpack.c.h.b16 %v7822
        %v8473 = vunpack.c.l.b16 %v7823
        %v8474 = vunpack.c.h.b16 %v7823
        %v8475 = vunpack.c.l.b16 %v7824
        %v8476 = vunpack.c.h.b16 %v7824
        %v8477 = vunpack.c.l.b16 %v7825
        %v8478 = vunpack.c.h.b16 %v7825
        %v8479 = vunpack.c.l.b16 %v7826
        %v8480 = vunpack.c.h.b16 %v7826
        %v8481 = vunpack.c.l.b16 %v7827
        %v8482 = vunpack.c.h.b16 %v7827
        %v8483 = vunpack.c.l.b16 %v7828
        %v8484 = vunpack.c.h.b16 %v7828
        %v8485 = vunpack.c.l.b16 %v7829
        %v8486 = vunpack.c.h.b16 %v7829
        %v8487 = vunpack.c.l.b16 %v7830
        %v8488 = vunpack.c.h.b16 %v7830
        %v8489 = vunpack.c.l.b16 %v7831
        %v8490 = vunpack.c.h.b16 %v7831
        %v8491 = vunpack.c.l.b16 %v7832
        %v8492 = vunpack.c.h.b16 %v7832
        %v8493 = vunpack.c.l.b16 %v7833
        %v8494 = vunpack.c.h.b16 %v7833
        %v8495 = vunpack.c.l.b16 %v7834
        %v8496 = vunpack.c.h.b16 %v7834
        %v8497 = vunpack.c.l.b16 %v7835
        %v8498 = vunpack.c.h.b16 %v7835
        %v8499 = vunpack.c.l.b16 %v7836
        %v8500 = vunpack.c.h.b16 %v7836
        %v8501 = vunpack.c.l.b16 %v7837
        %v8502 = vunpack.c.h.b16 %v7837
        %v8503 = vunpack.c.l.b16 %v7838
        %v8504 = vunpack.c.h.b16 %v7838
        %v8505 = vunpack.c.l.b16 %v7839
        %v8506 = vunpack.c.h.b16 %v7839
        %v8507 = vunpack.c.l.b16 %v7840
        %v8508 = vunpack.c.h.b16 %v7840
        %v8509 = vunpack.c.l.b16 %v7841
        %v8510 = vunpack.c.h.b16 %v7841
        %v8511 = vunpack.c.l.b16 %v7842
        %v8512 = vunpack.c.h.b16 %v7842
        %v8513 = vunpack.c.l.b16 %v7843
        %v8514 = vunpack.c.h.b16 %v7843
        %v8515 = vunpack.c.l.b16 %v7844
        %v8516 = vunpack.c.h.b16 %v7844
        %v8517 = vunpack.c.l.b16 %v7845
        %v8518 = vunpack.c.h.b16 %v7845
        %v8519 = vunpack.c.l.b16 %v7846
        %v8520 = vunpack.c.h.b16 %v7846
        %v8521 = vunpack.c.l.b16 %v7847
        %v8522 = vunpack.c.h.b16 %v7847
        %v8523 = vunpack.c.l.b16 %v7848
        %v8524 = vunpack.c.h.b16 %v7848
        %v8525 = vunpack.c.l.b16 %v7849
        %v8526 = vunpack.c.h.b16 %v7849
        %v8527 = vunpack.c.l.b16 %v7850
        %v8528 = vunpack.c.h.b16 %v7850
        %v8529 = vunpack.c.l.b16 %v7851
        %v8530 = vunpack.c.h.b16 %v7851
        %v8531 = vunpack.c.l.b16 %v7852
        %v8532 = vunpack.c.h.b16 %v7852
        %v8533 = vunpack.c.l.b16 %v7853
        %v8534 = vunpack.c.h.b16 %v7853
        %v8535 = vunpack.c.l.b16 %v7854
        %v8536 = vunpack.c.h.b16 %v7854
        %v8537 = vunpack.c.l.b16 %v7855
        %v8538 = vunpack.c.h.b16 %v7855
        %v8539 = vunpack.c.l.b16 %v7856
        %v8540 = vunpack.c.h.b16 %v7856
        %v8541 = vunpack.c.l.b16 %v7857
        %v8542 = vunpack.c.h.b16 %v7857
        %v8543 = vunpack.c.l.b16 %v7858
        %v8544 = vunpack.c.h.b16 %v7858
        %v8545 = vunpack.c.l.b16 %v7859
        %v8546 = vunpack.c.h.b16 %v7859
        %v8547 = vpack.c.b16 %v8427, %v8419
        %v8548 = vpack.c.b16 %v8428, %v8420
        %v8549 = vpack.c.b16 %v8429, %v8421
        %v8550 = vpack.c.b16 %v8430, %v8422
        %v8551 = vpack.c.b16 %v8431, %v8423
        %v8552 = vpack.c.b16 %v8432, %v8424
        %v8553 = vpack.c.b16 %v8433, %v8425
        %v8554 = vpack.c.b16 %v8434, %v8426
        %v8555 = vpack.c.b16 %v8443, %v8435
        %v8556 = vpack.c.b16 %v8444, %v8436
        %v8557 = vpack.c.b16 %v8445, %v8437
        %v8558 = vpack.c.b16 %v8446, %v8438
        %v8559 = vpack.c.b16 %v8447, %v8439
        %v8560 = vpack.c.b16 %v8448, %v8440
        %v8561 = vpack.c.b16 %v8449, %v8441
        %v8562 = vpack.c.b16 %v8450, %v8442
        %v8563 = vpack.c.b16 %v8459, %v8451
        %v8564 = vpack.c.b16 %v8460, %v8452
        %v8565 = vpack.c.b16 %v8461, %v8453
        %v8566 = vpack.c.b16 %v8462, %v8454
        %v8567 = vpack.c.b16 %v8463, %v8455
        %v8568 = vpack.c.b16 %v8464, %v8456
        %v8569 = vpack.c.b16 %v8465, %v8457
        %v8570 = vpack.c.b16 %v8466, %v8458
        %v8571 = vpack.c.b16 %v8475, %v8467
        %v8572 = vpack.c.b16 %v8476, %v8468
        %v8573 = vpack.c.b16 %v8477, %v8469
        %v8574 = vpack.c.b16 %v8478, %v8470
        %v8575 = vpack.c.b16 %v8479, %v8471
        %v8576 = vpack.c.b16 %v8480, %v8472
        %v8577 = vpack.c.b16 %v8481, %v8473
        %v8578 = vpack.c.b16 %v8482, %v8474
        %v8579 = vpack.c.b16 %v8491, %v8483
        %v8580 = vpack.c.b16 %v8492, %v8484
        %v8581 = vpack.c.b16 %v8493, %v8485
        %v8582 = vpack.c.b16 %v8494, %v8486
        %v8583 = vpack.c.b16 %v8495, %v8487
        %v8584 = vpack.c.b16 %v8496, %v8488
        %v8585 = vpack.c.b16 %v8497, %v8489
        %v8586 = vpack.c.b16 %v8498, %v8490
        %v8587 = vpack.c.b16 %v8507, %v8499
        %v8588 = vpack.c.b16 %v8508, %v8500
        %v8589 = vpack.c.b16 %v8509, %v8501
        %v8590 = vpack.c.b16 %v8510, %v8502
        %v8591 = vpack.c.b16 %v8511, %v8503
        %v8592 = vpack.c.b16 %v8512, %v8504
        %v8593 = vpack.c.b16 %v8513, %v8505
        %v8594 = vpack.c.b16 %v8514, %v8506
        %v8595 = vpack.c.b16 %v8523, %v8515
        %v8596 = vpack.c.b16 %v8524, %v8516
        %v8597 = vpack.c.b16 %v8525, %v8517
        %v8598 = vpack.c.b16 %v8526, %v8518
        %v8599 = vpack.c.b16 %v8527, %v8519
        %v8600 = vpack.c.b16 %v8528, %v8520
        %v8601 = vpack.c.b16 %v8529, %v8521
        %v8602 = vpack.c.b16 %v8530, %v8522
        %v8603 = vpack.c.b16 %v8539, %v8531
        %v8604 = vpack.c.b16 %v8540, %v8532
        %v8605 = vpack.c.b16 %v8541, %v8533
        %v8606 = vpack.c.b16 %v8542, %v8534
        %v8607 = vpack.c.b16 %v8543, %v8535
        %v8608 = vpack.c.b16 %v8544, %v8536
        %v8609 = vpack.c.b16 %v8545, %v8537
        %v8610 = vpack.c.b16 %v8546, %v8538
        %8675 = vmatpush.bf16.msra.mxu0 %v8603
        %8676 = vmatpush.bf16.msra.mxu0 %v8595
        %8677 = vmatpush.bf16.msra.mxu0 %v8587
        %8678 = vmatpush.bf16.msra.mxu0 %v8579
        %8679 = vmatpush.bf16.msra.mxu0 %v8571
        %8680 = vmatpush.bf16.msra.mxu0 %v8563
        %8681 = vmatpush.bf16.msra.mxu0 %v8555
        %8682 = vmatpush.bf16.msra.mxu0 %v8547
        %8683 = vmatmul.bf16.gmra.mxu0 %v7795
        %v8684 = vpop.f32.mrf.mxu0
        %v8685 = vadd.f32 %v8261, %v8684
        %v8686 = vpop.f32.mrf.mxu0
        %8687 = vdwg.mxu0
        %8688 = vmatpush.bf16.msra.mxu0 %v8604
        %8689 = vmatpush.bf16.msra.mxu0 %v8596
        %8690 = vmatpush.bf16.msra.mxu0 %v8588
        %8691 = vmatpush.bf16.msra.mxu0 %v8580
        %8692 = vmatpush.bf16.msra.mxu0 %v8572
        %8693 = vmatpush.bf16.msra.mxu0 %v8564
        %8694 = vmatpush.bf16.msra.mxu0 %v8556
        %8695 = vmatpush.bf16.msra.mxu0 %v8548
        %8696 = vmatmul.bf16.gmra.mxu0 %v7795
        %v8697 = vpop.f32.mrf.mxu0
        %v8698 = vadd.f32 %v8274, %v8697
        %v8699 = vpop.f32.mrf.mxu0
        %8700 = vdwg.mxu0
        %8701 = vmatpush.bf16.msra.mxu0 %v8605
        %8702 = vmatpush.bf16.msra.mxu0 %v8597
        %8703 = vmatpush.bf16.msra.mxu0 %v8589
        %8704 = vmatpush.bf16.msra.mxu0 %v8581
        %8705 = vmatpush.bf16.msra.mxu0 %v8573
        %8706 = vmatpush.bf16.msra.mxu0 %v8565
        %8707 = vmatpush.bf16.msra.mxu0 %v8557
        %8708 = vmatpush.bf16.msra.mxu0 %v8549
        %8709 = vmatmul.bf16.gmra.mxu0 %v7795
        %v8710 = vpop.f32.mrf.mxu0
        %v8711 = vadd.f32 %v8287, %v8710
        %v8712 = vpop.f32.mrf.mxu0
        %8713 = vdwg.mxu0
        %8714 = vmatpush.bf16.msra.mxu0 %v8606
        %8715 = vmatpush.bf16.msra.mxu0 %v8598
        %8716 = vmatpush.bf16.msra.mxu0 %v8590
        %8717 = vmatpush.bf16.msra.mxu0 %v8582
        %8718 = vmatpush.bf16.msra.mxu0 %v8574
        %8719 = vmatpush.bf16.msra.mxu0 %v8566
        %8720 = vmatpush.bf16.msra.mxu0 %v8558
        %8721 = vmatpush.bf16.msra.mxu0 %v8550
        %8722 = vmatmul.bf16.gmra.mxu0 %v7795
        %v8723 = vpop.f32.mrf.mxu0
        %v8724 = vadd.f32 %v8300, %v8723
        %v8725 = vpop.f32.mrf.mxu0
        %8726 = vdwg.mxu0
        %8727 = vmatpush.bf16.msra.mxu0 %v8607
        %8728 = vmatpush.bf16.msra.mxu0 %v8599
        %8729 = vmatpush.bf16.msra.mxu0 %v8591
        %8730 = vmatpush.bf16.msra.mxu0 %v8583
        %8731 = vmatpush.bf16.msra.mxu0 %v8575
        %8732 = vmatpush.bf16.msra.mxu0 %v8567
        %8733 = vmatpush.bf16.msra.mxu0 %v8559
        %8734 = vmatpush.bf16.msra.mxu0 %v8551
        %8735 = vmatmul.bf16.gmra.mxu0 %v7795
        %v8736 = vpop.f32.mrf.mxu0
        %v8737 = vadd.f32 %v8313, %v8736
        %v8738 = vpop.f32.mrf.mxu0
        %8739 = vdwg.mxu0
        %8740 = vmatpush.bf16.msra.mxu0 %v8608
        %8741 = vmatpush.bf16.msra.mxu0 %v8600
        %8742 = vmatpush.bf16.msra.mxu0 %v8592
        %8743 = vmatpush.bf16.msra.mxu0 %v8584
        %8744 = vmatpush.bf16.msra.mxu0 %v8576
        %8745 = vmatpush.bf16.msra.mxu0 %v8568
        %8746 = vmatpush.bf16.msra.mxu0 %v8560
        %8747 = vmatpush.bf16.msra.mxu0 %v8552
        %8748 = vmatmul.bf16.gmra.mxu0 %v7795
        %v8749 = vpop.f32.mrf.mxu0
        %v8750 = vadd.f32 %v8326, %v8749
        %v8751 = vpop.f32.mrf.mxu0
        %8752 = vdwg.mxu0
        %8753 = vmatpush.bf16.msra.mxu0 %v8609
        %8754 = vmatpush.bf16.msra.mxu0 %v8601
        %8755 = vmatpush.bf16.msra.mxu0 %v8593
        %8756 = vmatpush.bf16.msra.mxu0 %v8585
        %8757 = vmatpush.bf16.msra.mxu0 %v8577
        %8758 = vmatpush.bf16.msra.mxu0 %v8569
        %8759 = vmatpush.bf16.msra.mxu0 %v8561
        %8760 = vmatpush.bf16.msra.mxu0 %v8553
        %8761 = vmatmul.bf16.gmra.mxu0 %v7795
        %v8762 = vpop.f32.mrf.mxu0
        %v8763 = vadd.f32 %v8339, %v8762
        %v8764 = vpop.f32.mrf.mxu0
        %8765 = vdwg.mxu0
        %8766 = vmatpush.bf16.msra.mxu0 %v8610
        %8767 = vmatpush.bf16.msra.mxu0 %v8602
        %8768 = vmatpush.bf16.msra.mxu0 %v8594
        %8769 = vmatpush.bf16.msra.mxu0 %v8586
        %8770 = vmatpush.bf16.msra.mxu0 %v8578
        %8771 = vmatpush.bf16.msra.mxu0 %v8570
        %8772 = vmatpush.bf16.msra.mxu0 %v8562
        %8773 = vmatpush.bf16.msra.mxu0 %v8554
        %8774 = vmatmul.bf16.gmra.mxu0 %v7795
        %v8775 = vpop.f32.mrf.mxu0
        %v8776 = vadd.f32 %v8352, %v8775
        %v8777 = vpop.f32.mrf.mxu0
        %8778 = vdwg.mxu0
        %s8779 = sadd.s32 %s7860, 2
        %s8780 = smul.u32 %s8779, 4
        %s8781 = scalar_lea.vmem [#allocation2], %s8780
        %v8782 = vld [vmem:[%s8781] sm:$0xf]
        %v8783 = vpack.c.bf16 %v8782, %v8782
        %s8784 = scalar_lea.vmem %s405, 1024
        %v8785 = vld [vmem:[%s8784] sm:$0xff]
        %v8786 = vld [vmem:[%s8784 + $0x8] sm:$0xff]
        %v8787 = vld [vmem:[%s8784 + $0x10] sm:$0xff]
        %v8788 = vld [vmem:[%s8784 + $0x18] sm:$0xff]
        %v8789 = vld [vmem:[%s8784 + $0x20] sm:$0xff]
        %v8790 = vld [vmem:[%s8784 + $0x28] sm:$0xff]
        %v8791 = vld [vmem:[%s8784 + $0x30] sm:$0xff]
        %v8792 = vld [vmem:[%s8784 + $0x38] sm:$0xff]
        %v8793 = vld [vmem:[%s8784 + $0x40] sm:$0xff]
        %v8794 = vld [vmem:[%s8784 + $0x48] sm:$0xff]
        %v8795 = vld [vmem:[%s8784 + $0x50] sm:$0xff]
        %v8796 = vld [vmem:[%s8784 + $0x58] sm:$0xff]
        %v8797 = vld [vmem:[%s8784 + $0x60] sm:$0xff]
        %v8798 = vld [vmem:[%s8784 + $0x68] sm:$0xff]
        %v8799 = vld [vmem:[%s8784 + $0x70] sm:$0xff]
        %v8800 = vld [vmem:[%s8784 + $0x78] sm:$0xff]
        %v8801 = vld [vmem:[%s8784 + $0x80] sm:$0xff]
        %v8802 = vld [vmem:[%s8784 + $0x88] sm:$0xff]
        %v8803 = vld [vmem:[%s8784 + $0x90] sm:$0xff]
        %v8804 = vld [vmem:[%s8784 + $0x98] sm:$0xff]
        %v8805 = vld [vmem:[%s8784 + $0xa0] sm:$0xff]
        %v8806 = vld [vmem:[%s8784 + $0xa8] sm:$0xff]
        %v8807 = vld [vmem:[%s8784 + $0xb0] sm:$0xff]
        %v8808 = vld [vmem:[%s8784 + $0xb8] sm:$0xff]
        %v8809 = vld [vmem:[%s8784 + $0xc0] sm:$0xff]
        %v8810 = vld [vmem:[%s8784 + $0xc8] sm:$0xff]
        %v8811 = vld [vmem:[%s8784 + $0xd0] sm:$0xff]
        %v8812 = vld [vmem:[%s8784 + $0xd8] sm:$0xff]
        %v8813 = vld [vmem:[%s8784 + $0xe0] sm:$0xff]
        %v8814 = vld [vmem:[%s8784 + $0xe8] sm:$0xff]
        %v8815 = vld [vmem:[%s8784 + $0xf0] sm:$0xff]
        %v8816 = vld [vmem:[%s8784 + $0xf8] sm:$0xff]
        %v8817 = vld [vmem:[%s8784 + $0x100] sm:$0xff]
        %v8818 = vld [vmem:[%s8784 + $0x108] sm:$0xff]
        %v8819 = vld [vmem:[%s8784 + $0x110] sm:$0xff]
        %v8820 = vld [vmem:[%s8784 + $0x118] sm:$0xff]
        %v8821 = vld [vmem:[%s8784 + $0x120] sm:$0xff]
        %v8822 = vld [vmem:[%s8784 + $0x128] sm:$0xff]
        %v8823 = vld [vmem:[%s8784 + $0x130] sm:$0xff]
        %v8824 = vld [vmem:[%s8784 + $0x138] sm:$0xff]
        %v8825 = vld [vmem:[%s8784 + $0x140] sm:$0xff]
        %v8826 = vld [vmem:[%s8784 + $0x148] sm:$0xff]
        %v8827 = vld [vmem:[%s8784 + $0x150] sm:$0xff]
        %v8828 = vld [vmem:[%s8784 + $0x158] sm:$0xff]
        %v8829 = vld [vmem:[%s8784 + $0x160] sm:$0xff]
        %v8830 = vld [vmem:[%s8784 + $0x168] sm:$0xff]
        %v8831 = vld [vmem:[%s8784 + $0x170] sm:$0xff]
        %v8832 = vld [vmem:[%s8784 + $0x178] sm:$0xff]
        %v8833 = vld [vmem:[%s8784 + $0x180] sm:$0xff]
        %v8834 = vld [vmem:[%s8784 + $0x188] sm:$0xff]
        %v8835 = vld [vmem:[%s8784 + $0x190] sm:$0xff]
        %v8836 = vld [vmem:[%s8784 + $0x198] sm:$0xff]
        %v8837 = vld [vmem:[%s8784 + $0x1a0] sm:$0xff]
        %v8838 = vld [vmem:[%s8784 + $0x1a8] sm:$0xff]
        %v8839 = vld [vmem:[%s8784 + $0x1b0] sm:$0xff]
        %v8840 = vld [vmem:[%s8784 + $0x1b8] sm:$0xff]
        %v8841 = vld [vmem:[%s8784 + $0x1c0] sm:$0xff]
        %v8842 = vld [vmem:[%s8784 + $0x1c8] sm:$0xff]
        %v8843 = vld [vmem:[%s8784 + $0x1d0] sm:$0xff]
        %v8844 = vld [vmem:[%s8784 + $0x1d8] sm:$0xff]
        %v8845 = vld [vmem:[%s8784 + $0x1e0] sm:$0xff]
        %v8846 = vld [vmem:[%s8784 + $0x1e8] sm:$0xff]
        %v8847 = vld [vmem:[%s8784 + $0x1f0] sm:$0xff]
        %v8848 = vld [vmem:[%s8784 + $0x1f8] sm:$0xff]
        %v8913 = vunpack.c.l.b16 %v8785
        %v8914 = vunpack.c.h.b16 %v8785
        %v8915 = vunpack.c.l.b16 %v8786
        %v8916 = vunpack.c.h.b16 %v8786
        %v8917 = vunpack.c.l.b16 %v8787
        %v8918 = vunpack.c.h.b16 %v8787
        %v8919 = vunpack.c.l.b16 %v8788
        %v8920 = vunpack.c.h.b16 %v8788
        %v8921 = vunpack.c.l.b16 %v8789
        %v8922 = vunpack.c.h.b16 %v8789
        %v8923 = vunpack.c.l.b16 %v8790
        %v8924 = vunpack.c.h.b16 %v8790
        %v8925 = vunpack.c.l.b16 %v8791
        %v8926 = vunpack.c.h.b16 %v8791
        %v8927 = vunpack.c.l.b16 %v8792
        %v8928 = vunpack.c.h.b16 %v8792
        %v8929 = vunpack.c.l.b16 %v8793
        %v8930 = vunpack.c.h.b16 %v8793
        %v8931 = vunpack.c.l.b16 %v8794
        %v8932 = vunpack.c.h.b16 %v8794
        %v8933 = vunpack.c.l.b16 %v8795
        %v8934 = vunpack.c.h.b16 %v8795
        %v8935 = vunpack.c.l.b16 %v8796
        %v8936 = vunpack.c.h.b16 %v8796
        %v8937 = vunpack.c.l.b16 %v8797
        %v8938 = vunpack.c.h.b16 %v8797
        %v8939 = vunpack.c.l.b16 %v8798
        %v8940 = vunpack.c.h.b16 %v8798
        %v8941 = vunpack.c.l.b16 %v8799
        %v8942 = vunpack.c.h.b16 %v8799
        %v8943 = vunpack.c.l.b16 %v8800
        %v8944 = vunpack.c.h.b16 %v8800
        %v8945 = vunpack.c.l.b16 %v8801
        %v8946 = vunpack.c.h.b16 %v8801
        %v8947 = vunpack.c.l.b16 %v8802
        %v8948 = vunpack.c.h.b16 %v8802
        %v8949 = vunpack.c.l.b16 %v8803
        %v8950 = vunpack.c.h.b16 %v8803
        %v8951 = vunpack.c.l.b16 %v8804
        %v8952 = vunpack.c.h.b16 %v8804
        %v8953 = vunpack.c.l.b16 %v8805
        %v8954 = vunpack.c.h.b16 %v8805
        %v8955 = vunpack.c.l.b16 %v8806
        %v8956 = vunpack.c.h.b16 %v8806
        %v8957 = vunpack.c.l.b16 %v8807
        %v8958 = vunpack.c.h.b16 %v8807
        %v8959 = vunpack.c.l.b16 %v8808
        %v8960 = vunpack.c.h.b16 %v8808
        %v8961 = vunpack.c.l.b16 %v8809
        %v8962 = vunpack.c.h.b16 %v8809
        %v8963 = vunpack.c.l.b16 %v8810
        %v8964 = vunpack.c.h.b16 %v8810
        %v8965 = vunpack.c.l.b16 %v8811
        %v8966 = vunpack.c.h.b16 %v8811
        %v8967 = vunpack.c.l.b16 %v8812
        %v8968 = vunpack.c.h.b16 %v8812
        %v8969 = vunpack.c.l.b16 %v8813
        %v8970 = vunpack.c.h.b16 %v8813
        %v8971 = vunpack.c.l.b16 %v8814
        %v8972 = vunpack.c.h.b16 %v8814
        %v8973 = vunpack.c.l.b16 %v8815
        %v8974 = vunpack.c.h.b16 %v8815
        %v8975 = vunpack.c.l.b16 %v8816
        %v8976 = vunpack.c.h.b16 %v8816
        %v8977 = vunpack.c.l.b16 %v8817
        %v8978 = vunpack.c.h.b16 %v8817
        %v8979 = vunpack.c.l.b16 %v8818
        %v8980 = vunpack.c.h.b16 %v8818
        %v8981 = vunpack.c.l.b16 %v8819
        %v8982 = vunpack.c.h.b16 %v8819
        %v8983 = vunpack.c.l.b16 %v8820
        %v8984 = vunpack.c.h.b16 %v8820
        %v8985 = vunpack.c.l.b16 %v8821
        %v8986 = vunpack.c.h.b16 %v8821
        %v8987 = vunpack.c.l.b16 %v8822
        %v8988 = vunpack.c.h.b16 %v8822
        %v8989 = vunpack.c.l.b16 %v8823
        %v8990 = vunpack.c.h.b16 %v8823
        %v8991 = vunpack.c.l.b16 %v8824
        %v8992 = vunpack.c.h.b16 %v8824
        %v8993 = vunpack.c.l.b16 %v8825
        %v8994 = vunpack.c.h.b16 %v8825
        %v8995 = vunpack.c.l.b16 %v8826
        %v8996 = vunpack.c.h.b16 %v8826
        %v8997 = vunpack.c.l.b16 %v8827
        %v8998 = vunpack.c.h.b16 %v8827
        %v8999 = vunpack.c.l.b16 %v8828
        %v9000 = vunpack.c.h.b16 %v8828
        %v9001 = vunpack.c.l.b16 %v8829
        %v9002 = vunpack.c.h.b16 %v8829
        %v9003 = vunpack.c.l.b16 %v8830
        %v9004 = vunpack.c.h.b16 %v8830
        %v9005 = vunpack.c.l.b16 %v8831
        %v9006 = vunpack.c.h.b16 %v8831
        %v9007 = vunpack.c.l.b16 %v8832
        %v9008 = vunpack.c.h.b16 %v8832
        %v9009 = vunpack.c.l.b16 %v8833
        %v9010 = vunpack.c.h.b16 %v8833
        %v9011 = vunpack.c.l.b16 %v8834
        %v9012 = vunpack.c.h.b16 %v8834
        %v9013 = vunpack.c.l.b16 %v8835
        %v9014 = vunpack.c.h.b16 %v8835
        %v9015 = vunpack.c.l.b16 %v8836
        %v9016 = vunpack.c.h.b16 %v8836
        %v9017 = vunpack.c.l.b16 %v8837
        %v9018 = vunpack.c.h.b16 %v8837
        %v9019 = vunpack.c.l.b16 %v8838
        %v9020 = vunpack.c.h.b16 %v8838
        %v9021 = vunpack.c.l.b16 %v8839
        %v9022 = vunpack.c.h.b16 %v8839
        %v9023 = vunpack.c.l.b16 %v8840
        %v9024 = vunpack.c.h.b16 %v8840
        %v9025 = vunpack.c.l.b16 %v8841
        %v9026 = vunpack.c.h.b16 %v8841
        %v9027 = vunpack.c.l.b16 %v8842
        %v9028 = vunpack.c.h.b16 %v8842
        %v9029 = vunpack.c.l.b16 %v8843
        %v9030 = vunpack.c.h.b16 %v8843
        %v9031 = vunpack.c.l.b16 %v8844
        %v9032 = vunpack.c.h.b16 %v8844
        %v9033 = vunpack.c.l.b16 %v8845
        %v9034 = vunpack.c.h.b16 %v8845
        %v9035 = vunpack.c.l.b16 %v8846
        %v9036 = vunpack.c.h.b16 %v8846
        %v9037 = vunpack.c.l.b16 %v8847
        %v9038 = vunpack.c.h.b16 %v8847
        %v9039 = vunpack.c.l.b16 %v8848
        %v9040 = vunpack.c.h.b16 %v8848
        %v9041 = vpack.c.b16 %v8921, %v8913
        %v9042 = vpack.c.b16 %v8922, %v8914
        %v9043 = vpack.c.b16 %v8923, %v8915
        %v9044 = vpack.c.b16 %v8924, %v8916
        %v9045 = vpack.c.b16 %v8925, %v8917
        %v9046 = vpack.c.b16 %v8926, %v8918
        %v9047 = vpack.c.b16 %v8927, %v8919
        %v9048 = vpack.c.b16 %v8928, %v8920
        %v9049 = vpack.c.b16 %v8937, %v8929
        %v9050 = vpack.c.b16 %v8938, %v8930
        %v9051 = vpack.c.b16 %v8939, %v8931
        %v9052 = vpack.c.b16 %v8940, %v8932
        %v9053 = vpack.c.b16 %v8941, %v8933
        %v9054 = vpack.c.b16 %v8942, %v8934
        %v9055 = vpack.c.b16 %v8943, %v8935
        %v9056 = vpack.c.b16 %v8944, %v8936
        %v9057 = vpack.c.b16 %v8953, %v8945
        %v9058 = vpack.c.b16 %v8954, %v8946
        %v9059 = vpack.c.b16 %v8955, %v8947
        %v9060 = vpack.c.b16 %v8956, %v8948
        %v9061 = vpack.c.b16 %v8957, %v8949
        %v9062 = vpack.c.b16 %v8958, %v8950
        %v9063 = vpack.c.b16 %v8959, %v8951
        %v9064 = vpack.c.b16 %v8960, %v8952
        %v9065 = vpack.c.b16 %v8969, %v8961
        %v9066 = vpack.c.b16 %v8970, %v8962
        %v9067 = vpack.c.b16 %v8971, %v8963
        %v9068 = vpack.c.b16 %v8972, %v8964
        %v9069 = vpack.c.b16 %v8973, %v8965
        %v9070 = vpack.c.b16 %v8974, %v8966
        %v9071 = vpack.c.b16 %v8975, %v8967
        %v9072 = vpack.c.b16 %v8976, %v8968
        %v9073 = vpack.c.b16 %v8985, %v8977
        %v9074 = vpack.c.b16 %v8986, %v8978
        %v9075 = vpack.c.b16 %v8987, %v8979
        %v9076 = vpack.c.b16 %v8988, %v8980
        %v9077 = vpack.c.b16 %v8989, %v8981
        %v9078 = vpack.c.b16 %v8990, %v8982
        %v9079 = vpack.c.b16 %v8991, %v8983
        %v9080 = vpack.c.b16 %v8992, %v8984
        %v9081 = vpack.c.b16 %v9001, %v8993
        %v9082 = vpack.c.b16 %v9002, %v8994
        %v9083 = vpack.c.b16 %v9003, %v8995
        %v9084 = vpack.c.b16 %v9004, %v8996
        %v9085 = vpack.c.b16 %v9005, %v8997
        %v9086 = vpack.c.b16 %v9006, %v8998
        %v9087 = vpack.c.b16 %v9007, %v8999
        %v9088 = vpack.c.b16 %v9008, %v9000
        %v9089 = vpack.c.b16 %v9017, %v9009
        %v9090 = vpack.c.b16 %v9018, %v9010
        %v9091 = vpack.c.b16 %v9019, %v9011
        %v9092 = vpack.c.b16 %v9020, %v9012
        %v9093 = vpack.c.b16 %v9021, %v9013
        %v9094 = vpack.c.b16 %v9022, %v9014
        %v9095 = vpack.c.b16 %v9023, %v9015
        %v9096 = vpack.c.b16 %v9024, %v9016
        %v9097 = vpack.c.b16 %v9033, %v9025
        %v9098 = vpack.c.b16 %v9034, %v9026
        %v9099 = vpack.c.b16 %v9035, %v9027
        %v9100 = vpack.c.b16 %v9036, %v9028
        %v9101 = vpack.c.b16 %v9037, %v9029
        %v9102 = vpack.c.b16 %v9038, %v9030
        %v9103 = vpack.c.b16 %v9039, %v9031
        %v9104 = vpack.c.b16 %v9040, %v9032
        %9169 = vmatpush.bf16.msra.mxu0 %v9097
        %9170 = vmatpush.bf16.msra.mxu0 %v9089
        %9171 = vmatpush.bf16.msra.mxu0 %v9081
        %9172 = vmatpush.bf16.msra.mxu0 %v9073
        %9173 = vmatpush.bf16.msra.mxu0 %v9065
        %9174 = vmatpush.bf16.msra.mxu0 %v9057
        %9175 = vmatpush.bf16.msra.mxu0 %v9049
        %9176 = vmatpush.bf16.msra.mxu0 %v9041
        %9177 = vmatmul.bf16.gmra.mxu0 %v8783
        %v9178 = vpop.f32.mrf.mxu0
        %v9179 = vadd.f32 0.0, %v9178
        %v9180 = vpop.f32.mrf.mxu0
        %9181 = vdwg.mxu0
        %9182 = vmatpush.bf16.msra.mxu0 %v9098
        %9183 = vmatpush.bf16.msra.mxu0 %v9090
        %9184 = vmatpush.bf16.msra.mxu0 %v9082
        %9185 = vmatpush.bf16.msra.mxu0 %v9074
        %9186 = vmatpush.bf16.msra.mxu0 %v9066
        %9187 = vmatpush.bf16.msra.mxu0 %v9058
        %9188 = vmatpush.bf16.msra.mxu0 %v9050
        %9189 = vmatpush.bf16.msra.mxu0 %v9042
        %9190 = vmatmul.bf16.gmra.mxu0 %v8783
        %v9191 = vpop.f32.mrf.mxu0
        %v9192 = vadd.f32 0.0, %v9191
        %v9193 = vpop.f32.mrf.mxu0
        %9194 = vdwg.mxu0
        %9195 = vmatpush.bf16.msra.mxu0 %v9099
        %9196 = vmatpush.bf16.msra.mxu0 %v9091
        %9197 = vmatpush.bf16.msra.mxu0 %v9083
        %9198 = vmatpush.bf16.msra.mxu0 %v9075
        %9199 = vmatpush.bf16.msra.mxu0 %v9067
        %9200 = vmatpush.bf16.msra.mxu0 %v9059
        %9201 = vmatpush.bf16.msra.mxu0 %v9051
        %9202 = vmatpush.bf16.msra.mxu0 %v9043
        %9203 = vmatmul.bf16.gmra.mxu0 %v8783
        %v9204 = vpop.f32.mrf.mxu0
        %v9205 = vadd.f32 0.0, %v9204
        %v9206 = vpop.f32.mrf.mxu0
        %9207 = vdwg.mxu0
        %9208 = vmatpush.bf16.msra.mxu0 %v9100
        %9209 = vmatpush.bf16.msra.mxu0 %v9092
        %9210 = vmatpush.bf16.msra.mxu0 %v9084
        %9211 = vmatpush.bf16.msra.mxu0 %v9076
        %9212 = vmatpush.bf16.msra.mxu0 %v9068
        %9213 = vmatpush.bf16.msra.mxu0 %v9060
        %9214 = vmatpush.bf16.msra.mxu0 %v9052
        %9215 = vmatpush.bf16.msra.mxu0 %v9044
        %9216 = vmatmul.bf16.gmra.mxu0 %v8783
        %v9217 = vpop.f32.mrf.mxu0
        %v9218 = vadd.f32 0.0, %v9217
        %v9219 = vpop.f32.mrf.mxu0
        %9220 = vdwg.mxu0
        %9221 = vmatpush.bf16.msra.mxu0 %v9101
        %9222 = vmatpush.bf16.msra.mxu0 %v9093
        %9223 = vmatpush.bf16.msra.mxu0 %v9085
        %9224 = vmatpush.bf16.msra.mxu0 %v9077
        %9225 = vmatpush.bf16.msra.mxu0 %v9069
        %9226 = vmatpush.bf16.msra.mxu0 %v9061
        %9227 = vmatpush.bf16.msra.mxu0 %v9053
        %9228 = vmatpush.bf16.msra.mxu0 %v9045
        %9229 = vmatmul.bf16.gmra.mxu0 %v8783
        %v9230 = vpop.f32.mrf.mxu0
        %v9231 = vadd.f32 0.0, %v9230
        %v9232 = vpop.f32.mrf.mxu0
        %9233 = vdwg.mxu0
        %9234 = vmatpush.bf16.msra.mxu0 %v9102
        %9235 = vmatpush.bf16.msra.mxu0 %v9094
        %9236 = vmatpush.bf16.msra.mxu0 %v9086
        %9237 = vmatpush.bf16.msra.mxu0 %v9078
        %9238 = vmatpush.bf16.msra.mxu0 %v9070
        %9239 = vmatpush.bf16.msra.mxu0 %v9062
        %9240 = vmatpush.bf16.msra.mxu0 %v9054
        %9241 = vmatpush.bf16.msra.mxu0 %v9046
        %9242 = vmatmul.bf16.gmra.mxu0 %v8783
        %v9243 = vpop.f32.mrf.mxu0
        %v9244 = vadd.f32 0.0, %v9243
        %v9245 = vpop.f32.mrf.mxu0
        %9246 = vdwg.mxu0
        %9247 = vmatpush.bf16.msra.mxu0 %v9103
        %9248 = vmatpush.bf16.msra.mxu0 %v9095
        %9249 = vmatpush.bf16.msra.mxu0 %v9087
        %9250 = vmatpush.bf16.msra.mxu0 %v9079
        %9251 = vmatpush.bf16.msra.mxu0 %v9071
        %9252 = vmatpush.bf16.msra.mxu0 %v9063
        %9253 = vmatpush.bf16.msra.mxu0 %v9055
        %9254 = vmatpush.bf16.msra.mxu0 %v9047
        %9255 = vmatmul.bf16.gmra.mxu0 %v8783
        %v9256 = vpop.f32.mrf.mxu0
        %v9257 = vadd.f32 0.0, %v9256
        %v9258 = vpop.f32.mrf.mxu0
        %9259 = vdwg.mxu0
        %9260 = vmatpush.bf16.msra.mxu0 %v9104
        %9261 = vmatpush.bf16.msra.mxu0 %v9096
        %9262 = vmatpush.bf16.msra.mxu0 %v9088
        %9263 = vmatpush.bf16.msra.mxu0 %v9080
        %9264 = vmatpush.bf16.msra.mxu0 %v9072
        %9265 = vmatpush.bf16.msra.mxu0 %v9064
        %9266 = vmatpush.bf16.msra.mxu0 %v9056
        %9267 = vmatpush.bf16.msra.mxu0 %v9048
        %9268 = vmatmul.bf16.gmra.mxu0 %v8783
        %v9269 = vpop.f32.mrf.mxu0
        %v9270 = vadd.f32 0.0, %v9269
        %v9271 = vpop.f32.mrf.mxu0
        %9272 = vdwg.mxu0
        %v9273 = vadd.f32 %v8685, %v9179
        %v9274 = vadd.f32 %v8698, %v9192
        %v9275 = vadd.f32 %v8711, %v9205
        %v9276 = vadd.f32 %v8724, %v9218
        %v9277 = vadd.f32 %v8737, %v9231
        %v9278 = vadd.f32 %v8750, %v9244
        %v9279 = vadd.f32 %v8763, %v9257
        %v9280 = vadd.f32 %v8776, %v9270
        %s9281 = sadd.s32 %s7860, 3
        %s9282 = smul.u32 %s9281, 4
        %s9283 = scalar_lea.vmem [#allocation2], %s9282
        %v9284 = vld [vmem:[%s9283] sm:$0xf]
        %v9285 = vpack.c.bf16 %v9284, %v9284
        %s9286 = scalar_lea.vmem %s405, 1536
        %v9287 = vld [vmem:[%s9286] sm:$0xff]
        %v9288 = vld [vmem:[%s9286 + $0x8] sm:$0xff]
        %v9289 = vld [vmem:[%s9286 + $0x10] sm:$0xff]
        %v9290 = vld [vmem:[%s9286 + $0x18] sm:$0xff]
        %v9291 = vld [vmem:[%s9286 + $0x20] sm:$0xff]
        %v9292 = vld [vmem:[%s9286 + $0x28] sm:$0xff]
        %v9293 = vld [vmem:[%s9286 + $0x30] sm:$0xff]
        %v9294 = vld [vmem:[%s9286 + $0x38] sm:$0xff]
        %v9295 = vld [vmem:[%s9286 + $0x40] sm:$0xff]
        %v9296 = vld [vmem:[%s9286 + $0x48] sm:$0xff]
        %v9297 = vld [vmem:[%s9286 + $0x50] sm:$0xff]
        %v9298 = vld [vmem:[%s9286 + $0x58] sm:$0xff]
        %v9299 = vld [vmem:[%s9286 + $0x60] sm:$0xff]
        %v9300 = vld [vmem:[%s9286 + $0x68] sm:$0xff]
        %v9301 = vld [vmem:[%s9286 + $0x70] sm:$0xff]
        %v9302 = vld [vmem:[%s9286 + $0x78] sm:$0xff]
        %v9303 = vld [vmem:[%s9286 + $0x80] sm:$0xff]
        %v9304 = vld [vmem:[%s9286 + $0x88] sm:$0xff]
        %v9305 = vld [vmem:[%s9286 + $0x90] sm:$0xff]
        %v9306 = vld [vmem:[%s9286 + $0x98] sm:$0xff]
        %v9307 = vld [vmem:[%s9286 + $0xa0] sm:$0xff]
        %v9308 = vld [vmem:[%s9286 + $0xa8] sm:$0xff]
        %v9309 = vld [vmem:[%s9286 + $0xb0] sm:$0xff]
        %v9310 = vld [vmem:[%s9286 + $0xb8] sm:$0xff]
        %v9311 = vld [vmem:[%s9286 + $0xc0] sm:$0xff]
        %v9312 = vld [vmem:[%s9286 + $0xc8] sm:$0xff]
        %v9313 = vld [vmem:[%s9286 + $0xd0] sm:$0xff]
        %v9314 = vld [vmem:[%s9286 + $0xd8] sm:$0xff]
        %v9315 = vld [vmem:[%s9286 + $0xe0] sm:$0xff]
        %v9316 = vld [vmem:[%s9286 + $0xe8] sm:$0xff]
        %v9317 = vld [vmem:[%s9286 + $0xf0] sm:$0xff]
        %v9318 = vld [vmem:[%s9286 + $0xf8] sm:$0xff]
        %v9319 = vld [vmem:[%s9286 + $0x100] sm:$0xff]
        %v9320 = vld [vmem:[%s9286 + $0x108] sm:$0xff]
        %v9321 = vld [vmem:[%s9286 + $0x110] sm:$0xff]
        %v9322 = vld [vmem:[%s9286 + $0x118] sm:$0xff]
        %v9323 = vld [vmem:[%s9286 + $0x120] sm:$0xff]
        %v9324 = vld [vmem:[%s9286 + $0x128] sm:$0xff]
        %v9325 = vld [vmem:[%s9286 + $0x130] sm:$0xff]
        %v9326 = vld [vmem:[%s9286 + $0x138] sm:$0xff]
        %v9327 = vld [vmem:[%s9286 + $0x140] sm:$0xff]
        %v9328 = vld [vmem:[%s9286 + $0x148] sm:$0xff]
        %v9329 = vld [vmem:[%s9286 + $0x150] sm:$0xff]
        %v9330 = vld [vmem:[%s9286 + $0x158] sm:$0xff]
        %v9331 = vld [vmem:[%s9286 + $0x160] sm:$0xff]
        %v9332 = vld [vmem:[%s9286 + $0x168] sm:$0xff]
        %v9333 = vld [vmem:[%s9286 + $0x170] sm:$0xff]
        %v9334 = vld [vmem:[%s9286 + $0x178] sm:$0xff]
        %v9335 = vld [vmem:[%s9286 + $0x180] sm:$0xff]
        %v9336 = vld [vmem:[%s9286 + $0x188] sm:$0xff]
        %v9337 = vld [vmem:[%s9286 + $0x190] sm:$0xff]
        %v9338 = vld [vmem:[%s9286 + $0x198] sm:$0xff]
        %v9339 = vld [vmem:[%s9286 + $0x1a0] sm:$0xff]
        %v9340 = vld [vmem:[%s9286 + $0x1a8] sm:$0xff]
        %v9341 = vld [vmem:[%s9286 + $0x1b0] sm:$0xff]
        %v9342 = vld [vmem:[%s9286 + $0x1b8] sm:$0xff]
        %v9343 = vld [vmem:[%s9286 + $0x1c0] sm:$0xff]
        %v9344 = vld [vmem:[%s9286 + $0x1c8] sm:$0xff]
        %v9345 = vld [vmem:[%s9286 + $0x1d0] sm:$0xff]
        %v9346 = vld [vmem:[%s9286 + $0x1d8] sm:$0xff]
        %v9347 = vld [vmem:[%s9286 + $0x1e0] sm:$0xff]
        %v9348 = vld [vmem:[%s9286 + $0x1e8] sm:$0xff]
        %v9349 = vld [vmem:[%s9286 + $0x1f0] sm:$0xff]
        %v9350 = vld [vmem:[%s9286 + $0x1f8] sm:$0xff]
        %v9415 = vunpack.c.l.b16 %v9287
        %v9416 = vunpack.c.h.b16 %v9287
        %v9417 = vunpack.c.l.b16 %v9288
        %v9418 = vunpack.c.h.b16 %v9288
        %v9419 = vunpack.c.l.b16 %v9289
        %v9420 = vunpack.c.h.b16 %v9289
        %v9421 = vunpack.c.l.b16 %v9290
        %v9422 = vunpack.c.h.b16 %v9290
        %v9423 = vunpack.c.l.b16 %v9291
        %v9424 = vunpack.c.h.b16 %v9291
        %v9425 = vunpack.c.l.b16 %v9292
        %v9426 = vunpack.c.h.b16 %v9292
        %v9427 = vunpack.c.l.b16 %v9293
        %v9428 = vunpack.c.h.b16 %v9293
        %v9429 = vunpack.c.l.b16 %v9294
        %v9430 = vunpack.c.h.b16 %v9294
        %v9431 = vunpack.c.l.b16 %v9295
        %v9432 = vunpack.c.h.b16 %v9295
        %v9433 = vunpack.c.l.b16 %v9296
        %v9434 = vunpack.c.h.b16 %v9296
        %v9435 = vunpack.c.l.b16 %v9297
        %v9436 = vunpack.c.h.b16 %v9297
        %v9437 = vunpack.c.l.b16 %v9298
        %v9438 = vunpack.c.h.b16 %v9298
        %v9439 = vunpack.c.l.b16 %v9299
        %v9440 = vunpack.c.h.b16 %v9299
        %v9441 = vunpack.c.l.b16 %v9300
        %v9442 = vunpack.c.h.b16 %v9300
        %v9443 = vunpack.c.l.b16 %v9301
        %v9444 = vunpack.c.h.b16 %v9301
        %v9445 = vunpack.c.l.b16 %v9302
        %v9446 = vunpack.c.h.b16 %v9302
        %v9447 = vunpack.c.l.b16 %v9303
        %v9448 = vunpack.c.h.b16 %v9303
        %v9449 = vunpack.c.l.b16 %v9304
        %v9450 = vunpack.c.h.b16 %v9304
        %v9451 = vunpack.c.l.b16 %v9305
        %v9452 = vunpack.c.h.b16 %v9305
        %v9453 = vunpack.c.l.b16 %v9306
        %v9454 = vunpack.c.h.b16 %v9306
        %v9455 = vunpack.c.l.b16 %v9307
        %v9456 = vunpack.c.h.b16 %v9307
        %v9457 = vunpack.c.l.b16 %v9308
        %v9458 = vunpack.c.h.b16 %v9308
        %v9459 = vunpack.c.l.b16 %v9309
        %v9460 = vunpack.c.h.b16 %v9309
        %v9461 = vunpack.c.l.b16 %v9310
        %v9462 = vunpack.c.h.b16 %v9310
        %v9463 = vunpack.c.l.b16 %v9311
        %v9464 = vunpack.c.h.b16 %v9311
        %v9465 = vunpack.c.l.b16 %v9312
        %v9466 = vunpack.c.h.b16 %v9312
        %v9467 = vunpack.c.l.b16 %v9313
        %v9468 = vunpack.c.h.b16 %v9313
        %v9469 = vunpack.c.l.b16 %v9314
        %v9470 = vunpack.c.h.b16 %v9314
        %v9471 = vunpack.c.l.b16 %v9315
        %v9472 = vunpack.c.h.b16 %v9315
        %v9473 = vunpack.c.l.b16 %v9316
        %v9474 = vunpack.c.h.b16 %v9316
        %v9475 = vunpack.c.l.b16 %v9317
        %v9476 = vunpack.c.h.b16 %v9317
        %v9477 = vunpack.c.l.b16 %v9318
        %v9478 = vunpack.c.h.b16 %v9318
        %v9479 = vunpack.c.l.b16 %v9319
        %v9480 = vunpack.c.h.b16 %v9319
        %v9481 = vunpack.c.l.b16 %v9320
        %v9482 = vunpack.c.h.b16 %v9320
        %v9483 = vunpack.c.l.b16 %v9321
        %v9484 = vunpack.c.h.b16 %v9321
        %v9485 = vunpack.c.l.b16 %v9322
        %v9486 = vunpack.c.h.b16 %v9322
        %v9487 = vunpack.c.l.b16 %v9323
        %v9488 = vunpack.c.h.b16 %v9323
        %v9489 = vunpack.c.l.b16 %v9324
        %v9490 = vunpack.c.h.b16 %v9324
        %v9491 = vunpack.c.l.b16 %v9325
        %v9492 = vunpack.c.h.b16 %v9325
        %v9493 = vunpack.c.l.b16 %v9326
        %v9494 = vunpack.c.h.b16 %v9326
        %v9495 = vunpack.c.l.b16 %v9327
        %v9496 = vunpack.c.h.b16 %v9327
        %v9497 = vunpack.c.l.b16 %v9328
        %v9498 = vunpack.c.h.b16 %v9328
        %v9499 = vunpack.c.l.b16 %v9329
        %v9500 = vunpack.c.h.b16 %v9329
        %v9501 = vunpack.c.l.b16 %v9330
        %v9502 = vunpack.c.h.b16 %v9330
        %v9503 = vunpack.c.l.b16 %v9331
        %v9504 = vunpack.c.h.b16 %v9331
        %v9505 = vunpack.c.l.b16 %v9332
        %v9506 = vunpack.c.h.b16 %v9332
        %v9507 = vunpack.c.l.b16 %v9333
        %v9508 = vunpack.c.h.b16 %v9333
        %v9509 = vunpack.c.l.b16 %v9334
        %v9510 = vunpack.c.h.b16 %v9334
        %v9511 = vunpack.c.l.b16 %v9335
        %v9512 = vunpack.c.h.b16 %v9335
        %v9513 = vunpack.c.l.b16 %v9336
        %v9514 = vunpack.c.h.b16 %v9336
        %v9515 = vunpack.c.l.b16 %v9337
        %v9516 = vunpack.c.h.b16 %v9337
        %v9517 = vunpack.c.l.b16 %v9338
        %v9518 = vunpack.c.h.b16 %v9338
        %v9519 = vunpack.c.l.b16 %v9339
        %v9520 = vunpack.c.h.b16 %v9339
        %v9521 = vunpack.c.l.b16 %v9340
        %v9522 = vunpack.c.h.b16 %v9340
        %v9523 = vunpack.c.l.b16 %v9341
        %v9524 = vunpack.c.h.b16 %v9341
        %v9525 = vunpack.c.l.b16 %v9342
        %v9526 = vunpack.c.h.b16 %v9342
        %v9527 = vunpack.c.l.b16 %v9343
        %v9528 = vunpack.c.h.b16 %v9343
        %v9529 = vunpack.c.l.b16 %v9344
        %v9530 = vunpack.c.h.b16 %v9344
        %v9531 = vunpack.c.l.b16 %v9345
        %v9532 = vunpack.c.h.b16 %v9345
        %v9533 = vunpack.c.l.b16 %v9346
        %v9534 = vunpack.c.h.b16 %v9346
        %v9535 = vunpack.c.l.b16 %v9347
        %v9536 = vunpack.c.h.b16 %v9347
        %v9537 = vunpack.c.l.b16 %v9348
        %v9538 = vunpack.c.h.b16 %v9348
        %v9539 = vunpack.c.l.b16 %v9349
        %v9540 = vunpack.c.h.b16 %v9349
        %v9541 = vunpack.c.l.b16 %v9350
        %v9542 = vunpack.c.h.b16 %v9350
        %v9543 = vpack.c.b16 %v9423, %v9415
        %v9544 = vpack.c.b16 %v9424, %v9416
        %v9545 = vpack.c.b16 %v9425, %v9417
        %v9546 = vpack.c.b16 %v9426, %v9418
        %v9547 = vpack.c.b16 %v9427, %v9419
        %v9548 = vpack.c.b16 %v9428, %v9420
        %v9549 = vpack.c.b16 %v9429, %v9421
        %v9550 = vpack.c.b16 %v9430, %v9422
        %v9551 = vpack.c.b16 %v9439, %v9431
        %v9552 = vpack.c.b16 %v9440, %v9432
        %v9553 = vpack.c.b16 %v9441, %v9433
        %v9554 = vpack.c.b16 %v9442, %v9434
        %v9555 = vpack.c.b16 %v9443, %v9435
        %v9556 = vpack.c.b16 %v9444, %v9436
        %v9557 = vpack.c.b16 %v9445, %v9437
        %v9558 = vpack.c.b16 %v9446, %v9438
        %v9559 = vpack.c.b16 %v9455, %v9447
        %v9560 = vpack.c.b16 %v9456, %v9448
        %v9561 = vpack.c.b16 %v9457, %v9449
        %v9562 = vpack.c.b16 %v9458, %v9450
        %v9563 = vpack.c.b16 %v9459, %v9451
        %v9564 = vpack.c.b16 %v9460, %v9452
        %v9565 = vpack.c.b16 %v9461, %v9453
        %v9566 = vpack.c.b16 %v9462, %v9454
        %v9567 = vpack.c.b16 %v9471, %v9463
        %v9568 = vpack.c.b16 %v9472, %v9464
        %v9569 = vpack.c.b16 %v9473, %v9465
        %v9570 = vpack.c.b16 %v9474, %v9466
        %v9571 = vpack.c.b16 %v9475, %v9467
        %v9572 = vpack.c.b16 %v9476, %v9468
        %v9573 = vpack.c.b16 %v9477, %v9469
        %v9574 = vpack.c.b16 %v9478, %v9470
        %v9575 = vpack.c.b16 %v9487, %v9479
        %v9576 = vpack.c.b16 %v9488, %v9480
        %v9577 = vpack.c.b16 %v9489, %v9481
        %v9578 = vpack.c.b16 %v9490, %v9482
        %v9579 = vpack.c.b16 %v9491, %v9483
        %v9580 = vpack.c.b16 %v9492, %v9484
        %v9581 = vpack.c.b16 %v9493, %v9485
        %v9582 = vpack.c.b16 %v9494, %v9486
        %v9583 = vpack.c.b16 %v9503, %v9495
        %v9584 = vpack.c.b16 %v9504, %v9496
        %v9585 = vpack.c.b16 %v9505, %v9497
        %v9586 = vpack.c.b16 %v9506, %v9498
        %v9587 = vpack.c.b16 %v9507, %v9499
        %v9588 = vpack.c.b16 %v9508, %v9500
        %v9589 = vpack.c.b16 %v9509, %v9501
        %v9590 = vpack.c.b16 %v9510, %v9502
        %v9591 = vpack.c.b16 %v9519, %v9511
        %v9592 = vpack.c.b16 %v9520, %v9512
        %v9593 = vpack.c.b16 %v9521, %v9513
        %v9594 = vpack.c.b16 %v9522, %v9514
        %v9595 = vpack.c.b16 %v9523, %v9515
        %v9596 = vpack.c.b16 %v9524, %v9516
        %v9597 = vpack.c.b16 %v9525, %v9517
        %v9598 = vpack.c.b16 %v9526, %v9518
        %v9599 = vpack.c.b16 %v9535, %v9527
        %v9600 = vpack.c.b16 %v9536, %v9528
        %v9601 = vpack.c.b16 %v9537, %v9529
        %v9602 = vpack.c.b16 %v9538, %v9530
        %v9603 = vpack.c.b16 %v9539, %v9531
        %v9604 = vpack.c.b16 %v9540, %v9532
        %v9605 = vpack.c.b16 %v9541, %v9533
        %v9606 = vpack.c.b16 %v9542, %v9534
        %9671 = vmatpush.bf16.msra.mxu0 %v9599
        %9672 = vmatpush.bf16.msra.mxu0 %v9591
        %9673 = vmatpush.bf16.msra.mxu0 %v9583
        %9674 = vmatpush.bf16.msra.mxu0 %v9575
        %9675 = vmatpush.bf16.msra.mxu0 %v9567
        %9676 = vmatpush.bf16.msra.mxu0 %v9559
        %9677 = vmatpush.bf16.msra.mxu0 %v9551
        %9678 = vmatpush.bf16.msra.mxu0 %v9543
        %9679 = vmatmul.bf16.gmra.mxu0 %v9285
        %v9680 = vpop.f32.mrf.mxu0
        %v9681 = vadd.f32 0.0, %v9680
        %v9682 = vpop.f32.mrf.mxu0
        %9683 = vdwg.mxu0
        %9684 = vmatpush.bf16.msra.mxu0 %v9600
        %9685 = vmatpush.bf16.msra.mxu0 %v9592
        %9686 = vmatpush.bf16.msra.mxu0 %v9584
        %9687 = vmatpush.bf16.msra.mxu0 %v9576
        %9688 = vmatpush.bf16.msra.mxu0 %v9568
        %9689 = vmatpush.bf16.msra.mxu0 %v9560
        %9690 = vmatpush.bf16.msra.mxu0 %v9552
        %9691 = vmatpush.bf16.msra.mxu0 %v9544
        %9692 = vmatmul.bf16.gmra.mxu0 %v9285
        %v9693 = vpop.f32.mrf.mxu0
        %v9694 = vadd.f32 0.0, %v9693
        %v9695 = vpop.f32.mrf.mxu0
        %9696 = vdwg.mxu0
        %9697 = vmatpush.bf16.msra.mxu0 %v9601
        %9698 = vmatpush.bf16.msra.mxu0 %v9593
        %9699 = vmatpush.bf16.msra.mxu0 %v9585
        %9700 = vmatpush.bf16.msra.mxu0 %v9577
        %9701 = vmatpush.bf16.msra.mxu0 %v9569
        %9702 = vmatpush.bf16.msra.mxu0 %v9561
        %9703 = vmatpush.bf16.msra.mxu0 %v9553
        %9704 = vmatpush.bf16.msra.mxu0 %v9545
        %9705 = vmatmul.bf16.gmra.mxu0 %v9285
        %v9706 = vpop.f32.mrf.mxu0
        %v9707 = vadd.f32 0.0, %v9706
        %v9708 = vpop.f32.mrf.mxu0
        %9709 = vdwg.mxu0
        %9710 = vmatpush.bf16.msra.mxu0 %v9602
        %9711 = vmatpush.bf16.msra.mxu0 %v9594
        %9712 = vmatpush.bf16.msra.mxu0 %v9586
        %9713 = vmatpush.bf16.msra.mxu0 %v9578
        %9714 = vmatpush.bf16.msra.mxu0 %v9570
        %9715 = vmatpush.bf16.msra.mxu0 %v9562
        %9716 = vmatpush.bf16.msra.mxu0 %v9554
        %9717 = vmatpush.bf16.msra.mxu0 %v9546
        %9718 = vmatmul.bf16.gmra.mxu0 %v9285
        %v9719 = vpop.f32.mrf.mxu0
        %v9720 = vadd.f32 0.0, %v9719
        %v9721 = vpop.f32.mrf.mxu0
        %9722 = vdwg.mxu0
        %9723 = vmatpush.bf16.msra.mxu0 %v9603
        %9724 = vmatpush.bf16.msra.mxu0 %v9595
        %9725 = vmatpush.bf16.msra.mxu0 %v9587
        %9726 = vmatpush.bf16.msra.mxu0 %v9579
        %9727 = vmatpush.bf16.msra.mxu0 %v9571
        %9728 = vmatpush.bf16.msra.mxu0 %v9563
        %9729 = vmatpush.bf16.msra.mxu0 %v9555
        %9730 = vmatpush.bf16.msra.mxu0 %v9547
        %9731 = vmatmul.bf16.gmra.mxu0 %v9285
        %v9732 = vpop.f32.mrf.mxu0
        %v9733 = vadd.f32 0.0, %v9732
        %v9734 = vpop.f32.mrf.mxu0
        %9735 = vdwg.mxu0
        %9736 = vmatpush.bf16.msra.mxu0 %v9604
        %9737 = vmatpush.bf16.msra.mxu0 %v9596
        %9738 = vmatpush.bf16.msra.mxu0 %v9588
        %9739 = vmatpush.bf16.msra.mxu0 %v9580
        %9740 = vmatpush.bf16.msra.mxu0 %v9572
        %9741 = vmatpush.bf16.msra.mxu0 %v9564
        %9742 = vmatpush.bf16.msra.mxu0 %v9556
        %9743 = vmatpush.bf16.msra.mxu0 %v9548
        %9744 = vmatmul.bf16.gmra.mxu0 %v9285
        %v9745 = vpop.f32.mrf.mxu0
        %v9746 = vadd.f32 0.0, %v9745
        %v9747 = vpop.f32.mrf.mxu0
        %9748 = vdwg.mxu0
        %9749 = vmatpush.bf16.msra.mxu0 %v9605
        %9750 = vmatpush.bf16.msra.mxu0 %v9597
        %9751 = vmatpush.bf16.msra.mxu0 %v9589
        %9752 = vmatpush.bf16.msra.mxu0 %v9581
        %9753 = vmatpush.bf16.msra.mxu0 %v9573
        %9754 = vmatpush.bf16.msra.mxu0 %v9565
        %9755 = vmatpush.bf16.msra.mxu0 %v9557
        %9756 = vmatpush.bf16.msra.mxu0 %v9549
        %9757 = vmatmul.bf16.gmra.mxu0 %v9285
        %v9758 = vpop.f32.mrf.mxu0
        %v9759 = vadd.f32 0.0, %v9758
        %v9760 = vpop.f32.mrf.mxu0
        %9761 = vdwg.mxu0
        %9762 = vmatpush.bf16.msra.mxu0 %v9606
        %9763 = vmatpush.bf16.msra.mxu0 %v9598
        %9764 = vmatpush.bf16.msra.mxu0 %v9590
        %9765 = vmatpush.bf16.msra.mxu0 %v9582
        %9766 = vmatpush.bf16.msra.mxu0 %v9574
        %9767 = vmatpush.bf16.msra.mxu0 %v9566
        %9768 = vmatpush.bf16.msra.mxu0 %v9558
        %9769 = vmatpush.bf16.msra.mxu0 %v9550
        %9770 = vmatmul.bf16.gmra.mxu0 %v9285
        %v9771 = vpop.f32.mrf.mxu0
        %v9772 = vadd.f32 0.0, %v9771
        %v9773 = vpop.f32.mrf.mxu0
        %9774 = vdwg.mxu0
        %v9775 = vadd.f32 %v9273, %v9681
        %v9776 = vadd.f32 %v9274, %v9694
        %v9777 = vadd.f32 %v9275, %v9707
        %v9778 = vadd.f32 %v9276, %v9720
        %v9779 = vadd.f32 %v9277, %v9733
        %v9780 = vadd.f32 %v9278, %v9746
        %v9781 = vadd.f32 %v9279, %v9759
        %v9782 = vadd.f32 %v9280, %v9772
        %s9783 = sadd.s32 %s7860, 4
        %s9784 = smul.u32 %s9783, 4
        %s9785 = scalar_lea.vmem [#allocation2], %s9784
        %v9786 = vld [vmem:[%s9785] sm:$0xf]
        %v9787 = vpack.c.bf16 %v9786, %v9786
        %s9788 = scalar_lea.vmem %s405, 2048
        %v9789 = vld [vmem:[%s9788] sm:$0xff]
        %v9790 = vld [vmem:[%s9788 + $0x8] sm:$0xff]
        %v9791 = vld [vmem:[%s9788 + $0x10] sm:$0xff]
        %v9792 = vld [vmem:[%s9788 + $0x18] sm:$0xff]
        %v9793 = vld [vmem:[%s9788 + $0x20] sm:$0xff]
        %v9794 = vld [vmem:[%s9788 + $0x28] sm:$0xff]
        %v9795 = vld [vmem:[%s9788 + $0x30] sm:$0xff]
        %v9796 = vld [vmem:[%s9788 + $0x38] sm:$0xff]
        %v9797 = vld [vmem:[%s9788 + $0x40] sm:$0xff]
        %v9798 = vld [vmem:[%s9788 + $0x48] sm:$0xff]
        %v9799 = vld [vmem:[%s9788 + $0x50] sm:$0xff]
        %v9800 = vld [vmem:[%s9788 + $0x58] sm:$0xff]
        %v9801 = vld [vmem:[%s9788 + $0x60] sm:$0xff]
        %v9802 = vld [vmem:[%s9788 + $0x68] sm:$0xff]
        %v9803 = vld [vmem:[%s9788 + $0x70] sm:$0xff]
        %v9804 = vld [vmem:[%s9788 + $0x78] sm:$0xff]
        %v9805 = vld [vmem:[%s9788 + $0x80] sm:$0xff]
        %v9806 = vld [vmem:[%s9788 + $0x88] sm:$0xff]
        %v9807 = vld [vmem:[%s9788 + $0x90] sm:$0xff]
        %v9808 = vld [vmem:[%s9788 + $0x98] sm:$0xff]
        %v9809 = vld [vmem:[%s9788 + $0xa0] sm:$0xff]
        %v9810 = vld [vmem:[%s9788 + $0xa8] sm:$0xff]
        %v9811 = vld [vmem:[%s9788 + $0xb0] sm:$0xff]
        %v9812 = vld [vmem:[%s9788 + $0xb8] sm:$0xff]
        %v9813 = vld [vmem:[%s9788 + $0xc0] sm:$0xff]
        %v9814 = vld [vmem:[%s9788 + $0xc8] sm:$0xff]
        %v9815 = vld [vmem:[%s9788 + $0xd0] sm:$0xff]
        %v9816 = vld [vmem:[%s9788 + $0xd8] sm:$0xff]
        %v9817 = vld [vmem:[%s9788 + $0xe0] sm:$0xff]
        %v9818 = vld [vmem:[%s9788 + $0xe8] sm:$0xff]
        %v9819 = vld [vmem:[%s9788 + $0xf0] sm:$0xff]
        %v9820 = vld [vmem:[%s9788 + $0xf8] sm:$0xff]
        %v9821 = vld [vmem:[%s9788 + $0x100] sm:$0xff]
        %v9822 = vld [vmem:[%s9788 + $0x108] sm:$0xff]
        %v9823 = vld [vmem:[%s9788 + $0x110] sm:$0xff]
        %v9824 = vld [vmem:[%s9788 + $0x118] sm:$0xff]
        %v9825 = vld [vmem:[%s9788 + $0x120] sm:$0xff]
        %v9826 = vld [vmem:[%s9788 + $0x128] sm:$0xff]
        %v9827 = vld [vmem:[%s9788 + $0x130] sm:$0xff]
        %v9828 = vld [vmem:[%s9788 + $0x138] sm:$0xff]
        %v9829 = vld [vmem:[%s9788 + $0x140] sm:$0xff]
        %v9830 = vld [vmem:[%s9788 + $0x148] sm:$0xff]
        %v9831 = vld [vmem:[%s9788 + $0x150] sm:$0xff]
        %v9832 = vld [vmem:[%s9788 + $0x158] sm:$0xff]
        %v9833 = vld [vmem:[%s9788 + $0x160] sm:$0xff]
        %v9834 = vld [vmem:[%s9788 + $0x168] sm:$0xff]
        %v9835 = vld [vmem:[%s9788 + $0x170] sm:$0xff]
        %v9836 = vld [vmem:[%s9788 + $0x178] sm:$0xff]
        %v9837 = vld [vmem:[%s9788 + $0x180] sm:$0xff]
        %v9838 = vld [vmem:[%s9788 + $0x188] sm:$0xff]
        %v9839 = vld [vmem:[%s9788 + $0x190] sm:$0xff]
        %v9840 = vld [vmem:[%s9788 + $0x198] sm:$0xff]
        %v9841 = vld [vmem:[%s9788 + $0x1a0] sm:$0xff]
        %v9842 = vld [vmem:[%s9788 + $0x1a8] sm:$0xff]
        %v9843 = vld [vmem:[%s9788 + $0x1b0] sm:$0xff]
        %v9844 = vld [vmem:[%s9788 + $0x1b8] sm:$0xff]
        %v9845 = vld [vmem:[%s9788 + $0x1c0] sm:$0xff]
        %v9846 = vld [vmem:[%s9788 + $0x1c8] sm:$0xff]
        %v9847 = vld [vmem:[%s9788 + $0x1d0] sm:$0xff]
        %v9848 = vld [vmem:[%s9788 + $0x1d8] sm:$0xff]
        %v9849 = vld [vmem:[%s9788 + $0x1e0] sm:$0xff]
        %v9850 = vld [vmem:[%s9788 + $0x1e8] sm:$0xff]
        %v9851 = vld [vmem:[%s9788 + $0x1f0] sm:$0xff]
        %v9852 = vld [vmem:[%s9788 + $0x1f8] sm:$0xff]
        %v9917 = vunpack.c.l.b16 %v9789
        %v9918 = vunpack.c.h.b16 %v9789
        %v9919 = vunpack.c.l.b16 %v9790
        %v9920 = vunpack.c.h.b16 %v9790
        %v9921 = vunpack.c.l.b16 %v9791
        %v9922 = vunpack.c.h.b16 %v9791
        %v9923 = vunpack.c.l.b16 %v9792
        %v9924 = vunpack.c.h.b16 %v9792
        %v9925 = vunpack.c.l.b16 %v9793
        %v9926 = vunpack.c.h.b16 %v9793
        %v9927 = vunpack.c.l.b16 %v9794
        %v9928 = vunpack.c.h.b16 %v9794
        %v9929 = vunpack.c.l.b16 %v9795
        %v9930 = vunpack.c.h.b16 %v9795
        %v9931 = vunpack.c.l.b16 %v9796
        %v9932 = vunpack.c.h.b16 %v9796
        %v9933 = vunpack.c.l.b16 %v9797
        %v9934 = vunpack.c.h.b16 %v9797
        %v9935 = vunpack.c.l.b16 %v9798
        %v9936 = vunpack.c.h.b16 %v9798
        %v9937 = vunpack.c.l.b16 %v9799
        %v9938 = vunpack.c.h.b16 %v9799
        %v9939 = vunpack.c.l.b16 %v9800
        %v9940 = vunpack.c.h.b16 %v9800
        %v9941 = vunpack.c.l.b16 %v9801
        %v9942 = vunpack.c.h.b16 %v9801
        %v9943 = vunpack.c.l.b16 %v9802
        %v9944 = vunpack.c.h.b16 %v9802
        %v9945 = vunpack.c.l.b16 %v9803
        %v9946 = vunpack.c.h.b16 %v9803
        %v9947 = vunpack.c.l.b16 %v9804
        %v9948 = vunpack.c.h.b16 %v9804
        %v9949 = vunpack.c.l.b16 %v9805
        %v9950 = vunpack.c.h.b16 %v9805
        %v9951 = vunpack.c.l.b16 %v9806
        %v9952 = vunpack.c.h.b16 %v9806
        %v9953 = vunpack.c.l.b16 %v9807
        %v9954 = vunpack.c.h.b16 %v9807
        %v9955 = vunpack.c.l.b16 %v9808
        %v9956 = vunpack.c.h.b16 %v9808
        %v9957 = vunpack.c.l.b16 %v9809
        %v9958 = vunpack.c.h.b16 %v9809
        %v9959 = vunpack.c.l.b16 %v9810
        %v9960 = vunpack.c.h.b16 %v9810
        %v9961 = vunpack.c.l.b16 %v9811
        %v9962 = vunpack.c.h.b16 %v9811
        %v9963 = vunpack.c.l.b16 %v9812
        %v9964 = vunpack.c.h.b16 %v9812
        %v9965 = vunpack.c.l.b16 %v9813
        %v9966 = vunpack.c.h.b16 %v9813
        %v9967 = vunpack.c.l.b16 %v9814
        %v9968 = vunpack.c.h.b16 %v9814
        %v9969 = vunpack.c.l.b16 %v9815
        %v9970 = vunpack.c.h.b16 %v9815
        %v9971 = vunpack.c.l.b16 %v9816
        %v9972 = vunpack.c.h.b16 %v9816
        %v9973 = vunpack.c.l.b16 %v9817
        %v9974 = vunpack.c.h.b16 %v9817
        %v9975 = vunpack.c.l.b16 %v9818
        %v9976 = vunpack.c.h.b16 %v9818
        %v9977 = vunpack.c.l.b16 %v9819
        %v9978 = vunpack.c.h.b16 %v9819
        %v9979 = vunpack.c.l.b16 %v9820
        %v9980 = vunpack.c.h.b16 %v9820
        %v9981 = vunpack.c.l.b16 %v9821
        %v9982 = vunpack.c.h.b16 %v9821
        %v9983 = vunpack.c.l.b16 %v9822
        %v9984 = vunpack.c.h.b16 %v9822
        %v9985 = vunpack.c.l.b16 %v9823
        %v9986 = vunpack.c.h.b16 %v9823
        %v9987 = vunpack.c.l.b16 %v9824
        %v9988 = vunpack.c.h.b16 %v9824
        %v9989 = vunpack.c.l.b16 %v9825
        %v9990 = vunpack.c.h.b16 %v9825
        %v9991 = vunpack.c.l.b16 %v9826
        %v9992 = vunpack.c.h.b16 %v9826
        %v9993 = vunpack.c.l.b16 %v9827
        %v9994 = vunpack.c.h.b16 %v9827
        %v9995 = vunpack.c.l.b16 %v9828
        %v9996 = vunpack.c.h.b16 %v9828
        %v9997 = vunpack.c.l.b16 %v9829
        %v9998 = vunpack.c.h.b16 %v9829
        %v9999 = vunpack.c.l.b16 %v9830
        %v10000 = vunpack.c.h.b16 %v9830
        %v10001 = vunpack.c.l.b16 %v9831
        %v10002 = vunpack.c.h.b16 %v9831
        %v10003 = vunpack.c.l.b16 %v9832
        %v10004 = vunpack.c.h.b16 %v9832
        %v10005 = vunpack.c.l.b16 %v9833
        %v10006 = vunpack.c.h.b16 %v9833
        %v10007 = vunpack.c.l.b16 %v9834
        %v10008 = vunpack.c.h.b16 %v9834
        %v10009 = vunpack.c.l.b16 %v9835
        %v10010 = vunpack.c.h.b16 %v9835
        %v10011 = vunpack.c.l.b16 %v9836
        %v10012 = vunpack.c.h.b16 %v9836
        %v10013 = vunpack.c.l.b16 %v9837
        %v10014 = vunpack.c.h.b16 %v9837
        %v10015 = vunpack.c.l.b16 %v9838
        %v10016 = vunpack.c.h.b16 %v9838
        %v10017 = vunpack.c.l.b16 %v9839
        %v10018 = vunpack.c.h.b16 %v9839
        %v10019 = vunpack.c.l.b16 %v9840
        %v10020 = vunpack.c.h.b16 %v9840
        %v10021 = vunpack.c.l.b16 %v9841
        %v10022 = vunpack.c.h.b16 %v9841
        %v10023 = vunpack.c.l.b16 %v9842
        %v10024 = vunpack.c.h.b16 %v9842
        %v10025 = vunpack.c.l.b16 %v9843
        %v10026 = vunpack.c.h.b16 %v9843
        %v10027 = vunpack.c.l.b16 %v9844
        %v10028 = vunpack.c.h.b16 %v9844
        %v10029 = vunpack.c.l.b16 %v9845
        %v10030 = vunpack.c.h.b16 %v9845
        %v10031 = vunpack.c.l.b16 %v9846
        %v10032 = vunpack.c.h.b16 %v9846
        %v10033 = vunpack.c.l.b16 %v9847
        %v10034 = vunpack.c.h.b16 %v9847
        %v10035 = vunpack.c.l.b16 %v9848
        %v10036 = vunpack.c.h.b16 %v9848
        %v10037 = vunpack.c.l.b16 %v9849
        %v10038 = vunpack.c.h.b16 %v9849
        %v10039 = vunpack.c.l.b16 %v9850
        %v10040 = vunpack.c.h.b16 %v9850
        %v10041 = vunpack.c.l.b16 %v9851
        %v10042 = vunpack.c.h.b16 %v9851
        %v10043 = vunpack.c.l.b16 %v9852
        %v10044 = vunpack.c.h.b16 %v9852
        %v10045 = vpack.c.b16 %v9925, %v9917
        %v10046 = vpack.c.b16 %v9926, %v9918
        %v10047 = vpack.c.b16 %v9927, %v9919
        %v10048 = vpack.c.b16 %v9928, %v9920
        %v10049 = vpack.c.b16 %v9929, %v9921
        %v10050 = vpack.c.b16 %v9930, %v9922
        %v10051 = vpack.c.b16 %v9931, %v9923
        %v10052 = vpack.c.b16 %v9932, %v9924
        %v10053 = vpack.c.b16 %v9941, %v9933
        %v10054 = vpack.c.b16 %v9942, %v9934
        %v10055 = vpack.c.b16 %v9943, %v9935
        %v10056 = vpack.c.b16 %v9944, %v9936
        %v10057 = vpack.c.b16 %v9945, %v9937
        %v10058 = vpack.c.b16 %v9946, %v9938
        %v10059 = vpack.c.b16 %v9947, %v9939
        %v10060 = vpack.c.b16 %v9948, %v9940
        %v10061 = vpack.c.b16 %v9957, %v9949
        %v10062 = vpack.c.b16 %v9958, %v9950
        %v10063 = vpack.c.b16 %v9959, %v9951
        %v10064 = vpack.c.b16 %v9960, %v9952
        %v10065 = vpack.c.b16 %v9961, %v9953
        %v10066 = vpack.c.b16 %v9962, %v9954
        %v10067 = vpack.c.b16 %v9963, %v9955
        %v10068 = vpack.c.b16 %v9964, %v9956
        %v10069 = vpack.c.b16 %v9973, %v9965
        %v10070 = vpack.c.b16 %v9974, %v9966
        %v10071 = vpack.c.b16 %v9975, %v9967
        %v10072 = vpack.c.b16 %v9976, %v9968
        %v10073 = vpack.c.b16 %v9977, %v9969
        %v10074 = vpack.c.b16 %v9978, %v9970
        %v10075 = vpack.c.b16 %v9979, %v9971
        %v10076 = vpack.c.b16 %v9980, %v9972
        %v10077 = vpack.c.b16 %v9989, %v9981
        %v10078 = vpack.c.b16 %v9990, %v9982
        %v10079 = vpack.c.b16 %v9991, %v9983
        %v10080 = vpack.c.b16 %v9992, %v9984
        %v10081 = vpack.c.b16 %v9993, %v9985
        %v10082 = vpack.c.b16 %v9994, %v9986
        %v10083 = vpack.c.b16 %v9995, %v9987
        %v10084 = vpack.c.b16 %v9996, %v9988
        %v10085 = vpack.c.b16 %v10005, %v9997
        %v10086 = vpack.c.b16 %v10006, %v9998
        %v10087 = vpack.c.b16 %v10007, %v9999
        %v10088 = vpack.c.b16 %v10008, %v10000
        %v10089 = vpack.c.b16 %v10009, %v10001
        %v10090 = vpack.c.b16 %v10010, %v10002
        %v10091 = vpack.c.b16 %v10011, %v10003
        %v10092 = vpack.c.b16 %v10012, %v10004
        %v10093 = vpack.c.b16 %v10021, %v10013
        %v10094 = vpack.c.b16 %v10022, %v10014
        %v10095 = vpack.c.b16 %v10023, %v10015
        %v10096 = vpack.c.b16 %v10024, %v10016
        %v10097 = vpack.c.b16 %v10025, %v10017
        %v10098 = vpack.c.b16 %v10026, %v10018
        %v10099 = vpack.c.b16 %v10027, %v10019
        %v10100 = vpack.c.b16 %v10028, %v10020
        %v10101 = vpack.c.b16 %v10037, %v10029
        %v10102 = vpack.c.b16 %v10038, %v10030
        %v10103 = vpack.c.b16 %v10039, %v10031
        %v10104 = vpack.c.b16 %v10040, %v10032
        %v10105 = vpack.c.b16 %v10041, %v10033
        %v10106 = vpack.c.b16 %v10042, %v10034
        %v10107 = vpack.c.b16 %v10043, %v10035
        %v10108 = vpack.c.b16 %v10044, %v10036
        %10173 = vmatpush.bf16.msra.mxu0 %v10101
        %10174 = vmatpush.bf16.msra.mxu0 %v10093
        %10175 = vmatpush.bf16.msra.mxu0 %v10085
        %10176 = vmatpush.bf16.msra.mxu0 %v10077
        %10177 = vmatpush.bf16.msra.mxu0 %v10069
        %10178 = vmatpush.bf16.msra.mxu0 %v10061
        %10179 = vmatpush.bf16.msra.mxu0 %v10053
        %10180 = vmatpush.bf16.msra.mxu0 %v10045
        %10181 = vmatmul.bf16.gmra.mxu0 %v9787
        %v10182 = vpop.f32.mrf.mxu0
        %v10183 = vadd.f32 0.0, %v10182
        %v10184 = vpop.f32.mrf.mxu0
        %10185 = vdwg.mxu0
        %10186 = vmatpush.bf16.msra.mxu0 %v10102
        %10187 = vmatpush.bf16.msra.mxu0 %v10094
        %10188 = vmatpush.bf16.msra.mxu0 %v10086
        %10189 = vmatpush.bf16.msra.mxu0 %v10078
        %10190 = vmatpush.bf16.msra.mxu0 %v10070
        %10191 = vmatpush.bf16.msra.mxu0 %v10062
        %10192 = vmatpush.bf16.msra.mxu0 %v10054
        %10193 = vmatpush.bf16.msra.mxu0 %v10046
        %10194 = vmatmul.bf16.gmra.mxu0 %v9787
        %v10195 = vpop.f32.mrf.mxu0
        %v10196 = vadd.f32 0.0, %v10195
        %v10197 = vpop.f32.mrf.mxu0
        %10198 = vdwg.mxu0
        %10199 = vmatpush.bf16.msra.mxu0 %v10103
        %10200 = vmatpush.bf16.msra.mxu0 %v10095
        %10201 = vmatpush.bf16.msra.mxu0 %v10087
        %10202 = vmatpush.bf16.msra.mxu0 %v10079
        %10203 = vmatpush.bf16.msra.mxu0 %v10071
        %10204 = vmatpush.bf16.msra.mxu0 %v10063
        %10205 = vmatpush.bf16.msra.mxu0 %v10055
        %10206 = vmatpush.bf16.msra.mxu0 %v10047
        %10207 = vmatmul.bf16.gmra.mxu0 %v9787
        %v10208 = vpop.f32.mrf.mxu0
        %v10209 = vadd.f32 0.0, %v10208
        %v10210 = vpop.f32.mrf.mxu0
        %10211 = vdwg.mxu0
        %10212 = vmatpush.bf16.msra.mxu0 %v10104
        %10213 = vmatpush.bf16.msra.mxu0 %v10096
        %10214 = vmatpush.bf16.msra.mxu0 %v10088
        %10215 = vmatpush.bf16.msra.mxu0 %v10080
        %10216 = vmatpush.bf16.msra.mxu0 %v10072
        %10217 = vmatpush.bf16.msra.mxu0 %v10064
        %10218 = vmatpush.bf16.msra.mxu0 %v10056
        %10219 = vmatpush.bf16.msra.mxu0 %v10048
        %10220 = vmatmul.bf16.gmra.mxu0 %v9787
        %v10221 = vpop.f32.mrf.mxu0
        %v10222 = vadd.f32 0.0, %v10221
        %v10223 = vpop.f32.mrf.mxu0
        %10224 = vdwg.mxu0
        %10225 = vmatpush.bf16.msra.mxu0 %v10105
        %10226 = vmatpush.bf16.msra.mxu0 %v10097
        %10227 = vmatpush.bf16.msra.mxu0 %v10089
        %10228 = vmatpush.bf16.msra.mxu0 %v10081
        %10229 = vmatpush.bf16.msra.mxu0 %v10073
        %10230 = vmatpush.bf16.msra.mxu0 %v10065
        %10231 = vmatpush.bf16.msra.mxu0 %v10057
        %10232 = vmatpush.bf16.msra.mxu0 %v10049
        %10233 = vmatmul.bf16.gmra.mxu0 %v9787
        %v10234 = vpop.f32.mrf.mxu0
        %v10235 = vadd.f32 0.0, %v10234
        %v10236 = vpop.f32.mrf.mxu0
        %10237 = vdwg.mxu0
        %10238 = vmatpush.bf16.msra.mxu0 %v10106
        %10239 = vmatpush.bf16.msra.mxu0 %v10098
        %10240 = vmatpush.bf16.msra.mxu0 %v10090
        %10241 = vmatpush.bf16.msra.mxu0 %v10082
        %10242 = vmatpush.bf16.msra.mxu0 %v10074
        %10243 = vmatpush.bf16.msra.mxu0 %v10066
        %10244 = vmatpush.bf16.msra.mxu0 %v10058
        %10245 = vmatpush.bf16.msra.mxu0 %v10050
        %10246 = vmatmul.bf16.gmra.mxu0 %v9787
        %v10247 = vpop.f32.mrf.mxu0
        %v10248 = vadd.f32 0.0, %v10247
        %v10249 = vpop.f32.mrf.mxu0
        %10250 = vdwg.mxu0
        %10251 = vmatpush.bf16.msra.mxu0 %v10107
        %10252 = vmatpush.bf16.msra.mxu0 %v10099
        %10253 = vmatpush.bf16.msra.mxu0 %v10091
        %10254 = vmatpush.bf16.msra.mxu0 %v10083
        %10255 = vmatpush.bf16.msra.mxu0 %v10075
        %10256 = vmatpush.bf16.msra.mxu0 %v10067
        %10257 = vmatpush.bf16.msra.mxu0 %v10059
        %10258 = vmatpush.bf16.msra.mxu0 %v10051
        %10259 = vmatmul.bf16.gmra.mxu0 %v9787
        %v10260 = vpop.f32.mrf.mxu0
        %v10261 = vadd.f32 0.0, %v10260
        %v10262 = vpop.f32.mrf.mxu0
        %10263 = vdwg.mxu0
        %10264 = vmatpush.bf16.msra.mxu0 %v10108
        %10265 = vmatpush.bf16.msra.mxu0 %v10100
        %10266 = vmatpush.bf16.msra.mxu0 %v10092
        %10267 = vmatpush.bf16.msra.mxu0 %v10084
        %10268 = vmatpush.bf16.msra.mxu0 %v10076
        %10269 = vmatpush.bf16.msra.mxu0 %v10068
        %10270 = vmatpush.bf16.msra.mxu0 %v10060
        %10271 = vmatpush.bf16.msra.mxu0 %v10052
        %10272 = vmatmul.bf16.gmra.mxu0 %v9787
        %v10273 = vpop.f32.mrf.mxu0
        %v10274 = vadd.f32 0.0, %v10273
        %v10275 = vpop.f32.mrf.mxu0
        %10276 = vdwg.mxu0
        %v10277 = vadd.f32 %v9775, %v10183
        %v10278 = vadd.f32 %v9776, %v10196
        %v10279 = vadd.f32 %v9777, %v10209
        %v10280 = vadd.f32 %v9778, %v10222
        %v10281 = vadd.f32 %v9779, %v10235
        %v10282 = vadd.f32 %v9780, %v10248
        %v10283 = vadd.f32 %v9781, %v10261
        %v10284 = vadd.f32 %v9782, %v10274
        %s10285 = sadd.s32 %s7860, 5
        %s10286 = smul.u32 %s10285, 4
        %s10287 = scalar_lea.vmem [#allocation2], %s10286
        %v10288 = vld [vmem:[%s10287] sm:$0xf]
        %v10289 = vpack.c.bf16 %v10288, %v10288
        %s10290 = scalar_lea.vmem %s405, 2560
        %v10291 = vld [vmem:[%s10290] sm:$0xff]
        %v10292 = vld [vmem:[%s10290 + $0x8] sm:$0xff]
        %v10293 = vld [vmem:[%s10290 + $0x10] sm:$0xff]
        %v10294 = vld [vmem:[%s10290 + $0x18] sm:$0xff]
        %v10295 = vld [vmem:[%s10290 + $0x20] sm:$0xff]
        %v10296 = vld [vmem:[%s10290 + $0x28] sm:$0xff]
        %v10297 = vld [vmem:[%s10290 + $0x30] sm:$0xff]
        %v10298 = vld [vmem:[%s10290 + $0x38] sm:$0xff]
        %v10299 = vld [vmem:[%s10290 + $0x40] sm:$0xff]
        %v10300 = vld [vmem:[%s10290 + $0x48] sm:$0xff]
        %v10301 = vld [vmem:[%s10290 + $0x50] sm:$0xff]
        %v10302 = vld [vmem:[%s10290 + $0x58] sm:$0xff]
        %v10303 = vld [vmem:[%s10290 + $0x60] sm:$0xff]
        %v10304 = vld [vmem:[%s10290 + $0x68] sm:$0xff]
        %v10305 = vld [vmem:[%s10290 + $0x70] sm:$0xff]
        %v10306 = vld [vmem:[%s10290 + $0x78] sm:$0xff]
        %v10307 = vld [vmem:[%s10290 + $0x80] sm:$0xff]
        %v10308 = vld [vmem:[%s10290 + $0x88] sm:$0xff]
        %v10309 = vld [vmem:[%s10290 + $0x90] sm:$0xff]
        %v10310 = vld [vmem:[%s10290 + $0x98] sm:$0xff]
        %v10311 = vld [vmem:[%s10290 + $0xa0] sm:$0xff]
        %v10312 = vld [vmem:[%s10290 + $0xa8] sm:$0xff]
        %v10313 = vld [vmem:[%s10290 + $0xb0] sm:$0xff]
        %v10314 = vld [vmem:[%s10290 + $0xb8] sm:$0xff]
        %v10315 = vld [vmem:[%s10290 + $0xc0] sm:$0xff]
        %v10316 = vld [vmem:[%s10290 + $0xc8] sm:$0xff]
        %v10317 = vld [vmem:[%s10290 + $0xd0] sm:$0xff]
        %v10318 = vld [vmem:[%s10290 + $0xd8] sm:$0xff]
        %v10319 = vld [vmem:[%s10290 + $0xe0] sm:$0xff]
        %v10320 = vld [vmem:[%s10290 + $0xe8] sm:$0xff]
        %v10321 = vld [vmem:[%s10290 + $0xf0] sm:$0xff]
        %v10322 = vld [vmem:[%s10290 + $0xf8] sm:$0xff]
        %v10323 = vld [vmem:[%s10290 + $0x100] sm:$0xff]
        %v10324 = vld [vmem:[%s10290 + $0x108] sm:$0xff]
        %v10325 = vld [vmem:[%s10290 + $0x110] sm:$0xff]
        %v10326 = vld [vmem:[%s10290 + $0x118] sm:$0xff]
        %v10327 = vld [vmem:[%s10290 + $0x120] sm:$0xff]
        %v10328 = vld [vmem:[%s10290 + $0x128] sm:$0xff]
        %v10329 = vld [vmem:[%s10290 + $0x130] sm:$0xff]
        %v10330 = vld [vmem:[%s10290 + $0x138] sm:$0xff]
        %v10331 = vld [vmem:[%s10290 + $0x140] sm:$0xff]
        %v10332 = vld [vmem:[%s10290 + $0x148] sm:$0xff]
        %v10333 = vld [vmem:[%s10290 + $0x150] sm:$0xff]
        %v10334 = vld [vmem:[%s10290 + $0x158] sm:$0xff]
        %v10335 = vld [vmem:[%s10290 + $0x160] sm:$0xff]
        %v10336 = vld [vmem:[%s10290 + $0x168] sm:$0xff]
        %v10337 = vld [vmem:[%s10290 + $0x170] sm:$0xff]
        %v10338 = vld [vmem:[%s10290 + $0x178] sm:$0xff]
        %v10339 = vld [vmem:[%s10290 + $0x180] sm:$0xff]
        %v10340 = vld [vmem:[%s10290 + $0x188] sm:$0xff]
        %v10341 = vld [vmem:[%s10290 + $0x190] sm:$0xff]
        %v10342 = vld [vmem:[%s10290 + $0x198] sm:$0xff]
        %v10343 = vld [vmem:[%s10290 + $0x1a0] sm:$0xff]
        %v10344 = vld [vmem:[%s10290 + $0x1a8] sm:$0xff]
        %v10345 = vld [vmem:[%s10290 + $0x1b0] sm:$0xff]
        %v10346 = vld [vmem:[%s10290 + $0x1b8] sm:$0xff]
        %v10347 = vld [vmem:[%s10290 + $0x1c0] sm:$0xff]
        %v10348 = vld [vmem:[%s10290 + $0x1c8] sm:$0xff]
        %v10349 = vld [vmem:[%s10290 + $0x1d0] sm:$0xff]
        %v10350 = vld [vmem:[%s10290 + $0x1d8] sm:$0xff]
        %v10351 = vld [vmem:[%s10290 + $0x1e0] sm:$0xff]
        %v10352 = vld [vmem:[%s10290 + $0x1e8] sm:$0xff]
        %v10353 = vld [vmem:[%s10290 + $0x1f0] sm:$0xff]
        %v10354 = vld [vmem:[%s10290 + $0x1f8] sm:$0xff]
        %v10419 = vunpack.c.l.b16 %v10291
        %v10420 = vunpack.c.h.b16 %v10291
        %v10421 = vunpack.c.l.b16 %v10292
        %v10422 = vunpack.c.h.b16 %v10292
        %v10423 = vunpack.c.l.b16 %v10293
        %v10424 = vunpack.c.h.b16 %v10293
        %v10425 = vunpack.c.l.b16 %v10294
        %v10426 = vunpack.c.h.b16 %v10294
        %v10427 = vunpack.c.l.b16 %v10295
        %v10428 = vunpack.c.h.b16 %v10295
        %v10429 = vunpack.c.l.b16 %v10296
        %v10430 = vunpack.c.h.b16 %v10296
        %v10431 = vunpack.c.l.b16 %v10297
        %v10432 = vunpack.c.h.b16 %v10297
        %v10433 = vunpack.c.l.b16 %v10298
        %v10434 = vunpack.c.h.b16 %v10298
        %v10435 = vunpack.c.l.b16 %v10299
        %v10436 = vunpack.c.h.b16 %v10299
        %v10437 = vunpack.c.l.b16 %v10300
        %v10438 = vunpack.c.h.b16 %v10300
        %v10439 = vunpack.c.l.b16 %v10301
        %v10440 = vunpack.c.h.b16 %v10301
        %v10441 = vunpack.c.l.b16 %v10302
        %v10442 = vunpack.c.h.b16 %v10302
        %v10443 = vunpack.c.l.b16 %v10303
        %v10444 = vunpack.c.h.b16 %v10303
        %v10445 = vunpack.c.l.b16 %v10304
        %v10446 = vunpack.c.h.b16 %v10304
        %v10447 = vunpack.c.l.b16 %v10305
        %v10448 = vunpack.c.h.b16 %v10305
        %v10449 = vunpack.c.l.b16 %v10306
        %v10450 = vunpack.c.h.b16 %v10306
        %v10451 = vunpack.c.l.b16 %v10307
        %v10452 = vunpack.c.h.b16 %v10307
        %v10453 = vunpack.c.l.b16 %v10308
        %v10454 = vunpack.c.h.b16 %v10308
        %v10455 = vunpack.c.l.b16 %v10309
        %v10456 = vunpack.c.h.b16 %v10309
        %v10457 = vunpack.c.l.b16 %v10310
        %v10458 = vunpack.c.h.b16 %v10310
        %v10459 = vunpack.c.l.b16 %v10311
        %v10460 = vunpack.c.h.b16 %v10311
        %v10461 = vunpack.c.l.b16 %v10312
        %v10462 = vunpack.c.h.b16 %v10312
        %v10463 = vunpack.c.l.b16 %v10313
        %v10464 = vunpack.c.h.b16 %v10313
        %v10465 = vunpack.c.l.b16 %v10314
        %v10466 = vunpack.c.h.b16 %v10314
        %v10467 = vunpack.c.l.b16 %v10315
        %v10468 = vunpack.c.h.b16 %v10315
        %v10469 = vunpack.c.l.b16 %v10316
        %v10470 = vunpack.c.h.b16 %v10316
        %v10471 = vunpack.c.l.b16 %v10317
        %v10472 = vunpack.c.h.b16 %v10317
        %v10473 = vunpack.c.l.b16 %v10318
        %v10474 = vunpack.c.h.b16 %v10318
        %v10475 = vunpack.c.l.b16 %v10319
        %v10476 = vunpack.c.h.b16 %v10319
        %v10477 = vunpack.c.l.b16 %v10320
        %v10478 = vunpack.c.h.b16 %v10320
        %v10479 = vunpack.c.l.b16 %v10321
        %v10480 = vunpack.c.h.b16 %v10321
        %v10481 = vunpack.c.l.b16 %v10322
        %v10482 = vunpack.c.h.b16 %v10322
        %v10483 = vunpack.c.l.b16 %v10323
        %v10484 = vunpack.c.h.b16 %v10323
        %v10485 = vunpack.c.l.b16 %v10324
        %v10486 = vunpack.c.h.b16 %v10324
        %v10487 = vunpack.c.l.b16 %v10325
        %v10488 = vunpack.c.h.b16 %v10325
        %v10489 = vunpack.c.l.b16 %v10326
        %v10490 = vunpack.c.h.b16 %v10326
        %v10491 = vunpack.c.l.b16 %v10327
        %v10492 = vunpack.c.h.b16 %v10327
        %v10493 = vunpack.c.l.b16 %v10328
        %v10494 = vunpack.c.h.b16 %v10328
        %v10495 = vunpack.c.l.b16 %v10329
        %v10496 = vunpack.c.h.b16 %v10329
        %v10497 = vunpack.c.l.b16 %v10330
        %v10498 = vunpack.c.h.b16 %v10330
        %v10499 = vunpack.c.l.b16 %v10331
        %v10500 = vunpack.c.h.b16 %v10331
        %v10501 = vunpack.c.l.b16 %v10332
        %v10502 = vunpack.c.h.b16 %v10332
        %v10503 = vunpack.c.l.b16 %v10333
        %v10504 = vunpack.c.h.b16 %v10333
        %v10505 = vunpack.c.l.b16 %v10334
        %v10506 = vunpack.c.h.b16 %v10334
        %v10507 = vunpack.c.l.b16 %v10335
        %v10508 = vunpack.c.h.b16 %v10335
        %v10509 = vunpack.c.l.b16 %v10336
        %v10510 = vunpack.c.h.b16 %v10336
        %v10511 = vunpack.c.l.b16 %v10337
        %v10512 = vunpack.c.h.b16 %v10337
        %v10513 = vunpack.c.l.b16 %v10338
        %v10514 = vunpack.c.h.b16 %v10338
        %v10515 = vunpack.c.l.b16 %v10339
        %v10516 = vunpack.c.h.b16 %v10339
        %v10517 = vunpack.c.l.b16 %v10340
        %v10518 = vunpack.c.h.b16 %v10340
        %v10519 = vunpack.c.l.b16 %v10341
        %v10520 = vunpack.c.h.b16 %v10341
        %v10521 = vunpack.c.l.b16 %v10342
        %v10522 = vunpack.c.h.b16 %v10342
        %v10523 = vunpack.c.l.b16 %v10343
        %v10524 = vunpack.c.h.b16 %v10343
        %v10525 = vunpack.c.l.b16 %v10344
        %v10526 = vunpack.c.h.b16 %v10344
        %v10527 = vunpack.c.l.b16 %v10345
        %v10528 = vunpack.c.h.b16 %v10345
        %v10529 = vunpack.c.l.b16 %v10346
        %v10530 = vunpack.c.h.b16 %v10346
        %v10531 = vunpack.c.l.b16 %v10347
        %v10532 = vunpack.c.h.b16 %v10347
        %v10533 = vunpack.c.l.b16 %v10348
        %v10534 = vunpack.c.h.b16 %v10348
        %v10535 = vunpack.c.l.b16 %v10349
        %v10536 = vunpack.c.h.b16 %v10349
        %v10537 = vunpack.c.l.b16 %v10350
        %v10538 = vunpack.c.h.b16 %v10350
        %v10539 = vunpack.c.l.b16 %v10351
        %v10540 = vunpack.c.h.b16 %v10351
        %v10541 = vunpack.c.l.b16 %v10352
        %v10542 = vunpack.c.h.b16 %v10352
        %v10543 = vunpack.c.l.b16 %v10353
        %v10544 = vunpack.c.h.b16 %v10353
        %v10545 = vunpack.c.l.b16 %v10354
        %v10546 = vunpack.c.h.b16 %v10354
        %v10547 = vpack.c.b16 %v10427, %v10419
        %v10548 = vpack.c.b16 %v10428, %v10420
        %v10549 = vpack.c.b16 %v10429, %v10421
        %v10550 = vpack.c.b16 %v10430, %v10422
        %v10551 = vpack.c.b16 %v10431, %v10423
        %v10552 = vpack.c.b16 %v10432, %v10424
        %v10553 = vpack.c.b16 %v10433, %v10425
        %v10554 = vpack.c.b16 %v10434, %v10426
        %v10555 = vpack.c.b16 %v10443, %v10435
        %v10556 = vpack.c.b16 %v10444, %v10436
        %v10557 = vpack.c.b16 %v10445, %v10437
        %v10558 = vpack.c.b16 %v10446, %v10438
        %v10559 = vpack.c.b16 %v10447, %v10439
        %v10560 = vpack.c.b16 %v10448, %v10440
        %v10561 = vpack.c.b16 %v10449, %v10441
        %v10562 = vpack.c.b16 %v10450, %v10442
        %v10563 = vpack.c.b16 %v10459, %v10451
        %v10564 = vpack.c.b16 %v10460, %v10452
        %v10565 = vpack.c.b16 %v10461, %v10453
        %v10566 = vpack.c.b16 %v10462, %v10454
        %v10567 = vpack.c.b16 %v10463, %v10455
        %v10568 = vpack.c.b16 %v10464, %v10456
        %v10569 = vpack.c.b16 %v10465, %v10457
        %v10570 = vpack.c.b16 %v10466, %v10458
        %v10571 = vpack.c.b16 %v10475, %v10467
        %v10572 = vpack.c.b16 %v10476, %v10468
        %v10573 = vpack.c.b16 %v10477, %v10469
        %v10574 = vpack.c.b16 %v10478, %v10470
        %v10575 = vpack.c.b16 %v10479, %v10471
        %v10576 = vpack.c.b16 %v10480, %v10472
        %v10577 = vpack.c.b16 %v10481, %v10473
        %v10578 = vpack.c.b16 %v10482, %v10474
        %v10579 = vpack.c.b16 %v10491, %v10483
        %v10580 = vpack.c.b16 %v10492, %v10484
        %v10581 = vpack.c.b16 %v10493, %v10485
        %v10582 = vpack.c.b16 %v10494, %v10486
        %v10583 = vpack.c.b16 %v10495, %v10487
        %v10584 = vpack.c.b16 %v10496, %v10488
        %v10585 = vpack.c.b16 %v10497, %v10489
        %v10586 = vpack.c.b16 %v10498, %v10490
        %v10587 = vpack.c.b16 %v10507, %v10499
        %v10588 = vpack.c.b16 %v10508, %v10500
        %v10589 = vpack.c.b16 %v10509, %v10501
        %v10590 = vpack.c.b16 %v10510, %v10502
        %v10591 = vpack.c.b16 %v10511, %v10503
        %v10592 = vpack.c.b16 %v10512, %v10504
        %v10593 = vpack.c.b16 %v10513, %v10505
        %v10594 = vpack.c.b16 %v10514, %v10506
        %v10595 = vpack.c.b16 %v10523, %v10515
        %v10596 = vpack.c.b16 %v10524, %v10516
        %v10597 = vpack.c.b16 %v10525, %v10517
        %v10598 = vpack.c.b16 %v10526, %v10518
        %v10599 = vpack.c.b16 %v10527, %v10519
        %v10600 = vpack.c.b16 %v10528, %v10520
        %v10601 = vpack.c.b16 %v10529, %v10521
        %v10602 = vpack.c.b16 %v10530, %v10522
        %v10603 = vpack.c.b16 %v10539, %v10531
        %v10604 = vpack.c.b16 %v10540, %v10532
        %v10605 = vpack.c.b16 %v10541, %v10533
        %v10606 = vpack.c.b16 %v10542, %v10534
        %v10607 = vpack.c.b16 %v10543, %v10535
        %v10608 = vpack.c.b16 %v10544, %v10536
        %v10609 = vpack.c.b16 %v10545, %v10537
        %v10610 = vpack.c.b16 %v10546, %v10538
        %10675 = vmatpush.bf16.msra.mxu0 %v10603
        %10676 = vmatpush.bf16.msra.mxu0 %v10595
        %10677 = vmatpush.bf16.msra.mxu0 %v10587
        %10678 = vmatpush.bf16.msra.mxu0 %v10579
        %10679 = vmatpush.bf16.msra.mxu0 %v10571
        %10680 = vmatpush.bf16.msra.mxu0 %v10563
        %10681 = vmatpush.bf16.msra.mxu0 %v10555
        %10682 = vmatpush.bf16.msra.mxu0 %v10547
        %10683 = vmatmul.bf16.gmra.mxu0 %v10289
        %v10684 = vpop.f32.mrf.mxu0
        %v10685 = vadd.f32 0.0, %v10684
        %v10686 = vpop.f32.mrf.mxu0
        %10687 = vdwg.mxu0
        %10688 = vmatpush.bf16.msra.mxu0 %v10604
        %10689 = vmatpush.bf16.msra.mxu0 %v10596
        %10690 = vmatpush.bf16.msra.mxu0 %v10588
        %10691 = vmatpush.bf16.msra.mxu0 %v10580
        %10692 = vmatpush.bf16.msra.mxu0 %v10572
        %10693 = vmatpush.bf16.msra.mxu0 %v10564
        %10694 = vmatpush.bf16.msra.mxu0 %v10556
        %10695 = vmatpush.bf16.msra.mxu0 %v10548
        %10696 = vmatmul.bf16.gmra.mxu0 %v10289
        %v10697 = vpop.f32.mrf.mxu0
        %v10698 = vadd.f32 0.0, %v10697
        %v10699 = vpop.f32.mrf.mxu0
        %10700 = vdwg.mxu0
        %10701 = vmatpush.bf16.msra.mxu0 %v10605
        %10702 = vmatpush.bf16.msra.mxu0 %v10597
        %10703 = vmatpush.bf16.msra.mxu0 %v10589
        %10704 = vmatpush.bf16.msra.mxu0 %v10581
        %10705 = vmatpush.bf16.msra.mxu0 %v10573
        %10706 = vmatpush.bf16.msra.mxu0 %v10565
        %10707 = vmatpush.bf16.msra.mxu0 %v10557
        %10708 = vmatpush.bf16.msra.mxu0 %v10549
        %10709 = vmatmul.bf16.gmra.mxu0 %v10289
        %v10710 = vpop.f32.mrf.mxu0
        %v10711 = vadd.f32 0.0, %v10710
        %v10712 = vpop.f32.mrf.mxu0
        %10713 = vdwg.mxu0
        %10714 = vmatpush.bf16.msra.mxu0 %v10606
        %10715 = vmatpush.bf16.msra.mxu0 %v10598
        %10716 = vmatpush.bf16.msra.mxu0 %v10590
        %10717 = vmatpush.bf16.msra.mxu0 %v10582
        %10718 = vmatpush.bf16.msra.mxu0 %v10574
        %10719 = vmatpush.bf16.msra.mxu0 %v10566
        %10720 = vmatpush.bf16.msra.mxu0 %v10558
        %10721 = vmatpush.bf16.msra.mxu0 %v10550
        %10722 = vmatmul.bf16.gmra.mxu0 %v10289
        %v10723 = vpop.f32.mrf.mxu0
        %v10724 = vadd.f32 0.0, %v10723
        %v10725 = vpop.f32.mrf.mxu0
        %10726 = vdwg.mxu0
        %10727 = vmatpush.bf16.msra.mxu0 %v10607
        %10728 = vmatpush.bf16.msra.mxu0 %v10599
        %10729 = vmatpush.bf16.msra.mxu0 %v10591
        %10730 = vmatpush.bf16.msra.mxu0 %v10583
        %10731 = vmatpush.bf16.msra.mxu0 %v10575
        %10732 = vmatpush.bf16.msra.mxu0 %v10567
        %10733 = vmatpush.bf16.msra.mxu0 %v10559
        %10734 = vmatpush.bf16.msra.mxu0 %v10551
        %10735 = vmatmul.bf16.gmra.mxu0 %v10289
        %v10736 = vpop.f32.mrf.mxu0
        %v10737 = vadd.f32 0.0, %v10736
        %v10738 = vpop.f32.mrf.mxu0
        %10739 = vdwg.mxu0
        %10740 = vmatpush.bf16.msra.mxu0 %v10608
        %10741 = vmatpush.bf16.msra.mxu0 %v10600
        %10742 = vmatpush.bf16.msra.mxu0 %v10592
        %10743 = vmatpush.bf16.msra.mxu0 %v10584
        %10744 = vmatpush.bf16.msra.mxu0 %v10576
        %10745 = vmatpush.bf16.msra.mxu0 %v10568
        %10746 = vmatpush.bf16.msra.mxu0 %v10560
        %10747 = vmatpush.bf16.msra.mxu0 %v10552
        %10748 = vmatmul.bf16.gmra.mxu0 %v10289
        %v10749 = vpop.f32.mrf.mxu0
        %v10750 = vadd.f32 0.0, %v10749
        %v10751 = vpop.f32.mrf.mxu0
        %10752 = vdwg.mxu0
        %10753 = vmatpush.bf16.msra.mxu0 %v10609
        %10754 = vmatpush.bf16.msra.mxu0 %v10601
        %10755 = vmatpush.bf16.msra.mxu0 %v10593
        %10756 = vmatpush.bf16.msra.mxu0 %v10585
        %10757 = vmatpush.bf16.msra.mxu0 %v10577
        %10758 = vmatpush.bf16.msra.mxu0 %v10569
        %10759 = vmatpush.bf16.msra.mxu0 %v10561
        %10760 = vmatpush.bf16.msra.mxu0 %v10553
        %10761 = vmatmul.bf16.gmra.mxu0 %v10289
        %v10762 = vpop.f32.mrf.mxu0
        %v10763 = vadd.f32 0.0, %v10762
        %v10764 = vpop.f32.mrf.mxu0
        %10765 = vdwg.mxu0
        %10766 = vmatpush.bf16.msra.mxu0 %v10610
        %10767 = vmatpush.bf16.msra.mxu0 %v10602
        %10768 = vmatpush.bf16.msra.mxu0 %v10594
        %10769 = vmatpush.bf16.msra.mxu0 %v10586
        %10770 = vmatpush.bf16.msra.mxu0 %v10578
        %10771 = vmatpush.bf16.msra.mxu0 %v10570
        %10772 = vmatpush.bf16.msra.mxu0 %v10562
        %10773 = vmatpush.bf16.msra.mxu0 %v10554
        %10774 = vmatmul.bf16.gmra.mxu0 %v10289
        %v10775 = vpop.f32.mrf.mxu0
        %v10776 = vadd.f32 0.0, %v10775
        %v10777 = vpop.f32.mrf.mxu0
        %10778 = vdwg.mxu0
        %v10779 = vadd.f32 %v10277, %v10685
        %v10780 = vadd.f32 %v10278, %v10698
        %v10781 = vadd.f32 %v10279, %v10711
        %v10782 = vadd.f32 %v10280, %v10724
        %v10783 = vadd.f32 %v10281, %v10737
        %v10784 = vadd.f32 %v10282, %v10750
        %v10785 = vadd.f32 %v10283, %v10763
        %v10786 = vadd.f32 %v10284, %v10776
        %s10787 = sadd.s32 %s7860, 6
        %s10788 = smul.u32 %s10787, 4
        %s10789 = scalar_lea.vmem [#allocation2], %s10788
        %v10790 = vld [vmem:[%s10789] sm:$0xf]
        %v10791 = vpack.c.bf16 %v10790, %v10790
        %s10792 = scalar_lea.vmem %s405, 3072
        %v10793 = vld [vmem:[%s10792] sm:$0xff]
        %v10794 = vld [vmem:[%s10792 + $0x8] sm:$0xff]
        %v10795 = vld [vmem:[%s10792 + $0x10] sm:$0xff]
        %v10796 = vld [vmem:[%s10792 + $0x18] sm:$0xff]
        %v10797 = vld [vmem:[%s10792 + $0x20] sm:$0xff]
        %v10798 = vld [vmem:[%s10792 + $0x28] sm:$0xff]
        %v10799 = vld [vmem:[%s10792 + $0x30] sm:$0xff]
        %v10800 = vld [vmem:[%s10792 + $0x38] sm:$0xff]
        %v10801 = vld [vmem:[%s10792 + $0x40] sm:$0xff]
        %v10802 = vld [vmem:[%s10792 + $0x48] sm:$0xff]
        %v10803 = vld [vmem:[%s10792 + $0x50] sm:$0xff]
        %v10804 = vld [vmem:[%s10792 + $0x58] sm:$0xff]
        %v10805 = vld [vmem:[%s10792 + $0x60] sm:$0xff]
        %v10806 = vld [vmem:[%s10792 + $0x68] sm:$0xff]
        %v10807 = vld [vmem:[%s10792 + $0x70] sm:$0xff]
        %v10808 = vld [vmem:[%s10792 + $0x78] sm:$0xff]
        %v10809 = vld [vmem:[%s10792 + $0x80] sm:$0xff]
        %v10810 = vld [vmem:[%s10792 + $0x88] sm:$0xff]
        %v10811 = vld [vmem:[%s10792 + $0x90] sm:$0xff]
        %v10812 = vld [vmem:[%s10792 + $0x98] sm:$0xff]
        %v10813 = vld [vmem:[%s10792 + $0xa0] sm:$0xff]
        %v10814 = vld [vmem:[%s10792 + $0xa8] sm:$0xff]
        %v10815 = vld [vmem:[%s10792 + $0xb0] sm:$0xff]
        %v10816 = vld [vmem:[%s10792 + $0xb8] sm:$0xff]
        %v10817 = vld [vmem:[%s10792 + $0xc0] sm:$0xff]
        %v10818 = vld [vmem:[%s10792 + $0xc8] sm:$0xff]
        %v10819 = vld [vmem:[%s10792 + $0xd0] sm:$0xff]
        %v10820 = vld [vmem:[%s10792 + $0xd8] sm:$0xff]
        %v10821 = vld [vmem:[%s10792 + $0xe0] sm:$0xff]
        %v10822 = vld [vmem:[%s10792 + $0xe8] sm:$0xff]
        %v10823 = vld [vmem:[%s10792 + $0xf0] sm:$0xff]
        %v10824 = vld [vmem:[%s10792 + $0xf8] sm:$0xff]
        %v10825 = vld [vmem:[%s10792 + $0x100] sm:$0xff]
        %v10826 = vld [vmem:[%s10792 + $0x108] sm:$0xff]
        %v10827 = vld [vmem:[%s10792 + $0x110] sm:$0xff]
        %v10828 = vld [vmem:[%s10792 + $0x118] sm:$0xff]
        %v10829 = vld [vmem:[%s10792 + $0x120] sm:$0xff]
        %v10830 = vld [vmem:[%s10792 + $0x128] sm:$0xff]
        %v10831 = vld [vmem:[%s10792 + $0x130] sm:$0xff]
        %v10832 = vld [vmem:[%s10792 + $0x138] sm:$0xff]
        %v10833 = vld [vmem:[%s10792 + $0x140] sm:$0xff]
        %v10834 = vld [vmem:[%s10792 + $0x148] sm:$0xff]
        %v10835 = vld [vmem:[%s10792 + $0x150] sm:$0xff]
        %v10836 = vld [vmem:[%s10792 + $0x158] sm:$0xff]
        %v10837 = vld [vmem:[%s10792 + $0x160] sm:$0xff]
        %v10838 = vld [vmem:[%s10792 + $0x168] sm:$0xff]
        %v10839 = vld [vmem:[%s10792 + $0x170] sm:$0xff]
        %v10840 = vld [vmem:[%s10792 + $0x178] sm:$0xff]
        %v10841 = vld [vmem:[%s10792 + $0x180] sm:$0xff]
        %v10842 = vld [vmem:[%s10792 + $0x188] sm:$0xff]
        %v10843 = vld [vmem:[%s10792 + $0x190] sm:$0xff]
        %v10844 = vld [vmem:[%s10792 + $0x198] sm:$0xff]
        %v10845 = vld [vmem:[%s10792 + $0x1a0] sm:$0xff]
        %v10846 = vld [vmem:[%s10792 + $0x1a8] sm:$0xff]
        %v10847 = vld [vmem:[%s10792 + $0x1b0] sm:$0xff]
        %v10848 = vld [vmem:[%s10792 + $0x1b8] sm:$0xff]
        %v10849 = vld [vmem:[%s10792 + $0x1c0] sm:$0xff]
        %v10850 = vld [vmem:[%s10792 + $0x1c8] sm:$0xff]
        %v10851 = vld [vmem:[%s10792 + $0x1d0] sm:$0xff]
        %v10852 = vld [vmem:[%s10792 + $0x1d8] sm:$0xff]
        %v10853 = vld [vmem:[%s10792 + $0x1e0] sm:$0xff]
        %v10854 = vld [vmem:[%s10792 + $0x1e8] sm:$0xff]
        %v10855 = vld [vmem:[%s10792 + $0x1f0] sm:$0xff]
        %v10856 = vld [vmem:[%s10792 + $0x1f8] sm:$0xff]
        %v10921 = vunpack.c.l.b16 %v10793
        %v10922 = vunpack.c.h.b16 %v10793
        %v10923 = vunpack.c.l.b16 %v10794
        %v10924 = vunpack.c.h.b16 %v10794
        %v10925 = vunpack.c.l.b16 %v10795
        %v10926 = vunpack.c.h.b16 %v10795
        %v10927 = vunpack.c.l.b16 %v10796
        %v10928 = vunpack.c.h.b16 %v10796
        %v10929 = vunpack.c.l.b16 %v10797
        %v10930 = vunpack.c.h.b16 %v10797
        %v10931 = vunpack.c.l.b16 %v10798
        %v10932 = vunpack.c.h.b16 %v10798
        %v10933 = vunpack.c.l.b16 %v10799
        %v10934 = vunpack.c.h.b16 %v10799
        %v10935 = vunpack.c.l.b16 %v10800
        %v10936 = vunpack.c.h.b16 %v10800
        %v10937 = vunpack.c.l.b16 %v10801
        %v10938 = vunpack.c.h.b16 %v10801
        %v10939 = vunpack.c.l.b16 %v10802
        %v10940 = vunpack.c.h.b16 %v10802
        %v10941 = vunpack.c.l.b16 %v10803
        %v10942 = vunpack.c.h.b16 %v10803
        %v10943 = vunpack.c.l.b16 %v10804
        %v10944 = vunpack.c.h.b16 %v10804
        %v10945 = vunpack.c.l.b16 %v10805
        %v10946 = vunpack.c.h.b16 %v10805
        %v10947 = vunpack.c.l.b16 %v10806
        %v10948 = vunpack.c.h.b16 %v10806
        %v10949 = vunpack.c.l.b16 %v10807
        %v10950 = vunpack.c.h.b16 %v10807
        %v10951 = vunpack.c.l.b16 %v10808
        %v10952 = vunpack.c.h.b16 %v10808
        %v10953 = vunpack.c.l.b16 %v10809
        %v10954 = vunpack.c.h.b16 %v10809
        %v10955 = vunpack.c.l.b16 %v10810
        %v10956 = vunpack.c.h.b16 %v10810
        %v10957 = vunpack.c.l.b16 %v10811
        %v10958 = vunpack.c.h.b16 %v10811
        %v10959 = vunpack.c.l.b16 %v10812
        %v10960 = vunpack.c.h.b16 %v10812
        %v10961 = vunpack.c.l.b16 %v10813
        %v10962 = vunpack.c.h.b16 %v10813
        %v10963 = vunpack.c.l.b16 %v10814
        %v10964 = vunpack.c.h.b16 %v10814
        %v10965 = vunpack.c.l.b16 %v10815
        %v10966 = vunpack.c.h.b16 %v10815
        %v10967 = vunpack.c.l.b16 %v10816
        %v10968 = vunpack.c.h.b16 %v10816
        %v10969 = vunpack.c.l.b16 %v10817
        %v10970 = vunpack.c.h.b16 %v10817
        %v10971 = vunpack.c.l.b16 %v10818
        %v10972 = vunpack.c.h.b16 %v10818
        %v10973 = vunpack.c.l.b16 %v10819
        %v10974 = vunpack.c.h.b16 %v10819
        %v10975 = vunpack.c.l.b16 %v10820
        %v10976 = vunpack.c.h.b16 %v10820
        %v10977 = vunpack.c.l.b16 %v10821
        %v10978 = vunpack.c.h.b16 %v10821
        %v10979 = vunpack.c.l.b16 %v10822
        %v10980 = vunpack.c.h.b16 %v10822
        %v10981 = vunpack.c.l.b16 %v10823
        %v10982 = vunpack.c.h.b16 %v10823
        %v10983 = vunpack.c.l.b16 %v10824
        %v10984 = vunpack.c.h.b16 %v10824
        %v10985 = vunpack.c.l.b16 %v10825
        %v10986 = vunpack.c.h.b16 %v10825
        %v10987 = vunpack.c.l.b16 %v10826
        %v10988 = vunpack.c.h.b16 %v10826
        %v10989 = vunpack.c.l.b16 %v10827
        %v10990 = vunpack.c.h.b16 %v10827
        %v10991 = vunpack.c.l.b16 %v10828
        %v10992 = vunpack.c.h.b16 %v10828
        %v10993 = vunpack.c.l.b16 %v10829
        %v10994 = vunpack.c.h.b16 %v10829
        %v10995 = vunpack.c.l.b16 %v10830
        %v10996 = vunpack.c.h.b16 %v10830
        %v10997 = vunpack.c.l.b16 %v10831
        %v10998 = vunpack.c.h.b16 %v10831
        %v10999 = vunpack.c.l.b16 %v10832
        %v11000 = vunpack.c.h.b16 %v10832
        %v11001 = vunpack.c.l.b16 %v10833
        %v11002 = vunpack.c.h.b16 %v10833
        %v11003 = vunpack.c.l.b16 %v10834
        %v11004 = vunpack.c.h.b16 %v10834
        %v11005 = vunpack.c.l.b16 %v10835
        %v11006 = vunpack.c.h.b16 %v10835
        %v11007 = vunpack.c.l.b16 %v10836
        %v11008 = vunpack.c.h.b16 %v10836
        %v11009 = vunpack.c.l.b16 %v10837
        %v11010 = vunpack.c.h.b16 %v10837
        %v11011 = vunpack.c.l.b16 %v10838
        %v11012 = vunpack.c.h.b16 %v10838
        %v11013 = vunpack.c.l.b16 %v10839
        %v11014 = vunpack.c.h.b16 %v10839
        %v11015 = vunpack.c.l.b16 %v10840
        %v11016 = vunpack.c.h.b16 %v10840
        %v11017 = vunpack.c.l.b16 %v10841
        %v11018 = vunpack.c.h.b16 %v10841
        %v11019 = vunpack.c.l.b16 %v10842
        %v11020 = vunpack.c.h.b16 %v10842
        %v11021 = vunpack.c.l.b16 %v10843
        %v11022 = vunpack.c.h.b16 %v10843
        %v11023 = vunpack.c.l.b16 %v10844
        %v11024 = vunpack.c.h.b16 %v10844
        %v11025 = vunpack.c.l.b16 %v10845
        %v11026 = vunpack.c.h.b16 %v10845
        %v11027 = vunpack.c.l.b16 %v10846
        %v11028 = vunpack.c.h.b16 %v10846
        %v11029 = vunpack.c.l.b16 %v10847
        %v11030 = vunpack.c.h.b16 %v10847
        %v11031 = vunpack.c.l.b16 %v10848
        %v11032 = vunpack.c.h.b16 %v10848
        %v11033 = vunpack.c.l.b16 %v10849
        %v11034 = vunpack.c.h.b16 %v10849
        %v11035 = vunpack.c.l.b16 %v10850
        %v11036 = vunpack.c.h.b16 %v10850
        %v11037 = vunpack.c.l.b16 %v10851
        %v11038 = vunpack.c.h.b16 %v10851
        %v11039 = vunpack.c.l.b16 %v10852
        %v11040 = vunpack.c.h.b16 %v10852
        %v11041 = vunpack.c.l.b16 %v10853
        %v11042 = vunpack.c.h.b16 %v10853
        %v11043 = vunpack.c.l.b16 %v10854
        %v11044 = vunpack.c.h.b16 %v10854
        %v11045 = vunpack.c.l.b16 %v10855
        %v11046 = vunpack.c.h.b16 %v10855
        %v11047 = vunpack.c.l.b16 %v10856
        %v11048 = vunpack.c.h.b16 %v10856
        %v11049 = vpack.c.b16 %v10929, %v10921
        %v11050 = vpack.c.b16 %v10930, %v10922
        %v11051 = vpack.c.b16 %v10931, %v10923
        %v11052 = vpack.c.b16 %v10932, %v10924
        %v11053 = vpack.c.b16 %v10933, %v10925
        %v11054 = vpack.c.b16 %v10934, %v10926
        %v11055 = vpack.c.b16 %v10935, %v10927
        %v11056 = vpack.c.b16 %v10936, %v10928
        %v11057 = vpack.c.b16 %v10945, %v10937
        %v11058 = vpack.c.b16 %v10946, %v10938
        %v11059 = vpack.c.b16 %v10947, %v10939
        %v11060 = vpack.c.b16 %v10948, %v10940
        %v11061 = vpack.c.b16 %v10949, %v10941
        %v11062 = vpack.c.b16 %v10950, %v10942
        %v11063 = vpack.c.b16 %v10951, %v10943
        %v11064 = vpack.c.b16 %v10952, %v10944
        %v11065 = vpack.c.b16 %v10961, %v10953
        %v11066 = vpack.c.b16 %v10962, %v10954
        %v11067 = vpack.c.b16 %v10963, %v10955
        %v11068 = vpack.c.b16 %v10964, %v10956
        %v11069 = vpack.c.b16 %v10965, %v10957
        %v11070 = vpack.c.b16 %v10966, %v10958
        %v11071 = vpack.c.b16 %v10967, %v10959
        %v11072 = vpack.c.b16 %v10968, %v10960
        %v11073 = vpack.c.b16 %v10977, %v10969
        %v11074 = vpack.c.b16 %v10978, %v10970
        %v11075 = vpack.c.b16 %v10979, %v10971
        %v11076 = vpack.c.b16 %v10980, %v10972
        %v11077 = vpack.c.b16 %v10981, %v10973
        %v11078 = vpack.c.b16 %v10982, %v10974
        %v11079 = vpack.c.b16 %v10983, %v10975
        %v11080 = vpack.c.b16 %v10984, %v10976
        %v11081 = vpack.c.b16 %v10993, %v10985
        %v11082 = vpack.c.b16 %v10994, %v10986
        %v11083 = vpack.c.b16 %v10995, %v10987
        %v11084 = vpack.c.b16 %v10996, %v10988
        %v11085 = vpack.c.b16 %v10997, %v10989
        %v11086 = vpack.c.b16 %v10998, %v10990
        %v11087 = vpack.c.b16 %v10999, %v10991
        %v11088 = vpack.c.b16 %v11000, %v10992
        %v11089 = vpack.c.b16 %v11009, %v11001
        %v11090 = vpack.c.b16 %v11010, %v11002
        %v11091 = vpack.c.b16 %v11011, %v11003
        %v11092 = vpack.c.b16 %v11012, %v11004
        %v11093 = vpack.c.b16 %v11013, %v11005
        %v11094 = vpack.c.b16 %v11014, %v11006
        %v11095 = vpack.c.b16 %v11015, %v11007
        %v11096 = vpack.c.b16 %v11016, %v11008
        %v11097 = vpack.c.b16 %v11025, %v11017
        %v11098 = vpack.c.b16 %v11026, %v11018
        %v11099 = vpack.c.b16 %v11027, %v11019
        %v11100 = vpack.c.b16 %v11028, %v11020
        %v11101 = vpack.c.b16 %v11029, %v11021
        %v11102 = vpack.c.b16 %v11030, %v11022
        %v11103 = vpack.c.b16 %v11031, %v11023
        %v11104 = vpack.c.b16 %v11032, %v11024
        %v11105 = vpack.c.b16 %v11041, %v11033
        %v11106 = vpack.c.b16 %v11042, %v11034
        %v11107 = vpack.c.b16 %v11043, %v11035
        %v11108 = vpack.c.b16 %v11044, %v11036
        %v11109 = vpack.c.b16 %v11045, %v11037
        %v11110 = vpack.c.b16 %v11046, %v11038
        %v11111 = vpack.c.b16 %v11047, %v11039
        %v11112 = vpack.c.b16 %v11048, %v11040
        %11177 = vmatpush.bf16.msra.mxu0 %v11105
        %11178 = vmatpush.bf16.msra.mxu0 %v11097
        %11179 = vmatpush.bf16.msra.mxu0 %v11089
        %11180 = vmatpush.bf16.msra.mxu0 %v11081
        %11181 = vmatpush.bf16.msra.mxu0 %v11073
        %11182 = vmatpush.bf16.msra.mxu0 %v11065
        %11183 = vmatpush.bf16.msra.mxu0 %v11057
        %11184 = vmatpush.bf16.msra.mxu0 %v11049
        %11185 = vmatmul.bf16.gmra.mxu0 %v10791
        %v11186 = vpop.f32.mrf.mxu0
        %v11187 = vadd.f32 0.0, %v11186
        %v11188 = vpop.f32.mrf.mxu0
        %11189 = vdwg.mxu0
        %11190 = vmatpush.bf16.msra.mxu0 %v11106
        %11191 = vmatpush.bf16.msra.mxu0 %v11098
        %11192 = vmatpush.bf16.msra.mxu0 %v11090
        %11193 = vmatpush.bf16.msra.mxu0 %v11082
        %11194 = vmatpush.bf16.msra.mxu0 %v11074
        %11195 = vmatpush.bf16.msra.mxu0 %v11066
        %11196 = vmatpush.bf16.msra.mxu0 %v11058
        %11197 = vmatpush.bf16.msra.mxu0 %v11050
        %11198 = vmatmul.bf16.gmra.mxu0 %v10791
        %v11199 = vpop.f32.mrf.mxu0
        %v11200 = vadd.f32 0.0, %v11199
        %v11201 = vpop.f32.mrf.mxu0
        %11202 = vdwg.mxu0
        %11203 = vmatpush.bf16.msra.mxu0 %v11107
        %11204 = vmatpush.bf16.msra.mxu0 %v11099
        %11205 = vmatpush.bf16.msra.mxu0 %v11091
        %11206 = vmatpush.bf16.msra.mxu0 %v11083
        %11207 = vmatpush.bf16.msra.mxu0 %v11075
        %11208 = vmatpush.bf16.msra.mxu0 %v11067
        %11209 = vmatpush.bf16.msra.mxu0 %v11059
        %11210 = vmatpush.bf16.msra.mxu0 %v11051
        %11211 = vmatmul.bf16.gmra.mxu0 %v10791
        %v11212 = vpop.f32.mrf.mxu0
        %v11213 = vadd.f32 0.0, %v11212
        %v11214 = vpop.f32.mrf.mxu0
        %11215 = vdwg.mxu0
        %11216 = vmatpush.bf16.msra.mxu0 %v11108
        %11217 = vmatpush.bf16.msra.mxu0 %v11100
        %11218 = vmatpush.bf16.msra.mxu0 %v11092
        %11219 = vmatpush.bf16.msra.mxu0 %v11084
        %11220 = vmatpush.bf16.msra.mxu0 %v11076
        %11221 = vmatpush.bf16.msra.mxu0 %v11068
        %11222 = vmatpush.bf16.msra.mxu0 %v11060
        %11223 = vmatpush.bf16.msra.mxu0 %v11052
        %11224 = vmatmul.bf16.gmra.mxu0 %v10791
        %v11225 = vpop.f32.mrf.mxu0
        %v11226 = vadd.f32 0.0, %v11225
        %v11227 = vpop.f32.mrf.mxu0
        %11228 = vdwg.mxu0
        %11229 = vmatpush.bf16.msra.mxu0 %v11109
        %11230 = vmatpush.bf16.msra.mxu0 %v11101
        %11231 = vmatpush.bf16.msra.mxu0 %v11093
        %11232 = vmatpush.bf16.msra.mxu0 %v11085
        %11233 = vmatpush.bf16.msra.mxu0 %v11077
        %11234 = vmatpush.bf16.msra.mxu0 %v11069
        %11235 = vmatpush.bf16.msra.mxu0 %v11061
        %11236 = vmatpush.bf16.msra.mxu0 %v11053
        %11237 = vmatmul.bf16.gmra.mxu0 %v10791
        %v11238 = vpop.f32.mrf.mxu0
        %v11239 = vadd.f32 0.0, %v11238
        %v11240 = vpop.f32.mrf.mxu0
        %11241 = vdwg.mxu0
        %11242 = vmatpush.bf16.msra.mxu0 %v11110
        %11243 = vmatpush.bf16.msra.mxu0 %v11102
        %11244 = vmatpush.bf16.msra.mxu0 %v11094
        %11245 = vmatpush.bf16.msra.mxu0 %v11086
        %11246 = vmatpush.bf16.msra.mxu0 %v11078
        %11247 = vmatpush.bf16.msra.mxu0 %v11070
        %11248 = vmatpush.bf16.msra.mxu0 %v11062
        %11249 = vmatpush.bf16.msra.mxu0 %v11054
        %11250 = vmatmul.bf16.gmra.mxu0 %v10791
        %v11251 = vpop.f32.mrf.mxu0
        %v11252 = vadd.f32 0.0, %v11251
        %v11253 = vpop.f32.mrf.mxu0
        %11254 = vdwg.mxu0
        %11255 = vmatpush.bf16.msra.mxu0 %v11111
        %11256 = vmatpush.bf16.msra.mxu0 %v11103
        %11257 = vmatpush.bf16.msra.mxu0 %v11095
        %11258 = vmatpush.bf16.msra.mxu0 %v11087
        %11259 = vmatpush.bf16.msra.mxu0 %v11079
        %11260 = vmatpush.bf16.msra.mxu0 %v11071
        %11261 = vmatpush.bf16.msra.mxu0 %v11063
        %11262 = vmatpush.bf16.msra.mxu0 %v11055
        %11263 = vmatmul.bf16.gmra.mxu0 %v10791
        %v11264 = vpop.f32.mrf.mxu0
        %v11265 = vadd.f32 0.0, %v11264
        %v11266 = vpop.f32.mrf.mxu0
        %11267 = vdwg.mxu0
        %11268 = vmatpush.bf16.msra.mxu0 %v11112
        %11269 = vmatpush.bf16.msra.mxu0 %v11104
        %11270 = vmatpush.bf16.msra.mxu0 %v11096
        %11271 = vmatpush.bf16.msra.mxu0 %v11088
        %11272 = vmatpush.bf16.msra.mxu0 %v11080
        %11273 = vmatpush.bf16.msra.mxu0 %v11072
        %11274 = vmatpush.bf16.msra.mxu0 %v11064
        %11275 = vmatpush.bf16.msra.mxu0 %v11056
        %11276 = vmatmul.bf16.gmra.mxu0 %v10791
        %v11277 = vpop.f32.mrf.mxu0
        %v11278 = vadd.f32 0.0, %v11277
        %v11279 = vpop.f32.mrf.mxu0
        %11280 = vdwg.mxu0
        %v11281 = vadd.f32 %v10779, %v11187
        %v11282 = vadd.f32 %v10780, %v11200
        %v11283 = vadd.f32 %v10781, %v11213
        %v11284 = vadd.f32 %v10782, %v11226
        %v11285 = vadd.f32 %v10783, %v11239
        %v11286 = vadd.f32 %v10784, %v11252
        %v11287 = vadd.f32 %v10785, %v11265
        %v11288 = vadd.f32 %v10786, %v11278
        %v11289 = vld [vmem:[#allocation3] sm:$0xff]
        %v11290 = vld [vmem:[#allocation3 + $0x8] sm:$0xff]
        %v11291 = vld [vmem:[#allocation3 + $0x10] sm:$0xff]
        %v11292 = vld [vmem:[#allocation3 + $0x18] sm:$0xff]
        %v11301 = vrot.slane %v11282, 4
        %v11302 = vrot.slane %v11284, 4
        %v11303 = vrot.slane %v11286, 4
        %v11304 = vrot.slane %v11288, 4
        %vm11305 = vcmask 1043456
        %v11306 = vsel %vm11305, %v11281, %v11301
        %v11307 = vsel %vm11305, %v11283, %v11302
        %v11308 = vsel %vm11305, %v11285, %v11303
        %v11309 = vsel %vm11305, %v11287, %v11304
        %v11314 = vadd.f32 %v11289, %v11306
        %v11315 = vadd.f32 %v11290, %v11307
        %v11316 = vadd.f32 %v11291, %v11308
        %v11317 = vadd.f32 %v11292, %v11309
        %11318 = vst [vmem:[#allocation3] sm:$0xff] %v11314
        %11319 = vst [vmem:[#allocation3 + $0x8] sm:$0xff] %v11315
        %11320 = vst [vmem:[#allocation3 + $0x10] sm:$0xff] %v11316
        %11321 = vst [vmem:[#allocation3 + $0x18] sm:$0xff] %v11317
        %p11322 = scmp.eq.s32.totalorder %s26, 6
        // Predicated region
        $region73: #{discriminator_forward.1} parent=67 // pred_check
          %p11323 = pneg %p11322
        $region74: #{discriminator_forward.1} parent=67 // pred_check_branch
          %11325 = sbr.rel (%p11323) target = $region76
        $region75: #{discriminator_forward.1} parent=67 // pred_region
          %v11326 = vld [vmem:[#allocation3] sm:$0xff]
          %v11327 = vld [vmem:[#allocation3 + $0x8] sm:$0xff]
          %v11328 = vld [vmem:[#allocation3 + $0x10] sm:$0xff]
          %v11329 = vld [vmem:[#allocation3 + $0x18] sm:$0xff]
          %v11330 = vld [vmem:[%s7] sm:$0xff]
          %v11332 = vperm.slane %v11330, 0
          %v11333 = vperm.slane %v11330, 1
          %v11334 = vperm.slane %v11330, 2
          %v11335 = vperm.slane %v11330, 3
          %v11336 = vperm.slane %v11330, 4
          %v11337 = vperm.slane %v11330, 5
          %v11338 = vperm.slane %v11330, 6
          %v11339 = vperm.slane %v11330, 7
          %v11340 = vrot.slane %v11333, 4
          %v11341 = vrot.slane %v11335, 4
          %v11342 = vrot.slane %v11337, 4
          %v11343 = vrot.slane %v11339, 4
          %v11344 = vsel %vm11305, %v11332, %v11340
          %v11345 = vsel %vm11305, %v11334, %v11341
          %v11346 = vsel %vm11305, %v11336, %v11342
          %v11347 = vsel %vm11305, %v11338, %v11343
          %v11352 = vadd.f32 %v11326, %v11344
          %v11353 = vadd.f32 %v11327, %v11345
          %v11354 = vadd.f32 %v11328, %v11346
          %v11355 = vadd.f32 %v11329, %v11347
          %11360 = vst [vmem:[#allocation1] ss:$2 sm:$0xff] %v11352
          %s11361 = scalar_lea.vmem [#allocation1], 16
          %11362 = vst [vmem:[%s11361] ss:$2 sm:$0xff] %v11353
          %s11363 = scalar_lea.vmem [#allocation1], 32
          %11364 = vst [vmem:[%s11363] ss:$2 sm:$0xff] %v11354
          %s11365 = scalar_lea.vmem [#allocation1], 48
          %11366 = vst [vmem:[%s11365] ss:$2 sm:$0xff] %v11355
          %v11367 = vld.sshfl [vmem:[#allocation1] sm:$0xff pattern:$0x75316420]
          %v11368 = vld.sshfl [vmem:[#allocation1 + $0x8] sm:$0xff pattern:$0x75316420]
          %v11369 = vld.sshfl [vmem:[#allocation1 + $0x10] sm:$0xff pattern:$0x75316420]
          %v11370 = vld.sshfl [vmem:[#allocation1 + $0x18] sm:$0xff pattern:$0x75316420]
          %v11371 = vld.sshfl [vmem:[#allocation1 + $0x20] sm:$0xff pattern:$0x75316420]
          %v11372 = vld.sshfl [vmem:[#allocation1 + $0x28] sm:$0xff pattern:$0x75316420]
          %v11373 = vld.sshfl [vmem:[#allocation1 + $0x30] sm:$0xff pattern:$0x75316420]
          %v11374 = vld.sshfl [vmem:[#allocation1 + $0x38] sm:$0xff pattern:$0x75316420]
          %v11383 = vsel %vm11305, %v11367, 0.0
          %v11384 = vrot.slane %v11383, 4
          %v11385 = vadd.f32 %v11383, %v11384
          %v11386 = vrot.slane %v11385, 2
          %v11387 = vadd.f32 %v11385, %v11386
          %v11388 = vrot.slane %v11387, 1
          %v11389 = vadd.f32 %v11387, %v11388
          %v11390 = vsel %vm11305, %v11368, 0.0
          %v11391 = vrot.slane %v11390, 4
          %v11392 = vadd.f32 %v11390, %v11391
          %v11393 = vrot.slane %v11392, 2
          %v11394 = vadd.f32 %v11392, %v11393
          %v11395 = vrot.slane %v11394, 1
          %v11396 = vadd.f32 %v11394, %v11395
          %v11397 = vsel %vm11305, %v11369, 0.0
          %v11398 = vrot.slane %v11397, 4
          %v11399 = vadd.f32 %v11397, %v11398
          %v11400 = vrot.slane %v11399, 2
          %v11401 = vadd.f32 %v11399, %v11400
          %v11402 = vrot.slane %v11401, 1
          %v11403 = vadd.f32 %v11401, %v11402
          %v11404 = vsel %vm11305, %v11370, 0.0
          %v11405 = vrot.slane %v11404, 4
          %v11406 = vadd.f32 %v11404, %v11405
          %v11407 = vrot.slane %v11406, 2
          %v11408 = vadd.f32 %v11406, %v11407
          %v11409 = vrot.slane %v11408, 1
          %v11410 = vadd.f32 %v11408, %v11409
          %v11411 = vsel %vm11305, %v11371, 0.0
          %v11412 = vrot.slane %v11411, 4
          %v11413 = vadd.f32 %v11411, %v11412
          %v11414 = vrot.slane %v11413, 2
          %v11415 = vadd.f32 %v11413, %v11414
          %v11416 = vrot.slane %v11415, 1
          %v11417 = vadd.f32 %v11415, %v11416
          %v11418 = vsel %vm11305, %v11372, 0.0
          %v11419 = vrot.slane %v11418, 4
          %v11420 = vadd.f32 %v11418, %v11419
          %v11421 = vrot.slane %v11420, 2
          %v11422 = vadd.f32 %v11420, %v11421
          %v11423 = vrot.slane %v11422, 1
          %v11424 = vadd.f32 %v11422, %v11423
          %v11425 = vsel %vm11305, %v11373, 0.0
          %v11426 = vrot.slane %v11425, 4
          %v11427 = vadd.f32 %v11425, %v11426
          %v11428 = vrot.slane %v11427, 2
          %v11429 = vadd.f32 %v11427, %v11428
          %v11430 = vrot.slane %v11429, 1
          %v11431 = vadd.f32 %v11429, %v11430
          %v11432 = vsel %vm11305, %v11374, 0.0
          %v11433 = vrot.slane %v11432, 4
          %v11434 = vadd.f32 %v11432, %v11433
          %v11435 = vrot.slane %v11434, 2
          %v11436 = vadd.f32 %v11434, %v11435
          %v11437 = vrot.slane %v11436, 1
          %v11438 = vadd.f32 %v11436, %v11437
          %v11439 = vrcp.pop 4.0
          %v11440 = vmul.f32 4.0, %v11439
          %v11441 = vsub.f32 1.0, %v11440
          %v11442 = vmul.f32 %v11439, %v11441
          %v11443 = vadd.f32 %v11439, %v11442
          %vm11444 = vweird.f32 %v11439
          %v11445 = vsel %vm11444, %v11439, %v11443
          %v11446 = vmul.f32 %v11389, %v11445
          %v11447 = vmul.f32 %v11396, %v11445
          %v11448 = vmul.f32 %v11403, %v11445
          %v11449 = vmul.f32 %v11410, %v11445
          %v11450 = vmul.f32 %v11417, %v11445
          %v11451 = vmul.f32 %v11424, %v11445
          %v11452 = vmul.f32 %v11431, %v11445
          %v11453 = vmul.f32 %v11438, %v11445
          %v11462 = vrot.slane %v11447, 4
          %v11463 = vrot.slane %v11449, 4
          %v11464 = vrot.slane %v11451, 4
          %v11465 = vrot.slane %v11453, 4
          %v11466 = vsel %vm11305, %v11446, %v11462
          %v11467 = vsel %vm11305, %v11448, %v11463
          %v11468 = vsel %vm11305, %v11450, %v11464
          %v11469 = vsel %vm11305, %v11452, %v11465
          %v11474 = vsub.f32 %v11352, %v11466
          %v11475 = vsub.f32 %v11353, %v11467
          %v11476 = vsub.f32 %v11354, %v11468
          %v11477 = vsub.f32 %v11355, %v11469
          %v11478 = vmul.f32 %v11474, %v11474
          %v11479 = vmul.f32 %v11475, %v11475
          %v11480 = vmul.f32 %v11476, %v11476
          %v11481 = vmul.f32 %v11477, %v11477
          %11486 = vst [vmem:[#allocation1] ss:$2 sm:$0xff] %v11478
          %s11487 = scalar_lea.vmem [#allocation1], 16
          %11488 = vst [vmem:[%s11487] ss:$2 sm:$0xff] %v11479
          %s11489 = scalar_lea.vmem [#allocation1], 32
          %11490 = vst [vmem:[%s11489] ss:$2 sm:$0xff] %v11480
          %s11491 = scalar_lea.vmem [#allocation1], 48
          %11492 = vst [vmem:[%s11491] ss:$2 sm:$0xff] %v11481
          %v11493 = vld.sshfl [vmem:[#allocation1] sm:$0xff pattern:$0x75316420]
          %v11494 = vld.sshfl [vmem:[#allocation1 + $0x8] sm:$0xff pattern:$0x75316420]
          %v11495 = vld.sshfl [vmem:[#allocation1 + $0x10] sm:$0xff pattern:$0x75316420]
          %v11496 = vld.sshfl [vmem:[#allocation1 + $0x18] sm:$0xff pattern:$0x75316420]
          %v11497 = vld.sshfl [vmem:[#allocation1 + $0x20] sm:$0xff pattern:$0x75316420]
          %v11498 = vld.sshfl [vmem:[#allocation1 + $0x28] sm:$0xff pattern:$0x75316420]
          %v11499 = vld.sshfl [vmem:[#allocation1 + $0x30] sm:$0xff pattern:$0x75316420]
          %v11500 = vld.sshfl [vmem:[#allocation1 + $0x38] sm:$0xff pattern:$0x75316420]
          %v11509 = vsel %vm11305, %v11493, 0.0
          %v11510 = vrot.slane %v11509, 4
          %v11511 = vadd.f32 %v11509, %v11510
          %v11512 = vrot.slane %v11511, 2
          %v11513 = vadd.f32 %v11511, %v11512
          %v11514 = vrot.slane %v11513, 1
          %v11515 = vadd.f32 %v11513, %v11514
          %v11516 = vsel %vm11305, %v11494, 0.0
          %v11517 = vrot.slane %v11516, 4
          %v11518 = vadd.f32 %v11516, %v11517
          %v11519 = vrot.slane %v11518, 2
          %v11520 = vadd.f32 %v11518, %v11519
          %v11521 = vrot.slane %v11520, 1
          %v11522 = vadd.f32 %v11520, %v11521
          %v11523 = vsel %vm11305, %v11495, 0.0
          %v11524 = vrot.slane %v11523, 4
          %v11525 = vadd.f32 %v11523, %v11524
          %v11526 = vrot.slane %v11525, 2
          %v11527 = vadd.f32 %v11525, %v11526
          %v11528 = vrot.slane %v11527, 1
          %v11529 = vadd.f32 %v11527, %v11528
          %v11530 = vsel %vm11305, %v11496, 0.0
          %v11531 = vrot.slane %v11530, 4
          %v11532 = vadd.f32 %v11530, %v11531
          %v11533 = vrot.slane %v11532, 2
          %v11534 = vadd.f32 %v11532, %v11533
          %v11535 = vrot.slane %v11534, 1
          %v11536 = vadd.f32 %v11534, %v11535
          %v11537 = vsel %vm11305, %v11497, 0.0
          %v11538 = vrot.slane %v11537, 4
          %v11539 = vadd.f32 %v11537, %v11538
          %v11540 = vrot.slane %v11539, 2
          %v11541 = vadd.f32 %v11539, %v11540
          %v11542 = vrot.slane %v11541, 1
          %v11543 = vadd.f32 %v11541, %v11542
          %v11544 = vsel %vm11305, %v11498, 0.0
          %v11545 = vrot.slane %v11544, 4
          %v11546 = vadd.f32 %v11544, %v11545
          %v11547 = vrot.slane %v11546, 2
          %v11548 = vadd.f32 %v11546, %v11547
          %v11549 = vrot.slane %v11548, 1
          %v11550 = vadd.f32 %v11548, %v11549
          %v11551 = vsel %vm11305, %v11499, 0.0
          %v11552 = vrot.slane %v11551, 4
          %v11553 = vadd.f32 %v11551, %v11552
          %v11554 = vrot.slane %v11553, 2
          %v11555 = vadd.f32 %v11553, %v11554
          %v11556 = vrot.slane %v11555, 1
          %v11557 = vadd.f32 %v11555, %v11556
          %v11558 = vsel %vm11305, %v11500, 0.0
          %v11559 = vrot.slane %v11558, 4
          %v11560 = vadd.f32 %v11558, %v11559
          %v11561 = vrot.slane %v11560, 2
          %v11562 = vadd.f32 %v11560, %v11561
          %v11563 = vrot.slane %v11562, 1
          %v11564 = vadd.f32 %v11562, %v11563
          %v11565 = vmul.f32 %v11515, %v11445
          %v11566 = vmul.f32 %v11522, %v11445
          %v11567 = vmul.f32 %v11529, %v11445
          %v11568 = vmul.f32 %v11536, %v11445
          %v11569 = vmul.f32 %v11543, %v11445
          %v11570 = vmul.f32 %v11550, %v11445
          %v11571 = vmul.f32 %v11557, %v11445
          %v11572 = vmul.f32 %v11564, %v11445
          %v11573 = vadd.f32 %v11565, 1e-05
          %v11574 = vadd.f32 %v11566, 1e-05
          %v11575 = vadd.f32 %v11567, 1e-05
          %v11576 = vadd.f32 %v11568, 1e-05
          %v11577 = vadd.f32 %v11569, 1e-05
          %v11578 = vadd.f32 %v11570, 1e-05
          %v11579 = vadd.f32 %v11571, 1e-05
          %v11580 = vadd.f32 %v11572, 1e-05
          %v11581 = vrsqrt.pop %v11573
          %v11582 = vmul.f32 %v11581, %v11573
          %v11583 = vmul.f32 %v11582, %v11581
          %v11584 = vmul.f32 0.5, %v11583
          %v11585 = vsub.f32 1.5, %v11584
          %v11586 = vmul.f32 %v11581, %v11585
          %vm11587 = vweird.f32 %v11573
          %vm11588 = vweird.f32 %v11581
          %vm11589 = vmor %vm11587, %vm11588
          %v11590 = vsel %vm11589, %v11581, %v11586
          %v11591 = vrsqrt.pop %v11574
          %v11592 = vmul.f32 %v11591, %v11574
          %v11593 = vmul.f32 %v11592, %v11591
          %v11594 = vmul.f32 0.5, %v11593
          %v11595 = vsub.f32 1.5, %v11594
          %v11596 = vmul.f32 %v11591, %v11595
          %vm11597 = vweird.f32 %v11574
          %vm11598 = vweird.f32 %v11591
          %vm11599 = vmor %vm11597, %vm11598
          %v11600 = vsel %vm11599, %v11591, %v11596
          %v11601 = vrsqrt.pop %v11575
          %v11602 = vmul.f32 %v11601, %v11575
          %v11603 = vmul.f32 %v11602, %v11601
          %v11604 = vmul.f32 0.5, %v11603
          %v11605 = vsub.f32 1.5, %v11604
          %v11606 = vmul.f32 %v11601, %v11605
          %vm11607 = vweird.f32 %v11575
          %vm11608 = vweird.f32 %v11601
          %vm11609 = vmor %vm11607, %vm11608
          %v11610 = vsel %vm11609, %v11601, %v11606
          %v11611 = vrsqrt.pop %v11576
          %v11612 = vmul.f32 %v11611, %v11576
          %v11613 = vmul.f32 %v11612, %v11611
          %v11614 = vmul.f32 0.5, %v11613
          %v11615 = vsub.f32 1.5, %v11614
          %v11616 = vmul.f32 %v11611, %v11615
          %vm11617 = vweird.f32 %v11576
          %vm11618 = vweird.f32 %v11611
          %vm11619 = vmor %vm11617, %vm11618
          %v11620 = vsel %vm11619, %v11611, %v11616
          %v11621 = vrsqrt.pop %v11577
          %v11622 = vmul.f32 %v11621, %v11577
          %v11623 = vmul.f32 %v11622, %v11621
          %v11624 = vmul.f32 0.5, %v11623
          %v11625 = vsub.f32 1.5, %v11624
          %v11626 = vmul.f32 %v11621, %v11625
          %vm11627 = vweird.f32 %v11577
          %vm11628 = vweird.f32 %v11621
          %vm11629 = vmor %vm11627, %vm11628
          %v11630 = vsel %vm11629, %v11621, %v11626
          %v11631 = vrsqrt.pop %v11578
          %v11632 = vmul.f32 %v11631, %v11578
          %v11633 = vmul.f32 %v11632, %v11631
          %v11634 = vmul.f32 0.5, %v11633
          %v11635 = vsub.f32 1.5, %v11634
          %v11636 = vmul.f32 %v11631, %v11635
          %vm11637 = vweird.f32 %v11578
          %vm11638 = vweird.f32 %v11631
          %vm11639 = vmor %vm11637, %vm11638
          %v11640 = vsel %vm11639, %v11631, %v11636
          %v11641 = vrsqrt.pop %v11579
          %v11642 = vmul.f32 %v11641, %v11579
          %v11643 = vmul.f32 %v11642, %v11641
          %v11644 = vmul.f32 0.5, %v11643
          %v11645 = vsub.f32 1.5, %v11644
          %v11646 = vmul.f32 %v11641, %v11645
          %vm11647 = vweird.f32 %v11579
          %vm11648 = vweird.f32 %v11641
          %vm11649 = vmor %vm11647, %vm11648
          %v11650 = vsel %vm11649, %v11641, %v11646
          %v11651 = vrsqrt.pop %v11580
          %v11652 = vmul.f32 %v11651, %v11580
          %v11653 = vmul.f32 %v11652, %v11651
          %v11654 = vmul.f32 0.5, %v11653
          %v11655 = vsub.f32 1.5, %v11654
          %v11656 = vmul.f32 %v11651, %v11655
          %vm11657 = vweird.f32 %v11580
          %vm11658 = vweird.f32 %v11651
          %vm11659 = vmor %vm11657, %vm11658
          %v11660 = vsel %vm11659, %v11651, %v11656
          %v11669 = vrot.slane %v11600, 4
          %v11670 = vrot.slane %v11620, 4
          %v11671 = vrot.slane %v11640, 4
          %v11672 = vrot.slane %v11660, 4
          %v11673 = vsel %vm11305, %v11590, %v11669
          %v11674 = vsel %vm11305, %v11610, %v11670
          %v11675 = vsel %vm11305, %v11630, %v11671
          %v11676 = vsel %vm11305, %v11650, %v11672
          %v11681 = vmul.f32 %v11474, %v11673
          %v11682 = vmul.f32 %v11475, %v11674
          %v11683 = vmul.f32 %v11476, %v11675
          %v11684 = vmul.f32 %v11477, %v11676
          %v11685 = vld [vmem:[%s8] sm:$0xff]
          %v11687 = vperm.slane %v11685, 0
          %v11688 = vperm.slane %v11685, 1
          %v11689 = vperm.slane %v11685, 2
          %v11690 = vperm.slane %v11685, 3
          %v11691 = vperm.slane %v11685, 4
          %v11692 = vperm.slane %v11685, 5
          %v11693 = vperm.slane %v11685, 6
          %v11694 = vperm.slane %v11685, 7
          %v11695 = vrot.slane %v11688, 4
          %v11696 = vrot.slane %v11690, 4
          %v11697 = vrot.slane %v11692, 4
          %v11698 = vrot.slane %v11694, 4
          %v11699 = vsel %vm11305, %v11687, %v11695
          %v11700 = vsel %vm11305, %v11689, %v11696
          %v11701 = vsel %vm11305, %v11691, %v11697
          %v11702 = vsel %vm11305, %v11693, %v11698
          %v11707 = vmul.f32 %v11681, %v11699
          %v11708 = vmul.f32 %v11682, %v11700
          %v11709 = vmul.f32 %v11683, %v11701
          %v11710 = vmul.f32 %v11684, %v11702
          %v11711 = vld [vmem:[%s9] sm:$0xff]
          %v11713 = vperm.slane %v11711, 0
          %v11714 = vperm.slane %v11711, 1
          %v11715 = vperm.slane %v11711, 2
          %v11716 = vperm.slane %v11711, 3
          %v11717 = vperm.slane %v11711, 4
          %v11718 = vperm.slane %v11711, 5
          %v11719 = vperm.slane %v11711, 6
          %v11720 = vperm.slane %v11711, 7
          %v11721 = vrot.slane %v11714, 4
          %v11722 = vrot.slane %v11716, 4
          %v11723 = vrot.slane %v11718, 4
          %v11724 = vrot.slane %v11720, 4
          %v11725 = vsel %vm11305, %v11713, %v11721
          %v11726 = vsel %vm11305, %v11715, %v11722
          %v11727 = vsel %vm11305, %v11717, %v11723
          %v11728 = vsel %vm11305, %v11719, %v11724
          %v11733 = vadd.f32 %v11707, %v11725
          %v11734 = vadd.f32 %v11708, %v11726
          %v11735 = vadd.f32 %v11709, %v11727
          %v11736 = vadd.f32 %v11710, %v11728
          %v11737 = vmul.f32 %v11733, 0.2
          %v11738 = vmul.f32 %v11734, 0.2
          %v11739 = vmul.f32 %v11735, 0.2
          %v11740 = vmul.f32 %v11736, 0.2
          %v11741 = vmax.f32 %v11733, %v11737
          %v11742 = vmax.f32 %v11734, %v11738
          %v11743 = vmax.f32 %v11735, %v11739
          %v11744 = vmax.f32 %v11736, %v11740
          %v11745 = vld [vmem:[%s10] sm:$0xff]
          %v11747 = vperm.slane %v11745, 0
          %v11748 = vperm.slane %v11745, 1
          %v11749 = vperm.slane %v11745, 2
          %v11750 = vperm.slane %v11745, 3
          %v11751 = vperm.slane %v11745, 4
          %v11752 = vperm.slane %v11745, 5
          %v11753 = vperm.slane %v11745, 6
          %v11754 = vperm.slane %v11745, 7
          %v11755 = vrot.slane %v11748, 4
          %v11756 = vrot.slane %v11750, 4
          %v11757 = vrot.slane %v11752, 4
          %v11758 = vrot.slane %v11754, 4
          %v11759 = vsel %vm11305, %v11747, %v11755
          %v11760 = vsel %vm11305, %v11749, %v11756
          %v11761 = vsel %vm11305, %v11751, %v11757
          %v11762 = vsel %vm11305, %v11753, %v11758
          %v11767 = vmul.f32 %v11741, %v11759
          %v11768 = vmul.f32 %v11742, %v11760
          %v11769 = vmul.f32 %v11743, %v11761
          %v11770 = vmul.f32 %v11744, %v11762
          %11775 = vst [vmem:[#allocation1] ss:$2 sm:$0xff] %v11767
          %s11776 = scalar_lea.vmem [#allocation1], 16
          %11777 = vst [vmem:[%s11776] ss:$2 sm:$0xff] %v11768
          %s11778 = scalar_lea.vmem [#allocation1], 32
          %11779 = vst [vmem:[%s11778] ss:$2 sm:$0xff] %v11769
          %s11780 = scalar_lea.vmem [#allocation1], 48
          %11781 = vst [vmem:[%s11780] ss:$2 sm:$0xff] %v11770
          %v11782 = vld.sshfl [vmem:[#allocation1] sm:$0xff pattern:$0x75316420]
          %v11783 = vld.sshfl [vmem:[#allocation1 + $0x8] sm:$0xff pattern:$0x75316420]
          %v11784 = vld.sshfl [vmem:[#allocation1 + $0x10] sm:$0xff pattern:$0x75316420]
          %v11785 = vld.sshfl [vmem:[#allocation1 + $0x18] sm:$0xff pattern:$0x75316420]
          %v11786 = vld.sshfl [vmem:[#allocation1 + $0x20] sm:$0xff pattern:$0x75316420]
          %v11787 = vld.sshfl [vmem:[#allocation1 + $0x28] sm:$0xff pattern:$0x75316420]
          %v11788 = vld.sshfl [vmem:[#allocation1 + $0x30] sm:$0xff pattern:$0x75316420]
          %v11789 = vld.sshfl [vmem:[#allocation1 + $0x38] sm:$0xff pattern:$0x75316420]
          %v11798 = vsel %vm11305, %v11782, 0.0
          %v11799 = vsel %vm11305, %v11783, 0.0
          %v11800 = vadd.f32 %v11798, %v11799
          %v11801 = vsel %vm11305, %v11784, 0.0
          %v11802 = vadd.f32 %v11800, %v11801
          %v11803 = vsel %vm11305, %v11785, 0.0
          %v11804 = vadd.f32 %v11802, %v11803
          %v11805 = vsel %vm11305, %v11786, 0.0
          %v11806 = vadd.f32 %v11804, %v11805
          %v11807 = vsel %vm11305, %v11787, 0.0
          %v11808 = vadd.f32 %v11806, %v11807
          %v11809 = vsel %vm11305, %v11788, 0.0
          %v11810 = vadd.f32 %v11808, %v11809
          %v11811 = vsel %vm11305, %v11789, 0.0
          %v11812 = vadd.f32 %v11810, %v11811
          %11813 = vadd.xlane.f32.xlu0 %v11812
          %v11814 = vpop.xlane.xlu0 %11813
          %v11815 = vld [vmem:[#allocation4] sm:$0x1]
          %v11817 = vperm.slane %v11815, 0
          %v11819 = vadd.f32 %v11814, %v11817
          %vm11820 = vcmask 3072
          %v11821 = vsel %vm11820, %v11819, 0.0
          %v11822 = vrot.slane %v11821, 4
          %v11823 = vadd.f32 %v11821, %v11822
          %v11824 = vrot.slane %v11823, 2
          %v11825 = vadd.f32 %v11823, %v11824
          %v11826 = vrot.slane %v11825, 1
          %v11827 = vadd.f32 %v11825, %v11826
          %v11828 = vmul.f32 %v11827, %v11445
          %vm11829 = vcmask 0
          %11830 = vst.msk [vmem:[#allocation5] sm:$0x1] %vm11829, %v11828
        $region76: #{discriminator_forward.1} parent=67 // pred_fallthru
          _
        // Predicated region
        $region77: #{discriminator_forward.1} parent=67 // pred_check
          %p11831 = pneg %p296
        $region78: #{discriminator_forward.1} parent=67 // pred_check_branch
          %11833 = sbr.rel (%p11831) target = $region80
        $region79: #{discriminator_forward.1} parent=67 // pred_region
          %11835 = vsyncadd [#allocation6], 0
          %s11837 = sshll.u32 [#allocation5], 4
          %s11838 = int_to_ptr.vmem [resolvable:$true] %s11837
          %s11839 = sshll.u32 %s12, 4
          %s11840 = int_to_ptr.hbm [resolvable:$true] %s11839
          %11842 = dma.vmem_to_hbm [thread:$0]  %s11838, 16, %s11840, [#allocation6]
        $region80: #{discriminator_forward.1} parent=67 // pred_fallthru
          _
        // Predicated region
        $region81: #{discriminator_forward.1} parent=67 // pred_check
          %p11843 = pneg %p296
        $region82: #{discriminator_forward.1} parent=67 // pred_check_branch
          %11845 = sbr.rel (%p11843) target = $region84
        $region83: #{discriminator_forward.1} parent=67 // pred_region
          %11847 = dma.done [#allocation6], 16
        $region84: #{discriminator_forward.1} parent=67 // pred_fallthru
          _
      $region68: #{discriminator_forward.1} parent=5 // pred_fallthru
        _
      %p11848 = scmp.le.s32.totalorder 2, %s21
      // Predicated region
      $region85: #{discriminator_forward.1} parent=5 // pred_check
        %p11849 = pneg %p11848
      $region86: #{discriminator_forward.1} parent=5 // pred_check_branch
        %11851 = sbr.rel (%p11849) target = $region88
      $region87: #{discriminator_forward.1} parent=5 // pred_region
        %s11852 = ssub.s32 %s21, 2
      $region88: #{discriminator_forward.1} parent=5 // pred_fallthru
        _
    $region6: #{discriminator_forward.1} parent=1 // loop_footer
      %s25 = sadd.s32 1, %s21
    $region7: #{discriminator_forward.1} parent=1 // loop_footer_branch
      %20 = sbr.rel target = $region3
    $region8: #{discriminator_forward.1} parent=1 // loop_exit
      _
    %11853 = vsyncpa [#allocation6], 1
    %s11854 = scalar_lea.sflag [#allocation6], 1
    %11855 = vsyncpa %s11854, 1

</llo_original>
